<compile_context>
chip_gen: v7x
topology: tpu7x:2x2x1
jax: 0.10.0
libtpu: 0.0.40
codegen_flags: <defaults>
</compile_context>

<pallas_src>
import functools

import jax
import jax.numpy as jnp
from jax import lax
from jax.experimental import pallas as pl
from jax.experimental.pallas import tpu as pltpu

LN_EPS = 1e-5
NEG_INF = -1e9


def _layernorm(x, gamma, beta):
    mean = jnp.mean(x, axis=-1, keepdims=True)
    var = jnp.mean(jnp.square(x - mean), axis=-1, keepdims=True)
    return (x - mean) * lax.rsqrt(var + LN_EPS) * gamma + beta


def encoder_layer_kernel(xq_ref, xkv_ref, mask_ref,
                         wq_ref, bq_ref, wk_ref, bk_ref, wv_ref, bv_ref,
                         wo_ref, bo_ref, g1_ref, be1_ref,
                         w1_ref, b1_ref, w2_ref, b2_ref, g2_ref, be2_ref,
                         o_ref, k_scr, v_scr, ctx_scr,
                         *, num_head, compute_dtype, head_batched):
    cd = compute_dtype
    xq = xq_ref[0]                       # (tq, E) f32: query rows + residual
    valid = mask_ref[0] != 0             # (tq, S) bool (int8 mask, no float ==)

    tq, E = xq.shape
    S = xkv_ref.shape[1]
    H = num_head
    dh = E // H

    # K/V projections run once per batch row: the q-tile axis is "arbitrary"
    # (sequential per batch row), so the cached scratch stays valid for all
    # subsequent q-tiles of this row.
    @pl.when(pl.program_id(1) == 0)
    def _project_kv():
        xkv = xkv_ref[0]                 # (S, E) bf16
        k = jnp.dot(xkv, wk_ref[...],
                    preferred_element_type=jnp.float32) + bk_ref[...]
        v = jnp.dot(xkv, wv_ref[...],
                    preferred_element_type=jnp.float32) + bv_ref[...]
        k_scr[...] = k.astype(cd)
        v_scr[...] = v.astype(cd)

    # Q projection; 1/sqrt(dh) is pre-folded into wq/bq by the wrapper.
    q = jnp.dot(xq.astype(cd), wq_ref[...],
                preferred_element_type=jnp.float32) + bq_ref[...]

    if head_batched:
        # Head-batched attention: one relayout instead of 3*H lane-crossing
        # slices + H masked stores.
        q3 = q.astype(cd).reshape(tq, H, dh)           # (tq, H, dh)
        k3 = k_scr[...].reshape(S, H, dh)              # (S,  H, dh)
        v3 = v_scr[...].reshape(S, H, dh)              # (S,  H, dh)
        s = jnp.einsum("qhd,khd->hqk", q3, k3,
                       preferred_element_type=jnp.float32)       # (H, tq, S)
        s = jnp.where(valid[None], s, NEG_INF)
        s = s - jnp.max(s, axis=-1, keepdims=True)
        p = jnp.exp(s)
        p = p * pl.reciprocal(jnp.sum(p, axis=-1, keepdims=True), approx=True)
        ctx = jnp.einsum("hqk,khd->qhd", p.astype(cd), v3,
                         preferred_element_type=jnp.float32)     # (tq, H, dh)
        ctx = ctx.astype(cd).reshape(tq, E)
    else:
        # Fallback per-head loop (always lowers; lane-misaligned slices when
        # dh < 128).  TODO(synk): flash-style K/V streaming for very long S.
        k_full = k_scr[...]
        v_full = v_scr[...]
        for h in range(H):
            sl = slice(h * dh, (h + 1) * dh)
            qh = q[:, sl].astype(cd)
            kh = k_full[:, sl]
            vh = v_full[:, sl]
            s = lax.dot_general(qh, kh, (((1,), (1,)), ((), ())),
                                preferred_element_type=jnp.float32)   # (tq, S)
            s = jnp.where(valid, s, NEG_INF)
            s = s - jnp.max(s, axis=-1, keepdims=True)
            p = jnp.exp(s)
            p = p * pl.reciprocal(jnp.sum(p, axis=-1, keepdims=True),
                                  approx=True)
            ctx_scr[:, sl] = jnp.dot(p.astype(cd), vh,
                                     preferred_element_type=jnp.float32
                                     ).astype(cd)
        ctx = ctx_scr[...]

    mha = jnp.dot(ctx, wo_ref[...],
                  preferred_element_type=jnp.float32) + bo_ref[...]
    # dropout1: identity in inference mode.
    # TODO(synk): training-mode dropout (p=0.1) not implemented in-kernel.
    an1 = _layernorm(mha + xq, g1_ref[...], be1_ref[...])

    # FeedForward: Linear -> ReLU -> (dropout) -> Linear.
    # TODO(synk): stream w1/w2 over F-chunks (emit_pipeline) for E*F too large
    # to keep resident on v7x.
    hdn = jnp.dot(an1.astype(cd), w1_ref[...],
                  preferred_element_type=jnp.float32) + b1_ref[...]
    hdn = jnp.maximum(hdn, 0.0)
    ffn = jnp.dot(hdn.astype(cd), w2_ref[...],
                  preferred_element_type=jnp.float32) + b2_ref[...]
    # dropout2: identity in inference mode.
    out = _layernorm(ffn + an1, g2_ref[...], be2_ref[...])

    o_ref[0] = out.astype(o_ref.dtype)


def _vmem_capacity_bytes(default=64 * 2**20):
    # Generation-aware VMEM budget (v5e/v6e: 128 MiB, v7x: 64 MiB).
    try:
        cap = getattr(pltpu.get_tpu_info(), "vmem_capacity_bytes", None)
        if cap:
            return int(cap)
    except Exception:
        pass
    return default


def _vmem_limit_bytes(S, E, F, tq, H, cd_size, out_size, weight_bufs, cap):
    f32 = 4
    # Per-step IO tiles (double-buffered) + the per-row bf16 K/V source slab.
    io = 2 * (tq * E * f32 + tq * S + tq * E * out_size) + 2 * S * E * cd_size
    # Constant weight/bias blocks (single- or double-buffered).
    weights = weight_bufs * cd_size * (4 * E * E + 2 * E * F)
    small = weight_bufs * f32 * (8 * E + 2 * F)
    # Persistent K/V cache + per-head context slab.
    scratch = (2 * S * E + tq * E) * cd_size
    # f32 intermediates: K/V projection, residuals/LN temps, FFN hidden,
    # head-batched scores/probs.
    interm = f32 * (2 * S * E + 4 * tq * E + 2 * tq * F + 3 * H * tq * S)
    est = io + weights + small + scratch + interm
    ceiling = max(32 * 2**20, cap - 8 * 2**20)   # real capacity minus headroom
    return int(min(ceiling, max(32 * 2**20, 2 * est)))


def encoder_layer(x, mask, params, num_head, *, q_block=None,
                  compute_dtype=jnp.bfloat16, out_dtype=jnp.float32,
                  interpret=False):
    B, S, E = x.shape
    F = params["w1"].shape[0]
    assert E % num_head == 0
    dh = E // num_head
    cd = jnp.dtype(compute_dtype)
    out_dt = jnp.dtype(out_dtype)
    cap = _vmem_capacity_bytes()

    if q_block is None:
        # Smaller tiles on 64 MiB-VMEM chips (v7x); 512 on v5e/v6e (128 MiB).
        max_tq = 512 if cap >= 96 * 2**20 else 256
        q_block = S if S <= max_tq else max_tq
    assert S % q_block == 0, "q_block must divide S"
    nq = S // q_block

    scale = 1.0 / float(dh) ** 0.5

    def w_t(w):   # PyTorch (out, in) -> (in, out) in compute dtype: no in-kernel .T
        return jnp.asarray(w).T.astype(cd)

    def vec(v):   # biases / LN params stay f32, shape (1, dim)
        return jnp.asarray(v).reshape(1, -1).astype(jnp.float32)

    ordered = [
        w_t(params["wq"] * scale), vec(params["bq"] * scale),   # fold 1/sqrt(dh)
        w_t(params["wk"]), vec(params["bk"]),
        w_t(params["wv"]), vec(params["bv"]),
        w_t(params["wo"]), vec(params["bo"]),
        vec(params["gamma1"]), vec(params["beta1"]),
        w_t(params["w1"]), vec(params["b1"]),
        w_t(params["w2"]), vec(params["b2"]),
        vec(params["gamma2"]), vec(params["beta2"]),
    ]

    mask_i8 = (mask != 0).astype(jnp.int8)   # 4x less DMA than f32, exact compare
    xq_f32 = x.astype(jnp.float32)           # query tiles: f32 residual/LN path
    xkv_cd = x.astype(cd)                    # K/V source: bf16 halves the big DMA

    def run(single_buffer_consts, head_batched):
        def const_spec(a):
            nd = a.ndim
            idx = lambda b, qi, _nd=nd: (0,) * _nd
            if single_buffer_consts:
                # Constant index_map -> double buffering buys nothing; halve the
                # resident weight footprint (critical on v7x's 64 MiB VMEM).
                return pl.BlockSpec(a.shape, idx,
                                    pipeline_mode=pl.Buffered(buffer_count=1))
            return pl.BlockSpec(a.shape, idx)

        in_specs = [
            pl.BlockSpec((1, q_block, E), lambda b, qi: (b, qi, 0)),   # query tile
            pl.BlockSpec((1, S, E), lambda b, qi: (b, 0, 0)),          # K/V source
            pl.BlockSpec((1, q_block, S), lambda b, qi: (b, qi, 0)),   # int8 mask
        ] + [const_spec(a) for a in ordered]

        kernel = functools.partial(encoder_layer_kernel, num_head=num_head,
                                   compute_dtype=cd, head_batched=head_batched)

        return pl.pallas_call(
            kernel,
            out_shape=jax.ShapeDtypeStruct((B, S, E), out_dt),
            grid=(B, nq),
            in_specs=in_specs,
            out_specs=pl.BlockSpec((1, q_block, E), lambda b, qi: (b, qi, 0)),
            scratch_shapes=[pltpu.VMEM((S, E), cd),         # cached K (per row)
                            pltpu.VMEM((S, E), cd),         # cached V (per row)
                            pltpu.VMEM((q_block, E), cd)],  # ctx slab (fallback)
            compiler_params=pltpu.CompilerParams(
                # batch axis parallel (megacore); q-tile axis arbitrary so the
                # cached K/V scratch stays valid across q-tiles of one row.
                dimension_semantics=("parallel", "arbitrary"),
                vmem_limit_bytes=_vmem_limit_bytes(
                    S, E, F, q_block, num_head, cd.itemsize, out_dt.itemsize,
                    1 if single_buffer_consts else 2, cap)),
            interpret=interpret,
        )(xq_f32, xkv_cd, mask_i8, *ordered)

    # Preferred config first; fall back to always-lowerable constructs if this
    # jax/Mosaic build rejects pl.Buffered(1) or the head-batched reshape path.
    configs = ((True, True), (False, True), (False, False))
    for i, (single_buf, batched) in enumerate(configs):
        try:
            return run(single_buf, batched)
        except Exception:
            if i == len(configs) - 1:
                raise


# ---------------- pure-JAX reference (for sanity check) ----------------
def encoder_layer_ref(x, mask, params, num_head, compute_dtype=jnp.float32):
    B, S, E = x.shape
    dh = E // num_head
    cd = jnp.dtype(compute_dtype)

    def lin(z, w, b):
        return jnp.dot(z.astype(cd), w.T.astype(cd),
                       preferred_element_type=jnp.float32) + b

    q = lin(x, params["wq"], params["bq"][0]) * (1.0 / float(dh) ** 0.5)
    k = lin(x, params["wk"], params["bk"][0])
    v = lin(x, params["wv"], params["bv"][0])
    q = q.reshape(B, S, num_head, dh).transpose(0, 2, 1, 3).astype(cd)
    k = k.reshape(B, S, num_head, dh).transpose(0, 2, 1, 3).astype(cd)
    v = v.reshape(B, S, num_head, dh).transpose(0, 2, 1, 3).astype(cd)
    s = jnp.einsum("bhqd,bhkd->bhqk", q, k, preferred_element_type=jnp.float32)
    s = jnp.where(mask[:, None] != 0, s, NEG_INF)
    p = jax.nn.softmax(s, axis=-1)
    ctx = jnp.einsum("bhqk,bhkd->bhqd", p.astype(cd), v,
                     preferred_element_type=jnp.float32)
    ctx = ctx.transpose(0, 2, 1, 3).reshape(B, S, E)
    mha = lin(ctx, params["wo"], params["bo"][0])
    an1 = _layernorm(mha + x, params["gamma1"][0], params["beta1"][0])
    hdn = jnp.maximum(lin(an1, params["w1"], params["b1"][0]), 0.0)
    ffn = lin(hdn, params["w2"], params["b2"][0])
    return _layernorm(ffn + an1, params["gamma2"][0], params["beta2"][0])


def init_params(key, emb_dim, ffn_hidden_dim):
    keys = jax.random.split(key, 8)
    s = 0.05
    return {
        "wq": s * jax.random.normal(keys[0], (emb_dim, emb_dim), jnp.float32),
        "bq": jnp.zeros((1, emb_dim), jnp.float32),
        "wk": s * jax.random.normal(keys[1], (emb_dim, emb_dim), jnp.float32),
        "bk": jnp.zeros((1, emb_dim), jnp.float32),
        "wv": s * jax.random.normal(keys[2], (emb_dim, emb_dim), jnp.float32),
        "bv": jnp.zeros((1, emb_dim), jnp.float32),
        "wo": s * jax.random.normal(keys[3], (emb_dim, emb_dim), jnp.float32),
        "bo": s * jax.random.normal(keys[4], (1, emb_dim), jnp.float32),
        "gamma1": jnp.ones((1, emb_dim), jnp.float32),
        "beta1": jnp.zeros((1, emb_dim), jnp.float32),
        "w1": s * jax.random.normal(keys[5], (ffn_hidden_dim, emb_dim), jnp.float32),
        "b1": s * jax.random.normal(keys[6], (1, ffn_hidden_dim), jnp.float32),
        "w2": s * jax.random.normal(keys[7], (emb_dim, ffn_hidden_dim), jnp.float32),
        "b2": jnp.zeros((1, emb_dim), jnp.float32),
        "gamma2": jnp.ones((1, emb_dim), jnp.float32),
        "beta2": jnp.zeros((1, emb_dim), jnp.float32),
    }


if __name__ == "__main__":
    # Small but lane-dense shapes (E, FFN multiples of 128; S multiple of 8).
    B, S, E, H, FFN = 2, 16, 128, 4, 256
    key = jax.random.PRNGKey(0)
    kx, kp = jax.random.split(key)
    x = jax.random.normal(kx, (B, S, E), jnp.float32)
    # Padding-style mask: last 3 key positions are masked out for every query.
    key_valid = (jnp.arange(S) < S - 3).astype(jnp.float32)
    mask = jnp.broadcast_to(key_valid[None, None, :], (B, S, S))
    params = init_params(kp, E, FFN)

    out = jax.block_until_ready(encoder_layer(x, mask, params, num_head=H))

    ref_bf16 = encoder_layer_ref(x, mask, params, H, compute_dtype=jnp.bfloat16)
    ref_f32 = encoder_layer_ref(x, mask, params, H, compute_dtype=jnp.float32)
    assert out.shape == (B, S, E)
    assert jnp.allclose(out, ref_bf16, atol=1e-2, rtol=1e-2), \
        "mismatch vs bf16-matched JAX reference"
    assert jnp.allclose(out, ref_f32, atol=1e-1, rtol=1e-1), \
        "mismatch vs f32 JAX reference"
    print("KERNEL_OK")
</pallas_src>

<mosaic_0001>
module attributes {stable_mosaic.version = 11 : i64} {
  func.func @encoder_layer_kernel(%arg0: i32, %arg1: i32, %arg2: memref<1x16x128xf32, #tpu.memory_space<vmem>>, %arg3: memref<1x16x128xbf16, #tpu.memory_space<vmem>>, %arg4: memref<1x16x16xi8, #tpu.memory_space<vmem>>, %arg5: memref<128x128xbf16, #tpu.memory_space<vmem>>, %arg6: memref<1x128xf32, #tpu.memory_space<vmem>>, %arg7: memref<128x128xbf16, #tpu.memory_space<vmem>>, %arg8: memref<1x128xf32, #tpu.memory_space<vmem>>, %arg9: memref<128x128xbf16, #tpu.memory_space<vmem>>, %arg10: memref<1x128xf32, #tpu.memory_space<vmem>>, %arg11: memref<128x128xbf16, #tpu.memory_space<vmem>>, %arg12: memref<1x128xf32, #tpu.memory_space<vmem>>, %arg13: memref<1x128xf32, #tpu.memory_space<vmem>>, %arg14: memref<1x128xf32, #tpu.memory_space<vmem>>, %arg15: memref<128x256xbf16, #tpu.memory_space<vmem>>, %arg16: memref<1x256xf32, #tpu.memory_space<vmem>>, %arg17: memref<256x128xbf16, #tpu.memory_space<vmem>>, %arg18: memref<1x128xf32, #tpu.memory_space<vmem>>, %arg19: memref<1x128xf32, #tpu.memory_space<vmem>>, %arg20: memref<1x128xf32, #tpu.memory_space<vmem>>, %arg21: memref<1x16x128xf32, #tpu.memory_space<vmem>>, %arg22: memref<16x128xbf16, #tpu.memory_space<vmem>>, %arg23: memref<16x128xbf16, #tpu.memory_space<vmem>>, %arg24: memref<16x128xbf16, #tpu.memory_space<vmem>>) attributes {dimension_semantics = [#tpu.dimension_semantics<parallel>, #tpu.dimension_semantics<arbitrary>], iteration_bounds = array<i64: 2, 1>, scalar_prefetch = 0 : i64, scratch_operands = 3 : i64, tpu.core_type = #tpu.core_type<tc>, window_params = [{transform_indices = @transform_0, window_bounds = array<i64: 1, 16, 128>}, {transform_indices = @transform_1, window_bounds = array<i64: 1, 16, 128>}, {transform_indices = @transform_2, window_bounds = array<i64: 1, 16, 16>}, {pipeline_mode = #tpu.pipeline_mode<synchronous>, transform_indices = @transform_3, window_bounds = array<i64: 128, 128>}, {pipeline_mode = #tpu.pipeline_mode<synchronous>, transform_indices = @transform_4, window_bounds = array<i64: 1, 128>}, {pipeline_mode = #tpu.pipeline_mode<synchronous>, transform_indices = @transform_5, window_bounds = array<i64: 128, 128>}, {pipeline_mode = #tpu.pipeline_mode<synchronous>, transform_indices = @transform_6, window_bounds = array<i64: 1, 128>}, {pipeline_mode = #tpu.pipeline_mode<synchronous>, transform_indices = @transform_7, window_bounds = array<i64: 128, 128>}, {pipeline_mode = #tpu.pipeline_mode<synchronous>, transform_indices = @transform_8, window_bounds = array<i64: 1, 128>}, {pipeline_mode = #tpu.pipeline_mode<synchronous>, transform_indices = @transform_9, window_bounds = array<i64: 128, 128>}, {pipeline_mode = #tpu.pipeline_mode<synchronous>, transform_indices = @transform_10, window_bounds = array<i64: 1, 128>}, {pipeline_mode = #tpu.pipeline_mode<synchronous>, transform_indices = @transform_11, window_bounds = array<i64: 1, 128>}, {pipeline_mode = #tpu.pipeline_mode<synchronous>, transform_indices = @transform_12, window_bounds = array<i64: 1, 128>}, {pipeline_mode = #tpu.pipeline_mode<synchronous>, transform_indices = @transform_13, window_bounds = array<i64: 128, 256>}, {pipeline_mode = #tpu.pipeline_mode<synchronous>, transform_indices = @transform_14, window_bounds = array<i64: 1, 256>}, {pipeline_mode = #tpu.pipeline_mode<synchronous>, transform_indices = @transform_15, window_bounds = array<i64: 256, 128>}, {pipeline_mode = #tpu.pipeline_mode<synchronous>, transform_indices = @transform_16, window_bounds = array<i64: 1, 128>}, {pipeline_mode = #tpu.pipeline_mode<synchronous>, transform_indices = @transform_17, window_bounds = array<i64: 1, 128>}, {pipeline_mode = #tpu.pipeline_mode<synchronous>, transform_indices = @transform_18, window_bounds = array<i64: 1, 128>}, {transform_indices = @transform_19, window_bounds = array<i64: 1, 16, 128>}]} {
    %c0 = arith.constant 0 : index
    %c0_0 = arith.constant 0 : index
    %c0_1 = arith.constant 0 : index
    %0 = vector.load %arg2[%c0, %c0_0, %c0_1] : memref<1x16x128xf32, #tpu.memory_space<vmem>>, vector<1x16x128xf32>
    %1 = vector.shape_cast %0 : vector<1x16x128xf32> to vector<16x128xf32>
    %c0_2 = arith.constant 0 : index
    %c0_3 = arith.constant 0 : index
    %c0_4 = arith.constant 0 : index
    %2 = vector.load %arg4[%c0_2, %c0_3, %c0_4] : memref<1x16x16xi8, #tpu.memory_space<vmem>>, vector<1x16x16xi8>
    %3 = vector.shape_cast %2 : vector<1x16x16xi8> to vector<16x16xi8>
    %c0_i8 = arith.constant 0 : i8
    %4 = vector.broadcast %c0_i8 : i8 to vector<16x16xi8>
    %5 = arith.cmpi ne, %3, %4 : vector<16x16xi8>
    %c0_i32 = arith.constant 0 : i32
    %6 = arith.cmpi eq, %arg1, %c0_i32 : i32
    %7 = arith.extui %6 : i1 to i32
    %c0_i32_5 = arith.constant 0 : i32
    %8 = arith.cmpi ne, %7, %c0_i32_5 : i32
    scf.if %8 {
      %c0_56 = arith.constant 0 : index
      %c0_57 = arith.constant 0 : index
      %c0_58 = arith.constant 0 : index
      %114 = vector.load %arg3[%c0_56, %c0_57, %c0_58] : memref<1x16x128xbf16, #tpu.memory_space<vmem>>, vector<1x16x128xbf16>
      %115 = vector.shape_cast %114 : vector<1x16x128xbf16> to vector<16x128xbf16>
      %c0_59 = arith.constant 0 : index
      %c0_60 = arith.constant 0 : index
      %116 = vector.load %arg7[%c0_59, %c0_60] : memref<128x128xbf16, #tpu.memory_space<vmem>>, vector<128x128xbf16>
      %cst_61 = arith.constant dense<0.000000e+00> : vector<16x128xf32>
      %117 = tpu.matmul %115, %116, %cst_61 {dimension_numbers = #tpu.dot_dimension_numbers<[1], [0], [0], [1], [0, 0, 1, 1], [], []>} : vector<16x128xbf16>, vector<128x128xbf16>, vector<16x128xf32> -> vector<16x128xf32>
      %c0_62 = arith.constant 0 : index
      %c0_63 = arith.constant 0 : index
      %118 = vector.load %arg8[%c0_62, %c0_63] : memref<1x128xf32, #tpu.memory_space<vmem>>, vector<1x128xf32>
      %119 = vector.broadcast %118 : vector<1x128xf32> to vector<16x128xf32>
      %120 = arith.addf %117, %119 : vector<16x128xf32>
      %c0_64 = arith.constant 0 : index
      %c0_65 = arith.constant 0 : index
      %121 = vector.load %arg9[%c0_64, %c0_65] : memref<128x128xbf16, #tpu.memory_space<vmem>>, vector<128x128xbf16>
      %cst_66 = arith.constant dense<0.000000e+00> : vector<16x128xf32>
      %122 = tpu.matmul %115, %121, %cst_66 {dimension_numbers = #tpu.dot_dimension_numbers<[1], [0], [0], [1], [0, 0, 1, 1], [], []>} : vector<16x128xbf16>, vector<128x128xbf16>, vector<16x128xf32> -> vector<16x128xf32>
      %c0_67 = arith.constant 0 : index
      %c0_68 = arith.constant 0 : index
      %123 = vector.load %arg10[%c0_67, %c0_68] : memref<1x128xf32, #tpu.memory_space<vmem>>, vector<1x128xf32>
      %124 = vector.broadcast %123 : vector<1x128xf32> to vector<16x128xf32>
      %125 = arith.addf %122, %124 : vector<16x128xf32>
      %126 = arith.truncf %120 : vector<16x128xf32> to vector<16x128xbf16>
      %c0_69 = arith.constant 0 : index
      %c0_70 = arith.constant 0 : index
      %127 = vector.load %arg22[%c0_69, %c0_70] : memref<16x128xbf16, #tpu.memory_space<vmem>>, vector<16x128xbf16>
      tpu.vector_store %arg22[%c0_69, %c0_70], %126 {strides = array<i32>} : memref<16x128xbf16, #tpu.memory_space<vmem>>, vector<16x128xbf16>,
      %128 = arith.truncf %125 : vector<16x128xf32> to vector<16x128xbf16>
      %c0_71 = arith.constant 0 : index
      %c0_72 = arith.constant 0 : index
      %129 = vector.load %arg23[%c0_71, %c0_72] : memref<16x128xbf16, #tpu.memory_space<vmem>>, vector<16x128xbf16>
      tpu.vector_store %arg23[%c0_71, %c0_72], %128 {strides = array<i32>} : memref<16x128xbf16, #tpu.memory_space<vmem>>, vector<16x128xbf16>,
    } else {
    }
    %9 = arith.truncf %1 : vector<16x128xf32> to vector<16x128xbf16>
    %c0_6 = arith.constant 0 : index
    %c0_7 = arith.constant 0 : index
    %10 = vector.load %arg5[%c0_6, %c0_7] : memref<128x128xbf16, #tpu.memory_space<vmem>>, vector<128x128xbf16>
    %cst = arith.constant dense<0.000000e+00> : vector<16x128xf32>
    %11 = tpu.matmul %9, %10, %cst {dimension_numbers = #tpu.dot_dimension_numbers<[1], [0], [0], [1], [0, 0, 1, 1], [], []>} : vector<16x128xbf16>, vector<128x128xbf16>, vector<16x128xf32> -> vector<16x128xf32>
    %c0_8 = arith.constant 0 : index
    %c0_9 = arith.constant 0 : index
    %12 = vector.load %arg6[%c0_8, %c0_9] : memref<1x128xf32, #tpu.memory_space<vmem>>, vector<1x128xf32>
    %13 = vector.broadcast %12 : vector<1x128xf32> to vector<16x128xf32>
    %14 = arith.addf %11, %13 : vector<16x128xf32>
    %15 = arith.truncf %14 : vector<16x128xf32> to vector<16x128xbf16>
    %16 = vector.shape_cast %15 : vector<16x128xbf16> to vector<16x4x32xbf16>
    %c0_10 = arith.constant 0 : index
    %c0_11 = arith.constant 0 : index
    %17 = vector.load %arg22[%c0_10, %c0_11] : memref<16x128xbf16, #tpu.memory_space<vmem>>, vector<16x128xbf16>
    %18 = vector.shape_cast %17 : vector<16x128xbf16> to vector<16x4x32xbf16>
    %c0_12 = arith.constant 0 : index
    %c0_13 = arith.constant 0 : index
    %19 = vector.load %arg23[%c0_12, %c0_13] : memref<16x128xbf16, #tpu.memory_space<vmem>>, vector<16x128xbf16>
    %20 = vector.shape_cast %19 : vector<16x128xbf16> to vector<16x4x32xbf16>
    "tpu.trace_start"() <{level = 10 : i32, message = "qhd,khd->hqk"}> : () -> ()
    %cst_14 = arith.constant dense<0.000000e+00> : vector<4x16x16xf32>
    %21 = tpu.matmul %16, %18, %cst_14 {dimension_numbers = #tpu.dot_dimension_numbers<[2], [2], [0], [0], [0, 1, 0, 0, 1, 0], [1], [1]>} : vector<16x4x32xbf16>, vector<16x4x32xbf16>, vector<4x16x16xf32> -> vector<4x16x16xf32>
    "tpu.trace_stop"() : () -> ()
    %22 = vector.shape_cast %5 : vector<16x16xi1> to vector<1x16x16xi1>
    %cst_15 = arith.constant -1.000000e+09 : f32
    %23 = vector.shape_cast %22 : vector<1x16x16xi1> to vector<1x16x16xi1>
    %24 = vector.broadcast %23 : vector<1x16x16xi1> to vector<4x16x16xi1>
    %25 = vector.broadcast %cst_15 : f32 to vector<4x16x16xf32>
    %26 = arith.select %24, %21, %25 : vector<4x16x16xi1>, vector<4x16x16xf32>
    %cst_16 = arith.constant dense<0xFF800000> : vector<4x16xf32>
    %27 = vector.multi_reduction <maximumf>, %26, %cst_16 [2] : vector<4x16x16xf32> to vector<4x16xf32>
    %28 = vector.shape_cast %27 : vector<4x16xf32> to vector<4x16x1xf32>
    %29 = vector.broadcast %28 : vector<4x16x1xf32> to vector<4x16x16xf32>
    %30 = arith.subf %26, %29 : vector<4x16x16xf32>
    %31 = math.exp %30 : vector<4x16x16xf32>
    %cst_17 = arith.constant dense<0.000000e+00> : vector<4x16xf32>
    %32 = vector.multi_reduction <add>, %31, %cst_17 [2] : vector<4x16x16xf32> to vector<4x16xf32>
    %33 = vector.shape_cast %32 : vector<4x16xf32> to vector<4x16x1xf32>
    %34 = tpu.reciprocal %33 {approx = true} : vector<4x16x1xf32> -> vector<4x16x1xf32>
    %35 = vector.broadcast %34 : vector<4x16x1xf32> to vector<4x16x16xf32>
    %36 = arith.mulf %31, %35 : vector<4x16x16xf32>
    %37 = arith.truncf %36 : vector<4x16x16xf32> to vector<4x16x16xbf16>
    "tpu.trace_start"() <{level = 10 : i32, message = "hqk,khd->qhd"}> : () -> ()
    %cst_18 = arith.constant dense<0.000000e+00> : vector<4x32x16xf32>
    %38 = tpu.matmul %20, %37, %cst_18 {dimension_numbers = #tpu.dot_dimension_numbers<[0], [2], [2], [1], [0, 1, 0, 2, 1, 1], [1], [0]>} : vector<16x4x32xbf16>, vector<4x16x16xbf16>, vector<4x32x16xf32> -> vector<4x32x16xf32>
    %39 = tpu.transpose %38, [2, 0, 1] : vector<4x32x16xf32> -> vector<16x4x32xf32>
    "tpu.trace_stop"() : () -> ()
    %40 = arith.truncf %39 : vector<16x4x32xf32> to vector<16x4x32xbf16>
    %41 = vector.shape_cast %40 : vector<16x4x32xbf16> to vector<16x128xbf16>
    %c0_19 = arith.constant 0 : index
    %c0_20 = arith.constant 0 : index
    %42 = vector.load %arg11[%c0_19, %c0_20] : memref<128x128xbf16, #tpu.memory_space<vmem>>, vector<128x128xbf16>
    %cst_21 = arith.constant dense<0.000000e+00> : vector<16x128xf32>
    %43 = tpu.matmul %41, %42, %cst_21 {dimension_numbers = #tpu.dot_dimension_numbers<[1], [0], [0], [1], [0, 0, 1, 1], [], []>} : vector<16x128xbf16>, vector<128x128xbf16>, vector<16x128xf32> -> vector<16x128xf32>
    %c0_22 = arith.constant 0 : index
    %c0_23 = arith.constant 0 : index
    %44 = vector.load %arg12[%c0_22, %c0_23] : memref<1x128xf32, #tpu.memory_space<vmem>>, vector<1x128xf32>
    %45 = vector.broadcast %44 : vector<1x128xf32> to vector<16x128xf32>
    %46 = arith.addf %43, %45 : vector<16x128xf32>
    %47 = arith.addf %46, %1 : vector<16x128xf32>
    %c0_24 = arith.constant 0 : index
    %c0_25 = arith.constant 0 : index
    %48 = vector.load %arg13[%c0_24, %c0_25] : memref<1x128xf32, #tpu.memory_space<vmem>>, vector<1x128xf32>
    %c0_26 = arith.constant 0 : index
    %c0_27 = arith.constant 0 : index
    %49 = vector.load %arg14[%c0_26, %c0_27] : memref<1x128xf32, #tpu.memory_space<vmem>>, vector<1x128xf32>
    %cst_28 = arith.constant dense<0.000000e+00> : vector<16xf32>
    %50 = vector.multi_reduction <add>, %47, %cst_28 [1] : vector<16x128xf32> to vector<16xf32>
    %51 = vector.shape_cast %50 : vector<16xf32> to vector<16x1xf32>
    %cst_29 = arith.constant 1.280000e+02 : f32
    %52 = vector.broadcast %cst_29 : f32 to vector<16x1xf32>
    %53 = arith.divf %51, %52 : vector<16x1xf32>
    %54 = vector.broadcast %53 : vector<16x1xf32> to vector<16x128xf32>
    %55 = arith.subf %47, %54 : vector<16x128xf32>
    %56 = arith.mulf %55, %55 : vector<16x128xf32>
    %cst_30 = arith.constant dense<0.000000e+00> : vector<16xf32>
    %57 = vector.multi_reduction <add>, %56, %cst_30 [1] : vector<16x128xf32> to vector<16xf32>
    %58 = vector.shape_cast %57 : vector<16xf32> to vector<16x1xf32>
    %cst_31 = arith.constant 1.280000e+02 : f32
    %59 = vector.broadcast %cst_31 : f32 to vector<16x1xf32>
    %60 = arith.divf %58, %59 : vector<16x1xf32>
    %61 = vector.broadcast %53 : vector<16x1xf32> to vector<16x128xf32>
    %62 = arith.subf %47, %61 : vector<16x128xf32>
    %cst_32 = arith.constant 9.99999974E-6 : f32
    %63 = vector.broadcast %cst_32 : f32 to vector<16x1xf32>
    %64 = arith.addf %60, %63 : vector<16x1xf32>
    %65 = math.rsqrt %64 : vector<16x1xf32>
    %66 = vector.broadcast %65 : vector<16x1xf32> to vector<16x128xf32>
    %67 = arith.mulf %62, %66 : vector<16x128xf32>
    %68 = vector.broadcast %48 : vector<1x128xf32> to vector<16x128xf32>
    %69 = arith.mulf %67, %68 : vector<16x128xf32>
    %70 = vector.broadcast %49 : vector<1x128xf32> to vector<16x128xf32>
    %71 = arith.addf %69, %70 : vector<16x128xf32>
    %72 = arith.truncf %71 : vector<16x128xf32> to vector<16x128xbf16>
    %c0_33 = arith.constant 0 : index
    %c0_34 = arith.constant 0 : index
    %73 = vector.load %arg15[%c0_33, %c0_34] : memref<128x256xbf16, #tpu.memory_space<vmem>>, vector<128x256xbf16>
    %cst_35 = arith.constant dense<0.000000e+00> : vector<16x256xf32>
    %74 = tpu.matmul %72, %73, %cst_35 {dimension_numbers = #tpu.dot_dimension_numbers<[1], [0], [0], [1], [0, 0, 1, 1], [], []>} : vector<16x128xbf16>, vector<128x256xbf16>, vector<16x256xf32> -> vector<16x256xf32>
    %c0_36 = arith.constant 0 : index
    %c0_37 = arith.constant 0 : index
    %75 = vector.load %arg16[%c0_36, %c0_37] : memref<1x256xf32, #tpu.memory_space<vmem>>, vector<1x256xf32>
    %76 = vector.broadcast %75 : vector<1x256xf32> to vector<16x256xf32>
    %77 = arith.addf %74, %76 : vector<16x256xf32>
    %cst_38 = arith.constant 0.000000e+00 : f32
    %78 = vector.broadcast %cst_38 : f32 to vector<16x256xf32>
    %79 = arith.maximumf %77, %78 : vector<16x256xf32>
    %80 = arith.truncf %79 : vector<16x256xf32> to vector<16x256xbf16>
    %c0_39 = arith.constant 0 : index
    %c0_40 = arith.constant 0 : index
    %81 = vector.load %arg17[%c0_39, %c0_40] : memref<256x128xbf16, #tpu.memory_space<vmem>>, vector<256x128xbf16>
    %cst_41 = arith.constant dense<0.000000e+00> : vector<16x128xf32>
    %82 = tpu.matmul %80, %81, %cst_41 {dimension_numbers = #tpu.dot_dimension_numbers<[1], [0], [0], [1], [0, 0, 1, 1], [], []>} : vector<16x256xbf16>, vector<256x128xbf16>, vector<16x128xf32> -> vector<16x128xf32>
    %c0_42 = arith.constant 0 : index
    %c0_43 = arith.constant 0 : index
    %83 = vector.load %arg18[%c0_42, %c0_43] : memref<1x128xf32, #tpu.memory_space<vmem>>, vector<1x128xf32>
    %84 = vector.broadcast %83 : vector<1x128xf32> to vector<16x128xf32>
    %85 = arith.addf %82, %84 : vector<16x128xf32>
    %86 = arith.addf %85, %71 : vector<16x128xf32>
    %c0_44 = arith.constant 0 : index
    %c0_45 = arith.constant 0 : index
    %87 = vector.load %arg19[%c0_44, %c0_45] : memref<1x128xf32, #tpu.memory_space<vmem>>, vector<1x128xf32>
    %c0_46 = arith.constant 0 : index
    %c0_47 = arith.constant 0 : index
    %88 = vector.load %arg20[%c0_46, %c0_47] : memref<1x128xf32, #tpu.memory_space<vmem>>, vector<1x128xf32>
    %cst_48 = arith.constant dense<0.000000e+00> : vector<16xf32>
    %89 = vector.multi_reduction <add>, %86, %cst_48 [1] : vector<16x128xf32> to vector<16xf32>
    %90 = vector.shape_cast %89 : vector<16xf32> to vector<16x1xf32>
    %cst_49 = arith.constant 1.280000e+02 : f32
    %91 = vector.broadcast %cst_49 : f32 to vector<16x1xf32>
    %92 = arith.divf %90, %91 : vector<16x1xf32>
    %93 = vector.broadcast %92 : vector<16x1xf32> to vector<16x128xf32>
    %94 = arith.subf %86, %93 : vector<16x128xf32>
    %95 = arith.mulf %94, %94 : vector<16x128xf32>
    %cst_50 = arith.constant dense<0.000000e+00> : vector<16xf32>
    %96 = vector.multi_reduction <add>, %95, %cst_50 [1] : vector<16x128xf32> to vector<16xf32>
    %97 = vector.shape_cast %96 : vector<16xf32> to vector<16x1xf32>
    %cst_51 = arith.constant 1.280000e+02 : f32
    %98 = vector.broadcast %cst_51 : f32 to vector<16x1xf32>
    %99 = arith.divf %97, %98 : vector<16x1xf32>
    %100 = vector.broadcast %92 : vector<16x1xf32> to vector<16x128xf32>
    %101 = arith.subf %86, %100 : vector<16x128xf32>
    %cst_52 = arith.constant 9.99999974E-6 : f32
    %102 = vector.broadcast %cst_52 : f32 to vector<16x1xf32>
    %103 = arith.addf %99, %102 : vector<16x1xf32>
    %104 = math.rsqrt %103 : vector<16x1xf32>
    %105 = vector.broadcast %104 : vector<16x1xf32> to vector<16x128xf32>
    %106 = arith.mulf %101, %105 : vector<16x128xf32>
    %107 = vector.broadcast %87 : vector<1x128xf32> to vector<16x128xf32>
    %108 = arith.mulf %106, %107 : vector<16x128xf32>
    %109 = vector.broadcast %88 : vector<1x128xf32> to vector<16x128xf32>
    %110 = arith.addf %108, %109 : vector<16x128xf32>
    %c0_53 = arith.constant 0 : index
    %c0_54 = arith.constant 0 : index
    %c0_55 = arith.constant 0 : index
    %111 = vector.load %arg21[%c0_53, %c0_54, %c0_55] : memref<1x16x128xf32, #tpu.memory_space<vmem>>, vector<1x16x128xf32>
    %112 = vector.shape_cast %111 : vector<1x16x128xf32> to vector<16x128xf32>
    %113 = vector.shape_cast %110 : vector<16x128xf32> to vector<1x16x128xf32>
    tpu.vector_store %arg21[%c0_53, %c0_54, %c0_55], %113 {strides = array<i32>} : memref<1x16x128xf32, #tpu.memory_space<vmem>>, vector<1x16x128xf32>,
    return
  }
  func.func @transform_0(%arg0: i32, %arg1: i32) -> (i32, i32, i32) {
    %c0_i32 = arith.constant 0 : i32
    %c0_i32_0 = arith.constant 0 : i32
    return %arg0, %arg1, %c0_i32 : i32, i32, i32
  }
  func.func @transform_1(%arg0: i32, %arg1: i32) -> (i32, i32, i32) {
    %c0_i32 = arith.constant 0 : i32
    %c0_i32_0 = arith.constant 0 : i32
    %c0_i32_1 = arith.constant 0 : i32
    return %arg0, %c0_i32, %c0_i32_0 : i32, i32, i32
  }
  func.func @transform_2(%arg0: i32, %arg1: i32) -> (i32, i32, i32) {
    %c0_i32 = arith.constant 0 : i32
    %c0_i32_0 = arith.constant 0 : i32
    return %arg0, %arg1, %c0_i32 : i32, i32, i32
  }
  func.func @transform_3(%arg0: i32, %arg1: i32) -> (i32, i32) {
    %c0_i32 = arith.constant 0 : i32
    %c0_i32_0 = arith.constant 0 : i32
    %c0_i32_1 = arith.constant 0 : i32
    return %c0_i32, %c0_i32_0 : i32, i32
  }
  func.func @transform_4(%arg0: i32, %arg1: i32) -> (i32, i32) {
    %c0_i32 = arith.constant 0 : i32
    %c0_i32_0 = arith.constant 0 : i32
    %c0_i32_1 = arith.constant 0 : i32
    return %c0_i32, %c0_i32_0 : i32, i32
  }
  func.func @transform_5(%arg0: i32, %arg1: i32) -> (i32, i32) {
    %c0_i32 = arith.constant 0 : i32
    %c0_i32_0 = arith.constant 0 : i32
    %c0_i32_1 = arith.constant 0 : i32
    return %c0_i32, %c0_i32_0 : i32, i32
  }
  func.func @transform_6(%arg0: i32, %arg1: i32) -> (i32, i32) {
    %c0_i32 = arith.constant 0 : i32
    %c0_i32_0 = arith.constant 0 : i32
    %c0_i32_1 = arith.constant 0 : i32
    return %c0_i32, %c0_i32_0 : i32, i32
  }
  func.func @transform_7(%arg0: i32, %arg1: i32) -> (i32, i32) {
    %c0_i32 = arith.constant 0 : i32
    %c0_i32_0 = arith.constant 0 : i32
    %c0_i32_1 = arith.constant 0 : i32
    return %c0_i32, %c0_i32_0 : i32, i32
  }
  func.func @transform_8(%arg0: i32, %arg1: i32) -> (i32, i32) {
    %c0_i32 = arith.constant 0 : i32
    %c0_i32_0 = arith.constant 0 : i32
    %c0_i32_1 = arith.constant 0 : i32
    return %c0_i32, %c0_i32_0 : i32, i32
  }
  func.func @transform_9(%arg0: i32, %arg1: i32) -> (i32, i32) {
    %c0_i32 = arith.constant 0 : i32
    %c0_i32_0 = arith.constant 0 : i32
    %c0_i32_1 = arith.constant 0 : i32
    return %c0_i32, %c0_i32_0 : i32, i32
  }
  func.func @transform_10(%arg0: i32, %arg1: i32) -> (i32, i32) {
    %c0_i32 = arith.constant 0 : i32
    %c0_i32_0 = arith.constant 0 : i32
    %c0_i32_1 = arith.constant 0 : i32
    return %c0_i32, %c0_i32_0 : i32, i32
  }
  func.func @transform_11(%arg0: i32, %arg1: i32) -> (i32, i32) {
    %c0_i32 = arith.constant 0 : i32
    %c0_i32_0 = arith.constant 0 : i32
    %c0_i32_1 = arith.constant 0 : i32
    return %c0_i32, %c0_i32_0 : i32, i32
  }
  func.func @transform_12(%arg0: i32, %arg1: i32) -> (i32, i32) {
    %c0_i32 = arith.constant 0 : i32
    %c0_i32_0 = arith.constant 0 : i32
    %c0_i32_1 = arith.constant 0 : i32
    return %c0_i32, %c0_i32_0 : i32, i32
  }
  func.func @transform_13(%arg0: i32, %arg1: i32) -> (i32, i32) {
    %c0_i32 = arith.constant 0 : i32
    %c0_i32_0 = arith.constant 0 : i32
    %c0_i32_1 = arith.constant 0 : i32
    return %c0_i32, %c0_i32_0 : i32, i32
  }
  func.func @transform_14(%arg0: i32, %arg1: i32) -> (i32, i32) {
    %c0_i32 = arith.constant 0 : i32
    %c0_i32_0 = arith.constant 0 : i32
    %c0_i32_1 = arith.constant 0 : i32
    return %c0_i32, %c0_i32_0 : i32, i32
  }
  func.func @transform_15(%arg0: i32, %arg1: i32) -> (i32, i32) {
    %c0_i32 = arith.constant 0 : i32
    %c0_i32_0 = arith.constant 0 : i32
    %c0_i32_1 = arith.constant 0 : i32
    return %c0_i32, %c0_i32_0 : i32, i32
  }
  func.func @transform_16(%arg0: i32, %arg1: i32) -> (i32, i32) {
    %c0_i32 = arith.constant 0 : i32
    %c0_i32_0 = arith.constant 0 : i32
    %c0_i32_1 = arith.constant 0 : i32
    return %c0_i32, %c0_i32_0 : i32, i32
  }
  func.func @transform_17(%arg0: i32, %arg1: i32) -> (i32, i32) {
    %c0_i32 = arith.constant 0 : i32
    %c0_i32_0 = arith.constant 0 : i32
    %c0_i32_1 = arith.constant 0 : i32
    return %c0_i32, %c0_i32_0 : i32, i32
  }
  func.func @transform_18(%arg0: i32, %arg1: i32) -> (i32, i32) {
    %c0_i32 = arith.constant 0 : i32
    %c0_i32_0 = arith.constant 0 : i32
    %c0_i32_1 = arith.constant 0 : i32
    return %c0_i32, %c0_i32_0 : i32, i32
  }
  func.func @transform_19(%arg0: i32, %arg1: i32) -> (i32, i32, i32) {
    %c0_i32 = arith.constant 0 : i32
    %c0_i32_0 = arith.constant 0 : i32
    return %arg0, %arg1, %c0_i32 : i32, i32, i32
  }
}

module attributes {stable_mosaic.version = 11 : i64} {
  func.func @encoder_layer_kernel(%arg0: i32, %arg1: i32, %arg2: memref<1x16x128xf32, #tpu.memory_space<vmem>>, %arg3: memref<1x16x128xbf16, #tpu.memory_space<vmem>>, %arg4: memref<1x16x16xi8, #tpu.memory_space<vmem>>, %arg5: memref<128x128xbf16, #tpu.memory_space<vmem>>, %arg6: memref<1x128xf32, #tpu.memory_space<vmem>>, %arg7: memref<128x128xbf16, #tpu.memory_space<vmem>>, %arg8: memref<1x128xf32, #tpu.memory_space<vmem>>, %arg9: memref<128x128xbf16, #tpu.memory_space<vmem>>, %arg10: memref<1x128xf32, #tpu.memory_space<vmem>>, %arg11: memref<128x128xbf16, #tpu.memory_space<vmem>>, %arg12: memref<1x128xf32, #tpu.memory_space<vmem>>, %arg13: memref<1x128xf32, #tpu.memory_space<vmem>>, %arg14: memref<1x128xf32, #tpu.memory_space<vmem>>, %arg15: memref<128x256xbf16, #tpu.memory_space<vmem>>, %arg16: memref<1x256xf32, #tpu.memory_space<vmem>>, %arg17: memref<256x128xbf16, #tpu.memory_space<vmem>>, %arg18: memref<1x128xf32, #tpu.memory_space<vmem>>, %arg19: memref<1x128xf32, #tpu.memory_space<vmem>>, %arg20: memref<1x128xf32, #tpu.memory_space<vmem>>, %arg21: memref<1x16x128xf32, #tpu.memory_space<vmem>>, %arg22: memref<16x128xbf16, #tpu.memory_space<vmem>>, %arg23: memref<16x128xbf16, #tpu.memory_space<vmem>>, %arg24: memref<16x128xbf16, #tpu.memory_space<vmem>>) attributes {dimension_semantics = [#tpu.dimension_semantics<parallel>, #tpu.dimension_semantics<arbitrary>], iteration_bounds = array<i64: 2, 1>, scalar_prefetch = 0 : i64, scratch_operands = 3 : i64, tpu.core_type = #tpu.core_type<tc>, window_params = [{transform_indices = @transform_0, window_bounds = array<i64: 1, 16, 128>}, {transform_indices = @transform_1, window_bounds = array<i64: 1, 16, 128>}, {transform_indices = @transform_2, window_bounds = array<i64: 1, 16, 16>}, {pipeline_mode = #tpu.pipeline_mode<synchronous>, transform_indices = @transform_3, window_bounds = array<i64: 128, 128>}, {pipeline_mode = #tpu.pipeline_mode<synchronous>, transform_indices = @transform_4, window_bounds = array<i64: 1, 128>}, {pipeline_mode = #tpu.pipeline_mode<synchronous>, transform_indices = @transform_5, window_bounds = array<i64: 128, 128>}, {pipeline_mode = #tpu.pipeline_mode<synchronous>, transform_indices = @transform_6, window_bounds = array<i64: 1, 128>}, {pipeline_mode = #tpu.pipeline_mode<synchronous>, transform_indices = @transform_7, window_bounds = array<i64: 128, 128>}, {pipeline_mode = #tpu.pipeline_mode<synchronous>, transform_indices = @transform_8, window_bounds = array<i64: 1, 128>}, {pipeline_mode = #tpu.pipeline_mode<synchronous>, transform_indices = @transform_9, window_bounds = array<i64: 128, 128>}, {pipeline_mode = #tpu.pipeline_mode<synchronous>, transform_indices = @transform_10, window_bounds = array<i64: 1, 128>}, {pipeline_mode = #tpu.pipeline_mode<synchronous>, transform_indices = @transform_11, window_bounds = array<i64: 1, 128>}, {pipeline_mode = #tpu.pipeline_mode<synchronous>, transform_indices = @transform_12, window_bounds = array<i64: 1, 128>}, {pipeline_mode = #tpu.pipeline_mode<synchronous>, transform_indices = @transform_13, window_bounds = array<i64: 128, 256>}, {pipeline_mode = #tpu.pipeline_mode<synchronous>, transform_indices = @transform_14, window_bounds = array<i64: 1, 256>}, {pipeline_mode = #tpu.pipeline_mode<synchronous>, transform_indices = @transform_15, window_bounds = array<i64: 256, 128>}, {pipeline_mode = #tpu.pipeline_mode<synchronous>, transform_indices = @transform_16, window_bounds = array<i64: 1, 128>}, {pipeline_mode = #tpu.pipeline_mode<synchronous>, transform_indices = @transform_17, window_bounds = array<i64: 1, 128>}, {pipeline_mode = #tpu.pipeline_mode<synchronous>, transform_indices = @transform_18, window_bounds = array<i64: 1, 128>}, {transform_indices = @transform_19, window_bounds = array<i64: 1, 16, 128>}]} {
    %c0 = arith.constant 0 : index
    %c0_0 = arith.constant 0 : index
    %c0_1 = arith.constant 0 : index
    %0 = vector.load %arg2[%c0, %c0_0, %c0_1] : memref<1x16x128xf32, #tpu.memory_space<vmem>>, vector<1x16x128xf32>
    %1 = vector.shape_cast %0 : vector<1x16x128xf32> to vector<16x128xf32>
    %c0_2 = arith.constant 0 : index
    %c0_3 = arith.constant 0 : index
    %c0_4 = arith.constant 0 : index
    %2 = vector.load %arg4[%c0_2, %c0_3, %c0_4] : memref<1x16x16xi8, #tpu.memory_space<vmem>>, vector<1x16x16xi8>
    %3 = vector.shape_cast %2 : vector<1x16x16xi8> to vector<16x16xi8>
    %c0_i8 = arith.constant 0 : i8
    %4 = vector.broadcast %c0_i8 : i8 to vector<16x16xi8>
    %5 = arith.cmpi ne, %3, %4 : vector<16x16xi8>
    %c0_i32 = arith.constant 0 : i32
    %6 = arith.cmpi eq, %arg1, %c0_i32 : i32
    %7 = arith.extui %6 : i1 to i32
    %c0_i32_5 = arith.constant 0 : i32
    %8 = arith.cmpi ne, %7, %c0_i32_5 : i32
    scf.if %8 {
      %c0_56 = arith.constant 0 : index
      %c0_57 = arith.constant 0 : index
      %c0_58 = arith.constant 0 : index
      %114 = vector.load %arg3[%c0_56, %c0_57, %c0_58] : memref<1x16x128xbf16, #tpu.memory_space<vmem>>, vector<1x16x128xbf16>
      %115 = vector.shape_cast %114 : vector<1x16x128xbf16> to vector<16x128xbf16>
      %c0_59 = arith.constant 0 : index
      %c0_60 = arith.constant 0 : index
      %116 = vector.load %arg7[%c0_59, %c0_60] : memref<128x128xbf16, #tpu.memory_space<vmem>>, vector<128x128xbf16>
      %cst_61 = arith.constant dense<0.000000e+00> : vector<16x128xf32>
      %117 = tpu.matmul %115, %116, %cst_61 {dimension_numbers = #tpu.dot_dimension_numbers<[1], [0], [0], [1], [0, 0, 1, 1], [], []>} : vector<16x128xbf16>, vector<128x128xbf16>, vector<16x128xf32> -> vector<16x128xf32>
      %c0_62 = arith.constant 0 : index
      %c0_63 = arith.constant 0 : index
      %118 = vector.load %arg8[%c0_62, %c0_63] : memref<1x128xf32, #tpu.memory_space<vmem>>, vector<1x128xf32>
      %119 = vector.broadcast %118 : vector<1x128xf32> to vector<16x128xf32>
      %120 = arith.addf %117, %119 : vector<16x128xf32>
      %c0_64 = arith.constant 0 : index
      %c0_65 = arith.constant 0 : index
      %121 = vector.load %arg9[%c0_64, %c0_65] : memref<128x128xbf16, #tpu.memory_space<vmem>>, vector<128x128xbf16>
      %cst_66 = arith.constant dense<0.000000e+00> : vector<16x128xf32>
      %122 = tpu.matmul %115, %121, %cst_66 {dimension_numbers = #tpu.dot_dimension_numbers<[1], [0], [0], [1], [0, 0, 1, 1], [], []>} : vector<16x128xbf16>, vector<128x128xbf16>, vector<16x128xf32> -> vector<16x128xf32>
      %c0_67 = arith.constant 0 : index
      %c0_68 = arith.constant 0 : index
      %123 = vector.load %arg10[%c0_67, %c0_68] : memref<1x128xf32, #tpu.memory_space<vmem>>, vector<1x128xf32>
      %124 = vector.broadcast %123 : vector<1x128xf32> to vector<16x128xf32>
      %125 = arith.addf %122, %124 : vector<16x128xf32>
      %126 = arith.truncf %120 : vector<16x128xf32> to vector<16x128xbf16>
      %c0_69 = arith.constant 0 : index
      %c0_70 = arith.constant 0 : index
      %127 = vector.load %arg22[%c0_69, %c0_70] : memref<16x128xbf16, #tpu.memory_space<vmem>>, vector<16x128xbf16>
      tpu.vector_store %arg22[%c0_69, %c0_70], %126 {strides = array<i32>} : memref<16x128xbf16, #tpu.memory_space<vmem>>, vector<16x128xbf16>,
      %128 = arith.truncf %125 : vector<16x128xf32> to vector<16x128xbf16>
      %c0_71 = arith.constant 0 : index
      %c0_72 = arith.constant 0 : index
      %129 = vector.load %arg23[%c0_71, %c0_72] : memref<16x128xbf16, #tpu.memory_space<vmem>>, vector<16x128xbf16>
      tpu.vector_store %arg23[%c0_71, %c0_72], %128 {strides = array<i32>} : memref<16x128xbf16, #tpu.memory_space<vmem>>, vector<16x128xbf16>,
    } else {
    }
    %9 = arith.truncf %1 : vector<16x128xf32> to vector<16x128xbf16>
    %c0_6 = arith.constant 0 : index
    %c0_7 = arith.constant 0 : index
    %10 = vector.load %arg5[%c0_6, %c0_7] : memref<128x128xbf16, #tpu.memory_space<vmem>>, vector<128x128xbf16>
    %cst = arith.constant dense<0.000000e+00> : vector<16x128xf32>
    %11 = tpu.matmul %9, %10, %cst {dimension_numbers = #tpu.dot_dimension_numbers<[1], [0], [0], [1], [0, 0, 1, 1], [], []>} : vector<16x128xbf16>, vector<128x128xbf16>, vector<16x128xf32> -> vector<16x128xf32>
    %c0_8 = arith.constant 0 : index
    %c0_9 = arith.constant 0 : index
    %12 = vector.load %arg6[%c0_8, %c0_9] : memref<1x128xf32, #tpu.memory_space<vmem>>, vector<1x128xf32>
    %13 = vector.broadcast %12 : vector<1x128xf32> to vector<16x128xf32>
    %14 = arith.addf %11, %13 : vector<16x128xf32>
    %15 = arith.truncf %14 : vector<16x128xf32> to vector<16x128xbf16>
    %16 = vector.shape_cast %15 : vector<16x128xbf16> to vector<16x4x32xbf16>
    %c0_10 = arith.constant 0 : index
    %c0_11 = arith.constant 0 : index
    %17 = vector.load %arg22[%c0_10, %c0_11] : memref<16x128xbf16, #tpu.memory_space<vmem>>, vector<16x128xbf16>
    %18 = vector.shape_cast %17 : vector<16x128xbf16> to vector<16x4x32xbf16>
    %c0_12 = arith.constant 0 : index
    %c0_13 = arith.constant 0 : index
    %19 = vector.load %arg23[%c0_12, %c0_13] : memref<16x128xbf16, #tpu.memory_space<vmem>>, vector<16x128xbf16>
    %20 = vector.shape_cast %19 : vector<16x128xbf16> to vector<16x4x32xbf16>
    "tpu.trace_start"() <{level = 10 : i32, message = "qhd,khd->hqk"}> : () -> ()
    %cst_14 = arith.constant dense<0.000000e+00> : vector<4x16x16xf32>
    %21 = tpu.matmul %16, %18, %cst_14 {dimension_numbers = #tpu.dot_dimension_numbers<[2], [2], [0], [0], [0, 1, 0, 0, 1, 0], [1], [1]>} : vector<16x4x32xbf16>, vector<16x4x32xbf16>, vector<4x16x16xf32> -> vector<4x16x16xf32>
    "tpu.trace_stop"() : () -> ()
    %22 = vector.shape_cast %5 : vector<16x16xi1> to vector<1x16x16xi1>
    %cst_15 = arith.constant -1.000000e+09 : f32
    %23 = vector.shape_cast %22 : vector<1x16x16xi1> to vector<1x16x16xi1>
    %24 = vector.broadcast %23 : vector<1x16x16xi1> to vector<4x16x16xi1>
    %25 = vector.broadcast %cst_15 : f32 to vector<4x16x16xf32>
    %26 = arith.select %24, %21, %25 : vector<4x16x16xi1>, vector<4x16x16xf32>
    %cst_16 = arith.constant dense<0xFF800000> : vector<4x16xf32>
    %27 = vector.multi_reduction <maximumf>, %26, %cst_16 [2] : vector<4x16x16xf32> to vector<4x16xf32>
    %28 = vector.shape_cast %27 : vector<4x16xf32> to vector<4x16x1xf32>
    %29 = vector.broadcast %28 : vector<4x16x1xf32> to vector<4x16x16xf32>
    %30 = arith.subf %26, %29 : vector<4x16x16xf32>
    %31 = math.exp %30 : vector<4x16x16xf32>
    %cst_17 = arith.constant dense<0.000000e+00> : vector<4x16xf32>
    %32 = vector.multi_reduction <add>, %31, %cst_17 [2] : vector<4x16x16xf32> to vector<4x16xf32>
    %33 = vector.shape_cast %32 : vector<4x16xf32> to vector<4x16x1xf32>
    %34 = tpu.reciprocal %33 {approx = true} : vector<4x16x1xf32> -> vector<4x16x1xf32>
    %35 = vector.broadcast %34 : vector<4x16x1xf32> to vector<4x16x16xf32>
    %36 = arith.mulf %31, %35 : vector<4x16x16xf32>
    %37 = arith.truncf %36 : vector<4x16x16xf32> to vector<4x16x16xbf16>
    "tpu.trace_start"() <{level = 10 : i32, message = "hqk,khd->qhd"}> : () -> ()
    %cst_18 = arith.constant dense<0.000000e+00> : vector<4x32x16xf32>
    %38 = tpu.matmul %20, %37, %cst_18 {dimension_numbers = #tpu.dot_dimension_numbers<[0], [2], [2], [1], [0, 1, 0, 2, 1, 1], [1], [0]>} : vector<16x4x32xbf16>, vector<4x16x16xbf16>, vector<4x32x16xf32> -> vector<4x32x16xf32>
    %39 = tpu.transpose %38, [2, 0, 1] : vector<4x32x16xf32> -> vector<16x4x32xf32>
    "tpu.trace_stop"() : () -> ()
    %40 = arith.truncf %39 : vector<16x4x32xf32> to vector<16x4x32xbf16>
    %41 = vector.shape_cast %40 : vector<16x4x32xbf16> to vector<16x128xbf16>
    %c0_19 = arith.constant 0 : index
    %c0_20 = arith.constant 0 : index
    %42 = vector.load %arg11[%c0_19, %c0_20] : memref<128x128xbf16, #tpu.memory_space<vmem>>, vector<128x128xbf16>
    %cst_21 = arith.constant dense<0.000000e+00> : vector<16x128xf32>
    %43 = tpu.matmul %41, %42, %cst_21 {dimension_numbers = #tpu.dot_dimension_numbers<[1], [0], [0], [1], [0, 0, 1, 1], [], []>} : vector<16x128xbf16>, vector<128x128xbf16>, vector<16x128xf32> -> vector<16x128xf32>
    %c0_22 = arith.constant 0 : index
    %c0_23 = arith.constant 0 : index
    %44 = vector.load %arg12[%c0_22, %c0_23] : memref<1x128xf32, #tpu.memory_space<vmem>>, vector<1x128xf32>
    %45 = vector.broadcast %44 : vector<1x128xf32> to vector<16x128xf32>
    %46 = arith.addf %43, %45 : vector<16x128xf32>
    %47 = arith.addf %46, %1 : vector<16x128xf32>
    %c0_24 = arith.constant 0 : index
    %c0_25 = arith.constant 0 : index
    %48 = vector.load %arg13[%c0_24, %c0_25] : memref<1x128xf32, #tpu.memory_space<vmem>>, vector<1x128xf32>
    %c0_26 = arith.constant 0 : index
    %c0_27 = arith.constant 0 : index
    %49 = vector.load %arg14[%c0_26, %c0_27] : memref<1x128xf32, #tpu.memory_space<vmem>>, vector<1x128xf32>
    %cst_28 = arith.constant dense<0.000000e+00> : vector<16xf32>
    %50 = vector.multi_reduction <add>, %47, %cst_28 [1] : vector<16x128xf32> to vector<16xf32>
    %51 = vector.shape_cast %50 : vector<16xf32> to vector<16x1xf32>
    %cst_29 = arith.constant 1.280000e+02 : f32
    %52 = vector.broadcast %cst_29 : f32 to vector<16x1xf32>
    %53 = arith.divf %51, %52 : vector<16x1xf32>
    %54 = vector.broadcast %53 : vector<16x1xf32> to vector<16x128xf32>
    %55 = arith.subf %47, %54 : vector<16x128xf32>
    %56 = arith.mulf %55, %55 : vector<16x128xf32>
    %cst_30 = arith.constant dense<0.000000e+00> : vector<16xf32>
    %57 = vector.multi_reduction <add>, %56, %cst_30 [1] : vector<16x128xf32> to vector<16xf32>
    %58 = vector.shape_cast %57 : vector<16xf32> to vector<16x1xf32>
    %cst_31 = arith.constant 1.280000e+02 : f32
    %59 = vector.broadcast %cst_31 : f32 to vector<16x1xf32>
    %60 = arith.divf %58, %59 : vector<16x1xf32>
    %61 = vector.broadcast %53 : vector<16x1xf32> to vector<16x128xf32>
    %62 = arith.subf %47, %61 : vector<16x128xf32>
    %cst_32 = arith.constant 9.99999974E-6 : f32
    %63 = vector.broadcast %cst_32 : f32 to vector<16x1xf32>
    %64 = arith.addf %60, %63 : vector<16x1xf32>
    %65 = math.rsqrt %64 : vector<16x1xf32>
    %66 = vector.broadcast %65 : vector<16x1xf32> to vector<16x128xf32>
    %67 = arith.mulf %62, %66 : vector<16x128xf32>
    %68 = vector.broadcast %48 : vector<1x128xf32> to vector<16x128xf32>
    %69 = arith.mulf %67, %68 : vector<16x128xf32>
    %70 = vector.broadcast %49 : vector<1x128xf32> to vector<16x128xf32>
    %71 = arith.addf %69, %70 : vector<16x128xf32>
    %72 = arith.truncf %71 : vector<16x128xf32> to vector<16x128xbf16>
    %c0_33 = arith.constant 0 : index
    %c0_34 = arith.constant 0 : index
    %73 = vector.load %arg15[%c0_33, %c0_34] : memref<128x256xbf16, #tpu.memory_space<vmem>>, vector<128x256xbf16>
    %cst_35 = arith.constant dense<0.000000e+00> : vector<16x256xf32>
    %74 = tpu.matmul %72, %73, %cst_35 {dimension_numbers = #tpu.dot_dimension_numbers<[1], [0], [0], [1], [0, 0, 1, 1], [], []>} : vector<16x128xbf16>, vector<128x256xbf16>, vector<16x256xf32> -> vector<16x256xf32>
    %c0_36 = arith.constant 0 : index
    %c0_37 = arith.constant 0 : index
    %75 = vector.load %arg16[%c0_36, %c0_37] : memref<1x256xf32, #tpu.memory_space<vmem>>, vector<1x256xf32>
    %76 = vector.broadcast %75 : vector<1x256xf32> to vector<16x256xf32>
    %77 = arith.addf %74, %76 : vector<16x256xf32>
    %cst_38 = arith.constant 0.000000e+00 : f32
    %78 = vector.broadcast %cst_38 : f32 to vector<16x256xf32>
    %79 = arith.maximumf %77, %78 : vector<16x256xf32>
    %80 = arith.truncf %79 : vector<16x256xf32> to vector<16x256xbf16>
    %c0_39 = arith.constant 0 : index
    %c0_40 = arith.constant 0 : index
    %81 = vector.load %arg17[%c0_39, %c0_40] : memref<256x128xbf16, #tpu.memory_space<vmem>>, vector<256x128xbf16>
    %cst_41 = arith.constant dense<0.000000e+00> : vector<16x128xf32>
    %82 = tpu.matmul %80, %81, %cst_41 {dimension_numbers = #tpu.dot_dimension_numbers<[1], [0], [0], [1], [0, 0, 1, 1], [], []>} : vector<16x256xbf16>, vector<256x128xbf16>, vector<16x128xf32> -> vector<16x128xf32>
    %c0_42 = arith.constant 0 : index
    %c0_43 = arith.constant 0 : index
    %83 = vector.load %arg18[%c0_42, %c0_43] : memref<1x128xf32, #tpu.memory_space<vmem>>, vector<1x128xf32>
    %84 = vector.broadcast %83 : vector<1x128xf32> to vector<16x128xf32>
    %85 = arith.addf %82, %84 : vector<16x128xf32>
    %86 = arith.addf %85, %71 : vector<16x128xf32>
    %c0_44 = arith.constant 0 : index
    %c0_45 = arith.constant 0 : index
    %87 = vector.load %arg19[%c0_44, %c0_45] : memref<1x128xf32, #tpu.memory_space<vmem>>, vector<1x128xf32>
    %c0_46 = arith.constant 0 : index
    %c0_47 = arith.constant 0 : index
    %88 = vector.load %arg20[%c0_46, %c0_47] : memref<1x128xf32, #tpu.memory_space<vmem>>, vector<1x128xf32>
    %cst_48 = arith.constant dense<0.000000e+00> : vector<16xf32>
    %89 = vector.multi_reduction <add>, %86, %cst_48 [1] : vector<16x128xf32> to vector<16xf32>
    %90 = vector.shape_cast %89 : vector<16xf32> to vector<16x1xf32>
    %cst_49 = arith.constant 1.280000e+02 : f32
    %91 = vector.broadcast %cst_49 : f32 to vector<16x1xf32>
    %92 = arith.divf %90, %91 : vector<16x1xf32>
    %93 = vector.broadcast %92 : vector<16x1xf32> to vector<16x128xf32>
    %94 = arith.subf %86, %93 : vector<16x128xf32>
    %95 = arith.mulf %94, %94 : vector<16x128xf32>
    %cst_50 = arith.constant dense<0.000000e+00> : vector<16xf32>
    %96 = vector.multi_reduction <add>, %95, %cst_50 [1] : vector<16x128xf32> to vector<16xf32>
    %97 = vector.shape_cast %96 : vector<16xf32> to vector<16x1xf32>
    %cst_51 = arith.constant 1.280000e+02 : f32
    %98 = vector.broadcast %cst_51 : f32 to vector<16x1xf32>
    %99 = arith.divf %97, %98 : vector<16x1xf32>
    %100 = vector.broadcast %92 : vector<16x1xf32> to vector<16x128xf32>
    %101 = arith.subf %86, %100 : vector<16x128xf32>
    %cst_52 = arith.constant 9.99999974E-6 : f32
    %102 = vector.broadcast %cst_52 : f32 to vector<16x1xf32>
    %103 = arith.addf %99, %102 : vector<16x1xf32>
    %104 = math.rsqrt %103 : vector<16x1xf32>
    %105 = vector.broadcast %104 : vector<16x1xf32> to vector<16x128xf32>
    %106 = arith.mulf %101, %105 : vector<16x128xf32>
    %107 = vector.broadcast %87 : vector<1x128xf32> to vector<16x128xf32>
    %108 = arith.mulf %106, %107 : vector<16x128xf32>
    %109 = vector.broadcast %88 : vector<1x128xf32> to vector<16x128xf32>
    %110 = arith.addf %108, %109 : vector<16x128xf32>
    %c0_53 = arith.constant 0 : index
    %c0_54 = arith.constant 0 : index
    %c0_55 = arith.constant 0 : index
    %111 = vector.load %arg21[%c0_53, %c0_54, %c0_55] : memref<1x16x128xf32, #tpu.memory_space<vmem>>, vector<1x16x128xf32>
    %112 = vector.shape_cast %111 : vector<1x16x128xf32> to vector<16x128xf32>
    %113 = vector.shape_cast %110 : vector<16x128xf32> to vector<1x16x128xf32>
    tpu.vector_store %arg21[%c0_53, %c0_54, %c0_55], %113 {strides = array<i32>} : memref<1x16x128xf32, #tpu.memory_space<vmem>>, vector<1x16x128xf32>,
    return
  }
  func.func @transform_0(%arg0: i32, %arg1: i32) -> (i32, i32, i32) {
    %c0_i32 = arith.constant 0 : i32
    %c0_i32_0 = arith.constant 0 : i32
    return %arg0, %arg1, %c0_i32 : i32, i32, i32
  }
  func.func @transform_1(%arg0: i32, %arg1: i32) -> (i32, i32, i32) {
    %c0_i32 = arith.constant 0 : i32
    %c0_i32_0 = arith.constant 0 : i32
    %c0_i32_1 = arith.constant 0 : i32
    return %arg0, %c0_i32, %c0_i32_0 : i32, i32, i32
  }
  func.func @transform_2(%arg0: i32, %arg1: i32) -> (i32, i32, i32) {
    %c0_i32 = arith.constant 0 : i32
    %c0_i32_0 = arith.constant 0 : i32
    return %arg0, %arg1, %c0_i32 : i32, i32, i32
  }
  func.func @transform_3(%arg0: i32, %arg1: i32) -> (i32, i32) {
    %c0_i32 = arith.constant 0 : i32
    %c0_i32_0 = arith.constant 0 : i32
    %c0_i32_1 = arith.constant 0 : i32
    return %c0_i32, %c0_i32_0 : i32, i32
  }
  func.func @transform_4(%arg0: i32, %arg1: i32) -> (i32, i32) {
    %c0_i32 = arith.constant 0 : i32
    %c0_i32_0 = arith.constant 0 : i32
    %c0_i32_1 = arith.constant 0 : i32
    return %c0_i32, %c0_i32_0 : i32, i32
  }
  func.func @transform_5(%arg0: i32, %arg1: i32) -> (i32, i32) {
    %c0_i32 = arith.constant 0 : i32
    %c0_i32_0 = arith.constant 0 : i32
    %c0_i32_1 = arith.constant 0 : i32
    return %c0_i32, %c0_i32_0 : i32, i32
  }
  func.func @transform_6(%arg0: i32, %arg1: i32) -> (i32, i32) {
    %c0_i32 = arith.constant 0 : i32
    %c0_i32_0 = arith.constant 0 : i32
    %c0_i32_1 = arith.constant 0 : i32
    return %c0_i32, %c0_i32_0 : i32, i32
  }
  func.func @transform_7(%arg0: i32, %arg1: i32) -> (i32, i32) {
    %c0_i32 = arith.constant 0 : i32
    %c0_i32_0 = arith.constant 0 : i32
    %c0_i32_1 = arith.constant 0 : i32
    return %c0_i32, %c0_i32_0 : i32, i32
  }
  func.func @transform_8(%arg0: i32, %arg1: i32) -> (i32, i32) {
    %c0_i32 = arith.constant 0 : i32
    %c0_i32_0 = arith.constant 0 : i32
    %c0_i32_1 = arith.constant 0 : i32
    return %c0_i32, %c0_i32_0 : i32, i32
  }
  func.func @transform_9(%arg0: i32, %arg1: i32) -> (i32, i32) {
    %c0_i32 = arith.constant 0 : i32
    %c0_i32_0 = arith.constant 0 : i32
    %c0_i32_1 = arith.constant 0 : i32
    return %c0_i32, %c0_i32_0 : i32, i32
  }
  func.func @transform_10(%arg0: i32, %arg1: i32) -> (i32, i32) {
    %c0_i32 = arith.constant 0 : i32
    %c0_i32_0 = arith.constant 0 : i32
    %c0_i32_1 = arith.constant 0 : i32
    return %c0_i32, %c0_i32_0 : i32, i32
  }
  func.func @transform_11(%arg0: i32, %arg1: i32) -> (i32, i32) {
    %c0_i32 = arith.constant 0 : i32
    %c0_i32_0 = arith.constant 0 : i32
    %c0_i32_1 = arith.constant 0 : i32
    return %c0_i32, %c0_i32_0 : i32, i32
  }
  func.func @transform_12(%arg0: i32, %arg1: i32) -> (i32, i32) {
    %c0_i32 = arith.constant 0 : i32
    %c0_i32_0 = arith.constant 0 : i32
    %c0_i32_1 = arith.constant 0 : i32
    return %c0_i32, %c0_i32_0 : i32, i32
  }
  func.func @transform_13(%arg0: i32, %arg1: i32) -> (i32, i32) {
    %c0_i32 = arith.constant 0 : i32
    %c0_i32_0 = arith.constant 0 : i32
    %c0_i32_1 = arith.constant 0 : i32
    return %c0_i32, %c0_i32_0 : i32, i32
  }
  func.func @transform_14(%arg0: i32, %arg1: i32) -> (i32, i32) {
    %c0_i32 = arith.constant 0 : i32
    %c0_i32_0 = arith.constant 0 : i32
    %c0_i32_1 = arith.constant 0 : i32
    return %c0_i32, %c0_i32_0 : i32, i32
  }
  func.func @transform_15(%arg0: i32, %arg1: i32) -> (i32, i32) {
    %c0_i32 = arith.constant 0 : i32
    %c0_i32_0 = arith.constant 0 : i32
    %c0_i32_1 = arith.constant 0 : i32
    return %c0_i32, %c0_i32_0 : i32, i32
  }
  func.func @transform_16(%arg0: i32, %arg1: i32) -> (i32, i32) {
    %c0_i32 = arith.constant 0 : i32
    %c0_i32_0 = arith.constant 0 : i32
    %c0_i32_1 = arith.constant 0 : i32
    return %c0_i32, %c0_i32_0 : i32, i32
  }
  func.func @transform_17(%arg0: i32, %arg1: i32) -> (i32, i32) {
    %c0_i32 = arith.constant 0 : i32
    %c0_i32_0 = arith.constant 0 : i32
    %c0_i32_1 = arith.constant 0 : i32
    return %c0_i32, %c0_i32_0 : i32, i32
  }
  func.func @transform_18(%arg0: i32, %arg1: i32) -> (i32, i32) {
    %c0_i32 = arith.constant 0 : i32
    %c0_i32_0 = arith.constant 0 : i32
    %c0_i32_1 = arith.constant 0 : i32
    return %c0_i32, %c0_i32_0 : i32, i32
  }
  func.func @transform_19(%arg0: i32, %arg1: i32) -> (i32, i32, i32) {
    %c0_i32 = arith.constant 0 : i32
    %c0_i32_0 = arith.constant 0 : i32
    return %arg0, %arg1, %c0_i32 : i32, i32, i32
  }
}

module attributes {stable_mosaic.version = 11 : i64} {
  func.func @encoder_layer_kernel(%arg0: i32, %arg1: i32, %arg2: memref<1x16x128xf32, #tpu.memory_space<vmem>>, %arg3: memref<1x16x128xbf16, #tpu.memory_space<vmem>>, %arg4: memref<1x16x16xi8, #tpu.memory_space<vmem>>, %arg5: memref<128x128xbf16, #tpu.memory_space<vmem>>, %arg6: memref<1x128xf32, #tpu.memory_space<vmem>>, %arg7: memref<128x128xbf16, #tpu.memory_space<vmem>>, %arg8: memref<1x128xf32, #tpu.memory_space<vmem>>, %arg9: memref<128x128xbf16, #tpu.memory_space<vmem>>, %arg10: memref<1x128xf32, #tpu.memory_space<vmem>>, %arg11: memref<128x128xbf16, #tpu.memory_space<vmem>>, %arg12: memref<1x128xf32, #tpu.memory_space<vmem>>, %arg13: memref<1x128xf32, #tpu.memory_space<vmem>>, %arg14: memref<1x128xf32, #tpu.memory_space<vmem>>, %arg15: memref<128x256xbf16, #tpu.memory_space<vmem>>, %arg16: memref<1x256xf32, #tpu.memory_space<vmem>>, %arg17: memref<256x128xbf16, #tpu.memory_space<vmem>>, %arg18: memref<1x128xf32, #tpu.memory_space<vmem>>, %arg19: memref<1x128xf32, #tpu.memory_space<vmem>>, %arg20: memref<1x128xf32, #tpu.memory_space<vmem>>, %arg21: memref<1x16x128xf32, #tpu.memory_space<vmem>>, %arg22: memref<16x128xbf16, #tpu.memory_space<vmem>>, %arg23: memref<16x128xbf16, #tpu.memory_space<vmem>>, %arg24: memref<16x128xbf16, #tpu.memory_space<vmem>>) attributes {dimension_semantics = [#tpu.dimension_semantics<parallel>, #tpu.dimension_semantics<arbitrary>], iteration_bounds = array<i64: 2, 1>, scalar_prefetch = 0 : i64, scratch_operands = 3 : i64, tpu.core_type = #tpu.core_type<tc>, window_params = [{transform_indices = @transform_0, window_bounds = array<i64: 1, 16, 128>}, {transform_indices = @transform_1, window_bounds = array<i64: 1, 16, 128>}, {transform_indices = @transform_2, window_bounds = array<i64: 1, 16, 16>}, {pipeline_mode = #tpu.pipeline_mode<synchronous>, transform_indices = @transform_3, window_bounds = array<i64: 128, 128>}, {pipeline_mode = #tpu.pipeline_mode<synchronous>, transform_indices = @transform_4, window_bounds = array<i64: 1, 128>}, {pipeline_mode = #tpu.pipeline_mode<synchronous>, transform_indices = @transform_5, window_bounds = array<i64: 128, 128>}, {pipeline_mode = #tpu.pipeline_mode<synchronous>, transform_indices = @transform_6, window_bounds = array<i64: 1, 128>}, {pipeline_mode = #tpu.pipeline_mode<synchronous>, transform_indices = @transform_7, window_bounds = array<i64: 128, 128>}, {pipeline_mode = #tpu.pipeline_mode<synchronous>, transform_indices = @transform_8, window_bounds = array<i64: 1, 128>}, {pipeline_mode = #tpu.pipeline_mode<synchronous>, transform_indices = @transform_9, window_bounds = array<i64: 128, 128>}, {pipeline_mode = #tpu.pipeline_mode<synchronous>, transform_indices = @transform_10, window_bounds = array<i64: 1, 128>}, {pipeline_mode = #tpu.pipeline_mode<synchronous>, transform_indices = @transform_11, window_bounds = array<i64: 1, 128>}, {pipeline_mode = #tpu.pipeline_mode<synchronous>, transform_indices = @transform_12, window_bounds = array<i64: 1, 128>}, {pipeline_mode = #tpu.pipeline_mode<synchronous>, transform_indices = @transform_13, window_bounds = array<i64: 128, 256>}, {pipeline_mode = #tpu.pipeline_mode<synchronous>, transform_indices = @transform_14, window_bounds = array<i64: 1, 256>}, {pipeline_mode = #tpu.pipeline_mode<synchronous>, transform_indices = @transform_15, window_bounds = array<i64: 256, 128>}, {pipeline_mode = #tpu.pipeline_mode<synchronous>, transform_indices = @transform_16, window_bounds = array<i64: 1, 128>}, {pipeline_mode = #tpu.pipeline_mode<synchronous>, transform_indices = @transform_17, window_bounds = array<i64: 1, 128>}, {pipeline_mode = #tpu.pipeline_mode<synchronous>, transform_indices = @transform_18, window_bounds = array<i64: 1, 128>}, {transform_indices = @transform_19, window_bounds = array<i64: 1, 16, 128>}]} {
    %c0 = arith.constant 0 : index
    %c0_0 = arith.constant 0 : index
    %c0_1 = arith.constant 0 : index
    %0 = vector.load %arg2[%c0, %c0_0, %c0_1] : memref<1x16x128xf32, #tpu.memory_space<vmem>>, vector<1x16x128xf32>
    %1 = vector.shape_cast %0 : vector<1x16x128xf32> to vector<16x128xf32>
    %c0_2 = arith.constant 0 : index
    %c0_3 = arith.constant 0 : index
    %c0_4 = arith.constant 0 : index
    %2 = vector.load %arg4[%c0_2, %c0_3, %c0_4] : memref<1x16x16xi8, #tpu.memory_space<vmem>>, vector<1x16x16xi8>
    %3 = vector.shape_cast %2 : vector<1x16x16xi8> to vector<16x16xi8>
    %c0_i8 = arith.constant 0 : i8
    %4 = vector.broadcast %c0_i8 : i8 to vector<16x16xi8>
    %5 = arith.cmpi ne, %3, %4 : vector<16x16xi8>
    %c0_i32 = arith.constant 0 : i32
    %6 = arith.cmpi eq, %arg1, %c0_i32 : i32
    %7 = arith.extui %6 : i1 to i32
    %c0_i32_5 = arith.constant 0 : i32
    %8 = arith.cmpi ne, %7, %c0_i32_5 : i32
    scf.if %8 {
      %c0_78 = arith.constant 0 : index
      %c0_79 = arith.constant 0 : index
      %c0_80 = arith.constant 0 : index
      %174 = vector.load %arg3[%c0_78, %c0_79, %c0_80] : memref<1x16x128xbf16, #tpu.memory_space<vmem>>, vector<1x16x128xbf16>
      %175 = vector.shape_cast %174 : vector<1x16x128xbf16> to vector<16x128xbf16>
      %c0_81 = arith.constant 0 : index
      %c0_82 = arith.constant 0 : index
      %176 = vector.load %arg7[%c0_81, %c0_82] : memref<128x128xbf16, #tpu.memory_space<vmem>>, vector<128x128xbf16>
      %cst_83 = arith.constant dense<0.000000e+00> : vector<16x128xf32>
      %177 = tpu.matmul %175, %176, %cst_83 {dimension_numbers = #tpu.dot_dimension_numbers<[1], [0], [0], [1], [0, 0, 1, 1], [], []>} : vector<16x128xbf16>, vector<128x128xbf16>, vector<16x128xf32> -> vector<16x128xf32>
      %c0_84 = arith.constant 0 : index
      %c0_85 = arith.constant 0 : index
      %178 = vector.load %arg8[%c0_84, %c0_85] : memref<1x128xf32, #tpu.memory_space<vmem>>, vector<1x128xf32>
      %179 = vector.broadcast %178 : vector<1x128xf32> to vector<16x128xf32>
      %180 = arith.addf %177, %179 : vector<16x128xf32>
      %c0_86 = arith.constant 0 : index
      %c0_87 = arith.constant 0 : index
      %181 = vector.load %arg9[%c0_86, %c0_87] : memref<128x128xbf16, #tpu.memory_space<vmem>>, vector<128x128xbf16>
      %cst_88 = arith.constant dense<0.000000e+00> : vector<16x128xf32>
      %182 = tpu.matmul %175, %181, %cst_88 {dimension_numbers = #tpu.dot_dimension_numbers<[1], [0], [0], [1], [0, 0, 1, 1], [], []>} : vector<16x128xbf16>, vector<128x128xbf16>, vector<16x128xf32> -> vector<16x128xf32>
      %c0_89 = arith.constant 0 : index
      %c0_90 = arith.constant 0 : index
      %183 = vector.load %arg10[%c0_89, %c0_90] : memref<1x128xf32, #tpu.memory_space<vmem>>, vector<1x128xf32>
      %184 = vector.broadcast %183 : vector<1x128xf32> to vector<16x128xf32>
      %185 = arith.addf %182, %184 : vector<16x128xf32>
      %186 = arith.truncf %180 : vector<16x128xf32> to vector<16x128xbf16>
      %c0_91 = arith.constant 0 : index
      %c0_92 = arith.constant 0 : index
      %187 = vector.load %arg22[%c0_91, %c0_92] : memref<16x128xbf16, #tpu.memory_space<vmem>>, vector<16x128xbf16>
      tpu.vector_store %arg22[%c0_91, %c0_92], %186 {strides = array<i32>} : memref<16x128xbf16, #tpu.memory_space<vmem>>, vector<16x128xbf16>,
      %188 = arith.truncf %185 : vector<16x128xf32> to vector<16x128xbf16>
      %c0_93 = arith.constant 0 : index
      %c0_94 = arith.constant 0 : index
      %189 = vector.load %arg23[%c0_93, %c0_94] : memref<16x128xbf16, #tpu.memory_space<vmem>>, vector<16x128xbf16>
      tpu.vector_store %arg23[%c0_93, %c0_94], %188 {strides = array<i32>} : memref<16x128xbf16, #tpu.memory_space<vmem>>, vector<16x128xbf16>,
    } else {
    }
    %9 = arith.truncf %1 : vector<16x128xf32> to vector<16x128xbf16>
    %c0_6 = arith.constant 0 : index
    %c0_7 = arith.constant 0 : index
    %10 = vector.load %arg5[%c0_6, %c0_7] : memref<128x128xbf16, #tpu.memory_space<vmem>>, vector<128x128xbf16>
    %cst = arith.constant dense<0.000000e+00> : vector<16x128xf32>
    %11 = tpu.matmul %9, %10, %cst {dimension_numbers = #tpu.dot_dimension_numbers<[1], [0], [0], [1], [0, 0, 1, 1], [], []>} : vector<16x128xbf16>, vector<128x128xbf16>, vector<16x128xf32> -> vector<16x128xf32>
    %c0_8 = arith.constant 0 : index
    %c0_9 = arith.constant 0 : index
    %12 = vector.load %arg6[%c0_8, %c0_9] : memref<1x128xf32, #tpu.memory_space<vmem>>, vector<1x128xf32>
    %13 = vector.broadcast %12 : vector<1x128xf32> to vector<16x128xf32>
    %14 = arith.addf %11, %13 : vector<16x128xf32>
    %c0_10 = arith.constant 0 : index
    %c0_11 = arith.constant 0 : index
    %15 = vector.load %arg22[%c0_10, %c0_11] : memref<16x128xbf16, #tpu.memory_space<vmem>>, vector<16x128xbf16>
    %c0_12 = arith.constant 0 : index
    %c0_13 = arith.constant 0 : index
    %16 = vector.load %arg23[%c0_12, %c0_13] : memref<16x128xbf16, #tpu.memory_space<vmem>>, vector<16x128xbf16>
    %17 = vector.extract_strided_slice %14 {offsets = [0, 0], sizes = [16, 32], strides = [1, 1]} : vector<16x128xf32> to vector<16x32xf32>
    %18 = arith.truncf %17 : vector<16x32xf32> to vector<16x32xbf16>
    %19 = vector.extract_strided_slice %15 {offsets = [0, 0], sizes = [16, 32], strides = [1, 1]} : vector<16x128xbf16> to vector<16x32xbf16>
    %20 = vector.extract_strided_slice %16 {offsets = [0, 0], sizes = [16, 32], strides = [1, 1]} : vector<16x128xbf16> to vector<16x32xbf16>
    %cst_14 = arith.constant dense<0.000000e+00> : vector<16x16xf32>
    %21 = tpu.matmul %18, %19, %cst_14 {dimension_numbers = #tpu.dot_dimension_numbers<[1], [1], [0], [0], [0, 0, 1, 0], [], []>} : vector<16x32xbf16>, vector<16x32xbf16>, vector<16x16xf32> -> vector<16x16xf32>
    %cst_15 = arith.constant -1.000000e+09 : f32
    %22 = vector.broadcast %cst_15 : f32 to vector<16x16xf32>
    %23 = arith.select %5, %21, %22 : vector<16x16xi1>, vector<16x16xf32>
    %cst_16 = arith.constant dense<0xFF800000> : vector<16xf32>
    %24 = vector.multi_reduction <maximumf>, %23, %cst_16 [1] : vector<16x16xf32> to vector<16xf32>
    %25 = vector.shape_cast %24 : vector<16xf32> to vector<16x1xf32>
    %26 = vector.broadcast %25 : vector<16x1xf32> to vector<16x16xf32>
    %27 = arith.subf %23, %26 : vector<16x16xf32>
    %28 = math.exp %27 : vector<16x16xf32>
    %cst_17 = arith.constant dense<0.000000e+00> : vector<16xf32>
    %29 = vector.multi_reduction <add>, %28, %cst_17 [1] : vector<16x16xf32> to vector<16xf32>
    %30 = vector.shape_cast %29 : vector<16xf32> to vector<16x1xf32>
    %31 = tpu.reciprocal %30 {approx = true} : vector<16x1xf32> -> vector<16x1xf32>
    %32 = vector.broadcast %31 : vector<16x1xf32> to vector<16x16xf32>
    %33 = arith.mulf %28, %32 : vector<16x16xf32>
    %34 = arith.truncf %33 : vector<16x16xf32> to vector<16x16xbf16>
    %cst_18 = arith.constant dense<0.000000e+00> : vector<16x32xf32>
    %35 = tpu.matmul %34, %20, %cst_18 {dimension_numbers = #tpu.dot_dimension_numbers<[1], [0], [0], [1], [0, 0, 1, 1], [], []>} : vector<16x16xbf16>, vector<16x32xbf16>, vector<16x32xf32> -> vector<16x32xf32>
    %36 = arith.truncf %35 : vector<16x32xf32> to vector<16x32xbf16>
    %c0_19 = arith.constant 0 : index
    %c0_20 = arith.constant 0 : index
    %37 = vector.load %arg24[%c0_19, %c0_20] : memref<16x128xbf16, #tpu.memory_space<vmem>>, vector<16x32xbf16>
    tpu.vector_store %arg24[%c0_19, %c0_20], %36 {strides = array<i32>} : memref<16x128xbf16, #tpu.memory_space<vmem>>, vector<16x32xbf16>,
    %38 = vector.extract_strided_slice %14 {offsets = [0, 32], sizes = [16, 32], strides = [1, 1]} : vector<16x128xf32> to vector<16x32xf32>
    %39 = arith.truncf %38 : vector<16x32xf32> to vector<16x32xbf16>
    %40 = vector.extract_strided_slice %15 {offsets = [0, 32], sizes = [16, 32], strides = [1, 1]} : vector<16x128xbf16> to vector<16x32xbf16>
    %41 = vector.extract_strided_slice %16 {offsets = [0, 32], sizes = [16, 32], strides = [1, 1]} : vector<16x128xbf16> to vector<16x32xbf16>
    %cst_21 = arith.constant dense<0.000000e+00> : vector<16x16xf32>
    %42 = tpu.matmul %39, %40, %cst_21 {dimension_numbers = #tpu.dot_dimension_numbers<[1], [1], [0], [0], [0, 0, 1, 0], [], []>} : vector<16x32xbf16>, vector<16x32xbf16>, vector<16x16xf32> -> vector<16x16xf32>
    %cst_22 = arith.constant -1.000000e+09 : f32
    %43 = vector.broadcast %cst_22 : f32 to vector<16x16xf32>
    %44 = arith.select %5, %42, %43 : vector<16x16xi1>, vector<16x16xf32>
    %cst_23 = arith.constant dense<0xFF800000> : vector<16xf32>
    %45 = vector.multi_reduction <maximumf>, %44, %cst_23 [1] : vector<16x16xf32> to vector<16xf32>
    %46 = vector.shape_cast %45 : vector<16xf32> to vector<16x1xf32>
    %47 = vector.broadcast %46 : vector<16x1xf32> to vector<16x16xf32>
    %48 = arith.subf %44, %47 : vector<16x16xf32>
    %49 = math.exp %48 : vector<16x16xf32>
    %cst_24 = arith.constant dense<0.000000e+00> : vector<16xf32>
    %50 = vector.multi_reduction <add>, %49, %cst_24 [1] : vector<16x16xf32> to vector<16xf32>
    %51 = vector.shape_cast %50 : vector<16xf32> to vector<16x1xf32>
    %52 = tpu.reciprocal %51 {approx = true} : vector<16x1xf32> -> vector<16x1xf32>
    %53 = vector.broadcast %52 : vector<16x1xf32> to vector<16x16xf32>
    %54 = arith.mulf %49, %53 : vector<16x16xf32>
    %55 = arith.truncf %54 : vector<16x16xf32> to vector<16x16xbf16>
    %cst_25 = arith.constant dense<0.000000e+00> : vector<16x32xf32>
    %56 = tpu.matmul %55, %41, %cst_25 {dimension_numbers = #tpu.dot_dimension_numbers<[1], [0], [0], [1], [0, 0, 1, 1], [], []>} : vector<16x16xbf16>, vector<16x32xbf16>, vector<16x32xf32> -> vector<16x32xf32>
    %57 = arith.truncf %56 : vector<16x32xf32> to vector<16x32xbf16>
    %c0_26 = arith.constant 0 : index
    %c32 = arith.constant 32 : index
    %58 = vector.load %arg24[%c0_26, %c32] : memref<16x128xbf16, #tpu.memory_space<vmem>>, vector<16x32xbf16>
    tpu.vector_store %arg24[%c0_26, %c32], %57 {strides = array<i32>} : memref<16x128xbf16, #tpu.memory_space<vmem>>, vector<16x32xbf16>,
    %59 = vector.extract_strided_slice %14 {offsets = [0, 64], sizes = [16, 32], strides = [1, 1]} : vector<16x128xf32> to vector<16x32xf32>
    %60 = arith.truncf %59 : vector<16x32xf32> to vector<16x32xbf16>
    %61 = vector.extract_strided_slice %15 {offsets = [0, 64], sizes = [16, 32], strides = [1, 1]} : vector<16x128xbf16> to vector<16x32xbf16>
    %62 = vector.extract_strided_slice %16 {offsets = [0, 64], sizes = [16, 32], strides = [1, 1]} : vector<16x128xbf16> to vector<16x32xbf16>
    %cst_27 = arith.constant dense<0.000000e+00> : vector<16x16xf32>
    %63 = tpu.matmul %60, %61, %cst_27 {dimension_numbers = #tpu.dot_dimension_numbers<[1], [1], [0], [0], [0, 0, 1, 0], [], []>} : vector<16x32xbf16>, vector<16x32xbf16>, vector<16x16xf32> -> vector<16x16xf32>
    %cst_28 = arith.constant -1.000000e+09 : f32
    %64 = vector.broadcast %cst_28 : f32 to vector<16x16xf32>
    %65 = arith.select %5, %63, %64 : vector<16x16xi1>, vector<16x16xf32>
    %cst_29 = arith.constant dense<0xFF800000> : vector<16xf32>
    %66 = vector.multi_reduction <maximumf>, %65, %cst_29 [1] : vector<16x16xf32> to vector<16xf32>
    %67 = vector.shape_cast %66 : vector<16xf32> to vector<16x1xf32>
    %68 = vector.broadcast %67 : vector<16x1xf32> to vector<16x16xf32>
    %69 = arith.subf %65, %68 : vector<16x16xf32>
    %70 = math.exp %69 : vector<16x16xf32>
    %cst_30 = arith.constant dense<0.000000e+00> : vector<16xf32>
    %71 = vector.multi_reduction <add>, %70, %cst_30 [1] : vector<16x16xf32> to vector<16xf32>
    %72 = vector.shape_cast %71 : vector<16xf32> to vector<16x1xf32>
    %73 = tpu.reciprocal %72 {approx = true} : vector<16x1xf32> -> vector<16x1xf32>
    %74 = vector.broadcast %73 : vector<16x1xf32> to vector<16x16xf32>
    %75 = arith.mulf %70, %74 : vector<16x16xf32>
    %76 = arith.truncf %75 : vector<16x16xf32> to vector<16x16xbf16>
    %cst_31 = arith.constant dense<0.000000e+00> : vector<16x32xf32>
    %77 = tpu.matmul %76, %62, %cst_31 {dimension_numbers = #tpu.dot_dimension_numbers<[1], [0], [0], [1], [0, 0, 1, 1], [], []>} : vector<16x16xbf16>, vector<16x32xbf16>, vector<16x32xf32> -> vector<16x32xf32>
    %78 = arith.truncf %77 : vector<16x32xf32> to vector<16x32xbf16>
    %c0_32 = arith.constant 0 : index
    %c64 = arith.constant 64 : index
    %79 = vector.load %arg24[%c0_32, %c64] : memref<16x128xbf16, #tpu.memory_space<vmem>>, vector<16x32xbf16>
    tpu.vector_store %arg24[%c0_32, %c64], %78 {strides = array<i32>} : memref<16x128xbf16, #tpu.memory_space<vmem>>, vector<16x32xbf16>,
    %80 = vector.extract_strided_slice %14 {offsets = [0, 96], sizes = [16, 32], strides = [1, 1]} : vector<16x128xf32> to vector<16x32xf32>
    %81 = arith.truncf %80 : vector<16x32xf32> to vector<16x32xbf16>
    %82 = vector.extract_strided_slice %15 {offsets = [0, 96], sizes = [16, 32], strides = [1, 1]} : vector<16x128xbf16> to vector<16x32xbf16>
    %83 = vector.extract_strided_slice %16 {offsets = [0, 96], sizes = [16, 32], strides = [1, 1]} : vector<16x128xbf16> to vector<16x32xbf16>
    %cst_33 = arith.constant dense<0.000000e+00> : vector<16x16xf32>
    %84 = tpu.matmul %81, %82, %cst_33 {dimension_numbers = #tpu.dot_dimension_numbers<[1], [1], [0], [0], [0, 0, 1, 0], [], []>} : vector<16x32xbf16>, vector<16x32xbf16>, vector<16x16xf32> -> vector<16x16xf32>
    %cst_34 = arith.constant -1.000000e+09 : f32
    %85 = vector.broadcast %cst_34 : f32 to vector<16x16xf32>
    %86 = arith.select %5, %84, %85 : vector<16x16xi1>, vector<16x16xf32>
    %cst_35 = arith.constant dense<0xFF800000> : vector<16xf32>
    %87 = vector.multi_reduction <maximumf>, %86, %cst_35 [1] : vector<16x16xf32> to vector<16xf32>
    %88 = vector.shape_cast %87 : vector<16xf32> to vector<16x1xf32>
    %89 = vector.broadcast %88 : vector<16x1xf32> to vector<16x16xf32>
    %90 = arith.subf %86, %89 : vector<16x16xf32>
    %91 = math.exp %90 : vector<16x16xf32>
    %cst_36 = arith.constant dense<0.000000e+00> : vector<16xf32>
    %92 = vector.multi_reduction <add>, %91, %cst_36 [1] : vector<16x16xf32> to vector<16xf32>
    %93 = vector.shape_cast %92 : vector<16xf32> to vector<16x1xf32>
    %94 = tpu.reciprocal %93 {approx = true} : vector<16x1xf32> -> vector<16x1xf32>
    %95 = vector.broadcast %94 : vector<16x1xf32> to vector<16x16xf32>
    %96 = arith.mulf %91, %95 : vector<16x16xf32>
    %97 = arith.truncf %96 : vector<16x16xf32> to vector<16x16xbf16>
    %cst_37 = arith.constant dense<0.000000e+00> : vector<16x32xf32>
    %98 = tpu.matmul %97, %83, %cst_37 {dimension_numbers = #tpu.dot_dimension_numbers<[1], [0], [0], [1], [0, 0, 1, 1], [], []>} : vector<16x16xbf16>, vector<16x32xbf16>, vector<16x32xf32> -> vector<16x32xf32>
    %99 = arith.truncf %98 : vector<16x32xf32> to vector<16x32xbf16>
    %c0_38 = arith.constant 0 : index
    %c96 = arith.constant 96 : index
    %100 = vector.load %arg24[%c0_38, %c96] : memref<16x128xbf16, #tpu.memory_space<vmem>>, vector<16x32xbf16>
    tpu.vector_store %arg24[%c0_38, %c96], %99 {strides = array<i32>} : memref<16x128xbf16, #tpu.memory_space<vmem>>, vector<16x32xbf16>,
    %c0_39 = arith.constant 0 : index
    %c0_40 = arith.constant 0 : index
    %101 = vector.load %arg24[%c0_39, %c0_40] : memref<16x128xbf16, #tpu.memory_space<vmem>>, vector<16x128xbf16>
    %c0_41 = arith.constant 0 : index
    %c0_42 = arith.constant 0 : index
    %102 = vector.load %arg11[%c0_41, %c0_42] : memref<128x128xbf16, #tpu.memory_space<vmem>>, vector<128x128xbf16>
    %cst_43 = arith.constant dense<0.000000e+00> : vector<16x128xf32>
    %103 = tpu.matmul %101, %102, %cst_43 {dimension_numbers = #tpu.dot_dimension_numbers<[1], [0], [0], [1], [0, 0, 1, 1], [], []>} : vector<16x128xbf16>, vector<128x128xbf16>, vector<16x128xf32> -> vector<16x128xf32>
    %c0_44 = arith.constant 0 : index
    %c0_45 = arith.constant 0 : index
    %104 = vector.load %arg12[%c0_44, %c0_45] : memref<1x128xf32, #tpu.memory_space<vmem>>, vector<1x128xf32>
    %105 = vector.broadcast %104 : vector<1x128xf32> to vector<16x128xf32>
    %106 = arith.addf %103, %105 : vector<16x128xf32>
    %107 = arith.addf %106, %1 : vector<16x128xf32>
    %c0_46 = arith.constant 0 : index
    %c0_47 = arith.constant 0 : index
    %108 = vector.load %arg13[%c0_46, %c0_47] : memref<1x128xf32, #tpu.memory_space<vmem>>, vector<1x128xf32>
    %c0_48 = arith.constant 0 : index
    %c0_49 = arith.constant 0 : index
    %109 = vector.load %arg14[%c0_48, %c0_49] : memref<1x128xf32, #tpu.memory_space<vmem>>, vector<1x128xf32>
    %cst_50 = arith.constant dense<0.000000e+00> : vector<16xf32>
    %110 = vector.multi_reduction <add>, %107, %cst_50 [1] : vector<16x128xf32> to vector<16xf32>
    %111 = vector.shape_cast %110 : vector<16xf32> to vector<16x1xf32>
    %cst_51 = arith.constant 1.280000e+02 : f32
    %112 = vector.broadcast %cst_51 : f32 to vector<16x1xf32>
    %113 = arith.divf %111, %112 : vector<16x1xf32>
    %114 = vector.broadcast %113 : vector<16x1xf32> to vector<16x128xf32>
    %115 = arith.subf %107, %114 : vector<16x128xf32>
    %116 = arith.mulf %115, %115 : vector<16x128xf32>
    %cst_52 = arith.constant dense<0.000000e+00> : vector<16xf32>
    %117 = vector.multi_reduction <add>, %116, %cst_52 [1] : vector<16x128xf32> to vector<16xf32>
    %118 = vector.shape_cast %117 : vector<16xf32> to vector<16x1xf32>
    %cst_53 = arith.constant 1.280000e+02 : f32
    %119 = vector.broadcast %cst_53 : f32 to vector<16x1xf32>
    %120 = arith.divf %118, %119 : vector<16x1xf32>
    %121 = vector.broadcast %113 : vector<16x1xf32> to vector<16x128xf32>
    %122 = arith.subf %107, %121 : vector<16x128xf32>
    %cst_54 = arith.constant 9.99999974E-6 : f32
    %123 = vector.broadcast %cst_54 : f32 to vector<16x1xf32>
    %124 = arith.addf %120, %123 : vector<16x1xf32>
    %125 = math.rsqrt %124 : vector<16x1xf32>
    %126 = vector.broadcast %125 : vector<16x1xf32> to vector<16x128xf32>
    %127 = arith.mulf %122, %126 : vector<16x128xf32>
    %128 = vector.broadcast %108 : vector<1x128xf32> to vector<16x128xf32>
    %129 = arith.mulf %127, %128 : vector<16x128xf32>
    %130 = vector.broadcast %109 : vector<1x128xf32> to vector<16x128xf32>
    %131 = arith.addf %129, %130 : vector<16x128xf32>
    %132 = arith.truncf %131 : vector<16x128xf32> to vector<16x128xbf16>
    %c0_55 = arith.constant 0 : index
    %c0_56 = arith.constant 0 : index
    %133 = vector.load %arg15[%c0_55, %c0_56] : memref<128x256xbf16, #tpu.memory_space<vmem>>, vector<128x256xbf16>
    %cst_57 = arith.constant dense<0.000000e+00> : vector<16x256xf32>
    %134 = tpu.matmul %132, %133, %cst_57 {dimension_numbers = #tpu.dot_dimension_numbers<[1], [0], [0], [1], [0, 0, 1, 1], [], []>} : vector<16x128xbf16>, vector<128x256xbf16>, vector<16x256xf32> -> vector<16x256xf32>
    %c0_58 = arith.constant 0 : index
    %c0_59 = arith.constant 0 : index
    %135 = vector.load %arg16[%c0_58, %c0_59] : memref<1x256xf32, #tpu.memory_space<vmem>>, vector<1x256xf32>
    %136 = vector.broadcast %135 : vector<1x256xf32> to vector<16x256xf32>
    %137 = arith.addf %134, %136 : vector<16x256xf32>
    %cst_60 = arith.constant 0.000000e+00 : f32
    %138 = vector.broadcast %cst_60 : f32 to vector<16x256xf32>
    %139 = arith.maximumf %137, %138 : vector<16x256xf32>
    %140 = arith.truncf %139 : vector<16x256xf32> to vector<16x256xbf16>
    %c0_61 = arith.constant 0 : index
    %c0_62 = arith.constant 0 : index
    %141 = vector.load %arg17[%c0_61, %c0_62] : memref<256x128xbf16, #tpu.memory_space<vmem>>, vector<256x128xbf16>
    %cst_63 = arith.constant dense<0.000000e+00> : vector<16x128xf32>
    %142 = tpu.matmul %140, %141, %cst_63 {dimension_numbers = #tpu.dot_dimension_numbers<[1], [0], [0], [1], [0, 0, 1, 1], [], []>} : vector<16x256xbf16>, vector<256x128xbf16>, vector<16x128xf32> -> vector<16x128xf32>
    %c0_64 = arith.constant 0 : index
    %c0_65 = arith.constant 0 : index
    %143 = vector.load %arg18[%c0_64, %c0_65] : memref<1x128xf32, #tpu.memory_space<vmem>>, vector<1x128xf32>
    %144 = vector.broadcast %143 : vector<1x128xf32> to vector<16x128xf32>
    %145 = arith.addf %142, %144 : vector<16x128xf32>
    %146 = arith.addf %145, %131 : vector<16x128xf32>
    %c0_66 = arith.constant 0 : index
    %c0_67 = arith.constant 0 : index
    %147 = vector.load %arg19[%c0_66, %c0_67] : memref<1x128xf32, #tpu.memory_space<vmem>>, vector<1x128xf32>
    %c0_68 = arith.constant 0 : index
    %c0_69 = arith.constant 0 : index
    %148 = vector.load %arg20[%c0_68, %c0_69] : memref<1x128xf32, #tpu.memory_space<vmem>>, vector<1x128xf32>
    %cst_70 = arith.constant dense<0.000000e+00> : vector<16xf32>
    %149 = vector.multi_reduction <add>, %146, %cst_70 [1] : vector<16x128xf32> to vector<16xf32>
    %150 = vector.shape_cast %149 : vector<16xf32> to vector<16x1xf32>
    %cst_71 = arith.constant 1.280000e+02 : f32
    %151 = vector.broadcast %cst_71 : f32 to vector<16x1xf32>
    %152 = arith.divf %150, %151 : vector<16x1xf32>
    %153 = vector.broadcast %152 : vector<16x1xf32> to vector<16x128xf32>
    %154 = arith.subf %146, %153 : vector<16x128xf32>
    %155 = arith.mulf %154, %154 : vector<16x128xf32>
    %cst_72 = arith.constant dense<0.000000e+00> : vector<16xf32>
    %156 = vector.multi_reduction <add>, %155, %cst_72 [1] : vector<16x128xf32> to vector<16xf32>
    %157 = vector.shape_cast %156 : vector<16xf32> to vector<16x1xf32>
    %cst_73 = arith.constant 1.280000e+02 : f32
    %158 = vector.broadcast %cst_73 : f32 to vector<16x1xf32>
    %159 = arith.divf %157, %158 : vector<16x1xf32>
    %160 = vector.broadcast %152 : vector<16x1xf32> to vector<16x128xf32>
    %161 = arith.subf %146, %160 : vector<16x128xf32>
    %cst_74 = arith.constant 9.99999974E-6 : f32
    %162 = vector.broadcast %cst_74 : f32 to vector<16x1xf32>
    %163 = arith.addf %159, %162 : vector<16x1xf32>
    %164 = math.rsqrt %163 : vector<16x1xf32>
    %165 = vector.broadcast %164 : vector<16x1xf32> to vector<16x128xf32>
    %166 = arith.mulf %161, %165 : vector<16x128xf32>
    %167 = vector.broadcast %147 : vector<1x128xf32> to vector<16x128xf32>
    %168 = arith.mulf %166, %167 : vector<16x128xf32>
    %169 = vector.broadcast %148 : vector<1x128xf32> to vector<16x128xf32>
    %170 = arith.addf %168, %169 : vector<16x128xf32>
    %c0_75 = arith.constant 0 : index
    %c0_76 = arith.constant 0 : index
    %c0_77 = arith.constant 0 : index
    %171 = vector.load %arg21[%c0_75, %c0_76, %c0_77] : memref<1x16x128xf32, #tpu.memory_space<vmem>>, vector<1x16x128xf32>
    %172 = vector.shape_cast %171 : vector<1x16x128xf32> to vector<16x128xf32>
    %173 = vector.shape_cast %170 : vector<16x128xf32> to vector<1x16x128xf32>
    tpu.vector_store %arg21[%c0_75, %c0_76, %c0_77], %173 {strides = array<i32>} : memref<1x16x128xf32, #tpu.memory_space<vmem>>, vector<1x16x128xf32>,
    return
  }
  func.func @transform_0(%arg0: i32, %arg1: i32) -> (i32, i32, i32) {
    %c0_i32 = arith.constant 0 : i32
    %c0_i32_0 = arith.constant 0 : i32
    return %arg0, %arg1, %c0_i32 : i32, i32, i32
  }
  func.func @transform_1(%arg0: i32, %arg1: i32) -> (i32, i32, i32) {
    %c0_i32 = arith.constant 0 : i32
    %c0_i32_0 = arith.constant 0 : i32
    %c0_i32_1 = arith.constant 0 : i32
    return %arg0, %c0_i32, %c0_i32_0 : i32, i32, i32
  }
  func.func @transform_2(%arg0: i32, %arg1: i32) -> (i32, i32, i32) {
    %c0_i32 = arith.constant 0 : i32
    %c0_i32_0 = arith.constant 0 : i32
    return %arg0, %arg1, %c0_i32 : i32, i32, i32
  }
  func.func @transform_3(%arg0: i32, %arg1: i32) -> (i32, i32) {
    %c0_i32 = arith.constant 0 : i32
    %c0_i32_0 = arith.constant 0 : i32
    %c0_i32_1 = arith.constant 0 : i32
    return %c0_i32, %c0_i32_0 : i32, i32
  }
  func.func @transform_4(%arg0: i32, %arg1: i32) -> (i32, i32) {
    %c0_i32 = arith.constant 0 : i32
    %c0_i32_0 = arith.constant 0 : i32
    %c0_i32_1 = arith.constant 0 : i32
    return %c0_i32, %c0_i32_0 : i32, i32
  }
  func.func @transform_5(%arg0: i32, %arg1: i32) -> (i32, i32) {
    %c0_i32 = arith.constant 0 : i32
    %c0_i32_0 = arith.constant 0 : i32
    %c0_i32_1 = arith.constant 0 : i32
    return %c0_i32, %c0_i32_0 : i32, i32
  }
  func.func @transform_6(%arg0: i32, %arg1: i32) -> (i32, i32) {
    %c0_i32 = arith.constant 0 : i32
    %c0_i32_0 = arith.constant 0 : i32
    %c0_i32_1 = arith.constant 0 : i32
    return %c0_i32, %c0_i32_0 : i32, i32
  }
  func.func @transform_7(%arg0: i32, %arg1: i32) -> (i32, i32) {
    %c0_i32 = arith.constant 0 : i32
    %c0_i32_0 = arith.constant 0 : i32
    %c0_i32_1 = arith.constant 0 : i32
    return %c0_i32, %c0_i32_0 : i32, i32
  }
  func.func @transform_8(%arg0: i32, %arg1: i32) -> (i32, i32) {
    %c0_i32 = arith.constant 0 : i32
    %c0_i32_0 = arith.constant 0 : i32
    %c0_i32_1 = arith.constant 0 : i32
    return %c0_i32, %c0_i32_0 : i32, i32
  }
  func.func @transform_9(%arg0: i32, %arg1: i32) -> (i32, i32) {
    %c0_i32 = arith.constant 0 : i32
    %c0_i32_0 = arith.constant 0 : i32
    %c0_i32_1 = arith.constant 0 : i32
    return %c0_i32, %c0_i32_0 : i32, i32
  }
  func.func @transform_10(%arg0: i32, %arg1: i32) -> (i32, i32) {
    %c0_i32 = arith.constant 0 : i32
    %c0_i32_0 = arith.constant 0 : i32
    %c0_i32_1 = arith.constant 0 : i32
    return %c0_i32, %c0_i32_0 : i32, i32
  }
  func.func @transform_11(%arg0: i32, %arg1: i32) -> (i32, i32) {
    %c0_i32 = arith.constant 0 : i32
    %c0_i32_0 = arith.constant 0 : i32
    %c0_i32_1 = arith.constant 0 : i32
    return %c0_i32, %c0_i32_0 : i32, i32
  }
  func.func @transform_12(%arg0: i32, %arg1: i32) -> (i32, i32) {
    %c0_i32 = arith.constant 0 : i32
    %c0_i32_0 = arith.constant 0 : i32
    %c0_i32_1 = arith.constant 0 : i32
    return %c0_i32, %c0_i32_0 : i32, i32
  }
  func.func @transform_13(%arg0: i32, %arg1: i32) -> (i32, i32) {
    %c0_i32 = arith.constant 0 : i32
    %c0_i32_0 = arith.constant 0 : i32
    %c0_i32_1 = arith.constant 0 : i32
    return %c0_i32, %c0_i32_0 : i32, i32
  }
  func.func @transform_14(%arg0: i32, %arg1: i32) -> (i32, i32) {
    %c0_i32 = arith.constant 0 : i32
    %c0_i32_0 = arith.constant 0 : i32
    %c0_i32_1 = arith.constant 0 : i32
    return %c0_i32, %c0_i32_0 : i32, i32
  }
  func.func @transform_15(%arg0: i32, %arg1: i32) -> (i32, i32) {
    %c0_i32 = arith.constant 0 : i32
    %c0_i32_0 = arith.constant 0 : i32
    %c0_i32_1 = arith.constant 0 : i32
    return %c0_i32, %c0_i32_0 : i32, i32
  }
  func.func @transform_16(%arg0: i32, %arg1: i32) -> (i32, i32) {
    %c0_i32 = arith.constant 0 : i32
    %c0_i32_0 = arith.constant 0 : i32
    %c0_i32_1 = arith.constant 0 : i32
    return %c0_i32, %c0_i32_0 : i32, i32
  }
  func.func @transform_17(%arg0: i32, %arg1: i32) -> (i32, i32) {
    %c0_i32 = arith.constant 0 : i32
    %c0_i32_0 = arith.constant 0 : i32
    %c0_i32_1 = arith.constant 0 : i32
    return %c0_i32, %c0_i32_0 : i32, i32
  }
  func.func @transform_18(%arg0: i32, %arg1: i32) -> (i32, i32) {
    %c0_i32 = arith.constant 0 : i32
    %c0_i32_0 = arith.constant 0 : i32
    %c0_i32_1 = arith.constant 0 : i32
    return %c0_i32, %c0_i32_0 : i32, i32
  }
  func.func @transform_19(%arg0: i32, %arg1: i32) -> (i32, i32, i32) {
    %c0_i32 = arith.constant 0 : i32
    %c0_i32_0 = arith.constant 0 : i32
    return %arg0, %arg1, %c0_i32 : i32, i32, i32
  }
}

</mosaic_0001>

<llo_original>
// kernel: tpu_custom_call.1
$region0: #{tpu_custom_call.1}
  #allocation0 [shape = 'u32[]', space=smem, size = 0x4, offset = 0x4, fixed_abs, tag = 'smem constant byte address 0x4 - core index']
  #allocation1 [shape = 'u32[144,128]{1,0:T(1,128)}', space=vmem, size = 0x12000, scoped, tag = 'internal scratch']
  #allocation2 [shape = 'bf16[16,128]{1,0:T(16,128)(2,1)}', space=vmem, size = 0x1000, scoped, tag = 'scratch operand']
  #allocation3 [shape = 'bf16[16,128]{1,0:T(16,128)(2,1)}', space=vmem, size = 0x1000, scoped, tag = 'scratch operand']
  #allocation4 [shape = 'bf16[16,128]{1,0:T(16,128)(2,1)}', space=vmem, size = 0x1000, scoped, tag = 'scratch operand']
  %s0 = inlined_call_operand.hbm [shape: f32[2,16,128], index: 0, kind: input, shape index: {}]
  %s1 = inlined_call_operand.hbm [shape: bf16[2,16,128], index: 1, kind: input, shape index: {}]
  %s2 = inlined_call_operand.hbm [shape: s8[2,16,16], index: 2, kind: input, shape index: {}]
  %s3 = inlined_call_operand.hbm [shape: bf16[128,128], index: 3, kind: input, shape index: {}]
  %s4 = inlined_call_operand.vmem [shape: f32[1,128], index: 4, kind: input, shape index: {}]
  %s5 = inlined_call_operand.hbm [shape: bf16[128,128], index: 5, kind: input, shape index: {}]
  %s6 = inlined_call_operand.vmem [shape: f32[1,128], index: 6, kind: input, shape index: {}]
  %s7 = inlined_call_operand.hbm [shape: bf16[128,128], index: 7, kind: input, shape index: {}]
  %s8 = inlined_call_operand.vmem [shape: f32[1,128], index: 8, kind: input, shape index: {}]
  %s9 = inlined_call_operand.hbm [shape: bf16[128,128], index: 9, kind: input, shape index: {}]
  %s10 = inlined_call_operand.vmem [shape: f32[1,128], index: 10, kind: input, shape index: {}]
  %s11 = inlined_call_operand.vmem [shape: f32[1,128], index: 11, kind: input, shape index: {}]
  %s12 = inlined_call_operand.vmem [shape: f32[1,128], index: 12, kind: input, shape index: {}]
  %s13 = inlined_call_operand.hbm [shape: bf16[128,256], index: 13, kind: input, shape index: {}]
  %s14 = inlined_call_operand.vmem [shape: f32[1,256], index: 14, kind: input, shape index: {}]
  %s15 = inlined_call_operand.hbm [shape: bf16[256,128], index: 15, kind: input, shape index: {}]
  %s16 = inlined_call_operand.vmem [shape: f32[1,128], index: 16, kind: input, shape index: {}]
  %s17 = inlined_call_operand.vmem [shape: f32[1,128], index: 17, kind: input, shape index: {}]
  %s18 = inlined_call_operand.vmem [shape: f32[1,128], index: 18, kind: input, shape index: {}]
  %s19 = inlined_call_operand.hbm [shape: f32[2,16,128], index: 19, kind: output, shape index: {}]
  %s20 = sld [smem:[#allocation0]]
  $region149: #{tpu_custom_call.1} parent=0
    _
  %s22 = ssub.s32 1, %s20
  %s23 = scalar_select 0, %s22, %s20
  $region1: #{tpu_custom_call.1} parent=0
    #allocation5 [shape = 'u8[16384]{0}', space=vmem, size = 0x4000, scoped, tag = 'input window, operand 0']
    #allocation6 [shape = 's32[2]{0}', space=sflag, size = 0x8, scoped, tag = 'scoped memory for tpu_custom_call.1']
    #allocation7 [shape = 's32[2]{0}', space=sflag, size = 0x8, scoped, tag = 'scoped memory for tpu_custom_call.1']
    #allocation8 [shape = 'u8[8192]{0}', space=vmem, size = 0x2000, scoped, tag = 'input window, operand 1']
    #allocation9 [shape = 's32[2]{0}', space=sflag, size = 0x8, scoped, tag = 'scoped memory for tpu_custom_call.1']
    #allocation10 [shape = 'u8[4096]{0}', space=vmem, size = 0x1000, scoped, tag = 'input window, operand 2']
    #allocation11 [shape = 'u8[32768]{0}', space=vmem, size = 0x8000, scoped, tag = 'input window, operand 3, single buffered']
    #allocation12 [shape = 's32[1]{0}', space=sflag, size = 0x4, scoped, tag = 'scoped memory for tpu_custom_call.1']
    #allocation13 [shape = 'u8[32768]{0}', space=vmem, size = 0x8000, scoped, tag = 'input window, operand 5, single buffered']
    #allocation14 [shape = 'u8[32768]{0}', space=vmem, size = 0x8000, scoped, tag = 'input window, operand 7, single buffered']
    #allocation15 [shape = 's32[1]{0}', space=sflag, size = 0x4, scoped, tag = 'scoped memory for tpu_custom_call.1']
    #allocation16 [shape = 'u8[32768]{0}', space=vmem, size = 0x8000, scoped, tag = 'input window, operand 9, single buffered']
    #allocation17 [shape = 'u8[65536]{0}', space=vmem, size = 0x10000, scoped, tag = 'input window, operand 13, single buffered']
    #allocation18 [shape = 's32[1]{0}', space=sflag, size = 0x4, scoped, tag = 'scoped memory for tpu_custom_call.1']
    #allocation19 [shape = 'u8[65536]{0}', space=vmem, size = 0x10000, scoped, tag = 'input window, operand 15, single buffered']
    #allocation20 [shape = 'u8[16384]{0}', space=vmem, size = 0x4000, scoped, tag = 'output window, operand 0']
    %24 = vsyncpa [#allocation6], 0
    %s25 = scalar_lea.sflag [#allocation6], 1
    %26 = vsyncpa %s25, 0
    %27 = vsyncpa [#allocation9], 0
    %s28 = scalar_lea.sflag [#allocation9], 1
    %29 = vsyncpa %s28, 0
    %30 = vsyncpa [#allocation12], 0
    %31 = vsyncpa [#allocation15], 0
    %32 = vsyncpa [#allocation18], 0
    %33 = vsyncpa [#allocation7], 0
    %s34 = scalar_lea.sflag [#allocation7], 1
    %35 = vsyncpa %s34, 0
    loop: start=0, step=1, limit=4
    $region2: #{tpu_custom_call.1} parent=1 // loop_pre_header
      _
    $region3: #{tpu_custom_call.1} parent=1 // loop_header
      %s37 = sphi 0, %s41
      %p38 = scmp.ge.s32.totalorder %s37, 4
      %s44 = sphi 0, %s56
      %s45 = sphi 0, %s52
      %s46 = sphi 0, %s44
      %s47 = sphi 0, %s45
      %s48 = sphi 0, %s46
      %s49 = sphi 0, %s47
      %s61 = sphi 0, %s63
      %s64 = sphi 0, %s61
      %s65 = sphi 0, %s64
      %s81 = sphi 0, %s65
      %s87 = sphi 0, %s89
      %s90 = sphi 0, %s87
      %s91 = sphi 0, %s90
      %s107 = sphi 0, %s91
      %s115 = sphi 0, %s117
      %s118 = sphi 0, %s115
      %s119 = sphi 0, %s118
      %s135 = sphi 0, %s119
      %s139 = sphi 0, %s139
      %s141 = sphi 0, %s139
      %s142 = sphi 0, %s141
      %s156 = sphi 0, %s142
      %s160 = sphi 0, %s160
      %s162 = sphi 0, %s160
      %s163 = sphi 0, %s162
      %s177 = sphi 0, %s163
      %s181 = sphi 0, %s181
      %s183 = sphi 0, %s181
      %s184 = sphi 0, %s183
      %s198 = sphi 0, %s184
      %s202 = sphi 0, %s202
      %s204 = sphi 0, %s202
      %s205 = sphi 0, %s204
      %s219 = sphi 0, %s205
      %s223 = sphi 0, %s223
      %s225 = sphi 0, %s223
      %s226 = sphi 0, %s225
      %s240 = sphi 0, %s226
      %s244 = sphi 0, %s244
      %s246 = sphi 0, %s244
      %s247 = sphi 0, %s246
      %s261 = sphi 0, %s247
      %s265 = sphi 0, %s265
      %s267 = sphi 0, %s265
      %s268 = sphi 0, %s267
      %s282 = sphi 0, %s268
      %s286 = sphi 0, %s286
      %s288 = sphi 0, %s286
      %s289 = sphi 0, %s288
      %s303 = sphi 0, %s289
      %s307 = sphi 0, %s307
      %s309 = sphi 0, %s307
      %s310 = sphi 0, %s309
      %s324 = sphi 0, %s310
      %s328 = sphi 0, %s328
      %s330 = sphi 0, %s328
      %s331 = sphi 0, %s330
      %s345 = sphi 0, %s331
      %s349 = sphi 0, %s349
      %s351 = sphi 0, %s349
      %s352 = sphi 0, %s351
      %s366 = sphi 0, %s352
      %s370 = sphi 0, %s370
      %s372 = sphi 0, %s370
      %s373 = sphi 0, %s372
      %s387 = sphi 0, %s373
      %s391 = sphi 0, %s391
      %s393 = sphi 0, %s391
      %s394 = sphi 0, %s393
      %s408 = sphi 0, %s394
      %s412 = sphi 0, %s412
      %s414 = sphi 0, %s412
      %s415 = sphi 0, %s414
      %s429 = sphi 0, %s415
      %s433 = sphi 0, %s433
      %s435 = sphi 0, %s433
      %s436 = sphi 0, %s435
      %s450 = sphi 0, %s436
      %s454 = sphi 0, %s454
      %s456 = sphi 0, %s454
      %s457 = sphi 0, %s456
      %s471 = sphi 0, %s457
      %s479 = sphi 0, %s481
      %s482 = sphi 0, %s479
      %s483 = sphi 0, %s482
      %s499 = sphi 0, %s483
    $region4: #{tpu_custom_call.1} parent=1 // loop_header_branch
      %40 = sbr.rel (%p38) target = $region8
    $region5: #{tpu_custom_call.1} parent=1 // loop_body
      %s42 = ssub.s32 %s37, 1
      %s43 = ssub.s32 %s37, 2
      %s50 = sadd.s32 1, %s45
      %p51 = scmp.ge.s32.totalorder %s50, 1
      %s52 = scalar_select %p51, 0, %s50
      %s53 = sadd.s32 1, %s44
      %s54 = scalar_select %p51, %s53, %s44
      %p55 = scmp.ge.s32.totalorder %s54, 2
      %s56 = scalar_select %p55, 0, %s54
      %s57 = ssub.s32 %s44, %s56
      %s58 = ssub.s32 %s45, %s52
      %s59 = sor.u32 %s57, %s58
      %p60 = scmp.eq.s32.totalorder %s59, 0
      %s62 = sadd.s32 %s61, 1
      %s63 = scalar_select %p60, %s61, %s62
      %p66 = pneg %p60
      %p67 = scmp.eq.s32.totalorder %s37, 1
      %p68 = por %p66, %p67
      %p69 = scmp.ne.s32.totalorder %s61, %s64
      %p70 = scmp.eq.s32.totalorder %s37, 0
      %p71 = por %p69, %p70
      %p72 = scmp.ne.s32.totalorder %s61, %s64
      %p73 = scmp.eq.s32.totalorder %s42, 1
      %p74 = por %p72, %p73
      %p75 = scmp.ne.s32.totalorder %s64, %s65
      %p76 = scmp.eq.s32.totalorder %s42, 0
      %p77 = por %p75, %p76
      %p78 = scmp.ne.s32.totalorder %s64, %s65
      %p79 = scmp.eq.s32.totalorder %s43, 1
      %p80 = por %p78, %p79
      %p82 = scmp.ne.s32.totalorder %s65, %s81
      %p83 = scmp.eq.s32.totalorder %s43, 0
      %p84 = por %p82, %p83
      %s85 = ssub.s32 %s44, %s56
      %p86 = scmp.eq.s32.totalorder %s85, 0
      %s88 = sadd.s32 %s87, 1
      %s89 = scalar_select %p86, %s87, %s88
      %p92 = pneg %p86
      %p93 = scmp.eq.s32.totalorder %s37, 1
      %p94 = por %p92, %p93
      %p95 = scmp.ne.s32.totalorder %s87, %s90
      %p96 = scmp.eq.s32.totalorder %s37, 0
      %p97 = por %p95, %p96
      %p98 = scmp.ne.s32.totalorder %s87, %s90
      %p99 = scmp.eq.s32.totalorder %s42, 1
      %p100 = por %p98, %p99
      %p101 = scmp.ne.s32.totalorder %s90, %s91
      %p102 = scmp.eq.s32.totalorder %s42, 0
      %p103 = por %p101, %p102
      %p104 = scmp.ne.s32.totalorder %s90, %s91
      %p105 = scmp.eq.s32.totalorder %s43, 1
      %p106 = por %p104, %p105
      %p108 = scmp.ne.s32.totalorder %s91, %s107
      %p109 = scmp.eq.s32.totalorder %s43, 0
      %p110 = por %p108, %p109
      %s111 = ssub.s32 %s44, %s56
      %s112 = ssub.s32 %s45, %s52
      %s113 = sor.u32 %s111, %s112
      %p114 = scmp.eq.s32.totalorder %s113, 0
      %s116 = sadd.s32 %s115, 1
      %s117 = scalar_select %p114, %s115, %s116
      %p120 = pneg %p114
      %p121 = scmp.eq.s32.totalorder %s37, 1
      %p122 = por %p120, %p121
      %p123 = scmp.ne.s32.totalorder %s115, %s118
      %p124 = scmp.eq.s32.totalorder %s37, 0
      %p125 = por %p123, %p124
      %p126 = scmp.ne.s32.totalorder %s115, %s118
      %p127 = scmp.eq.s32.totalorder %s42, 1
      %p128 = por %p126, %p127
      %p129 = scmp.ne.s32.totalorder %s118, %s119
      %p130 = scmp.eq.s32.totalorder %s42, 0
      %p131 = por %p129, %p130
      %p132 = scmp.ne.s32.totalorder %s118, %s119
      %p133 = scmp.eq.s32.totalorder %s43, 1
      %p134 = por %p132, %p133
      %p136 = scmp.ne.s32.totalorder %s119, %s135
      %p137 = scmp.eq.s32.totalorder %s43, 0
      %p138 = por %p136, %p137
      %s140 = sadd.s32 %s139, 1
      %p143 = scmp.eq.s32.totalorder %s37, 1
      %p144 = scmp.ne.s32.totalorder %s139, %s141
      %p145 = scmp.eq.s32.totalorder %s37, 0
      %p146 = por %p144, %p145
      %p147 = scmp.ne.s32.totalorder %s139, %s141
      %p148 = scmp.eq.s32.totalorder %s42, 1
      %p149 = por %p147, %p148
      %p150 = scmp.ne.s32.totalorder %s141, %s142
      %p151 = scmp.eq.s32.totalorder %s42, 0
      %p152 = por %p150, %p151
      %p153 = scmp.ne.s32.totalorder %s141, %s142
      %p154 = scmp.eq.s32.totalorder %s43, 1
      %p155 = por %p153, %p154
      %p157 = scmp.ne.s32.totalorder %s142, %s156
      %p158 = scmp.eq.s32.totalorder %s43, 0
      %p159 = por %p157, %p158
      %s161 = sadd.s32 %s160, 1
      %p164 = scmp.eq.s32.totalorder %s37, 1
      %p165 = scmp.ne.s32.totalorder %s160, %s162
      %p166 = scmp.eq.s32.totalorder %s37, 0
      %p167 = por %p165, %p166
      %p168 = scmp.ne.s32.totalorder %s160, %s162
      %p169 = scmp.eq.s32.totalorder %s42, 1
      %p170 = por %p168, %p169
      %p171 = scmp.ne.s32.totalorder %s162, %s163
      %p172 = scmp.eq.s32.totalorder %s42, 0
      %p173 = por %p171, %p172
      %p174 = scmp.ne.s32.totalorder %s162, %s163
      %p175 = scmp.eq.s32.totalorder %s43, 1
      %p176 = por %p174, %p175
      %p178 = scmp.ne.s32.totalorder %s163, %s177
      %p179 = scmp.eq.s32.totalorder %s43, 0
      %p180 = por %p178, %p179
      %s182 = sadd.s32 %s181, 1
      %p185 = scmp.eq.s32.totalorder %s37, 1
      %p186 = scmp.ne.s32.totalorder %s181, %s183
      %p187 = scmp.eq.s32.totalorder %s37, 0
      %p188 = por %p186, %p187
      %p189 = scmp.ne.s32.totalorder %s181, %s183
      %p190 = scmp.eq.s32.totalorder %s42, 1
      %p191 = por %p189, %p190
      %p192 = scmp.ne.s32.totalorder %s183, %s184
      %p193 = scmp.eq.s32.totalorder %s42, 0
      %p194 = por %p192, %p193
      %p195 = scmp.ne.s32.totalorder %s183, %s184
      %p196 = scmp.eq.s32.totalorder %s43, 1
      %p197 = por %p195, %p196
      %p199 = scmp.ne.s32.totalorder %s184, %s198
      %p200 = scmp.eq.s32.totalorder %s43, 0
      %p201 = por %p199, %p200
      %s203 = sadd.s32 %s202, 1
      %p206 = scmp.eq.s32.totalorder %s37, 1
      %p207 = scmp.ne.s32.totalorder %s202, %s204
      %p208 = scmp.eq.s32.totalorder %s37, 0
      %p209 = por %p207, %p208
      %p210 = scmp.ne.s32.totalorder %s202, %s204
      %p211 = scmp.eq.s32.totalorder %s42, 1
      %p212 = por %p210, %p211
      %p213 = scmp.ne.s32.totalorder %s204, %s205
      %p214 = scmp.eq.s32.totalorder %s42, 0
      %p215 = por %p213, %p214
      %p216 = scmp.ne.s32.totalorder %s204, %s205
      %p217 = scmp.eq.s32.totalorder %s43, 1
      %p218 = por %p216, %p217
      %p220 = scmp.ne.s32.totalorder %s205, %s219
      %p221 = scmp.eq.s32.totalorder %s43, 0
      %p222 = por %p220, %p221
      %s224 = sadd.s32 %s223, 1
      %p227 = scmp.eq.s32.totalorder %s37, 1
      %p228 = scmp.ne.s32.totalorder %s223, %s225
      %p229 = scmp.eq.s32.totalorder %s37, 0
      %p230 = por %p228, %p229
      %p231 = scmp.ne.s32.totalorder %s223, %s225
      %p232 = scmp.eq.s32.totalorder %s42, 1
      %p233 = por %p231, %p232
      %p234 = scmp.ne.s32.totalorder %s225, %s226
      %p235 = scmp.eq.s32.totalorder %s42, 0
      %p236 = por %p234, %p235
      %p237 = scmp.ne.s32.totalorder %s225, %s226
      %p238 = scmp.eq.s32.totalorder %s43, 1
      %p239 = por %p237, %p238
      %p241 = scmp.ne.s32.totalorder %s226, %s240
      %p242 = scmp.eq.s32.totalorder %s43, 0
      %p243 = por %p241, %p242
      %s245 = sadd.s32 %s244, 1
      %p248 = scmp.eq.s32.totalorder %s37, 1
      %p249 = scmp.ne.s32.totalorder %s244, %s246
      %p250 = scmp.eq.s32.totalorder %s37, 0
      %p251 = por %p249, %p250
      %p252 = scmp.ne.s32.totalorder %s244, %s246
      %p253 = scmp.eq.s32.totalorder %s42, 1
      %p254 = por %p252, %p253
      %p255 = scmp.ne.s32.totalorder %s246, %s247
      %p256 = scmp.eq.s32.totalorder %s42, 0
      %p257 = por %p255, %p256
      %p258 = scmp.ne.s32.totalorder %s246, %s247
      %p259 = scmp.eq.s32.totalorder %s43, 1
      %p260 = por %p258, %p259
      %p262 = scmp.ne.s32.totalorder %s247, %s261
      %p263 = scmp.eq.s32.totalorder %s43, 0
      %p264 = por %p262, %p263
      %s266 = sadd.s32 %s265, 1
      %p269 = scmp.eq.s32.totalorder %s37, 1
      %p270 = scmp.ne.s32.totalorder %s265, %s267
      %p271 = scmp.eq.s32.totalorder %s37, 0
      %p272 = por %p270, %p271
      %p273 = scmp.ne.s32.totalorder %s265, %s267
      %p274 = scmp.eq.s32.totalorder %s42, 1
      %p275 = por %p273, %p274
      %p276 = scmp.ne.s32.totalorder %s267, %s268
      %p277 = scmp.eq.s32.totalorder %s42, 0
      %p278 = por %p276, %p277
      %p279 = scmp.ne.s32.totalorder %s267, %s268
      %p280 = scmp.eq.s32.totalorder %s43, 1
      %p281 = por %p279, %p280
      %p283 = scmp.ne.s32.totalorder %s268, %s282
      %p284 = scmp.eq.s32.totalorder %s43, 0
      %p285 = por %p283, %p284
      %s287 = sadd.s32 %s286, 1
      %p290 = scmp.eq.s32.totalorder %s37, 1
      %p291 = scmp.ne.s32.totalorder %s286, %s288
      %p292 = scmp.eq.s32.totalorder %s37, 0
      %p293 = por %p291, %p292
      %p294 = scmp.ne.s32.totalorder %s286, %s288
      %p295 = scmp.eq.s32.totalorder %s42, 1
      %p296 = por %p294, %p295
      %p297 = scmp.ne.s32.totalorder %s288, %s289
      %p298 = scmp.eq.s32.totalorder %s42, 0
      %p299 = por %p297, %p298
      %p300 = scmp.ne.s32.totalorder %s288, %s289
      %p301 = scmp.eq.s32.totalorder %s43, 1
      %p302 = por %p300, %p301
      %p304 = scmp.ne.s32.totalorder %s289, %s303
      %p305 = scmp.eq.s32.totalorder %s43, 0
      %p306 = por %p304, %p305
      %s308 = sadd.s32 %s307, 1
      %p311 = scmp.eq.s32.totalorder %s37, 1
      %p312 = scmp.ne.s32.totalorder %s307, %s309
      %p313 = scmp.eq.s32.totalorder %s37, 0
      %p314 = por %p312, %p313
      %p315 = scmp.ne.s32.totalorder %s307, %s309
      %p316 = scmp.eq.s32.totalorder %s42, 1
      %p317 = por %p315, %p316
      %p318 = scmp.ne.s32.totalorder %s309, %s310
      %p319 = scmp.eq.s32.totalorder %s42, 0
      %p320 = por %p318, %p319
      %p321 = scmp.ne.s32.totalorder %s309, %s310
      %p322 = scmp.eq.s32.totalorder %s43, 1
      %p323 = por %p321, %p322
      %p325 = scmp.ne.s32.totalorder %s310, %s324
      %p326 = scmp.eq.s32.totalorder %s43, 0
      %p327 = por %p325, %p326
      %s329 = sadd.s32 %s328, 1
      %p332 = scmp.eq.s32.totalorder %s37, 1
      %p333 = scmp.ne.s32.totalorder %s328, %s330
      %p334 = scmp.eq.s32.totalorder %s37, 0
      %p335 = por %p333, %p334
      %p336 = scmp.ne.s32.totalorder %s328, %s330
      %p337 = scmp.eq.s32.totalorder %s42, 1
      %p338 = por %p336, %p337
      %p339 = scmp.ne.s32.totalorder %s330, %s331
      %p340 = scmp.eq.s32.totalorder %s42, 0
      %p341 = por %p339, %p340
      %p342 = scmp.ne.s32.totalorder %s330, %s331
      %p343 = scmp.eq.s32.totalorder %s43, 1
      %p344 = por %p342, %p343
      %p346 = scmp.ne.s32.totalorder %s331, %s345
      %p347 = scmp.eq.s32.totalorder %s43, 0
      %p348 = por %p346, %p347
      %s350 = sadd.s32 %s349, 1
      %p353 = scmp.eq.s32.totalorder %s37, 1
      %p354 = scmp.ne.s32.totalorder %s349, %s351
      %p355 = scmp.eq.s32.totalorder %s37, 0
      %p356 = por %p354, %p355
      %p357 = scmp.ne.s32.totalorder %s349, %s351
      %p358 = scmp.eq.s32.totalorder %s42, 1
      %p359 = por %p357, %p358
      %p360 = scmp.ne.s32.totalorder %s351, %s352
      %p361 = scmp.eq.s32.totalorder %s42, 0
      %p362 = por %p360, %p361
      %p363 = scmp.ne.s32.totalorder %s351, %s352
      %p364 = scmp.eq.s32.totalorder %s43, 1
      %p365 = por %p363, %p364
      %p367 = scmp.ne.s32.totalorder %s352, %s366
      %p368 = scmp.eq.s32.totalorder %s43, 0
      %p369 = por %p367, %p368
      %s371 = sadd.s32 %s370, 1
      %p374 = scmp.eq.s32.totalorder %s37, 1
      %p375 = scmp.ne.s32.totalorder %s370, %s372
      %p376 = scmp.eq.s32.totalorder %s37, 0
      %p377 = por %p375, %p376
      %p378 = scmp.ne.s32.totalorder %s370, %s372
      %p379 = scmp.eq.s32.totalorder %s42, 1
      %p380 = por %p378, %p379
      %p381 = scmp.ne.s32.totalorder %s372, %s373
      %p382 = scmp.eq.s32.totalorder %s42, 0
      %p383 = por %p381, %p382
      %p384 = scmp.ne.s32.totalorder %s372, %s373
      %p385 = scmp.eq.s32.totalorder %s43, 1
      %p386 = por %p384, %p385
      %p388 = scmp.ne.s32.totalorder %s373, %s387
      %p389 = scmp.eq.s32.totalorder %s43, 0
      %p390 = por %p388, %p389
      %s392 = sadd.s32 %s391, 1
      %p395 = scmp.eq.s32.totalorder %s37, 1
      %p396 = scmp.ne.s32.totalorder %s391, %s393
      %p397 = scmp.eq.s32.totalorder %s37, 0
      %p398 = por %p396, %p397
      %p399 = scmp.ne.s32.totalorder %s391, %s393
      %p400 = scmp.eq.s32.totalorder %s42, 1
      %p401 = por %p399, %p400
      %p402 = scmp.ne.s32.totalorder %s393, %s394
      %p403 = scmp.eq.s32.totalorder %s42, 0
      %p404 = por %p402, %p403
      %p405 = scmp.ne.s32.totalorder %s393, %s394
      %p406 = scmp.eq.s32.totalorder %s43, 1
      %p407 = por %p405, %p406
      %p409 = scmp.ne.s32.totalorder %s394, %s408
      %p410 = scmp.eq.s32.totalorder %s43, 0
      %p411 = por %p409, %p410
      %s413 = sadd.s32 %s412, 1
      %p416 = scmp.eq.s32.totalorder %s37, 1
      %p417 = scmp.ne.s32.totalorder %s412, %s414
      %p418 = scmp.eq.s32.totalorder %s37, 0
      %p419 = por %p417, %p418
      %p420 = scmp.ne.s32.totalorder %s412, %s414
      %p421 = scmp.eq.s32.totalorder %s42, 1
      %p422 = por %p420, %p421
      %p423 = scmp.ne.s32.totalorder %s414, %s415
      %p424 = scmp.eq.s32.totalorder %s42, 0
      %p425 = por %p423, %p424
      %p426 = scmp.ne.s32.totalorder %s414, %s415
      %p427 = scmp.eq.s32.totalorder %s43, 1
      %p428 = por %p426, %p427
      %p430 = scmp.ne.s32.totalorder %s415, %s429
      %p431 = scmp.eq.s32.totalorder %s43, 0
      %p432 = por %p430, %p431
      %s434 = sadd.s32 %s433, 1
      %p437 = scmp.eq.s32.totalorder %s37, 1
      %p438 = scmp.ne.s32.totalorder %s433, %s435
      %p439 = scmp.eq.s32.totalorder %s37, 0
      %p440 = por %p438, %p439
      %p441 = scmp.ne.s32.totalorder %s433, %s435
      %p442 = scmp.eq.s32.totalorder %s42, 1
      %p443 = por %p441, %p442
      %p444 = scmp.ne.s32.totalorder %s435, %s436
      %p445 = scmp.eq.s32.totalorder %s42, 0
      %p446 = por %p444, %p445
      %p447 = scmp.ne.s32.totalorder %s435, %s436
      %p448 = scmp.eq.s32.totalorder %s43, 1
      %p449 = por %p447, %p448
      %p451 = scmp.ne.s32.totalorder %s436, %s450
      %p452 = scmp.eq.s32.totalorder %s43, 0
      %p453 = por %p451, %p452
      %s455 = sadd.s32 %s454, 1
      %p458 = scmp.eq.s32.totalorder %s37, 1
      %p459 = scmp.ne.s32.totalorder %s454, %s456
      %p460 = scmp.eq.s32.totalorder %s37, 0
      %p461 = por %p459, %p460
      %p462 = scmp.ne.s32.totalorder %s454, %s456
      %p463 = scmp.eq.s32.totalorder %s42, 1
      %p464 = por %p462, %p463
      %p465 = scmp.ne.s32.totalorder %s456, %s457
      %p466 = scmp.eq.s32.totalorder %s42, 0
      %p467 = por %p465, %p466
      %p468 = scmp.ne.s32.totalorder %s456, %s457
      %p469 = scmp.eq.s32.totalorder %s43, 1
      %p470 = por %p468, %p469
      %p472 = scmp.ne.s32.totalorder %s457, %s471
      %p473 = scmp.eq.s32.totalorder %s43, 0
      %p474 = por %p472, %p473
      %s475 = ssub.s32 %s44, %s56
      %s476 = ssub.s32 %s45, %s52
      %s477 = sor.u32 %s475, %s476
      %p478 = scmp.eq.s32.totalorder %s477, 0
      %s480 = sadd.s32 %s479, 1
      %s481 = scalar_select %p478, %s479, %s480
      %p484 = pneg %p478
      %p485 = scmp.eq.s32.totalorder %s37, 1
      %p486 = por %p484, %p485
      %p487 = scmp.ne.s32.totalorder %s479, %s482
      %p488 = scmp.eq.s32.totalorder %s37, 0
      %p489 = por %p487, %p488
      %p490 = scmp.ne.s32.totalorder %s479, %s482
      %p491 = scmp.eq.s32.totalorder %s42, 1
      %p492 = por %p490, %p491
      %p493 = scmp.ne.s32.totalorder %s482, %s483
      %p494 = scmp.eq.s32.totalorder %s42, 0
      %p495 = por %p493, %p494
      %p496 = scmp.ne.s32.totalorder %s482, %s483
      %p497 = scmp.eq.s32.totalorder %s43, 1
      %p498 = por %p496, %p497
      %p500 = scmp.ne.s32.totalorder %s483, %s499
      %p501 = scmp.eq.s32.totalorder %s43, 0
      %p502 = por %p500, %p501
      %p503 = scmp.le.s32.totalorder 1, %s37
      %p504 = scmp.lt.s32.totalorder %s37, 3
      %p505 = pnand %p503, %p504
      %p506 = pneg %p505
      // Predicated region
      $region9: #{tpu_custom_call.1} parent=5 // pred_check
        _
      $region10: #{tpu_custom_call.1} parent=5 // pred_check_branch
        %508 = sbr.rel (%p505) target = $region12
      $region11: #{tpu_custom_call.1} parent=5 // pred_region
        %s509 = ssub.s32 %s37, 1
        // Predicated region
        $region13: #{tpu_custom_call.1} parent=11 // pred_check
          %p510 = pneg %p152
        $region14: #{tpu_custom_call.1} parent=11 // pred_check_branch
          %512 = sbr.rel (%p510) target = $region16
        $region15: #{tpu_custom_call.1} parent=11 // pred_region
          %s514 = ssub.s32 1024, 1024
          %515 = vsyncadd [#allocation12], %s514
          %s516 = sshll.u32 [#allocation11], 4
          %s517 = int_to_ptr.vmem [resolvable:$true] %s516
          %522 = dma.hbm_to_vmem [thread:$0]  %s3, 1024, %s517, [#allocation12], 64, 64, 4
        $region16: #{tpu_custom_call.1} parent=11 // pred_fallthru
          _
        // Predicated region
        $region17: #{tpu_custom_call.1} parent=11 // pred_check
          %p523 = pneg %p173
        $region18: #{tpu_custom_call.1} parent=11 // pred_check_branch
          %525 = sbr.rel (%p523) target = $region20
        $region19: #{tpu_custom_call.1} parent=11 // pred_region
          _
        $region20: #{tpu_custom_call.1} parent=11 // pred_fallthru
          _
        // Predicated region
        $region21: #{tpu_custom_call.1} parent=11 // pred_check
          %p526 = pneg %p194
        $region22: #{tpu_custom_call.1} parent=11 // pred_check_branch
          %528 = sbr.rel (%p526) target = $region24
        $region23: #{tpu_custom_call.1} parent=11 // pred_region
          %s530 = ssub.s32 1024, 1024
          %531 = vsyncadd [#allocation12], %s530
          %s532 = sshll.u32 [#allocation13], 4
          %s533 = int_to_ptr.vmem [resolvable:$true] %s532
          %538 = dma.hbm_to_vmem [thread:$0]  %s5, 1024, %s533, [#allocation12], 64, 64, 4
        $region24: #{tpu_custom_call.1} parent=11 // pred_fallthru
          _
        // Predicated region
        $region25: #{tpu_custom_call.1} parent=11 // pred_check
          %p539 = pneg %p215
        $region26: #{tpu_custom_call.1} parent=11 // pred_check_branch
          %541 = sbr.rel (%p539) target = $region28
        $region27: #{tpu_custom_call.1} parent=11 // pred_region
          _
        $region28: #{tpu_custom_call.1} parent=11 // pred_fallthru
          _
        // Predicated region
        $region29: #{tpu_custom_call.1} parent=11 // pred_check
          %p542 = pneg %p236
        $region30: #{tpu_custom_call.1} parent=11 // pred_check_branch
          %544 = sbr.rel (%p542) target = $region32
        $region31: #{tpu_custom_call.1} parent=11 // pred_region
          %s546 = ssub.s32 1024, 1024
          %547 = vsyncadd [#allocation15], %s546
          %s548 = sshll.u32 [#allocation14], 4
          %s549 = int_to_ptr.vmem [resolvable:$true] %s548
          %554 = dma.hbm_to_vmem [thread:$0]  %s7, 1024, %s549, [#allocation15], 64, 64, 4
        $region32: #{tpu_custom_call.1} parent=11 // pred_fallthru
          _
        // Predicated region
        $region33: #{tpu_custom_call.1} parent=11 // pred_check
          %p555 = pneg %p257
        $region34: #{tpu_custom_call.1} parent=11 // pred_check_branch
          %557 = sbr.rel (%p555) target = $region36
        $region35: #{tpu_custom_call.1} parent=11 // pred_region
          _
        $region36: #{tpu_custom_call.1} parent=11 // pred_fallthru
          _
        // Predicated region
        $region37: #{tpu_custom_call.1} parent=11 // pred_check
          %p558 = pneg %p278
        $region38: #{tpu_custom_call.1} parent=11 // pred_check_branch
          %560 = sbr.rel (%p558) target = $region40
        $region39: #{tpu_custom_call.1} parent=11 // pred_region
          %s562 = ssub.s32 1024, 1024
          %563 = vsyncadd [#allocation15], %s562
          %s564 = sshll.u32 [#allocation16], 4
          %s565 = int_to_ptr.vmem [resolvable:$true] %s564
          %570 = dma.hbm_to_vmem [thread:$0]  %s9, 1024, %s565, [#allocation15], 64, 64, 4
        $region40: #{tpu_custom_call.1} parent=11 // pred_fallthru
          _
        // Predicated region
        $region41: #{tpu_custom_call.1} parent=11 // pred_check
          %p571 = pneg %p299
        $region42: #{tpu_custom_call.1} parent=11 // pred_check_branch
          %573 = sbr.rel (%p571) target = $region44
        $region43: #{tpu_custom_call.1} parent=11 // pred_region
          _
        $region44: #{tpu_custom_call.1} parent=11 // pred_fallthru
          _
        // Predicated region
        $region45: #{tpu_custom_call.1} parent=11 // pred_check
          %p574 = pneg %p320
        $region46: #{tpu_custom_call.1} parent=11 // pred_check_branch
          %576 = sbr.rel (%p574) target = $region48
        $region47: #{tpu_custom_call.1} parent=11 // pred_region
          _
        $region48: #{tpu_custom_call.1} parent=11 // pred_fallthru
          _
        // Predicated region
        $region49: #{tpu_custom_call.1} parent=11 // pred_check
          %p577 = pneg %p341
        $region50: #{tpu_custom_call.1} parent=11 // pred_check_branch
          %579 = sbr.rel (%p577) target = $region52
        $region51: #{tpu_custom_call.1} parent=11 // pred_region
          _
        $region52: #{tpu_custom_call.1} parent=11 // pred_fallthru
          _
        // Predicated region
        $region53: #{tpu_custom_call.1} parent=11 // pred_check
          %p580 = pneg %p362
        $region54: #{tpu_custom_call.1} parent=11 // pred_check_branch
          %582 = sbr.rel (%p580) target = $region56
        $region55: #{tpu_custom_call.1} parent=11 // pred_region
          %s584 = ssub.s32 2048, 2048
          %585 = vsyncadd [#allocation18], %s584
          %s586 = sshll.u32 [#allocation17], 4
          %s587 = int_to_ptr.vmem [resolvable:$true] %s586
          %592 = dma.hbm_to_vmem [thread:$0]  %s13, 2048, %s587, [#allocation18], 128, 128, 8
        $region56: #{tpu_custom_call.1} parent=11 // pred_fallthru
          _
        // Predicated region
        $region57: #{tpu_custom_call.1} parent=11 // pred_check
          %p593 = pneg %p383
        $region58: #{tpu_custom_call.1} parent=11 // pred_check_branch
          %595 = sbr.rel (%p593) target = $region60
        $region59: #{tpu_custom_call.1} parent=11 // pred_region
          _
        $region60: #{tpu_custom_call.1} parent=11 // pred_fallthru
          _
        // Predicated region
        $region61: #{tpu_custom_call.1} parent=11 // pred_check
          %p596 = pneg %p404
        $region62: #{tpu_custom_call.1} parent=11 // pred_check_branch
          %598 = sbr.rel (%p596) target = $region64
        $region63: #{tpu_custom_call.1} parent=11 // pred_region
          %s600 = ssub.s32 2048, 2048
          %601 = vsyncadd [#allocation18], %s600
          %s602 = sshll.u32 [#allocation19], 4
          %s603 = int_to_ptr.vmem [resolvable:$true] %s602
          %608 = dma.hbm_to_vmem [thread:$0]  %s15, 2048, %s603, [#allocation18], 64, 64, 4
        $region64: #{tpu_custom_call.1} parent=11 // pred_fallthru
          _
        // Predicated region
        $region65: #{tpu_custom_call.1} parent=11 // pred_check
          %p609 = pneg %p425
        $region66: #{tpu_custom_call.1} parent=11 // pred_check_branch
          %611 = sbr.rel (%p609) target = $region68
        $region67: #{tpu_custom_call.1} parent=11 // pred_region
          _
        $region68: #{tpu_custom_call.1} parent=11 // pred_fallthru
          _
        // Predicated region
        $region69: #{tpu_custom_call.1} parent=11 // pred_check
          %p612 = pneg %p446
        $region70: #{tpu_custom_call.1} parent=11 // pred_check_branch
          %614 = sbr.rel (%p612) target = $region72
        $region71: #{tpu_custom_call.1} parent=11 // pred_region
          _
        $region72: #{tpu_custom_call.1} parent=11 // pred_fallthru
          _
        // Predicated region
        $region73: #{tpu_custom_call.1} parent=11 // pred_check
          %p615 = pneg %p467
        $region74: #{tpu_custom_call.1} parent=11 // pred_check_branch
          %617 = sbr.rel (%p615) target = $region76
        $region75: #{tpu_custom_call.1} parent=11 // pred_region
          _
        $region76: #{tpu_custom_call.1} parent=11 // pred_fallthru
          _
      $region12: #{tpu_custom_call.1} parent=5 // pred_fallthru
        _
      %p618 = scmp.lt.s32.totalorder %s37, 2
      // Predicated region
      $region77: #{tpu_custom_call.1} parent=5 // pred_check
        %p619 = pneg %p618
      $region78: #{tpu_custom_call.1} parent=5 // pred_check_branch
        %621 = sbr.rel (%p619) target = $region80
      $region79: #{tpu_custom_call.1} parent=5 // pred_region
        // Predicated region
        $region81: #{tpu_custom_call.1} parent=79 // pred_check
          %p622 = pneg %p71
        $region82: #{tpu_custom_call.1} parent=79 // pred_check_branch
          %624 = sbr.rel (%p622) target = $region84
        $region83: #{tpu_custom_call.1} parent=79 // pred_region
          %s625 = sand.u32 %s61, 1
          %s626 = scalar_lea.sflag [#allocation6], %s625
          %s627 = sand.u32 %s61, 1
          %s628 = smul.addr %s627, 16
          %s629 = scalar_lea.vmem [#allocation5], %s628
          %s630 = smul.u32 2, %s45
          %s632 = ssub.s32 256, 256
          %633 = vsyncadd %s626, %s632
          %s634 = smul.addr %s44, 2
          %s635 = sadd.s32 %s630, %s634
          %s636 = smul.addr %s635, 128
          %s637 = scalar_lea.hbm %s0, %s636
          %s638 = sshll.u32 %s629, 4
          %s639 = int_to_ptr.vmem [resolvable:$true] %s638
          %644 = dma.hbm_to_vmem [thread:$0]  %s637, 256, %s639, %s626, 128, 128, 8
        $region84: #{tpu_custom_call.1} parent=79 // pred_fallthru
          _
        // Predicated region
        $region85: #{tpu_custom_call.1} parent=79 // pred_check
          %p645 = pneg %p97
        $region86: #{tpu_custom_call.1} parent=79 // pred_check_branch
          %647 = sbr.rel (%p645) target = $region88
        $region87: #{tpu_custom_call.1} parent=79 // pred_region
          %s648 = sand.u32 %s37, 1
          %s649 = scalar_lea.sflag [#allocation9], %s648
          %s650 = sand.u32 %s87, 1
          %s651 = smul.addr %s650, 8
          %s652 = scalar_lea.vmem [#allocation8], %s651
          %s654 = ssub.s32 128, 128
          %655 = vsyncadd %s649, %s654
          %s656 = smul.addr %s44, 2
          %s657 = smul.addr %s656, 64
          %s658 = scalar_lea.hbm %s1, %s657
          %s659 = sshll.u32 %s652, 4
          %s660 = int_to_ptr.vmem [resolvable:$true] %s659
          %665 = dma.hbm_to_vmem [thread:$0]  %s658, 128, %s660, %s649, 64, 64, 4
        $region88: #{tpu_custom_call.1} parent=79 // pred_fallthru
          _
        // Predicated region
        $region89: #{tpu_custom_call.1} parent=79 // pred_check
          %p666 = pneg %p125
        $region90: #{tpu_custom_call.1} parent=79 // pred_check_branch
          %668 = sbr.rel (%p666) target = $region92
        $region91: #{tpu_custom_call.1} parent=79 // pred_region
          %s669 = sand.u32 %s37, 1
          %s670 = scalar_lea.sflag [#allocation9], %s669
          %s671 = sand.u32 %s115, 1
          %s672 = smul.addr %s671, 4
          %s673 = scalar_lea.vmem [#allocation10], %s672
          %s674 = smul.u32 2, %s45
          %s676 = ssub.s32 64, 64
          %677 = vsyncadd %s670, %s676
          %s678 = smul.addr %s44, 2
          %s679 = sadd.s32 %s674, %s678
          %s680 = smul.addr %s679, 32
          %s681 = scalar_lea.hbm %s2, %s680
          %s682 = sshll.u32 %s673, 4
          %s683 = int_to_ptr.vmem [resolvable:$true] %s682
          %688 = dma.hbm_to_vmem [thread:$0]  %s681, 64, %s683, %s670, 32, 32, 2
        $region92: #{tpu_custom_call.1} parent=79 // pred_fallthru
          _
      $region80: #{tpu_custom_call.1} parent=5 // pred_fallthru
        _
      %p689 = scmp.le.s32.totalorder 1, %s37
      %p690 = scmp.lt.s32.totalorder %s37, 3
      %p691 = pnand %p689, %p690
      %p692 = pneg %p691
      // Predicated region
      $region93: #{tpu_custom_call.1} parent=5 // pred_check
        _
      $region94: #{tpu_custom_call.1} parent=5 // pred_check_branch
        %694 = sbr.rel (%p691) target = $region96
      $region95: #{tpu_custom_call.1} parent=5 // pred_region
        %s695 = ssub.s32 %s37, 1
        %s696 = sand.u32 %s64, 1
        %s697 = scalar_lea.sflag [#allocation6], %s696
        %s698 = sand.u32 %s64, 1
        %s699 = smul.addr %s698, 16
        %s700 = scalar_lea.vmem [#allocation5], %s699
        // Predicated region
        $region97: #{tpu_custom_call.1} parent=95 // pred_check
          %p701 = pneg %p77
        $region98: #{tpu_custom_call.1} parent=95 // pred_check_branch
          %703 = sbr.rel (%p701) target = $region100
        $region99: #{tpu_custom_call.1} parent=95 // pred_region
          %704 = dma.done %s697, 256
        $region100: #{tpu_custom_call.1} parent=95 // pred_fallthru
          _
        %s705 = sand.u32 %s42, 1
        %s706 = scalar_lea.sflag [#allocation9], %s705
        %s707 = sand.u32 %s90, 1
        %s708 = smul.addr %s707, 8
        %s709 = scalar_lea.vmem [#allocation8], %s708
        // Predicated region
        $region101: #{tpu_custom_call.1} parent=95 // pred_check
          %p710 = pneg %p103
        $region102: #{tpu_custom_call.1} parent=95 // pred_check_branch
          %712 = sbr.rel (%p710) target = $region104
        $region103: #{tpu_custom_call.1} parent=95 // pred_region
          %713 = dma.done %s706, 128
        $region104: #{tpu_custom_call.1} parent=95 // pred_fallthru
          _
        %s714 = sand.u32 %s42, 1
        %s715 = scalar_lea.sflag [#allocation9], %s714
        %s716 = sand.u32 %s118, 1
        %s717 = smul.addr %s716, 4
        %s718 = scalar_lea.vmem [#allocation10], %s717
        // Predicated region
        $region105: #{tpu_custom_call.1} parent=95 // pred_check
          %p719 = pneg %p131
        $region106: #{tpu_custom_call.1} parent=95 // pred_check_branch
          %721 = sbr.rel (%p719) target = $region108
        $region107: #{tpu_custom_call.1} parent=95 // pred_region
          %722 = dma.done %s715, 64
        $region108: #{tpu_custom_call.1} parent=95 // pred_fallthru
          _
        // Predicated region
        $region109: #{tpu_custom_call.1} parent=95 // pred_check
          %p723 = pneg %p152
        $region110: #{tpu_custom_call.1} parent=95 // pred_check_branch
          %725 = sbr.rel (%p723) target = $region112
        $region111: #{tpu_custom_call.1} parent=95 // pred_region
          %726 = dma.done [#allocation12], 1024
        $region112: #{tpu_custom_call.1} parent=95 // pred_fallthru
          _
        // Predicated region
        $region113: #{tpu_custom_call.1} parent=95 // pred_check
          %p727 = pneg %p194
        $region114: #{tpu_custom_call.1} parent=95 // pred_check_branch
          %729 = sbr.rel (%p727) target = $region116
        $region115: #{tpu_custom_call.1} parent=95 // pred_region
          %730 = dma.done [#allocation12], 1024
        $region116: #{tpu_custom_call.1} parent=95 // pred_fallthru
          _
        // Predicated region
        $region117: #{tpu_custom_call.1} parent=95 // pred_check
          %p731 = pneg %p236
        $region118: #{tpu_custom_call.1} parent=95 // pred_check_branch
          %733 = sbr.rel (%p731) target = $region120
        $region119: #{tpu_custom_call.1} parent=95 // pred_region
          %734 = dma.done [#allocation15], 1024
        $region120: #{tpu_custom_call.1} parent=95 // pred_fallthru
          _
        // Predicated region
        $region121: #{tpu_custom_call.1} parent=95 // pred_check
          %p735 = pneg %p278
        $region122: #{tpu_custom_call.1} parent=95 // pred_check_branch
          %737 = sbr.rel (%p735) target = $region124
        $region123: #{tpu_custom_call.1} parent=95 // pred_region
          %738 = dma.done [#allocation15], 1024
        $region124: #{tpu_custom_call.1} parent=95 // pred_fallthru
          _
        // Predicated region
        $region125: #{tpu_custom_call.1} parent=95 // pred_check
          %p739 = pneg %p362
        $region126: #{tpu_custom_call.1} parent=95 // pred_check_branch
          %741 = sbr.rel (%p739) target = $region128
        $region127: #{tpu_custom_call.1} parent=95 // pred_region
          %742 = dma.done [#allocation18], 2048
        $region128: #{tpu_custom_call.1} parent=95 // pred_fallthru
          _
        // Predicated region
        $region129: #{tpu_custom_call.1} parent=95 // pred_check
          %p743 = pneg %p404
        $region130: #{tpu_custom_call.1} parent=95 // pred_check_branch
          %745 = sbr.rel (%p743) target = $region132
        $region131: #{tpu_custom_call.1} parent=95 // pred_region
          %746 = dma.done [#allocation18], 2048
        $region132: #{tpu_custom_call.1} parent=95 // pred_fallthru
          _
        %s747 = sand.u32 %s64, 1
        %s748 = scalar_lea.sflag [#allocation6], %s747
        %s749 = sand.u32 %s64, 1
        %s750 = smul.addr %s749, 16
        %s751 = scalar_lea.vmem [#allocation5], %s750
        %p752 = pneg %p77
        %p753 = pneg %p74
        %s754 = sand.u32 %s42, 1
        %s755 = scalar_lea.sflag [#allocation9], %s754
        %s756 = sand.u32 %s90, 1
        %s757 = smul.addr %s756, 8
        %s758 = scalar_lea.vmem [#allocation8], %s757
        %p759 = pneg %p103
        %p760 = pneg %p100
        %s761 = sand.u32 %s42, 1
        %s762 = scalar_lea.sflag [#allocation9], %s761
        %s763 = sand.u32 %s118, 1
        %s764 = smul.addr %s763, 4
        %s765 = scalar_lea.vmem [#allocation10], %s764
        %p766 = pneg %p131
        %p767 = pneg %p128
        %p768 = pneg %p152
        %p769 = pneg %p149
        %p770 = pneg %p173
        %p771 = pneg %p170
        %p772 = pneg %p194
        %p773 = pneg %p191
        %p774 = pneg %p215
        %p775 = pneg %p212
        %p776 = pneg %p236
        %p777 = pneg %p233
        %p778 = pneg %p257
        %p779 = pneg %p254
        %p780 = pneg %p278
        %p781 = pneg %p275
        %p782 = pneg %p299
        %p783 = pneg %p296
        %p784 = pneg %p320
        %p785 = pneg %p317
        %p786 = pneg %p341
        %p787 = pneg %p338
        %p788 = pneg %p362
        %p789 = pneg %p359
        %p790 = pneg %p383
        %p791 = pneg %p380
        %p792 = pneg %p404
        %p793 = pneg %p401
        %p794 = pneg %p425
        %p795 = pneg %p422
        %p796 = pneg %p446
        %p797 = pneg %p443
        %p798 = pneg %p467
        %p799 = pneg %p464
        %p800 = pneg %p495
        %p801 = pneg %p492
        %s802 = sand.u32 %s482, 1
        %s803 = scalar_lea.sflag [#allocation7], %s802
        %s804 = sand.u32 %s482, 1
        %s805 = smul.addr %s804, 16
        %s806 = scalar_lea.vmem [#allocation20], %s805
        %s807 = smul.u32 2, %s47
        %s808 = smul.u32 2, %s47
        %s809 = smul.u32 2, %s47
        %v813 = vld [vmem:[%s700] sm:$0xff]
        %v814 = vld [vmem:[%s700 + $0x8] sm:$0xff]
        %v815 = vld [vmem:[%s718] sm:$0x3]
        %v816 = vld [vmem:[%s718 + $0x2] sm:$0x3]
        %vm817 = vnez %v815
        %vm818 = vnez %v816
        %p819 = scmp.eq.s32.totalorder %s47, 0
        // Predicated region
        $region133: #{tpu_custom_call.1} parent=95 // pred_check
          %p820 = pneg %p819
        $region134: #{tpu_custom_call.1} parent=95 // pred_check_branch
          %822 = sbr.rel (%p820) target = $region136
        $region135: #{tpu_custom_call.1} parent=95 // pred_region
          %v823 = vld [vmem:[%s709] sm:$0xf]
          %v824 = vld [vmem:[%s709 + $0x4] sm:$0xf]
          %v825 = vld [vmem:[#allocation13] sm:$0xf]
          %v826 = vld [vmem:[#allocation13 + $0x4] sm:$0xf]
          %v827 = vld [vmem:[#allocation13 + $0x8] sm:$0xf]
          %v828 = vld [vmem:[#allocation13 + $0xc] sm:$0xf]
          %v829 = vld [vmem:[#allocation13 + $0x10] sm:$0xf]
          %v830 = vld [vmem:[#allocation13 + $0x14] sm:$0xf]
          %v831 = vld [vmem:[#allocation13 + $0x18] sm:$0xf]
          %v832 = vld [vmem:[#allocation13 + $0x1c] sm:$0xf]
          %v833 = vld [vmem:[#allocation13 + $0x20] sm:$0xf]
          %v834 = vld [vmem:[#allocation13 + $0x24] sm:$0xf]
          %v835 = vld [vmem:[#allocation13 + $0x28] sm:$0xf]
          %v836 = vld [vmem:[#allocation13 + $0x2c] sm:$0xf]
          %v837 = vld [vmem:[#allocation13 + $0x30] sm:$0xf]
          %v838 = vld [vmem:[#allocation13 + $0x34] sm:$0xf]
          %v839 = vld [vmem:[#allocation13 + $0x38] sm:$0xf]
          %v840 = vld [vmem:[#allocation13 + $0x3c] sm:$0xf]
          %v841 = vld [vmem:[%s6] sm:$0x1]
          %v843 = vlaneseq
          %v844 = vshrl.u32 %v843, 7
          %v845 = vsub.s32 0, %v844
          %v846 = vrot.slane %v841, %v845
          %v850 = vunpack.c.l.b16 %v823
          %v851 = vunpack.c.l.b16 %v824
          %v852 = vpack.c.b16 %v851, %v850
          %v870 = vunpack.c.l.b16 %v825
          %v871 = vunpack.c.l.b16 %v826
          %v872 = vunpack.c.l.b16 %v827
          %v873 = vunpack.c.l.b16 %v828
          %v874 = vunpack.c.l.b16 %v829
          %v875 = vunpack.c.l.b16 %v830
          %v876 = vunpack.c.l.b16 %v831
          %v877 = vunpack.c.l.b16 %v832
          %v878 = vunpack.c.l.b16 %v833
          %v879 = vunpack.c.l.b16 %v834
          %v880 = vunpack.c.l.b16 %v835
          %v881 = vunpack.c.l.b16 %v836
          %v882 = vunpack.c.l.b16 %v837
          %v883 = vunpack.c.l.b16 %v838
          %v884 = vunpack.c.l.b16 %v839
          %v885 = vunpack.c.l.b16 %v840
          %v886 = vpack.c.b16 %v871, %v870
          %v887 = vpack.c.b16 %v873, %v872
          %v888 = vpack.c.b16 %v875, %v874
          %v889 = vpack.c.b16 %v877, %v876
          %v890 = vpack.c.b16 %v879, %v878
          %v891 = vpack.c.b16 %v881, %v880
          %v892 = vpack.c.b16 %v883, %v882
          %v893 = vpack.c.b16 %v885, %v884
          %902 = vmatprep.subr.bf16.mxu0 0
          %903 = vmatpush1.bf16.msra.mxu0 %v886
          %904 = vmatprep.subr.bf16.mxu0 0
          %905 = vmatpush1.bf16.msra.mxu0 %v887
          %906 = vmatprep.subr.bf16.mxu0 0
          %907 = vmatpush1.bf16.msra.mxu0 %v888
          %908 = vmatprep.subr.bf16.mxu0 0
          %909 = vmatpush1.bf16.msra.mxu0 %v889
          %910 = vmatprep.subr.bf16.mxu0 0
          %911 = vmatpush1.bf16.msra.mxu0 %v890
          %912 = vmatprep.subr.bf16.mxu0 0
          %913 = vmatpush1.bf16.msra.mxu0 %v891
          %914 = vmatprep.subr.bf16.mxu0 0
          %915 = vmatpush1.bf16.msra.mxu0 %v892
          %916 = vmatprep.subr.bf16.mxu0 0
          %917 = vmatpush1.bf16.msra.mxu0 %v893
          %918 = vmatprep.subr.bf16.mxu0 0
          %919 = vmatpush1.bf16.msra.mxu0 0
          %920 = vmatprep.subr.bf16.mxu0 0
          %921 = vmatpush1.bf16.msra.mxu0 0
          %922 = vmatprep.subr.bf16.mxu0 0
          %923 = vmatpush1.bf16.msra.mxu0 0
          %924 = vmatprep.subr.bf16.mxu0 0
          %925 = vmatpush1.bf16.msra.mxu0 0
          %926 = vmatprep.subr.bf16.mxu0 0
          %927 = vmatpush1.bf16.msra.mxu0 0
          %928 = vmatprep.subr.bf16.mxu0 0
          %929 = vmatpush1.bf16.msra.mxu0 0
          %930 = vmatprep.subr.bf16.mxu0 0
          %931 = vmatpush1.bf16.msra.mxu0 0
          %932 = vmatprep.subr.bf16.mxu0 0
          %933 = vmatpush1.bf16.msra.mxu0 0
          %934 = vmatprep.mubr.bf16.mxu0 0
          %935 = vmatmul.mubr.bf16.gmra.mrb[0].mxu0 %v852
          %v936 = vpop.f32.mrb[0].mxu0
          %v937 = vadd.f32 %v846, %v936
          %v938 = vpop.f32.mrb[0].mxu0
          %v939 = vpop.f32.mrb[0].mxu0
          %v940 = vadd.f32 %v846, %v939
          %v941 = vpop.f32.mrb[0].mxu0
          %942 = vdwg.mxu0
          %v943 = vld [vmem:[#allocation14] sm:$0xf]
          %v944 = vld [vmem:[#allocation14 + $0x4] sm:$0xf]
          %v945 = vld [vmem:[#allocation14 + $0x8] sm:$0xf]
          %v946 = vld [vmem:[#allocation14 + $0xc] sm:$0xf]
          %v947 = vld [vmem:[#allocation14 + $0x10] sm:$0xf]
          %v948 = vld [vmem:[#allocation14 + $0x14] sm:$0xf]
          %v949 = vld [vmem:[#allocation14 + $0x18] sm:$0xf]
          %v950 = vld [vmem:[#allocation14 + $0x1c] sm:$0xf]
          %v951 = vld [vmem:[#allocation14 + $0x20] sm:$0xf]
          %v952 = vld [vmem:[#allocation14 + $0x24] sm:$0xf]
          %v953 = vld [vmem:[#allocation14 + $0x28] sm:$0xf]
          %v954 = vld [vmem:[#allocation14 + $0x2c] sm:$0xf]
          %v955 = vld [vmem:[#allocation14 + $0x30] sm:$0xf]
          %v956 = vld [vmem:[#allocation14 + $0x34] sm:$0xf]
          %v957 = vld [vmem:[#allocation14 + $0x38] sm:$0xf]
          %v958 = vld [vmem:[#allocation14 + $0x3c] sm:$0xf]
          %v959 = vld [vmem:[%s8] sm:$0x1]
          %v961 = vlaneseq
          %v962 = vshrl.u32 %v961, 7
          %v963 = vsub.s32 0, %v962
          %v964 = vrot.slane %v959, %v963
          %v982 = vunpack.c.l.b16 %v943
          %v983 = vunpack.c.l.b16 %v944
          %v984 = vunpack.c.l.b16 %v945
          %v985 = vunpack.c.l.b16 %v946
          %v986 = vunpack.c.l.b16 %v947
          %v987 = vunpack.c.l.b16 %v948
          %v988 = vunpack.c.l.b16 %v949
          %v989 = vunpack.c.l.b16 %v950
          %v990 = vunpack.c.l.b16 %v951
          %v991 = vunpack.c.l.b16 %v952
          %v992 = vunpack.c.l.b16 %v953
          %v993 = vunpack.c.l.b16 %v954
          %v994 = vunpack.c.l.b16 %v955
          %v995 = vunpack.c.l.b16 %v956
          %v996 = vunpack.c.l.b16 %v957
          %v997 = vunpack.c.l.b16 %v958
          %v998 = vpack.c.b16 %v983, %v982
          %v999 = vpack.c.b16 %v985, %v984
          %v1000 = vpack.c.b16 %v987, %v986
          %v1001 = vpack.c.b16 %v989, %v988
          %v1002 = vpack.c.b16 %v991, %v990
          %v1003 = vpack.c.b16 %v993, %v992
          %v1004 = vpack.c.b16 %v995, %v994
          %v1005 = vpack.c.b16 %v997, %v996
          %1014 = vmatprep.subr.bf16.mxu0 0
          %1015 = vmatpush1.bf16.msra.mxu0 %v998
          %1016 = vmatprep.subr.bf16.mxu0 0
          %1017 = vmatpush1.bf16.msra.mxu0 %v999
          %1018 = vmatprep.subr.bf16.mxu0 0
          %1019 = vmatpush1.bf16.msra.mxu0 %v1000
          %1020 = vmatprep.subr.bf16.mxu0 0
          %1021 = vmatpush1.bf16.msra.mxu0 %v1001
          %1022 = vmatprep.subr.bf16.mxu0 0
          %1023 = vmatpush1.bf16.msra.mxu0 %v1002
          %1024 = vmatprep.subr.bf16.mxu0 0
          %1025 = vmatpush1.bf16.msra.mxu0 %v1003
          %1026 = vmatprep.subr.bf16.mxu0 0
          %1027 = vmatpush1.bf16.msra.mxu0 %v1004
          %1028 = vmatprep.subr.bf16.mxu0 0
          %1029 = vmatpush1.bf16.msra.mxu0 %v1005
          %1030 = vmatprep.subr.bf16.mxu0 0
          %1031 = vmatpush1.bf16.msra.mxu0 0
          %1032 = vmatprep.subr.bf16.mxu0 0
          %1033 = vmatpush1.bf16.msra.mxu0 0
          %1034 = vmatprep.subr.bf16.mxu0 0
          %1035 = vmatpush1.bf16.msra.mxu0 0
          %1036 = vmatprep.subr.bf16.mxu0 0
          %1037 = vmatpush1.bf16.msra.mxu0 0
          %1038 = vmatprep.subr.bf16.mxu0 0
          %1039 = vmatpush1.bf16.msra.mxu0 0
          %1040 = vmatprep.subr.bf16.mxu0 0
          %1041 = vmatpush1.bf16.msra.mxu0 0
          %1042 = vmatprep.subr.bf16.mxu0 0
          %1043 = vmatpush1.bf16.msra.mxu0 0
          %1044 = vmatprep.subr.bf16.mxu0 0
          %1045 = vmatpush1.bf16.msra.mxu0 0
          %1046 = vmatprep.mubr.bf16.mxu0 0
          %1047 = vmatmul.mubr.bf16.gmra.mrb[0].mxu0 %v852
          %v1048 = vpop.f32.mrb[0].mxu0
          %v1049 = vadd.f32 %v964, %v1048
          %v1050 = vpop.f32.mrb[0].mxu0
          %v1051 = vpop.f32.mrb[0].mxu0
          %v1052 = vadd.f32 %v964, %v1051
          %v1053 = vpop.f32.mrb[0].mxu0
          %1054 = vdwg.mxu0
          %v1055 = vpack.c.bf16 %v940, %v937
          %1056 = vst [vmem:[#allocation2] sm:$0xff] %v1055
          %v1057 = vpack.c.bf16 %v1052, %v1049
          %1058 = vst [vmem:[#allocation3] sm:$0xff] %v1057
        $region136: #{tpu_custom_call.1} parent=95 // pred_fallthru
          _
        %v1059 = vpack.c.bf16 %v814, %v813
        %v1060 = vld [vmem:[#allocation11] sm:$0xf]
        %v1061 = vld [vmem:[#allocation11 + $0x4] sm:$0xf]
        %v1062 = vld [vmem:[#allocation11 + $0x8] sm:$0xf]
        %v1063 = vld [vmem:[#allocation11 + $0xc] sm:$0xf]
        %v1064 = vld [vmem:[#allocation11 + $0x10] sm:$0xf]
        %v1065 = vld [vmem:[#allocation11 + $0x14] sm:$0xf]
        %v1066 = vld [vmem:[#allocation11 + $0x18] sm:$0xf]
        %v1067 = vld [vmem:[#allocation11 + $0x1c] sm:$0xf]
        %v1068 = vld [vmem:[#allocation11 + $0x20] sm:$0xf]
        %v1069 = vld [vmem:[#allocation11 + $0x24] sm:$0xf]
        %v1070 = vld [vmem:[#allocation11 + $0x28] sm:$0xf]
        %v1071 = vld [vmem:[#allocation11 + $0x2c] sm:$0xf]
        %v1072 = vld [vmem:[#allocation11 + $0x30] sm:$0xf]
        %v1073 = vld [vmem:[#allocation11 + $0x34] sm:$0xf]
        %v1074 = vld [vmem:[#allocation11 + $0x38] sm:$0xf]
        %v1075 = vld [vmem:[#allocation11 + $0x3c] sm:$0xf]
        %v1076 = vld [vmem:[%s4] sm:$0x1]
        %v1078 = vlaneseq
        %v1079 = vshrl.u32 %v1078, 7
        %v1080 = vsub.s32 0, %v1079
        %v1081 = vrot.slane %v1076, %v1080
        %v1099 = vunpack.c.l.b16 %v1060
        %v1100 = vunpack.c.l.b16 %v1061
        %v1101 = vunpack.c.l.b16 %v1062
        %v1102 = vunpack.c.l.b16 %v1063
        %v1103 = vunpack.c.l.b16 %v1064
        %v1104 = vunpack.c.l.b16 %v1065
        %v1105 = vunpack.c.l.b16 %v1066
        %v1106 = vunpack.c.l.b16 %v1067
        %v1107 = vunpack.c.l.b16 %v1068
        %v1108 = vunpack.c.l.b16 %v1069
        %v1109 = vunpack.c.l.b16 %v1070
        %v1110 = vunpack.c.l.b16 %v1071
        %v1111 = vunpack.c.l.b16 %v1072
        %v1112 = vunpack.c.l.b16 %v1073
        %v1113 = vunpack.c.l.b16 %v1074
        %v1114 = vunpack.c.l.b16 %v1075
        %v1115 = vpack.c.b16 %v1100, %v1099
        %v1116 = vpack.c.b16 %v1102, %v1101
        %v1117 = vpack.c.b16 %v1104, %v1103
        %v1118 = vpack.c.b16 %v1106, %v1105
        %v1119 = vpack.c.b16 %v1108, %v1107
        %v1120 = vpack.c.b16 %v1110, %v1109
        %v1121 = vpack.c.b16 %v1112, %v1111
        %v1122 = vpack.c.b16 %v1114, %v1113
        %1131 = vmatprep.subr.bf16.mxu0 0
        %1132 = vmatpush1.bf16.msra.mxu0 %v1115
        %1133 = vmatprep.subr.bf16.mxu0 0
        %1134 = vmatpush1.bf16.msra.mxu0 %v1116
        %1135 = vmatprep.subr.bf16.mxu0 0
        %1136 = vmatpush1.bf16.msra.mxu0 %v1117
        %1137 = vmatprep.subr.bf16.mxu0 0
        %1138 = vmatpush1.bf16.msra.mxu0 %v1118
        %1139 = vmatprep.subr.bf16.mxu0 0
        %1140 = vmatpush1.bf16.msra.mxu0 %v1119
        %1141 = vmatprep.subr.bf16.mxu0 0
        %1142 = vmatpush1.bf16.msra.mxu0 %v1120
        %1143 = vmatprep.subr.bf16.mxu0 0
        %1144 = vmatpush1.bf16.msra.mxu0 %v1121
        %1145 = vmatprep.subr.bf16.mxu0 0
        %1146 = vmatpush1.bf16.msra.mxu0 %v1122
        %1147 = vmatprep.subr.bf16.mxu0 0
        %1148 = vmatpush1.bf16.msra.mxu0 0
        %1149 = vmatprep.subr.bf16.mxu0 0
        %1150 = vmatpush1.bf16.msra.mxu0 0
        %1151 = vmatprep.subr.bf16.mxu0 0
        %1152 = vmatpush1.bf16.msra.mxu0 0
        %1153 = vmatprep.subr.bf16.mxu0 0
        %1154 = vmatpush1.bf16.msra.mxu0 0
        %1155 = vmatprep.subr.bf16.mxu0 0
        %1156 = vmatpush1.bf16.msra.mxu0 0
        %1157 = vmatprep.subr.bf16.mxu0 0
        %1158 = vmatpush1.bf16.msra.mxu0 0
        %1159 = vmatprep.subr.bf16.mxu0 0
        %1160 = vmatpush1.bf16.msra.mxu0 0
        %1161 = vmatprep.subr.bf16.mxu0 0
        %1162 = vmatpush1.bf16.msra.mxu0 0
        %1163 = vmatprep.mubr.bf16.mxu0 0
        %1164 = vmatmul.mubr.bf16.gmra.mrb[0].mxu0 %v1059
        %v1165 = vpop.f32.mrb[0].mxu0
        %v1166 = vadd.f32 %v1081, %v1165
        %v1167 = vpop.f32.mrb[0].mxu0
        %v1168 = vpop.f32.mrb[0].mxu0
        %v1169 = vadd.f32 %v1081, %v1168
        %v1170 = vpop.f32.mrb[0].mxu0
        %1171 = vdwg.mxu0
        %v1172 = vpack.c.bf16 %v1169, %v1166
        %1174 = vrot.lane.b32.xlu0 %v1172, 96
        %v1175 = vpop.permute.xlu0 %1174
        %1176 = vrot.lane.b32.xlu0 %v1172, 64
        %v1177 = vpop.permute.xlu0 %1176
        %1178 = vrot.lane.b32.xlu0 %v1172, 32
        %v1179 = vpop.permute.xlu0 %1178
        %v1180 = vld [vmem:[#allocation2] sm:$0xff]
        %1182 = vrot.lane.b32.xlu0 %v1180, 96
        %v1183 = vpop.permute.xlu0 %1182
        %1185 = vrot.lane.b32.xlu0 %v1180, 64
        %v1186 = vpop.permute.xlu0 %1185
        %1188 = vrot.lane.b32.xlu0 %v1180, 32
        %v1189 = vpop.permute.xlu0 %1188
        %v1191 = vld [vmem:[#allocation3] sm:$0xff]
        %1193 = vrot.lane.b32.xlu0 %v1191, 96
        %v1194 = vpop.permute.xlu0 %1193
        %1196 = vrot.lane.b32.xlu0 %v1191, 64
        %v1197 = vpop.permute.xlu0 %1196
        %1199 = vrot.lane.b32.xlu0 %v1191, 32
        %v1200 = vpop.permute.xlu0 %1199
        %1202 = vxpose.xlu0.c.b16.start [1/8] %v1180, 128
        %1203 = vxpose.xlu0.c.b16.cont [2/8] 0, 128
        %1204 = vxpose.xlu0.c.b16.cont [3/8] 0, 128
        %1205 = vxpose.xlu0.c.b16.cont [4/8] 0, 128
        %1206 = vxpose.xlu0.c.b16.cont [5/8] 0, 128
        %1207 = vxpose.xlu0.c.b16.cont [6/8] 0, 128
        %1208 = vxpose.xlu0.c.b16.cont [7/8] 0, 128
        %1209 = vxpose.xlu0.c.b16.end [8/8] 0, 128
        %v1210 = vpop.trf.xlu0
        %v1211 = vpop.trf.xlu0
        %v1212 = vpop.trf.xlu0
        %v1213 = vpop.trf.xlu0
        %v1214 = vpop.trf.xlu0
        %v1215 = vpop.trf.xlu0
        %v1216 = vpop.trf.xlu0
        %v1217 = vpop.trf.xlu0
        %1218 = vxpose.xlu0.c.b16.start [1/8] %v1183, 128
        %1219 = vxpose.xlu0.c.b16.cont [2/8] 0, 128
        %1220 = vxpose.xlu0.c.b16.cont [3/8] 0, 128
        %1221 = vxpose.xlu0.c.b16.cont [4/8] 0, 128
        %1222 = vxpose.xlu0.c.b16.cont [5/8] 0, 128
        %1223 = vxpose.xlu0.c.b16.cont [6/8] 0, 128
        %1224 = vxpose.xlu0.c.b16.cont [7/8] 0, 128
        %1225 = vxpose.xlu0.c.b16.end [8/8] 0, 128
        %v1226 = vpop.trf.xlu0
        %v1227 = vpop.trf.xlu0
        %v1228 = vpop.trf.xlu0
        %v1229 = vpop.trf.xlu0
        %v1230 = vpop.trf.xlu0
        %v1231 = vpop.trf.xlu0
        %v1232 = vpop.trf.xlu0
        %v1233 = vpop.trf.xlu0
        %1234 = vxpose.xlu0.c.b16.start [1/8] %v1186, 128
        %1235 = vxpose.xlu0.c.b16.cont [2/8] 0, 128
        %1236 = vxpose.xlu0.c.b16.cont [3/8] 0, 128
        %1237 = vxpose.xlu0.c.b16.cont [4/8] 0, 128
        %1238 = vxpose.xlu0.c.b16.cont [5/8] 0, 128
        %1239 = vxpose.xlu0.c.b16.cont [6/8] 0, 128
        %1240 = vxpose.xlu0.c.b16.cont [7/8] 0, 128
        %1241 = vxpose.xlu0.c.b16.end [8/8] 0, 128
        %v1242 = vpop.trf.xlu0
        %v1243 = vpop.trf.xlu0
        %v1244 = vpop.trf.xlu0
        %v1245 = vpop.trf.xlu0
        %v1246 = vpop.trf.xlu0
        %v1247 = vpop.trf.xlu0
        %v1248 = vpop.trf.xlu0
        %v1249 = vpop.trf.xlu0
        %1250 = vxpose.xlu0.c.b16.start [1/8] %v1189, 128
        %1251 = vxpose.xlu0.c.b16.cont [2/8] 0, 128
        %1252 = vxpose.xlu0.c.b16.cont [3/8] 0, 128
        %1253 = vxpose.xlu0.c.b16.cont [4/8] 0, 128
        %1254 = vxpose.xlu0.c.b16.cont [5/8] 0, 128
        %1255 = vxpose.xlu0.c.b16.cont [6/8] 0, 128
        %1256 = vxpose.xlu0.c.b16.cont [7/8] 0, 128
        %1257 = vxpose.xlu0.c.b16.end [8/8] 0, 128
        %v1258 = vpop.trf.xlu0
        %v1259 = vpop.trf.xlu0
        %v1260 = vpop.trf.xlu0
        %v1261 = vpop.trf.xlu0
        %v1262 = vpop.trf.xlu0
        %v1263 = vpop.trf.xlu0
        %v1264 = vpop.trf.xlu0
        %v1265 = vpop.trf.xlu0
        %vm1266 = vcmask 261120
        %v1268 = vsel %vm1266, %v1172, 0
        %1270 = vmatprep.subr.bf16.mxu0 0
        %1271 = vmatpush1.bf16.msra.mxu0 %v1210
        %1272 = vmatprep.subr.bf16.mxu0 0
        %1273 = vmatpush1.bf16.msra.mxu0 %v1211
        %1274 = vmatprep.subr.bf16.mxu0 0
        %1275 = vmatpush1.bf16.msra.mxu0 0
        %1276 = vmatprep.subr.bf16.mxu0 0
        %1277 = vmatpush1.bf16.msra.mxu0 0
        %1278 = vmatprep.subr.bf16.mxu0 0
        %1279 = vmatpush1.bf16.msra.mxu0 0
        %1280 = vmatprep.subr.bf16.mxu0 0
        %1281 = vmatpush1.bf16.msra.mxu0 0
        %1282 = vmatprep.subr.bf16.mxu0 0
        %1283 = vmatpush1.bf16.msra.mxu0 0
        %1284 = vmatprep.subr.bf16.mxu0 0
        %1285 = vmatpush1.bf16.msra.mxu0 0
        %1286 = vmatprep.subr.bf16.mxu0 0
        %1287 = vmatpush1.bf16.msra.mxu0 0
        %1288 = vmatprep.subr.bf16.mxu0 0
        %1289 = vmatpush1.bf16.msra.mxu0 0
        %1290 = vmatprep.subr.bf16.mxu0 0
        %1291 = vmatpush1.bf16.msra.mxu0 0
        %1292 = vmatprep.subr.bf16.mxu0 0
        %1293 = vmatpush1.bf16.msra.mxu0 0
        %1294 = vmatprep.subr.bf16.mxu0 0
        %1295 = vmatpush1.bf16.msra.mxu0 0
        %1296 = vmatprep.subr.bf16.mxu0 0
        %1297 = vmatpush1.bf16.msra.mxu0 0
        %1298 = vmatprep.subr.bf16.mxu0 0
        %1299 = vmatpush1.bf16.msra.mxu0 0
        %1300 = vmatprep.subr.bf16.mxu0 0
        %1301 = vmatpush1.bf16.msra.mxu0 0
        %1302 = vmatprep.mubr.bf16.mxu0 0
        %1303 = vmatmul.mubr.bf16.gmra.mrb[0].mxu0 %v1268
        %v1304 = vpop.f32.mrb[0].mxu0
        %v1305 = vadd.f32 0.0, %v1304
        %v1306 = vpop.f32.mrb[0].mxu0
        %v1307 = vpop.f32.mrb[0].mxu0
        %v1308 = vadd.f32 0.0, %v1307
        %v1309 = vpop.f32.mrb[0].mxu0
        %1310 = vdwg.mxu0
        %v1312 = vsel %vm1266, %v1175, 0
        %1314 = vmatprep.subr.bf16.mxu0 0
        %1315 = vmatpush1.bf16.msra.mxu0 %v1226
        %1316 = vmatprep.subr.bf16.mxu0 0
        %1317 = vmatpush1.bf16.msra.mxu0 %v1227
        %1318 = vmatprep.subr.bf16.mxu0 0
        %1319 = vmatpush1.bf16.msra.mxu0 0
        %1320 = vmatprep.subr.bf16.mxu0 0
        %1321 = vmatpush1.bf16.msra.mxu0 0
        %1322 = vmatprep.subr.bf16.mxu0 0
        %1323 = vmatpush1.bf16.msra.mxu0 0
        %1324 = vmatprep.subr.bf16.mxu0 0
        %1325 = vmatpush1.bf16.msra.mxu0 0
        %1326 = vmatprep.subr.bf16.mxu0 0
        %1327 = vmatpush1.bf16.msra.mxu0 0
        %1328 = vmatprep.subr.bf16.mxu0 0
        %1329 = vmatpush1.bf16.msra.mxu0 0
        %1330 = vmatprep.subr.bf16.mxu0 0
        %1331 = vmatpush1.bf16.msra.mxu0 0
        %1332 = vmatprep.subr.bf16.mxu0 0
        %1333 = vmatpush1.bf16.msra.mxu0 0
        %1334 = vmatprep.subr.bf16.mxu0 0
        %1335 = vmatpush1.bf16.msra.mxu0 0
        %1336 = vmatprep.subr.bf16.mxu0 0
        %1337 = vmatpush1.bf16.msra.mxu0 0
        %1338 = vmatprep.subr.bf16.mxu0 0
        %1339 = vmatpush1.bf16.msra.mxu0 0
        %1340 = vmatprep.subr.bf16.mxu0 0
        %1341 = vmatpush1.bf16.msra.mxu0 0
        %1342 = vmatprep.subr.bf16.mxu0 0
        %1343 = vmatpush1.bf16.msra.mxu0 0
        %1344 = vmatprep.subr.bf16.mxu0 0
        %1345 = vmatpush1.bf16.msra.mxu0 0
        %1346 = vmatprep.mubr.bf16.mxu0 0
        %1347 = vmatmul.mubr.bf16.gmra.mrb[0].mxu0 %v1312
        %v1348 = vpop.f32.mrb[0].mxu0
        %v1349 = vadd.f32 0.0, %v1348
        %v1350 = vpop.f32.mrb[0].mxu0
        %v1351 = vpop.f32.mrb[0].mxu0
        %v1352 = vadd.f32 0.0, %v1351
        %v1353 = vpop.f32.mrb[0].mxu0
        %1354 = vdwg.mxu0
        %v1356 = vsel %vm1266, %v1177, 0
        %1358 = vmatprep.subr.bf16.mxu0 0
        %1359 = vmatpush1.bf16.msra.mxu0 %v1242
        %1360 = vmatprep.subr.bf16.mxu0 0
        %1361 = vmatpush1.bf16.msra.mxu0 %v1243
        %1362 = vmatprep.subr.bf16.mxu0 0
        %1363 = vmatpush1.bf16.msra.mxu0 0
        %1364 = vmatprep.subr.bf16.mxu0 0
        %1365 = vmatpush1.bf16.msra.mxu0 0
        %1366 = vmatprep.subr.bf16.mxu0 0
        %1367 = vmatpush1.bf16.msra.mxu0 0
        %1368 = vmatprep.subr.bf16.mxu0 0
        %1369 = vmatpush1.bf16.msra.mxu0 0
        %1370 = vmatprep.subr.bf16.mxu0 0
        %1371 = vmatpush1.bf16.msra.mxu0 0
        %1372 = vmatprep.subr.bf16.mxu0 0
        %1373 = vmatpush1.bf16.msra.mxu0 0
        %1374 = vmatprep.subr.bf16.mxu0 0
        %1375 = vmatpush1.bf16.msra.mxu0 0
        %1376 = vmatprep.subr.bf16.mxu0 0
        %1377 = vmatpush1.bf16.msra.mxu0 0
        %1378 = vmatprep.subr.bf16.mxu0 0
        %1379 = vmatpush1.bf16.msra.mxu0 0
        %1380 = vmatprep.subr.bf16.mxu0 0
        %1381 = vmatpush1.bf16.msra.mxu0 0
        %1382 = vmatprep.subr.bf16.mxu0 0
        %1383 = vmatpush1.bf16.msra.mxu0 0
        %1384 = vmatprep.subr.bf16.mxu0 0
        %1385 = vmatpush1.bf16.msra.mxu0 0
        %1386 = vmatprep.subr.bf16.mxu0 0
        %1387 = vmatpush1.bf16.msra.mxu0 0
        %1388 = vmatprep.subr.bf16.mxu0 0
        %1389 = vmatpush1.bf16.msra.mxu0 0
        %1390 = vmatprep.mubr.bf16.mxu0 0
        %1391 = vmatmul.mubr.bf16.gmra.mrb[0].mxu0 %v1356
        %v1392 = vpop.f32.mrb[0].mxu0
        %v1393 = vadd.f32 0.0, %v1392
        %v1394 = vpop.f32.mrb[0].mxu0
        %v1395 = vpop.f32.mrb[0].mxu0
        %v1396 = vadd.f32 0.0, %v1395
        %v1397 = vpop.f32.mrb[0].mxu0
        %1398 = vdwg.mxu0
        %v1400 = vsel %vm1266, %v1179, 0
        %1402 = vmatprep.subr.bf16.mxu0 0
        %1403 = vmatpush1.bf16.msra.mxu0 %v1258
        %1404 = vmatprep.subr.bf16.mxu0 0
        %1405 = vmatpush1.bf16.msra.mxu0 %v1259
        %1406 = vmatprep.subr.bf16.mxu0 0
        %1407 = vmatpush1.bf16.msra.mxu0 0
        %1408 = vmatprep.subr.bf16.mxu0 0
        %1409 = vmatpush1.bf16.msra.mxu0 0
        %1410 = vmatprep.subr.bf16.mxu0 0
        %1411 = vmatpush1.bf16.msra.mxu0 0
        %1412 = vmatprep.subr.bf16.mxu0 0
        %1413 = vmatpush1.bf16.msra.mxu0 0
        %1414 = vmatprep.subr.bf16.mxu0 0
        %1415 = vmatpush1.bf16.msra.mxu0 0
        %1416 = vmatprep.subr.bf16.mxu0 0
        %1417 = vmatpush1.bf16.msra.mxu0 0
        %1418 = vmatprep.subr.bf16.mxu0 0
        %1419 = vmatpush1.bf16.msra.mxu0 0
        %1420 = vmatprep.subr.bf16.mxu0 0
        %1421 = vmatpush1.bf16.msra.mxu0 0
        %1422 = vmatprep.subr.bf16.mxu0 0
        %1423 = vmatpush1.bf16.msra.mxu0 0
        %1424 = vmatprep.subr.bf16.mxu0 0
        %1425 = vmatpush1.bf16.msra.mxu0 0
        %1426 = vmatprep.subr.bf16.mxu0 0
        %1427 = vmatpush1.bf16.msra.mxu0 0
        %1428 = vmatprep.subr.bf16.mxu0 0
        %1429 = vmatpush1.bf16.msra.mxu0 0
        %1430 = vmatprep.subr.bf16.mxu0 0
        %1431 = vmatpush1.bf16.msra.mxu0 0
        %1432 = vmatprep.subr.bf16.mxu0 0
        %1433 = vmatpush1.bf16.msra.mxu0 0
        %1434 = vmatprep.mubr.bf16.mxu0 0
        %1435 = vmatmul.mubr.bf16.gmra.mrb[0].mxu0 %v1400
        %v1436 = vpop.f32.mrb[0].mxu0
        %v1437 = vadd.f32 0.0, %v1436
        %v1438 = vpop.f32.mrb[0].mxu0
        %v1439 = vpop.f32.mrb[0].mxu0
        %v1440 = vadd.f32 0.0, %v1439
        %v1441 = vpop.f32.mrb[0].mxu0
        %1442 = vdwg.mxu0
        %v1443 = vsel %vm817, 16843009, 0
        %v1444 = vsel %vm818, 16843009, 0
        %v1445 = vunpack.c.0.s8 %v1443
        %v1446 = vunpack.c.0.s8 %v1444
        %vm1447 = vcmp.ne.s32.totalorder %v1445, 0
        %vm1448 = vcmp.ne.s32.totalorder %v1446, 0
        %v1449 = vsel %vm1447, 1, 0
        %v1450 = vsel %vm1448, 1, 0
        %vm1451 = vcmp.eq.s32.totalorder %v1449, 1
        %vm1452 = vcmp.eq.s32.totalorder %v1450, 1
        %v1453 = vsel %vm1451, %v1305, -1e+09
        %v1454 = vsel %vm1452, %v1308, -1e+09
        %v1455 = vsel %vm1451, %v1349, -1e+09
        %v1456 = vsel %vm1452, %v1352, -1e+09
        %v1457 = vsel %vm1451, %v1393, -1e+09
        %v1458 = vsel %vm1452, %v1396, -1e+09
        %v1459 = vsel %vm1451, %v1437, -1e+09
        %v1460 = vsel %vm1452, %v1440, -1e+09
        %vm1461 = vcmask 130048
        %v1462 = vsel %vm1461, %v1453, -inf
        %1463 = vmax.xlane.f32.xlu0 %v1462
        %v1464 = vpop.xlane.xlu0 %1463
        %v1465 = vsel %vm1461, %v1454, -inf
        %1466 = vmax.xlane.f32.xlu0 %v1465
        %v1467 = vpop.xlane.xlu0 %1466
        %v1468 = vsel %vm1461, %v1455, -inf
        %1469 = vmax.xlane.f32.xlu0 %v1468
        %v1470 = vpop.xlane.xlu0 %1469
        %v1471 = vsel %vm1461, %v1456, -inf
        %1472 = vmax.xlane.f32.xlu0 %v1471
        %v1473 = vpop.xlane.xlu0 %1472
        %v1474 = vsel %vm1461, %v1457, -inf
        %1475 = vmax.xlane.f32.xlu0 %v1474
        %v1476 = vpop.xlane.xlu0 %1475
        %v1477 = vsel %vm1461, %v1458, -inf
        %1478 = vmax.xlane.f32.xlu0 %v1477
        %v1479 = vpop.xlane.xlu0 %1478
        %v1480 = vsel %vm1461, %v1459, -inf
        %1481 = vmax.xlane.f32.xlu0 %v1480
        %v1482 = vpop.xlane.xlu0 %1481
        %v1483 = vsel %vm1461, %v1460, -inf
        %1484 = vmax.xlane.f32.xlu0 %v1483
        %v1485 = vpop.xlane.xlu0 %1484
        %v1486 = vsub.f32 %v1453, %v1464
        %v1487 = vsub.f32 %v1454, %v1467
        %v1488 = vsub.f32 %v1455, %v1470
        %v1489 = vsub.f32 %v1456, %v1473
        %v1490 = vsub.f32 %v1457, %v1476
        %v1491 = vsub.f32 %v1458, %v1479
        %v1492 = vsub.f32 %v1459, %v1482
        %v1493 = vsub.f32 %v1460, %v1485
        %v1494 = vmul.f32 %v1486, 1.442695
        %v1495 = vpow.pop %v1494
        %v1496 = vmul.f32 %v1487, 1.442695
        %v1497 = vpow.pop %v1496
        %v1498 = vmul.f32 %v1488, 1.442695
        %v1499 = vpow.pop %v1498
        %v1500 = vmul.f32 %v1489, 1.442695
        %v1501 = vpow.pop %v1500
        %v1502 = vmul.f32 %v1490, 1.442695
        %v1503 = vpow.pop %v1502
        %v1504 = vmul.f32 %v1491, 1.442695
        %v1505 = vpow.pop %v1504
        %v1506 = vmul.f32 %v1492, 1.442695
        %v1507 = vpow.pop %v1506
        %v1508 = vmul.f32 %v1493, 1.442695
        %v1509 = vpow.pop %v1508
        %v1510 = vsel %vm1461, %v1495, 0.0
        %1511 = vadd.xlane.f32.xlu0 %v1510
        %v1512 = vpop.xlane.xlu0 %1511
        %v1513 = vsel %vm1461, %v1497, 0.0
        %1514 = vadd.xlane.f32.xlu0 %v1513
        %v1515 = vpop.xlane.xlu0 %1514
        %v1516 = vsel %vm1461, %v1499, 0.0
        %1517 = vadd.xlane.f32.xlu0 %v1516
        %v1518 = vpop.xlane.xlu0 %1517
        %v1519 = vsel %vm1461, %v1501, 0.0
        %1520 = vadd.xlane.f32.xlu0 %v1519
        %v1521 = vpop.xlane.xlu0 %1520
        %v1522 = vsel %vm1461, %v1503, 0.0
        %1523 = vadd.xlane.f32.xlu0 %v1522
        %v1524 = vpop.xlane.xlu0 %1523
        %v1525 = vsel %vm1461, %v1505, 0.0
        %1526 = vadd.xlane.f32.xlu0 %v1525
        %v1527 = vpop.xlane.xlu0 %1526
        %v1528 = vsel %vm1461, %v1507, 0.0
        %1529 = vadd.xlane.f32.xlu0 %v1528
        %v1530 = vpop.xlane.xlu0 %1529
        %v1531 = vsel %vm1461, %v1509, 0.0
        %1532 = vadd.xlane.f32.xlu0 %v1531
        %v1533 = vpop.xlane.xlu0 %1532
        %v1534 = vrcp.pop %v1512
        %v1535 = vrcp.pop %v1515
        %v1536 = vrcp.pop %v1518
        %v1537 = vrcp.pop %v1521
        %v1538 = vrcp.pop %v1524
        %v1539 = vrcp.pop %v1527
        %v1540 = vrcp.pop %v1530
        %v1541 = vrcp.pop %v1533
        %v1542 = vmul.f32 %v1495, %v1534
        %v1543 = vmul.f32 %v1497, %v1535
        %v1544 = vmul.f32 %v1499, %v1536
        %v1545 = vmul.f32 %v1501, %v1537
        %v1546 = vmul.f32 %v1503, %v1538
        %v1547 = vmul.f32 %v1505, %v1539
        %v1548 = vmul.f32 %v1507, %v1540
        %v1549 = vmul.f32 %v1509, %v1541
        %v1550 = vpack.c.bf16 %v1543, %v1542
        %v1551 = vpack.c.bf16 %v1545, %v1544
        %v1552 = vpack.c.bf16 %v1547, %v1546
        %v1553 = vpack.c.bf16 %v1549, %v1548
        %1554 = vxpose.xlu0.c.b16.start [1/8] %v1191, 128
        %1555 = vxpose.xlu0.c.b16.cont [2/8] 0, 128
        %1556 = vxpose.xlu0.c.b16.cont [3/8] 0, 128
        %1557 = vxpose.xlu0.c.b16.cont [4/8] 0, 128
        %1558 = vxpose.xlu0.c.b16.cont [5/8] 0, 128
        %1559 = vxpose.xlu0.c.b16.cont [6/8] 0, 128
        %1560 = vxpose.xlu0.c.b16.cont [7/8] 0, 128
        %1561 = vxpose.xlu0.c.b16.end [8/8] 0, 128
        %v1562 = vpop.trf.xlu0
        %v1563 = vpop.trf.xlu0
        %v1564 = vpop.trf.xlu0
        %v1565 = vpop.trf.xlu0
        %v1566 = vpop.trf.xlu0
        %v1567 = vpop.trf.xlu0
        %v1568 = vpop.trf.xlu0
        %v1569 = vpop.trf.xlu0
        %1570 = vxpose.xlu0.c.b16.start [1/8] %v1194, 128
        %1571 = vxpose.xlu0.c.b16.cont [2/8] 0, 128
        %1572 = vxpose.xlu0.c.b16.cont [3/8] 0, 128
        %1573 = vxpose.xlu0.c.b16.cont [4/8] 0, 128
        %1574 = vxpose.xlu0.c.b16.cont [5/8] 0, 128
        %1575 = vxpose.xlu0.c.b16.cont [6/8] 0, 128
        %1576 = vxpose.xlu0.c.b16.cont [7/8] 0, 128
        %1577 = vxpose.xlu0.c.b16.end [8/8] 0, 128
        %v1578 = vpop.trf.xlu0
        %v1579 = vpop.trf.xlu0
        %v1580 = vpop.trf.xlu0
        %v1581 = vpop.trf.xlu0
        %v1582 = vpop.trf.xlu0
        %v1583 = vpop.trf.xlu0
        %v1584 = vpop.trf.xlu0
        %v1585 = vpop.trf.xlu0
        %1586 = vxpose.xlu0.c.b16.start [1/8] %v1197, 128
        %1587 = vxpose.xlu0.c.b16.cont [2/8] 0, 128
        %1588 = vxpose.xlu0.c.b16.cont [3/8] 0, 128
        %1589 = vxpose.xlu0.c.b16.cont [4/8] 0, 128
        %1590 = vxpose.xlu0.c.b16.cont [5/8] 0, 128
        %1591 = vxpose.xlu0.c.b16.cont [6/8] 0, 128
        %1592 = vxpose.xlu0.c.b16.cont [7/8] 0, 128
        %1593 = vxpose.xlu0.c.b16.end [8/8] 0, 128
        %v1594 = vpop.trf.xlu0
        %v1595 = vpop.trf.xlu0
        %v1596 = vpop.trf.xlu0
        %v1597 = vpop.trf.xlu0
        %v1598 = vpop.trf.xlu0
        %v1599 = vpop.trf.xlu0
        %v1600 = vpop.trf.xlu0
        %v1601 = vpop.trf.xlu0
        %1602 = vxpose.xlu0.c.b16.start [1/8] %v1200, 128
        %1603 = vxpose.xlu0.c.b16.cont [2/8] 0, 128
        %1604 = vxpose.xlu0.c.b16.cont [3/8] 0, 128
        %1605 = vxpose.xlu0.c.b16.cont [4/8] 0, 128
        %1606 = vxpose.xlu0.c.b16.cont [5/8] 0, 128
        %1607 = vxpose.xlu0.c.b16.cont [6/8] 0, 128
        %1608 = vxpose.xlu0.c.b16.cont [7/8] 0, 128
        %1609 = vxpose.xlu0.c.b16.end [8/8] 0, 128
        %v1610 = vpop.trf.xlu0
        %v1611 = vpop.trf.xlu0
        %v1612 = vpop.trf.xlu0
        %v1613 = vpop.trf.xlu0
        %v1614 = vpop.trf.xlu0
        %v1615 = vpop.trf.xlu0
        %v1616 = vpop.trf.xlu0
        %v1617 = vpop.trf.xlu0
        %v1619 = vsel %vm1461, %v1562, 0
        %v1622 = vsel %vm1461, %v1563, 0
        %v1625 = vsel %vm1461, %v1550, 0
        %1627 = vmatprep.subr.bf16.mxu0 0
        %1628 = vmatpush1.bf16.xpose.msra.mxu0 %v1625
        %1629 = vmatprep.subr.bf16.mxu0 0
        %1630 = vmatpush1.bf16.xpose.msra.mxu0 0
        %1631 = vmatprep.subr.bf16.mxu0 0
        %1632 = vmatpush1.bf16.xpose.msra.mxu0 0
        %1633 = vmatprep.subr.bf16.mxu0 0
        %1634 = vmatpush1.bf16.xpose.msra.mxu0 0
        %1635 = vmatprep.subr.bf16.mxu0 0
        %1636 = vmatpush1.bf16.xpose.msra.mxu0 0
        %1637 = vmatprep.subr.bf16.mxu0 0
        %1638 = vmatpush1.bf16.xpose.msra.mxu0 0
        %1639 = vmatprep.subr.bf16.mxu0 0
        %1640 = vmatpush1.bf16.xpose.msra.mxu0 0
        %1641 = vmatprep.subr.bf16.mxu0 0
        %1642 = vmatpush1.bf16.xpose.msra.mxu0 0
        %1643 = vmatprep.subr.bf16.mxu0 0
        %1644 = vmatpush1.bf16.xpose.msra.mxu0 0
        %1645 = vmatprep.subr.bf16.mxu0 0
        %1646 = vmatpush1.bf16.xpose.msra.mxu0 0
        %1647 = vmatprep.subr.bf16.mxu0 0
        %1648 = vmatpush1.bf16.xpose.msra.mxu0 0
        %1649 = vmatprep.subr.bf16.mxu0 0
        %1650 = vmatpush1.bf16.xpose.msra.mxu0 0
        %1651 = vmatprep.subr.bf16.mxu0 0
        %1652 = vmatpush1.bf16.xpose.msra.mxu0 0
        %1653 = vmatprep.subr.bf16.mxu0 0
        %1654 = vmatpush1.bf16.xpose.msra.mxu0 0
        %1655 = vmatprep.subr.bf16.mxu0 0
        %1656 = vmatpush1.bf16.xpose.msra.mxu0 0
        %1657 = vmatprep.subr.bf16.mxu0 0
        %1658 = vmatpush1.bf16.xpose.msra.mxu0 0
        %1659 = vmatprep.mubr.bf16.mxu0 0
        %1660 = vmatmul.mubr.bf16.gmra.mrb[0].mxu0 %v1619
        %v1661 = vpop.f32.mrb[0].mxu0
        %v1662 = vadd.f32 0.0, %v1661
        %v1663 = vpop.f32.mrb[0].mxu0
        %v1664 = vpop.f32.mrb[0].mxu0
        %v1665 = vadd.f32 0.0, %v1664
        %v1666 = vpop.f32.mrb[0].mxu0
        %1667 = vmatprep.mubr.bf16.mxu0 0
        %1668 = vmatmul.mubr.bf16.gmra.mrb[0].mxu0 %v1622
        %v1669 = vpop.f32.mrb[0].mxu0
        %v1670 = vadd.f32 0.0, %v1669
        %v1671 = vpop.f32.mrb[0].mxu0
        %v1672 = vpop.f32.mrb[0].mxu0
        %v1673 = vadd.f32 0.0, %v1672
        %v1674 = vpop.f32.mrb[0].mxu0
        %1675 = vdwg.mxu0
        %v1677 = vsel %vm1461, %v1578, 0
        %v1680 = vsel %vm1461, %v1579, 0
        %v1683 = vsel %vm1461, %v1551, 0
        %1685 = vmatprep.subr.bf16.mxu0 0
        %1686 = vmatpush1.bf16.xpose.msra.mxu0 %v1683
        %1687 = vmatprep.subr.bf16.mxu0 0
        %1688 = vmatpush1.bf16.xpose.msra.mxu0 0
        %1689 = vmatprep.subr.bf16.mxu0 0
        %1690 = vmatpush1.bf16.xpose.msra.mxu0 0
        %1691 = vmatprep.subr.bf16.mxu0 0
        %1692 = vmatpush1.bf16.xpose.msra.mxu0 0
        %1693 = vmatprep.subr.bf16.mxu0 0
        %1694 = vmatpush1.bf16.xpose.msra.mxu0 0
        %1695 = vmatprep.subr.bf16.mxu0 0
        %1696 = vmatpush1.bf16.xpose.msra.mxu0 0
        %1697 = vmatprep.subr.bf16.mxu0 0
        %1698 = vmatpush1.bf16.xpose.msra.mxu0 0
        %1699 = vmatprep.subr.bf16.mxu0 0
        %1700 = vmatpush1.bf16.xpose.msra.mxu0 0
        %1701 = vmatprep.subr.bf16.mxu0 0
        %1702 = vmatpush1.bf16.xpose.msra.mxu0 0
        %1703 = vmatprep.subr.bf16.mxu0 0
        %1704 = vmatpush1.bf16.xpose.msra.mxu0 0
        %1705 = vmatprep.subr.bf16.mxu0 0
        %1706 = vmatpush1.bf16.xpose.msra.mxu0 0
        %1707 = vmatprep.subr.bf16.mxu0 0
        %1708 = vmatpush1.bf16.xpose.msra.mxu0 0
        %1709 = vmatprep.subr.bf16.mxu0 0
        %1710 = vmatpush1.bf16.xpose.msra.mxu0 0
        %1711 = vmatprep.subr.bf16.mxu0 0
        %1712 = vmatpush1.bf16.xpose.msra.mxu0 0
        %1713 = vmatprep.subr.bf16.mxu0 0
        %1714 = vmatpush1.bf16.xpose.msra.mxu0 0
        %1715 = vmatprep.subr.bf16.mxu0 0
        %1716 = vmatpush1.bf16.xpose.msra.mxu0 0
        %1717 = vmatprep.mubr.bf16.mxu0 0
        %1718 = vmatmul.mubr.bf16.gmra.mrb[0].mxu0 %v1677
        %v1719 = vpop.f32.mrb[0].mxu0
        %v1720 = vadd.f32 0.0, %v1719
        %v1721 = vpop.f32.mrb[0].mxu0
        %v1722 = vpop.f32.mrb[0].mxu0
        %v1723 = vadd.f32 0.0, %v1722
        %v1724 = vpop.f32.mrb[0].mxu0
        %1725 = vmatprep.mubr.bf16.mxu0 0
        %1726 = vmatmul.mubr.bf16.gmra.mrb[0].mxu0 %v1680
        %v1727 = vpop.f32.mrb[0].mxu0
        %v1728 = vadd.f32 0.0, %v1727
        %v1729 = vpop.f32.mrb[0].mxu0
        %v1730 = vpop.f32.mrb[0].mxu0
        %v1731 = vadd.f32 0.0, %v1730
        %v1732 = vpop.f32.mrb[0].mxu0
        %1733 = vdwg.mxu0
        %v1735 = vsel %vm1461, %v1594, 0
        %v1738 = vsel %vm1461, %v1595, 0
        %v1741 = vsel %vm1461, %v1552, 0
        %1743 = vmatprep.subr.bf16.mxu0 0
        %1744 = vmatpush1.bf16.xpose.msra.mxu0 %v1741
        %1745 = vmatprep.subr.bf16.mxu0 0
        %1746 = vmatpush1.bf16.xpose.msra.mxu0 0
        %1747 = vmatprep.subr.bf16.mxu0 0
        %1748 = vmatpush1.bf16.xpose.msra.mxu0 0
        %1749 = vmatprep.subr.bf16.mxu0 0
        %1750 = vmatpush1.bf16.xpose.msra.mxu0 0
        %1751 = vmatprep.subr.bf16.mxu0 0
        %1752 = vmatpush1.bf16.xpose.msra.mxu0 0
        %1753 = vmatprep.subr.bf16.mxu0 0
        %1754 = vmatpush1.bf16.xpose.msra.mxu0 0
        %1755 = vmatprep.subr.bf16.mxu0 0
        %1756 = vmatpush1.bf16.xpose.msra.mxu0 0
        %1757 = vmatprep.subr.bf16.mxu0 0
        %1758 = vmatpush1.bf16.xpose.msra.mxu0 0
        %1759 = vmatprep.subr.bf16.mxu0 0
        %1760 = vmatpush1.bf16.xpose.msra.mxu0 0
        %1761 = vmatprep.subr.bf16.mxu0 0
        %1762 = vmatpush1.bf16.xpose.msra.mxu0 0
        %1763 = vmatprep.subr.bf16.mxu0 0
        %1764 = vmatpush1.bf16.xpose.msra.mxu0 0
        %1765 = vmatprep.subr.bf16.mxu0 0
        %1766 = vmatpush1.bf16.xpose.msra.mxu0 0
        %1767 = vmatprep.subr.bf16.mxu0 0
        %1768 = vmatpush1.bf16.xpose.msra.mxu0 0
        %1769 = vmatprep.subr.bf16.mxu0 0
        %1770 = vmatpush1.bf16.xpose.msra.mxu0 0
        %1771 = vmatprep.subr.bf16.mxu0 0
        %1772 = vmatpush1.bf16.xpose.msra.mxu0 0
        %1773 = vmatprep.subr.bf16.mxu0 0
        %1774 = vmatpush1.bf16.xpose.msra.mxu0 0
        %1775 = vmatprep.mubr.bf16.mxu0 0
        %1776 = vmatmul.mubr.bf16.gmra.mrb[0].mxu0 %v1735
        %v1777 = vpop.f32.mrb[0].mxu0
        %v1778 = vadd.f32 0.0, %v1777
        %v1779 = vpop.f32.mrb[0].mxu0
        %v1780 = vpop.f32.mrb[0].mxu0
        %v1781 = vadd.f32 0.0, %v1780
        %v1782 = vpop.f32.mrb[0].mxu0
        %1783 = vmatprep.mubr.bf16.mxu0 0
        %1784 = vmatmul.mubr.bf16.gmra.mrb[0].mxu0 %v1738
        %v1785 = vpop.f32.mrb[0].mxu0
        %v1786 = vadd.f32 0.0, %v1785
        %v1787 = vpop.f32.mrb[0].mxu0
        %v1788 = vpop.f32.mrb[0].mxu0
        %v1789 = vadd.f32 0.0, %v1788
        %v1790 = vpop.f32.mrb[0].mxu0
        %1791 = vdwg.mxu0
        %v1793 = vsel %vm1461, %v1610, 0
        %v1796 = vsel %vm1461, %v1611, 0
        %v1799 = vsel %vm1461, %v1553, 0
        %1801 = vmatprep.subr.bf16.mxu0 0
        %1802 = vmatpush1.bf16.xpose.msra.mxu0 %v1799
        %1803 = vmatprep.subr.bf16.mxu0 0
        %1804 = vmatpush1.bf16.xpose.msra.mxu0 0
        %1805 = vmatprep.subr.bf16.mxu0 0
        %1806 = vmatpush1.bf16.xpose.msra.mxu0 0
        %1807 = vmatprep.subr.bf16.mxu0 0
        %1808 = vmatpush1.bf16.xpose.msra.mxu0 0
        %1809 = vmatprep.subr.bf16.mxu0 0
        %1810 = vmatpush1.bf16.xpose.msra.mxu0 0
        %1811 = vmatprep.subr.bf16.mxu0 0
        %1812 = vmatpush1.bf16.xpose.msra.mxu0 0
        %1813 = vmatprep.subr.bf16.mxu0 0
        %1814 = vmatpush1.bf16.xpose.msra.mxu0 0
        %1815 = vmatprep.subr.bf16.mxu0 0
        %1816 = vmatpush1.bf16.xpose.msra.mxu0 0
        %1817 = vmatprep.subr.bf16.mxu0 0
        %1818 = vmatpush1.bf16.xpose.msra.mxu0 0
        %1819 = vmatprep.subr.bf16.mxu0 0
        %1820 = vmatpush1.bf16.xpose.msra.mxu0 0
        %1821 = vmatprep.subr.bf16.mxu0 0
        %1822 = vmatpush1.bf16.xpose.msra.mxu0 0
        %1823 = vmatprep.subr.bf16.mxu0 0
        %1824 = vmatpush1.bf16.xpose.msra.mxu0 0
        %1825 = vmatprep.subr.bf16.mxu0 0
        %1826 = vmatpush1.bf16.xpose.msra.mxu0 0
        %1827 = vmatprep.subr.bf16.mxu0 0
        %1828 = vmatpush1.bf16.xpose.msra.mxu0 0
        %1829 = vmatprep.subr.bf16.mxu0 0
        %1830 = vmatpush1.bf16.xpose.msra.mxu0 0
        %1831 = vmatprep.subr.bf16.mxu0 0
        %1832 = vmatpush1.bf16.xpose.msra.mxu0 0
        %1833 = vmatprep.mubr.bf16.mxu0 0
        %1834 = vmatmul.mubr.bf16.gmra.mrb[0].mxu0 %v1793
        %v1835 = vpop.f32.mrb[0].mxu0
        %v1836 = vadd.f32 0.0, %v1835
        %v1837 = vpop.f32.mrb[0].mxu0
        %v1838 = vpop.f32.mrb[0].mxu0
        %v1839 = vadd.f32 0.0, %v1838
        %v1840 = vpop.f32.mrb[0].mxu0
        %1841 = vmatprep.mubr.bf16.mxu0 0
        %1842 = vmatmul.mubr.bf16.gmra.mrb[0].mxu0 %v1796
        %v1843 = vpop.f32.mrb[0].mxu0
        %v1844 = vadd.f32 0.0, %v1843
        %v1845 = vpop.f32.mrb[0].mxu0
        %v1846 = vpop.f32.mrb[0].mxu0
        %v1847 = vadd.f32 0.0, %v1846
        %v1848 = vpop.f32.mrb[0].mxu0
        %1849 = vdwg.mxu0
        %1850 = vxpose.xlu0.b32.start [1/16] %v1662, 128
        %1851 = vxpose.xlu0.b32.cont [2/16] %v1665, 128
        %1852 = vxpose.xlu0.b32.cont [3/16] %v1670, 128
        %1853 = vxpose.xlu0.b32.cont [4/16] %v1673, 128
        %1854 = vxpose.xlu0.b32.cont [5/16] 0.0, 128
        %1855 = vxpose.xlu0.b32.cont [6/16] 0.0, 128
        %1856 = vxpose.xlu0.b32.cont [7/16] 0.0, 128
        %1857 = vxpose.xlu0.b32.cont [8/16] 0.0, 128
        %1858 = vxpose.xlu0.b32.cont [9/16] 0.0, 128
        %1859 = vxpose.xlu0.b32.cont [10/16] 0.0, 128
        %1860 = vxpose.xlu0.b32.cont [11/16] 0.0, 128
        %1861 = vxpose.xlu0.b32.cont [12/16] 0.0, 128
        %1862 = vxpose.xlu0.b32.cont [13/16] 0.0, 128
        %1863 = vxpose.xlu0.b32.cont [14/16] 0.0, 128
        %1864 = vxpose.xlu0.b32.cont [15/16] 0.0, 128
        %1865 = vxpose.xlu0.b32.end [16/16] 0.0, 128
        %v1866 = vpop.trf.xlu0
        %v1867 = vpop.trf.xlu0
        %v1868 = vpop.trf.xlu0
        %v1869 = vpop.trf.xlu0
        %v1870 = vpop.trf.xlu0
        %v1871 = vpop.trf.xlu0
        %v1872 = vpop.trf.xlu0
        %v1873 = vpop.trf.xlu0
        %v1874 = vpop.trf.xlu0
        %v1875 = vpop.trf.xlu0
        %v1876 = vpop.trf.xlu0
        %v1877 = vpop.trf.xlu0
        %v1878 = vpop.trf.xlu0
        %v1879 = vpop.trf.xlu0
        %v1880 = vpop.trf.xlu0
        %v1881 = vpop.trf.xlu0
        %1882 = vxpose.xlu0.b32.start [1/16] %v1720, 128
        %1883 = vxpose.xlu0.b32.cont [2/16] %v1723, 128
        %1884 = vxpose.xlu0.b32.cont [3/16] %v1728, 128
        %1885 = vxpose.xlu0.b32.cont [4/16] %v1731, 128
        %1886 = vxpose.xlu0.b32.cont [5/16] 0.0, 128
        %1887 = vxpose.xlu0.b32.cont [6/16] 0.0, 128
        %1888 = vxpose.xlu0.b32.cont [7/16] 0.0, 128
        %1889 = vxpose.xlu0.b32.cont [8/16] 0.0, 128
        %1890 = vxpose.xlu0.b32.cont [9/16] 0.0, 128
        %1891 = vxpose.xlu0.b32.cont [10/16] 0.0, 128
        %1892 = vxpose.xlu0.b32.cont [11/16] 0.0, 128
        %1893 = vxpose.xlu0.b32.cont [12/16] 0.0, 128
        %1894 = vxpose.xlu0.b32.cont [13/16] 0.0, 128
        %1895 = vxpose.xlu0.b32.cont [14/16] 0.0, 128
        %1896 = vxpose.xlu0.b32.cont [15/16] 0.0, 128
        %1897 = vxpose.xlu0.b32.end [16/16] 0.0, 128
        %v1898 = vpop.trf.xlu0
        %v1899 = vpop.trf.xlu0
        %v1900 = vpop.trf.xlu0
        %v1901 = vpop.trf.xlu0
        %v1902 = vpop.trf.xlu0
        %v1903 = vpop.trf.xlu0
        %v1904 = vpop.trf.xlu0
        %v1905 = vpop.trf.xlu0
        %v1906 = vpop.trf.xlu0
        %v1907 = vpop.trf.xlu0
        %v1908 = vpop.trf.xlu0
        %v1909 = vpop.trf.xlu0
        %v1910 = vpop.trf.xlu0
        %v1911 = vpop.trf.xlu0
        %v1912 = vpop.trf.xlu0
        %v1913 = vpop.trf.xlu0
        %1914 = vxpose.xlu0.b32.start [1/16] %v1778, 128
        %1915 = vxpose.xlu0.b32.cont [2/16] %v1781, 128
        %1916 = vxpose.xlu0.b32.cont [3/16] %v1786, 128
        %1917 = vxpose.xlu0.b32.cont [4/16] %v1789, 128
        %1918 = vxpose.xlu0.b32.cont [5/16] 0.0, 128
        %1919 = vxpose.xlu0.b32.cont [6/16] 0.0, 128
        %1920 = vxpose.xlu0.b32.cont [7/16] 0.0, 128
        %1921 = vxpose.xlu0.b32.cont [8/16] 0.0, 128
        %1922 = vxpose.xlu0.b32.cont [9/16] 0.0, 128
        %1923 = vxpose.xlu0.b32.cont [10/16] 0.0, 128
        %1924 = vxpose.xlu0.b32.cont [11/16] 0.0, 128
        %1925 = vxpose.xlu0.b32.cont [12/16] 0.0, 128
        %1926 = vxpose.xlu0.b32.cont [13/16] 0.0, 128
        %1927 = vxpose.xlu0.b32.cont [14/16] 0.0, 128
        %1928 = vxpose.xlu0.b32.cont [15/16] 0.0, 128
        %1929 = vxpose.xlu0.b32.end [16/16] 0.0, 128
        %v1930 = vpop.trf.xlu0
        %v1931 = vpop.trf.xlu0
        %v1932 = vpop.trf.xlu0
        %v1933 = vpop.trf.xlu0
        %v1934 = vpop.trf.xlu0
        %v1935 = vpop.trf.xlu0
        %v1936 = vpop.trf.xlu0
        %v1937 = vpop.trf.xlu0
        %v1938 = vpop.trf.xlu0
        %v1939 = vpop.trf.xlu0
        %v1940 = vpop.trf.xlu0
        %v1941 = vpop.trf.xlu0
        %v1942 = vpop.trf.xlu0
        %v1943 = vpop.trf.xlu0
        %v1944 = vpop.trf.xlu0
        %v1945 = vpop.trf.xlu0
        %1946 = vxpose.xlu0.b32.start [1/16] %v1836, 128
        %1947 = vxpose.xlu0.b32.cont [2/16] %v1839, 128
        %1948 = vxpose.xlu0.b32.cont [3/16] %v1844, 128
        %1949 = vxpose.xlu0.b32.cont [4/16] %v1847, 128
        %1950 = vxpose.xlu0.b32.cont [5/16] 0.0, 128
        %1951 = vxpose.xlu0.b32.cont [6/16] 0.0, 128
        %1952 = vxpose.xlu0.b32.cont [7/16] 0.0, 128
        %1953 = vxpose.xlu0.b32.cont [8/16] 0.0, 128
        %1954 = vxpose.xlu0.b32.cont [9/16] 0.0, 128
        %1955 = vxpose.xlu0.b32.cont [10/16] 0.0, 128
        %1956 = vxpose.xlu0.b32.cont [11/16] 0.0, 128
        %1957 = vxpose.xlu0.b32.cont [12/16] 0.0, 128
        %1958 = vxpose.xlu0.b32.cont [13/16] 0.0, 128
        %1959 = vxpose.xlu0.b32.cont [14/16] 0.0, 128
        %1960 = vxpose.xlu0.b32.cont [15/16] 0.0, 128
        %1961 = vxpose.xlu0.b32.end [16/16] 0.0, 128
        %v1962 = vpop.trf.xlu0
        %v1963 = vpop.trf.xlu0
        %v1964 = vpop.trf.xlu0
        %v1965 = vpop.trf.xlu0
        %v1966 = vpop.trf.xlu0
        %v1967 = vpop.trf.xlu0
        %v1968 = vpop.trf.xlu0
        %v1969 = vpop.trf.xlu0
        %v1970 = vpop.trf.xlu0
        %v1971 = vpop.trf.xlu0
        %v1972 = vpop.trf.xlu0
        %v1973 = vpop.trf.xlu0
        %v1974 = vpop.trf.xlu0
        %v1975 = vpop.trf.xlu0
        %v1976 = vpop.trf.xlu0
        %v1977 = vpop.trf.xlu0
        %v1978 = vcombine.low %v1866, %v1930
        %v1979 = vcombine.high %v1866, %v1930
        %v1981 = vunpack.c.l.s4 1983009808
        %v1982 = vunpack.c.0.s8 %v1981
        %v1983 = vlaneseq
        %v1984 = vshrl.u32 %v1983, 7
        %v1985 = vsub.s32 %v1982, %v1984
        %v1986 = vrot.slane %v1978, %v1985
        %v1988 = vunpack.c.l.s4 1983009808
        %v1989 = vunpack.c.0.s8 %v1988
        %v1990 = vlaneseq
        %v1991 = vshrl.u32 %v1990, 7
        %v1992 = vsub.s32 %v1989, %v1991
        %v1993 = vrot.slane %v1979, %v1992
        %v1994 = vcombine.low %v1898, %v1962
        %v1995 = vcombine.high %v1898, %v1962
        %v1997 = vunpack.c.l.s4 1983009808
        %v1998 = vunpack.c.0.s8 %v1997
        %v1999 = vlaneseq
        %v2000 = vshrl.u32 %v1999, 7
        %v2001 = vsub.s32 %v1998, %v2000
        %v2002 = vrot.slane %v1994, %v2001
        %v2004 = vunpack.c.l.s4 1983009808
        %v2005 = vunpack.c.0.s8 %v2004
        %v2006 = vlaneseq
        %v2007 = vshrl.u32 %v2006, 7
        %v2008 = vsub.s32 %v2005, %v2007
        %v2009 = vrot.slane %v1995, %v2008
        %v2010 = vcombine.low %v1986, %v2002
        %v2011 = vcombine.high %v1986, %v2002
        %v2013 = vunpack.c.l.s4 1934713408
        %v2014 = vunpack.c.0.s8 %v2013
        %v2015 = vlaneseq
        %v2016 = vshrl.u32 %v2015, 7
        %v2017 = vsub.s32 %v2014, %v2016
        %v2018 = vrot.slane %v2010, %v2017
        %v2020 = vunpack.c.l.s4 1934713408
        %v2021 = vunpack.c.0.s8 %v2020
        %v2022 = vlaneseq
        %v2023 = vshrl.u32 %v2022, 7
        %v2024 = vsub.s32 %v2021, %v2023
        %v2025 = vrot.slane %v2011, %v2024
        %v2026 = vcombine.low %v1993, %v2009
        %v2027 = vcombine.high %v1993, %v2009
        %v2029 = vunpack.c.l.s4 1934713408
        %v2030 = vunpack.c.0.s8 %v2029
        %v2031 = vlaneseq
        %v2032 = vshrl.u32 %v2031, 7
        %v2033 = vsub.s32 %v2030, %v2032
        %v2034 = vrot.slane %v2026, %v2033
        %v2036 = vunpack.c.l.s4 1934713408
        %v2037 = vunpack.c.0.s8 %v2036
        %v2038 = vlaneseq
        %v2039 = vshrl.u32 %v2038, 7
        %v2040 = vsub.s32 %v2037, %v2039
        %v2041 = vrot.slane %v2027, %v2040
        %v2042 = vcombine.high %v2018, 0.0
        %v2043 = vcombine.high %v2025, 0.0
        %v2044 = vcombine.high %v2034, 0.0
        %v2045 = vcombine.high %v2041, 0.0
        %v2046 = vcombine.low %v1867, %v1931
        %v2047 = vcombine.high %v1867, %v1931
        %v2049 = vunpack.c.l.s4 1983009808
        %v2050 = vunpack.c.0.s8 %v2049
        %v2051 = vlaneseq
        %v2052 = vshrl.u32 %v2051, 7
        %v2053 = vsub.s32 %v2050, %v2052
        %v2054 = vrot.slane %v2046, %v2053
        %v2056 = vunpack.c.l.s4 1983009808
        %v2057 = vunpack.c.0.s8 %v2056
        %v2058 = vlaneseq
        %v2059 = vshrl.u32 %v2058, 7
        %v2060 = vsub.s32 %v2057, %v2059
        %v2061 = vrot.slane %v2047, %v2060
        %v2062 = vcombine.low %v1899, %v1963
        %v2063 = vcombine.high %v1899, %v1963
        %v2065 = vunpack.c.l.s4 1983009808
        %v2066 = vunpack.c.0.s8 %v2065
        %v2067 = vlaneseq
        %v2068 = vshrl.u32 %v2067, 7
        %v2069 = vsub.s32 %v2066, %v2068
        %v2070 = vrot.slane %v2062, %v2069
        %v2072 = vunpack.c.l.s4 1983009808
        %v2073 = vunpack.c.0.s8 %v2072
        %v2074 = vlaneseq
        %v2075 = vshrl.u32 %v2074, 7
        %v2076 = vsub.s32 %v2073, %v2075
        %v2077 = vrot.slane %v2063, %v2076
        %v2078 = vcombine.low %v2054, %v2070
        %v2079 = vcombine.high %v2054, %v2070
        %v2081 = vunpack.c.l.s4 1934713408
        %v2082 = vunpack.c.0.s8 %v2081
        %v2083 = vlaneseq
        %v2084 = vshrl.u32 %v2083, 7
        %v2085 = vsub.s32 %v2082, %v2084
        %v2086 = vrot.slane %v2078, %v2085
        %v2088 = vunpack.c.l.s4 1934713408
        %v2089 = vunpack.c.0.s8 %v2088
        %v2090 = vlaneseq
        %v2091 = vshrl.u32 %v2090, 7
        %v2092 = vsub.s32 %v2089, %v2091
        %v2093 = vrot.slane %v2079, %v2092
        %v2094 = vcombine.low %v2061, %v2077
        %v2095 = vcombine.high %v2061, %v2077
        %v2097 = vunpack.c.l.s4 1934713408
        %v2098 = vunpack.c.0.s8 %v2097
        %v2099 = vlaneseq
        %v2100 = vshrl.u32 %v2099, 7
        %v2101 = vsub.s32 %v2098, %v2100
        %v2102 = vrot.slane %v2094, %v2101
        %v2104 = vunpack.c.l.s4 1934713408
        %v2105 = vunpack.c.0.s8 %v2104
        %v2106 = vlaneseq
        %v2107 = vshrl.u32 %v2106, 7
        %v2108 = vsub.s32 %v2105, %v2107
        %v2109 = vrot.slane %v2095, %v2108
        %v2110 = vcombine.high %v2086, 0.0
        %v2111 = vcombine.high %v2093, 0.0
        %v2112 = vcombine.high %v2102, 0.0
        %v2113 = vcombine.high %v2109, 0.0
        %v2114 = vpack.c.bf16 %v2018, %v2018
        %v2115 = vpack.c.bf16 %v2042, %v2042
        %v2116 = vpack.c.bf16 %v2025, %v2025
        %v2117 = vpack.c.bf16 %v2043, %v2043
        %v2118 = vpack.c.bf16 %v2034, %v2034
        %v2119 = vpack.c.bf16 %v2044, %v2044
        %v2120 = vpack.c.bf16 %v2041, %v2041
        %v2121 = vpack.c.bf16 %v2045, %v2045
        %v2122 = vpack.c.bf16 %v2086, %v2086
        %v2123 = vpack.c.bf16 %v2110, %v2110
        %v2124 = vpack.c.bf16 %v2093, %v2093
        %v2125 = vpack.c.bf16 %v2111, %v2111
        %v2126 = vpack.c.bf16 %v2102, %v2102
        %v2127 = vpack.c.bf16 %v2112, %v2112
        %v2128 = vpack.c.bf16 %v2109, %v2109
        %v2129 = vpack.c.bf16 %v2113, %v2113
        %v2130 = vcombine.low %v2114, %v2118
        %v2132 = vunpack.c.l.s4 1983009808
        %v2133 = vunpack.c.0.s8 %v2132
        %v2134 = vlaneseq
        %v2135 = vshrl.u32 %v2134, 7
        %v2136 = vsub.s32 %v2133, %v2135
        %v2137 = vrot.slane %v2130, %v2136
        %v2138 = vcombine.low %v2116, %v2120
        %v2140 = vunpack.c.l.s4 1983009808
        %v2141 = vunpack.c.0.s8 %v2140
        %v2142 = vlaneseq
        %v2143 = vshrl.u32 %v2142, 7
        %v2144 = vsub.s32 %v2141, %v2143
        %v2145 = vrot.slane %v2138, %v2144
        %v2146 = vcombine.low %v2122, %v2126
        %v2148 = vunpack.c.l.s4 1983009808
        %v2149 = vunpack.c.0.s8 %v2148
        %v2150 = vlaneseq
        %v2151 = vshrl.u32 %v2150, 7
        %v2152 = vsub.s32 %v2149, %v2151
        %v2153 = vrot.slane %v2146, %v2152
        %v2154 = vcombine.low %v2124, %v2128
        %v2156 = vunpack.c.l.s4 1983009808
        %v2157 = vunpack.c.0.s8 %v2156
        %v2158 = vlaneseq
        %v2159 = vshrl.u32 %v2158, 7
        %v2160 = vsub.s32 %v2157, %v2159
        %v2161 = vrot.slane %v2154, %v2160
        %v2162 = vcombine.low %v2137, %v2145
        %v2164 = vunpack.c.l.s4 1934713408
        %v2165 = vunpack.c.0.s8 %v2164
        %v2166 = vlaneseq
        %v2167 = vshrl.u32 %v2166, 7
        %v2168 = vsub.s32 %v2165, %v2167
        %v2169 = vrot.slane %v2162, %v2168
        %v2170 = vcombine.low %v2153, %v2161
        %v2172 = vunpack.c.l.s4 1934713408
        %v2173 = vunpack.c.0.s8 %v2172
        %v2174 = vlaneseq
        %v2175 = vshrl.u32 %v2174, 7
        %v2176 = vsub.s32 %v2173, %v2175
        %v2177 = vrot.slane %v2170, %v2176
        %v2178 = vcombine.low %v2169, %v2177
        %v2179 = vcombine.high %v2169, %v2177
        %v2180 = vcombine.low %v2115, %v2119
        %v2182 = vunpack.c.l.s4 1983009808
        %v2183 = vunpack.c.0.s8 %v2182
        %v2184 = vlaneseq
        %v2185 = vshrl.u32 %v2184, 7
        %v2186 = vsub.s32 %v2183, %v2185
        %v2187 = vrot.slane %v2180, %v2186
        %v2188 = vcombine.low %v2117, %v2121
        %v2190 = vunpack.c.l.s4 1983009808
        %v2191 = vunpack.c.0.s8 %v2190
        %v2192 = vlaneseq
        %v2193 = vshrl.u32 %v2192, 7
        %v2194 = vsub.s32 %v2191, %v2193
        %v2195 = vrot.slane %v2188, %v2194
        %v2196 = vcombine.low %v2123, %v2127
        %v2198 = vunpack.c.l.s4 1983009808
        %v2199 = vunpack.c.0.s8 %v2198
        %v2200 = vlaneseq
        %v2201 = vshrl.u32 %v2200, 7
        %v2202 = vsub.s32 %v2199, %v2201
        %v2203 = vrot.slane %v2196, %v2202
        %v2204 = vcombine.low %v2125, %v2129
        %v2206 = vunpack.c.l.s4 1983009808
        %v2207 = vunpack.c.0.s8 %v2206
        %v2208 = vlaneseq
        %v2209 = vshrl.u32 %v2208, 7
        %v2210 = vsub.s32 %v2207, %v2209
        %v2211 = vrot.slane %v2204, %v2210
        %v2212 = vcombine.low %v2187, %v2195
        %v2214 = vunpack.c.l.s4 1934713408
        %v2215 = vunpack.c.0.s8 %v2214
        %v2216 = vlaneseq
        %v2217 = vshrl.u32 %v2216, 7
        %v2218 = vsub.s32 %v2215, %v2217
        %v2219 = vrot.slane %v2212, %v2218
        %v2220 = vcombine.low %v2203, %v2211
        %v2222 = vunpack.c.l.s4 1934713408
        %v2223 = vunpack.c.0.s8 %v2222
        %v2224 = vlaneseq
        %v2225 = vshrl.u32 %v2224, 7
        %v2226 = vsub.s32 %v2223, %v2225
        %v2227 = vrot.slane %v2220, %v2226
        %v2228 = vcombine.low %v2219, %v2227
        %v2229 = vcombine.high %v2219, %v2227
        %v2232 = vpack.i.b16 %v2228, %v2178
        %v2233 = vshrl.u32 %v2178, 16
        %v2234 = vshrl.u32 %v2228, 16
        %v2235 = vpack.i.b16 %v2234, %v2233
        %v2238 = vpack.i.b16 %v2229, %v2179
        %v2239 = vshrl.u32 %v2179, 16
        %v2240 = vshrl.u32 %v2229, 16
        %v2241 = vpack.i.b16 %v2240, %v2239
        %2242 = vrot.lane.b32.xlu0 %v2235, 32
        %v2243 = vpop.permute.xlu0 %2242
        %2244 = vrot.lane.b32.xlu0 %v2238, 64
        %v2245 = vpop.permute.xlu0 %2244
        %2246 = vrot.lane.b32.xlu0 %v2241, 96
        %v2247 = vpop.permute.xlu0 %2246
        %v2250 = vsel %vm1266, %v2232, %v2243
        %vm2251 = vcmask 523264
        %v2253 = vsel %vm2251, %v2250, %v2245
        %vm2254 = vcmask 785408
        %v2256 = vsel %vm2254, %v2253, %v2247
        %v2258 = vld [vmem:[#allocation16] sm:$0xf]
        %v2259 = vld [vmem:[#allocation16 + $0x4] sm:$0xf]
        %v2260 = vld [vmem:[#allocation16 + $0x8] sm:$0xf]
        %v2261 = vld [vmem:[#allocation16 + $0xc] sm:$0xf]
        %v2262 = vld [vmem:[#allocation16 + $0x10] sm:$0xf]
        %v2263 = vld [vmem:[#allocation16 + $0x14] sm:$0xf]
        %v2264 = vld [vmem:[#allocation16 + $0x18] sm:$0xf]
        %v2265 = vld [vmem:[#allocation16 + $0x1c] sm:$0xf]
        %v2266 = vld [vmem:[#allocation16 + $0x20] sm:$0xf]
        %v2267 = vld [vmem:[#allocation16 + $0x24] sm:$0xf]
        %v2268 = vld [vmem:[#allocation16 + $0x28] sm:$0xf]
        %v2269 = vld [vmem:[#allocation16 + $0x2c] sm:$0xf]
        %v2270 = vld [vmem:[#allocation16 + $0x30] sm:$0xf]
        %v2271 = vld [vmem:[#allocation16 + $0x34] sm:$0xf]
        %v2272 = vld [vmem:[#allocation16 + $0x38] sm:$0xf]
        %v2273 = vld [vmem:[#allocation16 + $0x3c] sm:$0xf]
        %v2274 = vld [vmem:[%s10] sm:$0x1]
        %v2276 = vlaneseq
        %v2277 = vshrl.u32 %v2276, 7
        %v2278 = vsub.s32 0, %v2277
        %v2279 = vrot.slane %v2274, %v2278
        %v2297 = vunpack.c.l.b16 %v2258
        %v2298 = vunpack.c.l.b16 %v2259
        %v2299 = vunpack.c.l.b16 %v2260
        %v2300 = vunpack.c.l.b16 %v2261
        %v2301 = vunpack.c.l.b16 %v2262
        %v2302 = vunpack.c.l.b16 %v2263
        %v2303 = vunpack.c.l.b16 %v2264
        %v2304 = vunpack.c.l.b16 %v2265
        %v2305 = vunpack.c.l.b16 %v2266
        %v2306 = vunpack.c.l.b16 %v2267
        %v2307 = vunpack.c.l.b16 %v2268
        %v2308 = vunpack.c.l.b16 %v2269
        %v2309 = vunpack.c.l.b16 %v2270
        %v2310 = vunpack.c.l.b16 %v2271
        %v2311 = vunpack.c.l.b16 %v2272
        %v2312 = vunpack.c.l.b16 %v2273
        %v2313 = vpack.c.b16 %v2298, %v2297
        %v2314 = vpack.c.b16 %v2300, %v2299
        %v2315 = vpack.c.b16 %v2302, %v2301
        %v2316 = vpack.c.b16 %v2304, %v2303
        %v2317 = vpack.c.b16 %v2306, %v2305
        %v2318 = vpack.c.b16 %v2308, %v2307
        %v2319 = vpack.c.b16 %v2310, %v2309
        %v2320 = vpack.c.b16 %v2312, %v2311
        %2329 = vmatprep.subr.bf16.mxu0 0
        %2330 = vmatpush1.bf16.msra.mxu0 %v2313
        %2331 = vmatprep.subr.bf16.mxu0 0
        %2332 = vmatpush1.bf16.msra.mxu0 %v2314
        %2333 = vmatprep.subr.bf16.mxu0 0
        %2334 = vmatpush1.bf16.msra.mxu0 %v2315
        %2335 = vmatprep.subr.bf16.mxu0 0
        %2336 = vmatpush1.bf16.msra.mxu0 %v2316
        %2337 = vmatprep.subr.bf16.mxu0 0
        %2338 = vmatpush1.bf16.msra.mxu0 %v2317
        %2339 = vmatprep.subr.bf16.mxu0 0
        %2340 = vmatpush1.bf16.msra.mxu0 %v2318
        %2341 = vmatprep.subr.bf16.mxu0 0
        %2342 = vmatpush1.bf16.msra.mxu0 %v2319
        %2343 = vmatprep.subr.bf16.mxu0 0
        %2344 = vmatpush1.bf16.msra.mxu0 %v2320
        %2345 = vmatprep.subr.bf16.mxu0 0
        %2346 = vmatpush1.bf16.msra.mxu0 0
        %2347 = vmatprep.subr.bf16.mxu0 0
        %2348 = vmatpush1.bf16.msra.mxu0 0
        %2349 = vmatprep.subr.bf16.mxu0 0
        %2350 = vmatpush1.bf16.msra.mxu0 0
        %2351 = vmatprep.subr.bf16.mxu0 0
        %2352 = vmatpush1.bf16.msra.mxu0 0
        %2353 = vmatprep.subr.bf16.mxu0 0
        %2354 = vmatpush1.bf16.msra.mxu0 0
        %2355 = vmatprep.subr.bf16.mxu0 0
        %2356 = vmatpush1.bf16.msra.mxu0 0
        %2357 = vmatprep.subr.bf16.mxu0 0
        %2358 = vmatpush1.bf16.msra.mxu0 0
        %2359 = vmatprep.subr.bf16.mxu0 0
        %2360 = vmatpush1.bf16.msra.mxu0 0
        %2361 = vmatprep.mubr.bf16.mxu0 0
        %2362 = vmatmul.mubr.bf16.gmra.mrb[0].mxu0 %v2256
        %v2363 = vpop.f32.mrb[0].mxu0
        %v2364 = vadd.f32 %v2279, %v2363
        %v2365 = vpop.f32.mrb[0].mxu0
        %v2366 = vpop.f32.mrb[0].mxu0
        %v2367 = vadd.f32 %v2279, %v2366
        %v2368 = vpop.f32.mrb[0].mxu0
        %2369 = vdwg.mxu0
        %v2370 = vadd.f32 %v2364, %v813
        %v2371 = vadd.f32 %v2367, %v814
        %v2372 = vld [vmem:[%s11] sm:$0x1]
        %v2373 = vld [vmem:[%s12] sm:$0x1]
        %2374 = vadd.xlane.f32.xlu0 %v2370
        %v2375 = vpop.xlane.xlu0 %2374
        %2376 = vadd.xlane.f32.xlu0 %v2371
        %v2377 = vpop.xlane.xlu0 %2376
        %v2378 = vrcp.pop 128.0
        %v2379 = vmul.f32 %v2375, %v2378
        %v2380 = vmul.f32 %v2377, %v2378
        %v2381 = vsub.f32 %v2370, %v2379
        %v2382 = vsub.f32 %v2371, %v2380
        %v2383 = vmul.f32 %v2381, %v2381
        %v2384 = vmul.f32 %v2382, %v2382
        %2385 = vadd.xlane.f32.xlu0 %v2383
        %v2386 = vpop.xlane.xlu0 %2385
        %2387 = vadd.xlane.f32.xlu0 %v2384
        %v2388 = vpop.xlane.xlu0 %2387
        %v2389 = vmul.f32 %v2386, %v2378
        %v2390 = vmul.f32 %v2388, %v2378
        %v2391 = vadd.f32 %v2389, 1e-05
        %v2392 = vadd.f32 %v2390, 1e-05
        %v2393 = vrsqrt.pop %v2391
        %v2394 = vrsqrt.pop %v2392
        %v2395 = vmul.f32 %v2381, %v2393
        %v2396 = vmul.f32 %v2382, %v2394
        %v2398 = vlaneseq
        %v2399 = vshrl.u32 %v2398, 7
        %v2400 = vsub.s32 0, %v2399
        %v2401 = vrot.slane %v2372, %v2400
        %v2403 = vmul.f32 %v2395, %v2401
        %v2404 = vmul.f32 %v2396, %v2401
        %v2406 = vlaneseq
        %v2407 = vshrl.u32 %v2406, 7
        %v2408 = vsub.s32 0, %v2407
        %v2409 = vrot.slane %v2373, %v2408
        %v2411 = vadd.f32 %v2403, %v2409
        %v2412 = vadd.f32 %v2404, %v2409
        %v2413 = vpack.c.bf16 %v2412, %v2411
        %v2414 = vld [vmem:[#allocation17] sm:$0xff]
        %v2415 = vld [vmem:[#allocation17 + $0x8] sm:$0xff]
        %v2416 = vld [vmem:[#allocation17 + $0x10] sm:$0xff]
        %v2417 = vld [vmem:[#allocation17 + $0x18] sm:$0xff]
        %v2418 = vld [vmem:[#allocation17 + $0x20] sm:$0xff]
        %v2419 = vld [vmem:[#allocation17 + $0x28] sm:$0xff]
        %v2420 = vld [vmem:[#allocation17 + $0x30] sm:$0xff]
        %v2421 = vld [vmem:[#allocation17 + $0x38] sm:$0xff]
        %v2422 = vld [vmem:[#allocation17 + $0x40] sm:$0xff]
        %v2423 = vld [vmem:[#allocation17 + $0x48] sm:$0xff]
        %v2424 = vld [vmem:[#allocation17 + $0x50] sm:$0xff]
        %v2425 = vld [vmem:[#allocation17 + $0x58] sm:$0xff]
        %v2426 = vld [vmem:[#allocation17 + $0x60] sm:$0xff]
        %v2427 = vld [vmem:[#allocation17 + $0x68] sm:$0xff]
        %v2428 = vld [vmem:[#allocation17 + $0x70] sm:$0xff]
        %v2429 = vld [vmem:[#allocation17 + $0x78] sm:$0xff]
        %v2430 = vld [vmem:[%s14] sm:$0x3]
        %v2432 = vlaneseq
        %v2433 = vshrl.u32 %v2432, 7
        %v2434 = vsub.s32 0, %v2433
        %v2435 = vrot.slane %v2430, %v2434
        %v2436 = vlaneseq
        %v2437 = vshrl.u32 %v2436, 7
        %v2438 = vsub.s32 1, %v2437
        %v2439 = vrot.slane %v2430, %v2438
        %v2458 = vunpack.c.l.b16 %v2414
        %v2459 = vunpack.c.h.b16 %v2414
        %v2460 = vunpack.c.l.b16 %v2415
        %v2461 = vunpack.c.h.b16 %v2415
        %v2462 = vunpack.c.l.b16 %v2416
        %v2463 = vunpack.c.h.b16 %v2416
        %v2464 = vunpack.c.l.b16 %v2417
        %v2465 = vunpack.c.h.b16 %v2417
        %v2466 = vunpack.c.l.b16 %v2418
        %v2467 = vunpack.c.h.b16 %v2418
        %v2468 = vunpack.c.l.b16 %v2419
        %v2469 = vunpack.c.h.b16 %v2419
        %v2470 = vunpack.c.l.b16 %v2420
        %v2471 = vunpack.c.h.b16 %v2420
        %v2472 = vunpack.c.l.b16 %v2421
        %v2473 = vunpack.c.h.b16 %v2421
        %v2474 = vunpack.c.l.b16 %v2422
        %v2475 = vunpack.c.h.b16 %v2422
        %v2476 = vunpack.c.l.b16 %v2423
        %v2477 = vunpack.c.h.b16 %v2423
        %v2478 = vunpack.c.l.b16 %v2424
        %v2479 = vunpack.c.h.b16 %v2424
        %v2480 = vunpack.c.l.b16 %v2425
        %v2481 = vunpack.c.h.b16 %v2425
        %v2482 = vunpack.c.l.b16 %v2426
        %v2483 = vunpack.c.h.b16 %v2426
        %v2484 = vunpack.c.l.b16 %v2427
        %v2485 = vunpack.c.h.b16 %v2427
        %v2486 = vunpack.c.l.b16 %v2428
        %v2487 = vunpack.c.h.b16 %v2428
        %v2488 = vunpack.c.l.b16 %v2429
        %v2489 = vunpack.c.h.b16 %v2429
        %v2490 = vpack.c.b16 %v2460, %v2458
        %v2491 = vpack.c.b16 %v2461, %v2459
        %v2492 = vpack.c.b16 %v2464, %v2462
        %v2493 = vpack.c.b16 %v2465, %v2463
        %v2494 = vpack.c.b16 %v2468, %v2466
        %v2495 = vpack.c.b16 %v2469, %v2467
        %v2496 = vpack.c.b16 %v2472, %v2470
        %v2497 = vpack.c.b16 %v2473, %v2471
        %v2498 = vpack.c.b16 %v2476, %v2474
        %v2499 = vpack.c.b16 %v2477, %v2475
        %v2500 = vpack.c.b16 %v2480, %v2478
        %v2501 = vpack.c.b16 %v2481, %v2479
        %v2502 = vpack.c.b16 %v2484, %v2482
        %v2503 = vpack.c.b16 %v2485, %v2483
        %v2504 = vpack.c.b16 %v2488, %v2486
        %v2505 = vpack.c.b16 %v2489, %v2487
        %2522 = vmatprep.subr.bf16.mxu0 %v2491
        %2523 = vmatpush1.bf16.msra.mxu0 %v2490
        %2524 = vmatprep.subr.bf16.mxu0 %v2493
        %2525 = vmatpush1.bf16.msra.mxu0 %v2492
        %2526 = vmatprep.subr.bf16.mxu0 %v2495
        %2527 = vmatpush1.bf16.msra.mxu0 %v2494
        %2528 = vmatprep.subr.bf16.mxu0 %v2497
        %2529 = vmatpush1.bf16.msra.mxu0 %v2496
        %2530 = vmatprep.subr.bf16.mxu0 %v2499
        %2531 = vmatpush1.bf16.msra.mxu0 %v2498
        %2532 = vmatprep.subr.bf16.mxu0 %v2501
        %2533 = vmatpush1.bf16.msra.mxu0 %v2500
        %2534 = vmatprep.subr.bf16.mxu0 %v2503
        %2535 = vmatpush1.bf16.msra.mxu0 %v2502
        %2536 = vmatprep.subr.bf16.mxu0 %v2505
        %2537 = vmatpush1.bf16.msra.mxu0 %v2504
        %2538 = vmatprep.subr.bf16.mxu0 0
        %2539 = vmatpush1.bf16.msra.mxu0 0
        %2540 = vmatprep.subr.bf16.mxu0 0
        %2541 = vmatpush1.bf16.msra.mxu0 0
        %2542 = vmatprep.subr.bf16.mxu0 0
        %2543 = vmatpush1.bf16.msra.mxu0 0
        %2544 = vmatprep.subr.bf16.mxu0 0
        %2545 = vmatpush1.bf16.msra.mxu0 0
        %2546 = vmatprep.subr.bf16.mxu0 0
        %2547 = vmatpush1.bf16.msra.mxu0 0
        %2548 = vmatprep.subr.bf16.mxu0 0
        %2549 = vmatpush1.bf16.msra.mxu0 0
        %2550 = vmatprep.subr.bf16.mxu0 0
        %2551 = vmatpush1.bf16.msra.mxu0 0
        %2552 = vmatprep.subr.bf16.mxu0 0
        %2553 = vmatpush1.bf16.msra.mxu0 0
        %2554 = vmatprep.mubr.bf16.mxu0 0
        %2555 = vmatmul.mubr.bf16.gmra.mrb[0].mxu0 %v2413
        %v2556 = vpop.f32.mrb[0].mxu0
        %v2557 = vadd.f32 %v2435, %v2556
        %v2558 = vpop.f32.mrb[0].mxu0
        %v2559 = vadd.f32 %v2439, %v2558
        %v2560 = vpop.f32.mrb[0].mxu0
        %v2561 = vadd.f32 %v2435, %v2560
        %v2562 = vpop.f32.mrb[0].mxu0
        %v2563 = vadd.f32 %v2439, %v2562
        %2564 = vdwg.mxu0
        %v2565 = vmax.f32 %v2557, 0.0
        %v2566 = vmax.f32 %v2559, 0.0
        %v2567 = vmax.f32 %v2561, 0.0
        %v2568 = vmax.f32 %v2563, 0.0
        %v2569 = vpack.c.bf16 %v2567, %v2565
        %v2570 = vpack.c.bf16 %v2568, %v2566
        %v2571 = vld [vmem:[#allocation19] sm:$0xf]
        %v2572 = vld [vmem:[#allocation19 + $0x4] sm:$0xf]
        %v2573 = vld [vmem:[#allocation19 + $0x8] sm:$0xf]
        %v2574 = vld [vmem:[#allocation19 + $0xc] sm:$0xf]
        %v2575 = vld [vmem:[#allocation19 + $0x10] sm:$0xf]
        %v2576 = vld [vmem:[#allocation19 + $0x14] sm:$0xf]
        %v2577 = vld [vmem:[#allocation19 + $0x18] sm:$0xf]
        %v2578 = vld [vmem:[#allocation19 + $0x1c] sm:$0xf]
        %v2579 = vld [vmem:[#allocation19 + $0x20] sm:$0xf]
        %v2580 = vld [vmem:[#allocation19 + $0x24] sm:$0xf]
        %v2581 = vld [vmem:[#allocation19 + $0x28] sm:$0xf]
        %v2582 = vld [vmem:[#allocation19 + $0x2c] sm:$0xf]
        %v2583 = vld [vmem:[#allocation19 + $0x30] sm:$0xf]
        %v2584 = vld [vmem:[#allocation19 + $0x34] sm:$0xf]
        %v2585 = vld [vmem:[#allocation19 + $0x38] sm:$0xf]
        %v2586 = vld [vmem:[#allocation19 + $0x3c] sm:$0xf]
        %v2587 = vld [vmem:[#allocation19 + $0x40] sm:$0xf]
        %v2588 = vld [vmem:[#allocation19 + $0x44] sm:$0xf]
        %v2589 = vld [vmem:[#allocation19 + $0x48] sm:$0xf]
        %v2590 = vld [vmem:[#allocation19 + $0x4c] sm:$0xf]
        %v2591 = vld [vmem:[#allocation19 + $0x50] sm:$0xf]
        %v2592 = vld [vmem:[#allocation19 + $0x54] sm:$0xf]
        %v2593 = vld [vmem:[#allocation19 + $0x58] sm:$0xf]
        %v2594 = vld [vmem:[#allocation19 + $0x5c] sm:$0xf]
        %v2595 = vld [vmem:[#allocation19 + $0x60] sm:$0xf]
        %v2596 = vld [vmem:[#allocation19 + $0x64] sm:$0xf]
        %v2597 = vld [vmem:[#allocation19 + $0x68] sm:$0xf]
        %v2598 = vld [vmem:[#allocation19 + $0x6c] sm:$0xf]
        %v2599 = vld [vmem:[#allocation19 + $0x70] sm:$0xf]
        %v2600 = vld [vmem:[#allocation19 + $0x74] sm:$0xf]
        %v2601 = vld [vmem:[#allocation19 + $0x78] sm:$0xf]
        %v2602 = vld [vmem:[#allocation19 + $0x7c] sm:$0xf]
        %v2603 = vld [vmem:[%s16] sm:$0x1]
        %v2605 = vlaneseq
        %v2606 = vshrl.u32 %v2605, 7
        %v2607 = vsub.s32 0, %v2606
        %v2608 = vrot.slane %v2603, %v2607
        %v2642 = vunpack.c.l.b16 %v2571
        %v2643 = vunpack.c.l.b16 %v2572
        %v2644 = vunpack.c.l.b16 %v2573
        %v2645 = vunpack.c.l.b16 %v2574
        %v2646 = vunpack.c.l.b16 %v2575
        %v2647 = vunpack.c.l.b16 %v2576
        %v2648 = vunpack.c.l.b16 %v2577
        %v2649 = vunpack.c.l.b16 %v2578
        %v2650 = vunpack.c.l.b16 %v2579
        %v2651 = vunpack.c.l.b16 %v2580
        %v2652 = vunpack.c.l.b16 %v2581
        %v2653 = vunpack.c.l.b16 %v2582
        %v2654 = vunpack.c.l.b16 %v2583
        %v2655 = vunpack.c.l.b16 %v2584
        %v2656 = vunpack.c.l.b16 %v2585
        %v2657 = vunpack.c.l.b16 %v2586
        %v2658 = vunpack.c.l.b16 %v2587
        %v2659 = vunpack.c.l.b16 %v2588
        %v2660 = vunpack.c.l.b16 %v2589
        %v2661 = vunpack.c.l.b16 %v2590
        %v2662 = vunpack.c.l.b16 %v2591
        %v2663 = vunpack.c.l.b16 %v2592
        %v2664 = vunpack.c.l.b16 %v2593
        %v2665 = vunpack.c.l.b16 %v2594
        %v2666 = vunpack.c.l.b16 %v2595
        %v2667 = vunpack.c.l.b16 %v2596
        %v2668 = vunpack.c.l.b16 %v2597
        %v2669 = vunpack.c.l.b16 %v2598
        %v2670 = vunpack.c.l.b16 %v2599
        %v2671 = vunpack.c.l.b16 %v2600
        %v2672 = vunpack.c.l.b16 %v2601
        %v2673 = vunpack.c.l.b16 %v2602
        %v2674 = vpack.c.b16 %v2643, %v2642
        %v2675 = vpack.c.b16 %v2645, %v2644
        %v2676 = vpack.c.b16 %v2647, %v2646
        %v2677 = vpack.c.b16 %v2649, %v2648
        %v2678 = vpack.c.b16 %v2651, %v2650
        %v2679 = vpack.c.b16 %v2653, %v2652
        %v2680 = vpack.c.b16 %v2655, %v2654
        %v2681 = vpack.c.b16 %v2657, %v2656
        %v2682 = vpack.c.b16 %v2659, %v2658
        %v2683 = vpack.c.b16 %v2661, %v2660
        %v2684 = vpack.c.b16 %v2663, %v2662
        %v2685 = vpack.c.b16 %v2665, %v2664
        %v2686 = vpack.c.b16 %v2667, %v2666
        %v2687 = vpack.c.b16 %v2669, %v2668
        %v2688 = vpack.c.b16 %v2671, %v2670
        %v2689 = vpack.c.b16 %v2673, %v2672
        %2706 = vmatprep.subr.bf16.mxu0 0
        %2707 = vmatpush1.bf16.msra.mxu0 %v2674
        %2708 = vmatprep.subr.bf16.mxu0 0
        %2709 = vmatpush1.bf16.msra.mxu0 %v2675
        %2710 = vmatprep.subr.bf16.mxu0 0
        %2711 = vmatpush1.bf16.msra.mxu0 %v2676
        %2712 = vmatprep.subr.bf16.mxu0 0
        %2713 = vmatpush1.bf16.msra.mxu0 %v2677
        %2714 = vmatprep.subr.bf16.mxu0 0
        %2715 = vmatpush1.bf16.msra.mxu0 %v2678
        %2716 = vmatprep.subr.bf16.mxu0 0
        %2717 = vmatpush1.bf16.msra.mxu0 %v2679
        %2718 = vmatprep.subr.bf16.mxu0 0
        %2719 = vmatpush1.bf16.msra.mxu0 %v2680
        %2720 = vmatprep.subr.bf16.mxu0 0
        %2721 = vmatpush1.bf16.msra.mxu0 %v2681
        %2722 = vmatprep.subr.bf16.mxu0 0
        %2723 = vmatpush1.bf16.msra.mxu0 %v2682
        %2724 = vmatprep.subr.bf16.mxu0 0
        %2725 = vmatpush1.bf16.msra.mxu0 %v2683
        %2726 = vmatprep.subr.bf16.mxu0 0
        %2727 = vmatpush1.bf16.msra.mxu0 %v2684
        %2728 = vmatprep.subr.bf16.mxu0 0
        %2729 = vmatpush1.bf16.msra.mxu0 %v2685
        %2730 = vmatprep.subr.bf16.mxu0 0
        %2731 = vmatpush1.bf16.msra.mxu0 %v2686
        %2732 = vmatprep.subr.bf16.mxu0 0
        %2733 = vmatpush1.bf16.msra.mxu0 %v2687
        %2734 = vmatprep.subr.bf16.mxu0 0
        %2735 = vmatpush1.bf16.msra.mxu0 %v2688
        %2736 = vmatprep.subr.bf16.mxu0 0
        %2737 = vmatpush1.bf16.msra.mxu0 %v2689
        %2738 = vmatprep.mubr.bf16.mxu0 %v2570
        %2739 = vmatmul.mubr.bf16.gmra.mrb[0].mxu0 %v2569
        %v2740 = vpop.f32.mrb[0].mxu0
        %v2741 = vadd.f32 %v2608, %v2740
        %v2742 = vpop.f32.mrb[0].mxu0
        %v2743 = vpop.f32.mrb[0].mxu0
        %v2744 = vadd.f32 %v2608, %v2743
        %v2745 = vpop.f32.mrb[0].mxu0
        %2746 = vdwg.mxu0
        %v2747 = vadd.f32 %v2741, %v2411
        %v2748 = vadd.f32 %v2744, %v2412
        %v2749 = vld [vmem:[%s17] sm:$0x1]
        %v2750 = vld [vmem:[%s18] sm:$0x1]
        %2751 = vadd.xlane.f32.xlu0 %v2747
        %v2752 = vpop.xlane.xlu0 %2751
        %2753 = vadd.xlane.f32.xlu0 %v2748
        %v2754 = vpop.xlane.xlu0 %2753
        %v2755 = vmul.f32 %v2752, %v2378
        %v2756 = vmul.f32 %v2754, %v2378
        %v2757 = vsub.f32 %v2747, %v2755
        %v2758 = vsub.f32 %v2748, %v2756
        %v2759 = vmul.f32 %v2757, %v2757
        %v2760 = vmul.f32 %v2758, %v2758
        %2761 = vadd.xlane.f32.xlu0 %v2759
        %v2762 = vpop.xlane.xlu0 %2761
        %2763 = vadd.xlane.f32.xlu0 %v2760
        %v2764 = vpop.xlane.xlu0 %2763
        %v2765 = vmul.f32 %v2762, %v2378
        %v2766 = vmul.f32 %v2764, %v2378
        %v2767 = vadd.f32 %v2765, 1e-05
        %v2768 = vadd.f32 %v2766, 1e-05
        %v2769 = vrsqrt.pop %v2767
        %v2770 = vrsqrt.pop %v2768
        %v2771 = vmul.f32 %v2757, %v2769
        %v2772 = vmul.f32 %v2758, %v2770
        %v2774 = vlaneseq
        %v2775 = vshrl.u32 %v2774, 7
        %v2776 = vsub.s32 0, %v2775
        %v2777 = vrot.slane %v2749, %v2776
        %v2779 = vmul.f32 %v2771, %v2777
        %v2780 = vmul.f32 %v2772, %v2777
        %v2782 = vlaneseq
        %v2783 = vshrl.u32 %v2782, 7
        %v2784 = vsub.s32 0, %v2783
        %v2785 = vrot.slane %v2750, %v2784
        %v2787 = vadd.f32 %v2779, %v2785
        %v2788 = vadd.f32 %v2780, %v2785
        %2789 = vst [vmem:[%s806] sm:$0xff] %v2787
        %2790 = vst [vmem:[%s806 + $0x8] sm:$0xff] %v2788
        %s2791 = sand.u32 %s482, 1
        %s2792 = scalar_lea.sflag [#allocation7], %s2791
        %s2793 = sand.u32 %s482, 1
        %s2794 = smul.addr %s2793, 16
        %s2795 = scalar_lea.vmem [#allocation20], %s2794
        // Predicated region
        $region137: #{tpu_custom_call.1} parent=95 // pred_check
          %p2796 = pneg %p492
        $region138: #{tpu_custom_call.1} parent=95 // pred_check_branch
          %2798 = sbr.rel (%p2796) target = $region140
        $region139: #{tpu_custom_call.1} parent=95 // pred_region
          %s2799 = smul.u32 2, %s47
          %s2801 = ssub.s32 256, 256
          %2802 = vsyncadd %s2792, %s2801
          %s2803 = smul.addr %s46, 2
          %s2804 = sadd.s32 %s2799, %s2803
          %s2805 = smul.addr %s2804, 128
          %s2806 = scalar_lea.hbm %s19, %s2805
          %s2807 = sshll.u32 %s2795, 4
          %s2808 = int_to_ptr.vmem [resolvable:$true] %s2807
          %2813 = dma.vmem_to_hbm [thread:$0]  %s2808, 256, %s2806, %s2792, 128, 128, 8
        $region140: #{tpu_custom_call.1} parent=95 // pred_fallthru
          _
      $region96: #{tpu_custom_call.1} parent=5 // pred_fallthru
        _
      %p2814 = scmp.le.s32.totalorder 2, %s37
      // Predicated region
      $region141: #{tpu_custom_call.1} parent=5 // pred_check
        %p2815 = pneg %p2814
      $region142: #{tpu_custom_call.1} parent=5 // pred_check_branch
        %2817 = sbr.rel (%p2815) target = $region144
      $region143: #{tpu_custom_call.1} parent=5 // pred_region
        %s2818 = ssub.s32 %s37, 2
        // Predicated region
        $region145: #{tpu_custom_call.1} parent=143 // pred_check
          %p2819 = pneg %p498
        $region146: #{tpu_custom_call.1} parent=143 // pred_check_branch
          %2821 = sbr.rel (%p2819) target = $region148
        $region147: #{tpu_custom_call.1} parent=143 // pred_region
          %s2822 = sand.u32 %s483, 1
          %s2823 = scalar_lea.sflag [#allocation7], %s2822
          %s2824 = sand.u32 %s483, 1
          %s2825 = smul.addr %s2824, 16
          %s2826 = scalar_lea.vmem [#allocation20], %s2825
          %2827 = dma.done %s2823, 256
        $region148: #{tpu_custom_call.1} parent=143 // pred_fallthru
          _
      $region144: #{tpu_custom_call.1} parent=5 // pred_fallthru
        _
    $region6: #{tpu_custom_call.1} parent=1 // loop_footer
      %s41 = sadd.s32 1, %s37
    $region7: #{tpu_custom_call.1} parent=1 // loop_footer_branch
      %36 = sbr.rel target = $region3
    $region8: #{tpu_custom_call.1} parent=1 // loop_exit
      _
    %2828 = vsyncpa [#allocation6], 1
    %s2829 = scalar_lea.sflag [#allocation6], 1
    %2830 = vsyncpa %s2829, 1
    %2831 = vsyncpa [#allocation9], 1
    %s2832 = scalar_lea.sflag [#allocation9], 1
    %2833 = vsyncpa %s2832, 1
    %2834 = vsyncpa [#allocation12], 1
    %2835 = vsyncpa [#allocation15], 1
    %2836 = vsyncpa [#allocation18], 1
    %2837 = vsyncpa [#allocation7], 1
    %s2838 = scalar_lea.sflag [#allocation7], 1
    %2839 = vsyncpa %s2838, 1

// kernel: tpu_custom_call.1
$region0: #{tpu_custom_call.1}
  #allocation0 [shape = 'u32[]', space=smem, size = 0x4, offset = 0x4, fixed_abs, tag = 'smem constant byte address 0x4 - core index']
  #allocation1 [shape = 'u32[144,128]{1,0:T(1,128)}', space=vmem, size = 0x12000, scoped, tag = 'internal scratch']
  #allocation2 [shape = 'bf16[16,128]{1,0:T(16,128)(2,1)}', space=vmem, size = 0x1000, scoped, tag = 'scratch operand']
  #allocation3 [shape = 'bf16[16,128]{1,0:T(16,128)(2,1)}', space=vmem, size = 0x1000, scoped, tag = 'scratch operand']
  #allocation4 [shape = 'bf16[16,128]{1,0:T(16,128)(2,1)}', space=vmem, size = 0x1000, scoped, tag = 'scratch operand']
  %s0 = inlined_call_operand.hbm [shape: f32[2,16,128], index: 0, kind: input, shape index: {}]
  %s1 = inlined_call_operand.hbm [shape: bf16[2,16,128], index: 1, kind: input, shape index: {}]
  %s2 = inlined_call_operand.hbm [shape: s8[2,16,16], index: 2, kind: input, shape index: {}]
  %s3 = inlined_call_operand.hbm [shape: bf16[128,128], index: 3, kind: input, shape index: {}]
  %s4 = inlined_call_operand.vmem [shape: f32[1,128], index: 4, kind: input, shape index: {}]
  %s5 = inlined_call_operand.hbm [shape: bf16[128,128], index: 5, kind: input, shape index: {}]
  %s6 = inlined_call_operand.vmem [shape: f32[1,128], index: 6, kind: input, shape index: {}]
  %s7 = inlined_call_operand.hbm [shape: bf16[128,128], index: 7, kind: input, shape index: {}]
  %s8 = inlined_call_operand.vmem [shape: f32[1,128], index: 8, kind: input, shape index: {}]
  %s9 = inlined_call_operand.hbm [shape: bf16[128,128], index: 9, kind: input, shape index: {}]
  %s10 = inlined_call_operand.vmem [shape: f32[1,128], index: 10, kind: input, shape index: {}]
  %s11 = inlined_call_operand.vmem [shape: f32[1,128], index: 11, kind: input, shape index: {}]
  %s12 = inlined_call_operand.vmem [shape: f32[1,128], index: 12, kind: input, shape index: {}]
  %s13 = inlined_call_operand.hbm [shape: bf16[128,256], index: 13, kind: input, shape index: {}]
  %s14 = inlined_call_operand.vmem [shape: f32[1,256], index: 14, kind: input, shape index: {}]
  %s15 = inlined_call_operand.hbm [shape: bf16[256,128], index: 15, kind: input, shape index: {}]
  %s16 = inlined_call_operand.vmem [shape: f32[1,128], index: 16, kind: input, shape index: {}]
  %s17 = inlined_call_operand.vmem [shape: f32[1,128], index: 17, kind: input, shape index: {}]
  %s18 = inlined_call_operand.vmem [shape: f32[1,128], index: 18, kind: input, shape index: {}]
  %s19 = inlined_call_operand.hbm [shape: f32[2,16,128], index: 19, kind: output, shape index: {}]
  %s20 = sld [smem:[#allocation0]]
  $region149: #{tpu_custom_call.1} parent=0
    _
  %s22 = ssub.s32 1, %s20
  %s23 = scalar_select 0, %s22, %s20
  $region1: #{tpu_custom_call.1} parent=0
    #allocation5 [shape = 'u8[16384]{0}', space=vmem, size = 0x4000, scoped, tag = 'input window, operand 0']
    #allocation6 [shape = 's32[2]{0}', space=sflag, size = 0x8, scoped, tag = 'scoped memory for tpu_custom_call.1']
    #allocation7 [shape = 's32[2]{0}', space=sflag, size = 0x8, scoped, tag = 'scoped memory for tpu_custom_call.1']
    #allocation8 [shape = 'u8[8192]{0}', space=vmem, size = 0x2000, scoped, tag = 'input window, operand 1']
    #allocation9 [shape = 's32[2]{0}', space=sflag, size = 0x8, scoped, tag = 'scoped memory for tpu_custom_call.1']
    #allocation10 [shape = 'u8[4096]{0}', space=vmem, size = 0x1000, scoped, tag = 'input window, operand 2']
    #allocation11 [shape = 'u8[32768]{0}', space=vmem, size = 0x8000, scoped, tag = 'input window, operand 3, single buffered']
    #allocation12 [shape = 's32[1]{0}', space=sflag, size = 0x4, scoped, tag = 'scoped memory for tpu_custom_call.1']
    #allocation13 [shape = 'u8[32768]{0}', space=vmem, size = 0x8000, scoped, tag = 'input window, operand 5, single buffered']
    #allocation14 [shape = 'u8[32768]{0}', space=vmem, size = 0x8000, scoped, tag = 'input window, operand 7, single buffered']
    #allocation15 [shape = 's32[1]{0}', space=sflag, size = 0x4, scoped, tag = 'scoped memory for tpu_custom_call.1']
    #allocation16 [shape = 'u8[32768]{0}', space=vmem, size = 0x8000, scoped, tag = 'input window, operand 9, single buffered']
    #allocation17 [shape = 'u8[65536]{0}', space=vmem, size = 0x10000, scoped, tag = 'input window, operand 13, single buffered']
    #allocation18 [shape = 's32[1]{0}', space=sflag, size = 0x4, scoped, tag = 'scoped memory for tpu_custom_call.1']
    #allocation19 [shape = 'u8[65536]{0}', space=vmem, size = 0x10000, scoped, tag = 'input window, operand 15, single buffered']
    #allocation20 [shape = 'u8[16384]{0}', space=vmem, size = 0x4000, scoped, tag = 'output window, operand 0']
    %24 = vsyncpa [#allocation6], 0
    %s25 = scalar_lea.sflag [#allocation6], 1
    %26 = vsyncpa %s25, 0
    %27 = vsyncpa [#allocation9], 0
    %s28 = scalar_lea.sflag [#allocation9], 1
    %29 = vsyncpa %s28, 0
    %30 = vsyncpa [#allocation12], 0
    %31 = vsyncpa [#allocation15], 0
    %32 = vsyncpa [#allocation18], 0
    %33 = vsyncpa [#allocation7], 0
    %s34 = scalar_lea.sflag [#allocation7], 1
    %35 = vsyncpa %s34, 0
    loop: start=0, step=1, limit=4
    $region2: #{tpu_custom_call.1} parent=1 // loop_pre_header
      _
    $region3: #{tpu_custom_call.1} parent=1 // loop_header
      %s37 = sphi 0, %s41
      %p38 = scmp.ge.s32.totalorder %s37, 4
      %s44 = sphi 0, %s56
      %s45 = sphi 0, %s52
      %s46 = sphi 0, %s44
      %s47 = sphi 0, %s45
      %s48 = sphi 0, %s46
      %s49 = sphi 0, %s47
      %s61 = sphi 0, %s63
      %s64 = sphi 0, %s61
      %s65 = sphi 0, %s64
      %s81 = sphi 0, %s65
      %s87 = sphi 0, %s89
      %s90 = sphi 0, %s87
      %s91 = sphi 0, %s90
      %s107 = sphi 0, %s91
      %s115 = sphi 0, %s117
      %s118 = sphi 0, %s115
      %s119 = sphi 0, %s118
      %s135 = sphi 0, %s119
      %s139 = sphi 0, %s139
      %s141 = sphi 0, %s139
      %s142 = sphi 0, %s141
      %s156 = sphi 0, %s142
      %s160 = sphi 0, %s160
      %s162 = sphi 0, %s160
      %s163 = sphi 0, %s162
      %s177 = sphi 0, %s163
      %s181 = sphi 0, %s181
      %s183 = sphi 0, %s181
      %s184 = sphi 0, %s183
      %s198 = sphi 0, %s184
      %s202 = sphi 0, %s202
      %s204 = sphi 0, %s202
      %s205 = sphi 0, %s204
      %s219 = sphi 0, %s205
      %s223 = sphi 0, %s223
      %s225 = sphi 0, %s223
      %s226 = sphi 0, %s225
      %s240 = sphi 0, %s226
      %s244 = sphi 0, %s244
      %s246 = sphi 0, %s244
      %s247 = sphi 0, %s246
      %s261 = sphi 0, %s247
      %s265 = sphi 0, %s265
      %s267 = sphi 0, %s265
      %s268 = sphi 0, %s267
      %s282 = sphi 0, %s268
      %s286 = sphi 0, %s286
      %s288 = sphi 0, %s286
      %s289 = sphi 0, %s288
      %s303 = sphi 0, %s289
      %s307 = sphi 0, %s307
      %s309 = sphi 0, %s307
      %s310 = sphi 0, %s309
      %s324 = sphi 0, %s310
      %s328 = sphi 0, %s328
      %s330 = sphi 0, %s328
      %s331 = sphi 0, %s330
      %s345 = sphi 0, %s331
      %s349 = sphi 0, %s349
      %s351 = sphi 0, %s349
      %s352 = sphi 0, %s351
      %s366 = sphi 0, %s352
      %s370 = sphi 0, %s370
      %s372 = sphi 0, %s370
      %s373 = sphi 0, %s372
      %s387 = sphi 0, %s373
      %s391 = sphi 0, %s391
      %s393 = sphi 0, %s391
      %s394 = sphi 0, %s393
      %s408 = sphi 0, %s394
      %s412 = sphi 0, %s412
      %s414 = sphi 0, %s412
      %s415 = sphi 0, %s414
      %s429 = sphi 0, %s415
      %s433 = sphi 0, %s433
      %s435 = sphi 0, %s433
      %s436 = sphi 0, %s435
      %s450 = sphi 0, %s436
      %s454 = sphi 0, %s454
      %s456 = sphi 0, %s454
      %s457 = sphi 0, %s456
      %s471 = sphi 0, %s457
      %s479 = sphi 0, %s481
      %s482 = sphi 0, %s479
      %s483 = sphi 0, %s482
      %s499 = sphi 0, %s483
    $region4: #{tpu_custom_call.1} parent=1 // loop_header_branch
      %40 = sbr.rel (%p38) target = $region8
    $region5: #{tpu_custom_call.1} parent=1 // loop_body
      %s42 = ssub.s32 %s37, 1
      %s43 = ssub.s32 %s37, 2
      %s50 = sadd.s32 1, %s45
      %p51 = scmp.ge.s32.totalorder %s50, 1
      %s52 = scalar_select %p51, 0, %s50
      %s53 = sadd.s32 1, %s44
      %s54 = scalar_select %p51, %s53, %s44
      %p55 = scmp.ge.s32.totalorder %s54, 2
      %s56 = scalar_select %p55, 0, %s54
      %s57 = ssub.s32 %s44, %s56
      %s58 = ssub.s32 %s45, %s52
      %s59 = sor.u32 %s57, %s58
      %p60 = scmp.eq.s32.totalorder %s59, 0
      %s62 = sadd.s32 %s61, 1
      %s63 = scalar_select %p60, %s61, %s62
      %p66 = pneg %p60
      %p67 = scmp.eq.s32.totalorder %s37, 1
      %p68 = por %p66, %p67
      %p69 = scmp.ne.s32.totalorder %s61, %s64
      %p70 = scmp.eq.s32.totalorder %s37, 0
      %p71 = por %p69, %p70
      %p72 = scmp.ne.s32.totalorder %s61, %s64
      %p73 = scmp.eq.s32.totalorder %s42, 1
      %p74 = por %p72, %p73
      %p75 = scmp.ne.s32.totalorder %s64, %s65
      %p76 = scmp.eq.s32.totalorder %s42, 0
      %p77 = por %p75, %p76
      %p78 = scmp.ne.s32.totalorder %s64, %s65
      %p79 = scmp.eq.s32.totalorder %s43, 1
      %p80 = por %p78, %p79
      %p82 = scmp.ne.s32.totalorder %s65, %s81
      %p83 = scmp.eq.s32.totalorder %s43, 0
      %p84 = por %p82, %p83
      %s85 = ssub.s32 %s44, %s56
      %p86 = scmp.eq.s32.totalorder %s85, 0
      %s88 = sadd.s32 %s87, 1
      %s89 = scalar_select %p86, %s87, %s88
      %p92 = pneg %p86
      %p93 = scmp.eq.s32.totalorder %s37, 1
      %p94 = por %p92, %p93
      %p95 = scmp.ne.s32.totalorder %s87, %s90
      %p96 = scmp.eq.s32.totalorder %s37, 0
      %p97 = por %p95, %p96
      %p98 = scmp.ne.s32.totalorder %s87, %s90
      %p99 = scmp.eq.s32.totalorder %s42, 1
      %p100 = por %p98, %p99
      %p101 = scmp.ne.s32.totalorder %s90, %s91
      %p102 = scmp.eq.s32.totalorder %s42, 0
      %p103 = por %p101, %p102
      %p104 = scmp.ne.s32.totalorder %s90, %s91
      %p105 = scmp.eq.s32.totalorder %s43, 1
      %p106 = por %p104, %p105
      %p108 = scmp.ne.s32.totalorder %s91, %s107
      %p109 = scmp.eq.s32.totalorder %s43, 0
      %p110 = por %p108, %p109
      %s111 = ssub.s32 %s44, %s56
      %s112 = ssub.s32 %s45, %s52
      %s113 = sor.u32 %s111, %s112
      %p114 = scmp.eq.s32.totalorder %s113, 0
      %s116 = sadd.s32 %s115, 1
      %s117 = scalar_select %p114, %s115, %s116
      %p120 = pneg %p114
      %p121 = scmp.eq.s32.totalorder %s37, 1
      %p122 = por %p120, %p121
      %p123 = scmp.ne.s32.totalorder %s115, %s118
      %p124 = scmp.eq.s32.totalorder %s37, 0
      %p125 = por %p123, %p124
      %p126 = scmp.ne.s32.totalorder %s115, %s118
      %p127 = scmp.eq.s32.totalorder %s42, 1
      %p128 = por %p126, %p127
      %p129 = scmp.ne.s32.totalorder %s118, %s119
      %p130 = scmp.eq.s32.totalorder %s42, 0
      %p131 = por %p129, %p130
      %p132 = scmp.ne.s32.totalorder %s118, %s119
      %p133 = scmp.eq.s32.totalorder %s43, 1
      %p134 = por %p132, %p133
      %p136 = scmp.ne.s32.totalorder %s119, %s135
      %p137 = scmp.eq.s32.totalorder %s43, 0
      %p138 = por %p136, %p137
      %s140 = sadd.s32 %s139, 1
      %p143 = scmp.eq.s32.totalorder %s37, 1
      %p144 = scmp.ne.s32.totalorder %s139, %s141
      %p145 = scmp.eq.s32.totalorder %s37, 0
      %p146 = por %p144, %p145
      %p147 = scmp.ne.s32.totalorder %s139, %s141
      %p148 = scmp.eq.s32.totalorder %s42, 1
      %p149 = por %p147, %p148
      %p150 = scmp.ne.s32.totalorder %s141, %s142
      %p151 = scmp.eq.s32.totalorder %s42, 0
      %p152 = por %p150, %p151
      %p153 = scmp.ne.s32.totalorder %s141, %s142
      %p154 = scmp.eq.s32.totalorder %s43, 1
      %p155 = por %p153, %p154
      %p157 = scmp.ne.s32.totalorder %s142, %s156
      %p158 = scmp.eq.s32.totalorder %s43, 0
      %p159 = por %p157, %p158
      %s161 = sadd.s32 %s160, 1
      %p164 = scmp.eq.s32.totalorder %s37, 1
      %p165 = scmp.ne.s32.totalorder %s160, %s162
      %p166 = scmp.eq.s32.totalorder %s37, 0
      %p167 = por %p165, %p166
      %p168 = scmp.ne.s32.totalorder %s160, %s162
      %p169 = scmp.eq.s32.totalorder %s42, 1
      %p170 = por %p168, %p169
      %p171 = scmp.ne.s32.totalorder %s162, %s163
      %p172 = scmp.eq.s32.totalorder %s42, 0
      %p173 = por %p171, %p172
      %p174 = scmp.ne.s32.totalorder %s162, %s163
      %p175 = scmp.eq.s32.totalorder %s43, 1
      %p176 = por %p174, %p175
      %p178 = scmp.ne.s32.totalorder %s163, %s177
      %p179 = scmp.eq.s32.totalorder %s43, 0
      %p180 = por %p178, %p179
      %s182 = sadd.s32 %s181, 1
      %p185 = scmp.eq.s32.totalorder %s37, 1
      %p186 = scmp.ne.s32.totalorder %s181, %s183
      %p187 = scmp.eq.s32.totalorder %s37, 0
      %p188 = por %p186, %p187
      %p189 = scmp.ne.s32.totalorder %s181, %s183
      %p190 = scmp.eq.s32.totalorder %s42, 1
      %p191 = por %p189, %p190
      %p192 = scmp.ne.s32.totalorder %s183, %s184
      %p193 = scmp.eq.s32.totalorder %s42, 0
      %p194 = por %p192, %p193
      %p195 = scmp.ne.s32.totalorder %s183, %s184
      %p196 = scmp.eq.s32.totalorder %s43, 1
      %p197 = por %p195, %p196
      %p199 = scmp.ne.s32.totalorder %s184, %s198
      %p200 = scmp.eq.s32.totalorder %s43, 0
      %p201 = por %p199, %p200
      %s203 = sadd.s32 %s202, 1
      %p206 = scmp.eq.s32.totalorder %s37, 1
      %p207 = scmp.ne.s32.totalorder %s202, %s204
      %p208 = scmp.eq.s32.totalorder %s37, 0
      %p209 = por %p207, %p208
      %p210 = scmp.ne.s32.totalorder %s202, %s204
      %p211 = scmp.eq.s32.totalorder %s42, 1
      %p212 = por %p210, %p211
      %p213 = scmp.ne.s32.totalorder %s204, %s205
      %p214 = scmp.eq.s32.totalorder %s42, 0
      %p215 = por %p213, %p214
      %p216 = scmp.ne.s32.totalorder %s204, %s205
      %p217 = scmp.eq.s32.totalorder %s43, 1
      %p218 = por %p216, %p217
      %p220 = scmp.ne.s32.totalorder %s205, %s219
      %p221 = scmp.eq.s32.totalorder %s43, 0
      %p222 = por %p220, %p221
      %s224 = sadd.s32 %s223, 1
      %p227 = scmp.eq.s32.totalorder %s37, 1
      %p228 = scmp.ne.s32.totalorder %s223, %s225
      %p229 = scmp.eq.s32.totalorder %s37, 0
      %p230 = por %p228, %p229
      %p231 = scmp.ne.s32.totalorder %s223, %s225
      %p232 = scmp.eq.s32.totalorder %s42, 1
      %p233 = por %p231, %p232
      %p234 = scmp.ne.s32.totalorder %s225, %s226
      %p235 = scmp.eq.s32.totalorder %s42, 0
      %p236 = por %p234, %p235
      %p237 = scmp.ne.s32.totalorder %s225, %s226
      %p238 = scmp.eq.s32.totalorder %s43, 1
      %p239 = por %p237, %p238
      %p241 = scmp.ne.s32.totalorder %s226, %s240
      %p242 = scmp.eq.s32.totalorder %s43, 0
      %p243 = por %p241, %p242
      %s245 = sadd.s32 %s244, 1
      %p248 = scmp.eq.s32.totalorder %s37, 1
      %p249 = scmp.ne.s32.totalorder %s244, %s246
      %p250 = scmp.eq.s32.totalorder %s37, 0
      %p251 = por %p249, %p250
      %p252 = scmp.ne.s32.totalorder %s244, %s246
      %p253 = scmp.eq.s32.totalorder %s42, 1
      %p254 = por %p252, %p253
      %p255 = scmp.ne.s32.totalorder %s246, %s247
      %p256 = scmp.eq.s32.totalorder %s42, 0
      %p257 = por %p255, %p256
      %p258 = scmp.ne.s32.totalorder %s246, %s247
      %p259 = scmp.eq.s32.totalorder %s43, 1
      %p260 = por %p258, %p259
      %p262 = scmp.ne.s32.totalorder %s247, %s261
      %p263 = scmp.eq.s32.totalorder %s43, 0
      %p264 = por %p262, %p263
      %s266 = sadd.s32 %s265, 1
      %p269 = scmp.eq.s32.totalorder %s37, 1
      %p270 = scmp.ne.s32.totalorder %s265, %s267
      %p271 = scmp.eq.s32.totalorder %s37, 0
      %p272 = por %p270, %p271
      %p273 = scmp.ne.s32.totalorder %s265, %s267
      %p274 = scmp.eq.s32.totalorder %s42, 1
      %p275 = por %p273, %p274
      %p276 = scmp.ne.s32.totalorder %s267, %s268
      %p277 = scmp.eq.s32.totalorder %s42, 0
      %p278 = por %p276, %p277
      %p279 = scmp.ne.s32.totalorder %s267, %s268
      %p280 = scmp.eq.s32.totalorder %s43, 1
      %p281 = por %p279, %p280
      %p283 = scmp.ne.s32.totalorder %s268, %s282
      %p284 = scmp.eq.s32.totalorder %s43, 0
      %p285 = por %p283, %p284
      %s287 = sadd.s32 %s286, 1
      %p290 = scmp.eq.s32.totalorder %s37, 1
      %p291 = scmp.ne.s32.totalorder %s286, %s288
      %p292 = scmp.eq.s32.totalorder %s37, 0
      %p293 = por %p291, %p292
      %p294 = scmp.ne.s32.totalorder %s286, %s288
      %p295 = scmp.eq.s32.totalorder %s42, 1
      %p296 = por %p294, %p295
      %p297 = scmp.ne.s32.totalorder %s288, %s289
      %p298 = scmp.eq.s32.totalorder %s42, 0
      %p299 = por %p297, %p298
      %p300 = scmp.ne.s32.totalorder %s288, %s289
      %p301 = scmp.eq.s32.totalorder %s43, 1
      %p302 = por %p300, %p301
      %p304 = scmp.ne.s32.totalorder %s289, %s303
      %p305 = scmp.eq.s32.totalorder %s43, 0
      %p306 = por %p304, %p305
      %s308 = sadd.s32 %s307, 1
      %p311 = scmp.eq.s32.totalorder %s37, 1
      %p312 = scmp.ne.s32.totalorder %s307, %s309
      %p313 = scmp.eq.s32.totalorder %s37, 0
      %p314 = por %p312, %p313
      %p315 = scmp.ne.s32.totalorder %s307, %s309
      %p316 = scmp.eq.s32.totalorder %s42, 1
      %p317 = por %p315, %p316
      %p318 = scmp.ne.s32.totalorder %s309, %s310
      %p319 = scmp.eq.s32.totalorder %s42, 0
      %p320 = por %p318, %p319
      %p321 = scmp.ne.s32.totalorder %s309, %s310
      %p322 = scmp.eq.s32.totalorder %s43, 1
      %p323 = por %p321, %p322
      %p325 = scmp.ne.s32.totalorder %s310, %s324
      %p326 = scmp.eq.s32.totalorder %s43, 0
      %p327 = por %p325, %p326
      %s329 = sadd.s32 %s328, 1
      %p332 = scmp.eq.s32.totalorder %s37, 1
      %p333 = scmp.ne.s32.totalorder %s328, %s330
      %p334 = scmp.eq.s32.totalorder %s37, 0
      %p335 = por %p333, %p334
      %p336 = scmp.ne.s32.totalorder %s328, %s330
      %p337 = scmp.eq.s32.totalorder %s42, 1
      %p338 = por %p336, %p337
      %p339 = scmp.ne.s32.totalorder %s330, %s331
      %p340 = scmp.eq.s32.totalorder %s42, 0
      %p341 = por %p339, %p340
      %p342 = scmp.ne.s32.totalorder %s330, %s331
      %p343 = scmp.eq.s32.totalorder %s43, 1
      %p344 = por %p342, %p343
      %p346 = scmp.ne.s32.totalorder %s331, %s345
      %p347 = scmp.eq.s32.totalorder %s43, 0
      %p348 = por %p346, %p347
      %s350 = sadd.s32 %s349, 1
      %p353 = scmp.eq.s32.totalorder %s37, 1
      %p354 = scmp.ne.s32.totalorder %s349, %s351
      %p355 = scmp.eq.s32.totalorder %s37, 0
      %p356 = por %p354, %p355
      %p357 = scmp.ne.s32.totalorder %s349, %s351
      %p358 = scmp.eq.s32.totalorder %s42, 1
      %p359 = por %p357, %p358
      %p360 = scmp.ne.s32.totalorder %s351, %s352
      %p361 = scmp.eq.s32.totalorder %s42, 0
      %p362 = por %p360, %p361
      %p363 = scmp.ne.s32.totalorder %s351, %s352
      %p364 = scmp.eq.s32.totalorder %s43, 1
      %p365 = por %p363, %p364
      %p367 = scmp.ne.s32.totalorder %s352, %s366
      %p368 = scmp.eq.s32.totalorder %s43, 0
      %p369 = por %p367, %p368
      %s371 = sadd.s32 %s370, 1
      %p374 = scmp.eq.s32.totalorder %s37, 1
      %p375 = scmp.ne.s32.totalorder %s370, %s372
      %p376 = scmp.eq.s32.totalorder %s37, 0
      %p377 = por %p375, %p376
      %p378 = scmp.ne.s32.totalorder %s370, %s372
      %p379 = scmp.eq.s32.totalorder %s42, 1
      %p380 = por %p378, %p379
      %p381 = scmp.ne.s32.totalorder %s372, %s373
      %p382 = scmp.eq.s32.totalorder %s42, 0
      %p383 = por %p381, %p382
      %p384 = scmp.ne.s32.totalorder %s372, %s373
      %p385 = scmp.eq.s32.totalorder %s43, 1
      %p386 = por %p384, %p385
      %p388 = scmp.ne.s32.totalorder %s373, %s387
      %p389 = scmp.eq.s32.totalorder %s43, 0
      %p390 = por %p388, %p389
      %s392 = sadd.s32 %s391, 1
      %p395 = scmp.eq.s32.totalorder %s37, 1
      %p396 = scmp.ne.s32.totalorder %s391, %s393
      %p397 = scmp.eq.s32.totalorder %s37, 0
      %p398 = por %p396, %p397
      %p399 = scmp.ne.s32.totalorder %s391, %s393
      %p400 = scmp.eq.s32.totalorder %s42, 1
      %p401 = por %p399, %p400
      %p402 = scmp.ne.s32.totalorder %s393, %s394
      %p403 = scmp.eq.s32.totalorder %s42, 0
      %p404 = por %p402, %p403
      %p405 = scmp.ne.s32.totalorder %s393, %s394
      %p406 = scmp.eq.s32.totalorder %s43, 1
      %p407 = por %p405, %p406
      %p409 = scmp.ne.s32.totalorder %s394, %s408
      %p410 = scmp.eq.s32.totalorder %s43, 0
      %p411 = por %p409, %p410
      %s413 = sadd.s32 %s412, 1
      %p416 = scmp.eq.s32.totalorder %s37, 1
      %p417 = scmp.ne.s32.totalorder %s412, %s414
      %p418 = scmp.eq.s32.totalorder %s37, 0
      %p419 = por %p417, %p418
      %p420 = scmp.ne.s32.totalorder %s412, %s414
      %p421 = scmp.eq.s32.totalorder %s42, 1
      %p422 = por %p420, %p421
      %p423 = scmp.ne.s32.totalorder %s414, %s415
      %p424 = scmp.eq.s32.totalorder %s42, 0
      %p425 = por %p423, %p424
      %p426 = scmp.ne.s32.totalorder %s414, %s415
      %p427 = scmp.eq.s32.totalorder %s43, 1
      %p428 = por %p426, %p427
      %p430 = scmp.ne.s32.totalorder %s415, %s429
      %p431 = scmp.eq.s32.totalorder %s43, 0
      %p432 = por %p430, %p431
      %s434 = sadd.s32 %s433, 1
      %p437 = scmp.eq.s32.totalorder %s37, 1
      %p438 = scmp.ne.s32.totalorder %s433, %s435
      %p439 = scmp.eq.s32.totalorder %s37, 0
      %p440 = por %p438, %p439
      %p441 = scmp.ne.s32.totalorder %s433, %s435
      %p442 = scmp.eq.s32.totalorder %s42, 1
      %p443 = por %p441, %p442
      %p444 = scmp.ne.s32.totalorder %s435, %s436
      %p445 = scmp.eq.s32.totalorder %s42, 0
      %p446 = por %p444, %p445
      %p447 = scmp.ne.s32.totalorder %s435, %s436
      %p448 = scmp.eq.s32.totalorder %s43, 1
      %p449 = por %p447, %p448
      %p451 = scmp.ne.s32.totalorder %s436, %s450
      %p452 = scmp.eq.s32.totalorder %s43, 0
      %p453 = por %p451, %p452
      %s455 = sadd.s32 %s454, 1
      %p458 = scmp.eq.s32.totalorder %s37, 1
      %p459 = scmp.ne.s32.totalorder %s454, %s456
      %p460 = scmp.eq.s32.totalorder %s37, 0
      %p461 = por %p459, %p460
      %p462 = scmp.ne.s32.totalorder %s454, %s456
      %p463 = scmp.eq.s32.totalorder %s42, 1
      %p464 = por %p462, %p463
      %p465 = scmp.ne.s32.totalorder %s456, %s457
      %p466 = scmp.eq.s32.totalorder %s42, 0
      %p467 = por %p465, %p466
      %p468 = scmp.ne.s32.totalorder %s456, %s457
      %p469 = scmp.eq.s32.totalorder %s43, 1
      %p470 = por %p468, %p469
      %p472 = scmp.ne.s32.totalorder %s457, %s471
      %p473 = scmp.eq.s32.totalorder %s43, 0
      %p474 = por %p472, %p473
      %s475 = ssub.s32 %s44, %s56
      %s476 = ssub.s32 %s45, %s52
      %s477 = sor.u32 %s475, %s476
      %p478 = scmp.eq.s32.totalorder %s477, 0
      %s480 = sadd.s32 %s479, 1
      %s481 = scalar_select %p478, %s479, %s480
      %p484 = pneg %p478
      %p485 = scmp.eq.s32.totalorder %s37, 1
      %p486 = por %p484, %p485
      %p487 = scmp.ne.s32.totalorder %s479, %s482
      %p488 = scmp.eq.s32.totalorder %s37, 0
      %p489 = por %p487, %p488
      %p490 = scmp.ne.s32.totalorder %s479, %s482
      %p491 = scmp.eq.s32.totalorder %s42, 1
      %p492 = por %p490, %p491
      %p493 = scmp.ne.s32.totalorder %s482, %s483
      %p494 = scmp.eq.s32.totalorder %s42, 0
      %p495 = por %p493, %p494
      %p496 = scmp.ne.s32.totalorder %s482, %s483
      %p497 = scmp.eq.s32.totalorder %s43, 1
      %p498 = por %p496, %p497
      %p500 = scmp.ne.s32.totalorder %s483, %s499
      %p501 = scmp.eq.s32.totalorder %s43, 0
      %p502 = por %p500, %p501
      %p503 = scmp.le.s32.totalorder 1, %s37
      %p504 = scmp.lt.s32.totalorder %s37, 3
      %p505 = pnand %p503, %p504
      %p506 = pneg %p505
      // Predicated region
      $region9: #{tpu_custom_call.1} parent=5 // pred_check
        _
      $region10: #{tpu_custom_call.1} parent=5 // pred_check_branch
        %508 = sbr.rel (%p505) target = $region12
      $region11: #{tpu_custom_call.1} parent=5 // pred_region
        %s509 = ssub.s32 %s37, 1
        // Predicated region
        $region13: #{tpu_custom_call.1} parent=11 // pred_check
          %p510 = pneg %p152
        $region14: #{tpu_custom_call.1} parent=11 // pred_check_branch
          %512 = sbr.rel (%p510) target = $region16
        $region15: #{tpu_custom_call.1} parent=11 // pred_region
          %s514 = ssub.s32 1024, 1024
          %515 = vsyncadd [#allocation12], %s514
          %s516 = sshll.u32 [#allocation11], 4
          %s517 = int_to_ptr.vmem [resolvable:$true] %s516
          %522 = dma.hbm_to_vmem [thread:$0]  %s3, 1024, %s517, [#allocation12], 64, 64, 4
        $region16: #{tpu_custom_call.1} parent=11 // pred_fallthru
          _
        // Predicated region
        $region17: #{tpu_custom_call.1} parent=11 // pred_check
          %p523 = pneg %p173
        $region18: #{tpu_custom_call.1} parent=11 // pred_check_branch
          %525 = sbr.rel (%p523) target = $region20
        $region19: #{tpu_custom_call.1} parent=11 // pred_region
          _
        $region20: #{tpu_custom_call.1} parent=11 // pred_fallthru
          _
        // Predicated region
        $region21: #{tpu_custom_call.1} parent=11 // pred_check
          %p526 = pneg %p194
        $region22: #{tpu_custom_call.1} parent=11 // pred_check_branch
          %528 = sbr.rel (%p526) target = $region24
        $region23: #{tpu_custom_call.1} parent=11 // pred_region
          %s530 = ssub.s32 1024, 1024
          %531 = vsyncadd [#allocation12], %s530
          %s532 = sshll.u32 [#allocation13], 4
          %s533 = int_to_ptr.vmem [resolvable:$true] %s532
          %538 = dma.hbm_to_vmem [thread:$0]  %s5, 1024, %s533, [#allocation12], 64, 64, 4
        $region24: #{tpu_custom_call.1} parent=11 // pred_fallthru
          _
        // Predicated region
        $region25: #{tpu_custom_call.1} parent=11 // pred_check
          %p539 = pneg %p215
        $region26: #{tpu_custom_call.1} parent=11 // pred_check_branch
          %541 = sbr.rel (%p539) target = $region28
        $region27: #{tpu_custom_call.1} parent=11 // pred_region
          _
        $region28: #{tpu_custom_call.1} parent=11 // pred_fallthru
          _
        // Predicated region
        $region29: #{tpu_custom_call.1} parent=11 // pred_check
          %p542 = pneg %p236
        $region30: #{tpu_custom_call.1} parent=11 // pred_check_branch
          %544 = sbr.rel (%p542) target = $region32
        $region31: #{tpu_custom_call.1} parent=11 // pred_region
          %s546 = ssub.s32 1024, 1024
          %547 = vsyncadd [#allocation15], %s546
          %s548 = sshll.u32 [#allocation14], 4
          %s549 = int_to_ptr.vmem [resolvable:$true] %s548
          %554 = dma.hbm_to_vmem [thread:$0]  %s7, 1024, %s549, [#allocation15], 64, 64, 4
        $region32: #{tpu_custom_call.1} parent=11 // pred_fallthru
          _
        // Predicated region
        $region33: #{tpu_custom_call.1} parent=11 // pred_check
          %p555 = pneg %p257
        $region34: #{tpu_custom_call.1} parent=11 // pred_check_branch
          %557 = sbr.rel (%p555) target = $region36
        $region35: #{tpu_custom_call.1} parent=11 // pred_region
          _
        $region36: #{tpu_custom_call.1} parent=11 // pred_fallthru
          _
        // Predicated region
        $region37: #{tpu_custom_call.1} parent=11 // pred_check
          %p558 = pneg %p278
        $region38: #{tpu_custom_call.1} parent=11 // pred_check_branch
          %560 = sbr.rel (%p558) target = $region40
        $region39: #{tpu_custom_call.1} parent=11 // pred_region
          %s562 = ssub.s32 1024, 1024
          %563 = vsyncadd [#allocation15], %s562
          %s564 = sshll.u32 [#allocation16], 4
          %s565 = int_to_ptr.vmem [resolvable:$true] %s564
          %570 = dma.hbm_to_vmem [thread:$0]  %s9, 1024, %s565, [#allocation15], 64, 64, 4
        $region40: #{tpu_custom_call.1} parent=11 // pred_fallthru
          _
        // Predicated region
        $region41: #{tpu_custom_call.1} parent=11 // pred_check
          %p571 = pneg %p299
        $region42: #{tpu_custom_call.1} parent=11 // pred_check_branch
          %573 = sbr.rel (%p571) target = $region44
        $region43: #{tpu_custom_call.1} parent=11 // pred_region
          _
        $region44: #{tpu_custom_call.1} parent=11 // pred_fallthru
          _
        // Predicated region
        $region45: #{tpu_custom_call.1} parent=11 // pred_check
          %p574 = pneg %p320
        $region46: #{tpu_custom_call.1} parent=11 // pred_check_branch
          %576 = sbr.rel (%p574) target = $region48
        $region47: #{tpu_custom_call.1} parent=11 // pred_region
          _
        $region48: #{tpu_custom_call.1} parent=11 // pred_fallthru
          _
        // Predicated region
        $region49: #{tpu_custom_call.1} parent=11 // pred_check
          %p577 = pneg %p341
        $region50: #{tpu_custom_call.1} parent=11 // pred_check_branch
          %579 = sbr.rel (%p577) target = $region52
        $region51: #{tpu_custom_call.1} parent=11 // pred_region
          _
        $region52: #{tpu_custom_call.1} parent=11 // pred_fallthru
          _
        // Predicated region
        $region53: #{tpu_custom_call.1} parent=11 // pred_check
          %p580 = pneg %p362
        $region54: #{tpu_custom_call.1} parent=11 // pred_check_branch
          %582 = sbr.rel (%p580) target = $region56
        $region55: #{tpu_custom_call.1} parent=11 // pred_region
          %s584 = ssub.s32 2048, 2048
          %585 = vsyncadd [#allocation18], %s584
          %s586 = sshll.u32 [#allocation17], 4
          %s587 = int_to_ptr.vmem [resolvable:$true] %s586
          %592 = dma.hbm_to_vmem [thread:$0]  %s13, 2048, %s587, [#allocation18], 128, 128, 8
        $region56: #{tpu_custom_call.1} parent=11 // pred_fallthru
          _
        // Predicated region
        $region57: #{tpu_custom_call.1} parent=11 // pred_check
          %p593 = pneg %p383
        $region58: #{tpu_custom_call.1} parent=11 // pred_check_branch
          %595 = sbr.rel (%p593) target = $region60
        $region59: #{tpu_custom_call.1} parent=11 // pred_region
          _
        $region60: #{tpu_custom_call.1} parent=11 // pred_fallthru
          _
        // Predicated region
        $region61: #{tpu_custom_call.1} parent=11 // pred_check
          %p596 = pneg %p404
        $region62: #{tpu_custom_call.1} parent=11 // pred_check_branch
          %598 = sbr.rel (%p596) target = $region64
        $region63: #{tpu_custom_call.1} parent=11 // pred_region
          %s600 = ssub.s32 2048, 2048
          %601 = vsyncadd [#allocation18], %s600
          %s602 = sshll.u32 [#allocation19], 4
          %s603 = int_to_ptr.vmem [resolvable:$true] %s602
          %608 = dma.hbm_to_vmem [thread:$0]  %s15, 2048, %s603, [#allocation18], 64, 64, 4
        $region64: #{tpu_custom_call.1} parent=11 // pred_fallthru
          _
        // Predicated region
        $region65: #{tpu_custom_call.1} parent=11 // pred_check
          %p609 = pneg %p425
        $region66: #{tpu_custom_call.1} parent=11 // pred_check_branch
          %611 = sbr.rel (%p609) target = $region68
        $region67: #{tpu_custom_call.1} parent=11 // pred_region
          _
        $region68: #{tpu_custom_call.1} parent=11 // pred_fallthru
          _
        // Predicated region
        $region69: #{tpu_custom_call.1} parent=11 // pred_check
          %p612 = pneg %p446
        $region70: #{tpu_custom_call.1} parent=11 // pred_check_branch
          %614 = sbr.rel (%p612) target = $region72
        $region71: #{tpu_custom_call.1} parent=11 // pred_region
          _
        $region72: #{tpu_custom_call.1} parent=11 // pred_fallthru
          _
        // Predicated region
        $region73: #{tpu_custom_call.1} parent=11 // pred_check
          %p615 = pneg %p467
        $region74: #{tpu_custom_call.1} parent=11 // pred_check_branch
          %617 = sbr.rel (%p615) target = $region76
        $region75: #{tpu_custom_call.1} parent=11 // pred_region
          _
        $region76: #{tpu_custom_call.1} parent=11 // pred_fallthru
          _
      $region12: #{tpu_custom_call.1} parent=5 // pred_fallthru
        _
      %p618 = scmp.lt.s32.totalorder %s37, 2
      // Predicated region
      $region77: #{tpu_custom_call.1} parent=5 // pred_check
        %p619 = pneg %p618
      $region78: #{tpu_custom_call.1} parent=5 // pred_check_branch
        %621 = sbr.rel (%p619) target = $region80
      $region79: #{tpu_custom_call.1} parent=5 // pred_region
        // Predicated region
        $region81: #{tpu_custom_call.1} parent=79 // pred_check
          %p622 = pneg %p71
        $region82: #{tpu_custom_call.1} parent=79 // pred_check_branch
          %624 = sbr.rel (%p622) target = $region84
        $region83: #{tpu_custom_call.1} parent=79 // pred_region
          %s625 = sand.u32 %s61, 1
          %s626 = scalar_lea.sflag [#allocation6], %s625
          %s627 = sand.u32 %s61, 1
          %s628 = smul.addr %s627, 16
          %s629 = scalar_lea.vmem [#allocation5], %s628
          %s630 = smul.u32 2, %s45
          %s632 = ssub.s32 256, 256
          %633 = vsyncadd %s626, %s632
          %s634 = smul.addr %s44, 2
          %s635 = sadd.s32 %s630, %s634
          %s636 = smul.addr %s635, 128
          %s637 = scalar_lea.hbm %s0, %s636
          %s638 = sshll.u32 %s629, 4
          %s639 = int_to_ptr.vmem [resolvable:$true] %s638
          %644 = dma.hbm_to_vmem [thread:$0]  %s637, 256, %s639, %s626, 128, 128, 8
        $region84: #{tpu_custom_call.1} parent=79 // pred_fallthru
          _
        // Predicated region
        $region85: #{tpu_custom_call.1} parent=79 // pred_check
          %p645 = pneg %p97
        $region86: #{tpu_custom_call.1} parent=79 // pred_check_branch
          %647 = sbr.rel (%p645) target = $region88
        $region87: #{tpu_custom_call.1} parent=79 // pred_region
          %s648 = sand.u32 %s37, 1
          %s649 = scalar_lea.sflag [#allocation9], %s648
          %s650 = sand.u32 %s87, 1
          %s651 = smul.addr %s650, 8
          %s652 = scalar_lea.vmem [#allocation8], %s651
          %s654 = ssub.s32 128, 128
          %655 = vsyncadd %s649, %s654
          %s656 = smul.addr %s44, 2
          %s657 = smul.addr %s656, 64
          %s658 = scalar_lea.hbm %s1, %s657
          %s659 = sshll.u32 %s652, 4
          %s660 = int_to_ptr.vmem [resolvable:$true] %s659
          %665 = dma.hbm_to_vmem [thread:$0]  %s658, 128, %s660, %s649, 64, 64, 4
        $region88: #{tpu_custom_call.1} parent=79 // pred_fallthru
          _
        // Predicated region
        $region89: #{tpu_custom_call.1} parent=79 // pred_check
          %p666 = pneg %p125
        $region90: #{tpu_custom_call.1} parent=79 // pred_check_branch
          %668 = sbr.rel (%p666) target = $region92
        $region91: #{tpu_custom_call.1} parent=79 // pred_region
          %s669 = sand.u32 %s37, 1
          %s670 = scalar_lea.sflag [#allocation9], %s669
          %s671 = sand.u32 %s115, 1
          %s672 = smul.addr %s671, 4
          %s673 = scalar_lea.vmem [#allocation10], %s672
          %s674 = smul.u32 2, %s45
          %s676 = ssub.s32 64, 64
          %677 = vsyncadd %s670, %s676
          %s678 = smul.addr %s44, 2
          %s679 = sadd.s32 %s674, %s678
          %s680 = smul.addr %s679, 32
          %s681 = scalar_lea.hbm %s2, %s680
          %s682 = sshll.u32 %s673, 4
          %s683 = int_to_ptr.vmem [resolvable:$true] %s682
          %688 = dma.hbm_to_vmem [thread:$0]  %s681, 64, %s683, %s670, 32, 32, 2
        $region92: #{tpu_custom_call.1} parent=79 // pred_fallthru
          _
      $region80: #{tpu_custom_call.1} parent=5 // pred_fallthru
        _
      %p689 = scmp.le.s32.totalorder 1, %s37
      %p690 = scmp.lt.s32.totalorder %s37, 3
      %p691 = pnand %p689, %p690
      %p692 = pneg %p691
      // Predicated region
      $region93: #{tpu_custom_call.1} parent=5 // pred_check
        _
      $region94: #{tpu_custom_call.1} parent=5 // pred_check_branch
        %694 = sbr.rel (%p691) target = $region96
      $region95: #{tpu_custom_call.1} parent=5 // pred_region
        %s695 = ssub.s32 %s37, 1
        %s696 = sand.u32 %s64, 1
        %s697 = scalar_lea.sflag [#allocation6], %s696
        %s698 = sand.u32 %s64, 1
        %s699 = smul.addr %s698, 16
        %s700 = scalar_lea.vmem [#allocation5], %s699
        // Predicated region
        $region97: #{tpu_custom_call.1} parent=95 // pred_check
          %p701 = pneg %p77
        $region98: #{tpu_custom_call.1} parent=95 // pred_check_branch
          %703 = sbr.rel (%p701) target = $region100
        $region99: #{tpu_custom_call.1} parent=95 // pred_region
          %704 = dma.done %s697, 256
        $region100: #{tpu_custom_call.1} parent=95 // pred_fallthru
          _
        %s705 = sand.u32 %s42, 1
        %s706 = scalar_lea.sflag [#allocation9], %s705
        %s707 = sand.u32 %s90, 1
        %s708 = smul.addr %s707, 8
        %s709 = scalar_lea.vmem [#allocation8], %s708
        // Predicated region
        $region101: #{tpu_custom_call.1} parent=95 // pred_check
          %p710 = pneg %p103
        $region102: #{tpu_custom_call.1} parent=95 // pred_check_branch
          %712 = sbr.rel (%p710) target = $region104
        $region103: #{tpu_custom_call.1} parent=95 // pred_region
          %713 = dma.done %s706, 128
        $region104: #{tpu_custom_call.1} parent=95 // pred_fallthru
          _
        %s714 = sand.u32 %s42, 1
        %s715 = scalar_lea.sflag [#allocation9], %s714
        %s716 = sand.u32 %s118, 1
        %s717 = smul.addr %s716, 4
        %s718 = scalar_lea.vmem [#allocation10], %s717
        // Predicated region
        $region105: #{tpu_custom_call.1} parent=95 // pred_check
          %p719 = pneg %p131
        $region106: #{tpu_custom_call.1} parent=95 // pred_check_branch
          %721 = sbr.rel (%p719) target = $region108
        $region107: #{tpu_custom_call.1} parent=95 // pred_region
          %722 = dma.done %s715, 64
        $region108: #{tpu_custom_call.1} parent=95 // pred_fallthru
          _
        // Predicated region
        $region109: #{tpu_custom_call.1} parent=95 // pred_check
          %p723 = pneg %p152
        $region110: #{tpu_custom_call.1} parent=95 // pred_check_branch
          %725 = sbr.rel (%p723) target = $region112
        $region111: #{tpu_custom_call.1} parent=95 // pred_region
          %726 = dma.done [#allocation12], 1024
        $region112: #{tpu_custom_call.1} parent=95 // pred_fallthru
          _
        // Predicated region
        $region113: #{tpu_custom_call.1} parent=95 // pred_check
          %p727 = pneg %p194
        $region114: #{tpu_custom_call.1} parent=95 // pred_check_branch
          %729 = sbr.rel (%p727) target = $region116
        $region115: #{tpu_custom_call.1} parent=95 // pred_region
          %730 = dma.done [#allocation12], 1024
        $region116: #{tpu_custom_call.1} parent=95 // pred_fallthru
          _
        // Predicated region
        $region117: #{tpu_custom_call.1} parent=95 // pred_check
          %p731 = pneg %p236
        $region118: #{tpu_custom_call.1} parent=95 // pred_check_branch
          %733 = sbr.rel (%p731) target = $region120
        $region119: #{tpu_custom_call.1} parent=95 // pred_region
          %734 = dma.done [#allocation15], 1024
        $region120: #{tpu_custom_call.1} parent=95 // pred_fallthru
          _
        // Predicated region
        $region121: #{tpu_custom_call.1} parent=95 // pred_check
          %p735 = pneg %p278
        $region122: #{tpu_custom_call.1} parent=95 // pred_check_branch
          %737 = sbr.rel (%p735) target = $region124
        $region123: #{tpu_custom_call.1} parent=95 // pred_region
          %738 = dma.done [#allocation15], 1024
        $region124: #{tpu_custom_call.1} parent=95 // pred_fallthru
          _
        // Predicated region
        $region125: #{tpu_custom_call.1} parent=95 // pred_check
          %p739 = pneg %p362
        $region126: #{tpu_custom_call.1} parent=95 // pred_check_branch
          %741 = sbr.rel (%p739) target = $region128
        $region127: #{tpu_custom_call.1} parent=95 // pred_region
          %742 = dma.done [#allocation18], 2048
        $region128: #{tpu_custom_call.1} parent=95 // pred_fallthru
          _
        // Predicated region
        $region129: #{tpu_custom_call.1} parent=95 // pred_check
          %p743 = pneg %p404
        $region130: #{tpu_custom_call.1} parent=95 // pred_check_branch
          %745 = sbr.rel (%p743) target = $region132
        $region131: #{tpu_custom_call.1} parent=95 // pred_region
          %746 = dma.done [#allocation18], 2048
        $region132: #{tpu_custom_call.1} parent=95 // pred_fallthru
          _
        %s747 = sand.u32 %s64, 1
        %s748 = scalar_lea.sflag [#allocation6], %s747
        %s749 = sand.u32 %s64, 1
        %s750 = smul.addr %s749, 16
        %s751 = scalar_lea.vmem [#allocation5], %s750
        %p752 = pneg %p77
        %p753 = pneg %p74
        %s754 = sand.u32 %s42, 1
        %s755 = scalar_lea.sflag [#allocation9], %s754
        %s756 = sand.u32 %s90, 1
        %s757 = smul.addr %s756, 8
        %s758 = scalar_lea.vmem [#allocation8], %s757
        %p759 = pneg %p103
        %p760 = pneg %p100
        %s761 = sand.u32 %s42, 1
        %s762 = scalar_lea.sflag [#allocation9], %s761
        %s763 = sand.u32 %s118, 1
        %s764 = smul.addr %s763, 4
        %s765 = scalar_lea.vmem [#allocation10], %s764
        %p766 = pneg %p131
        %p767 = pneg %p128
        %p768 = pneg %p152
        %p769 = pneg %p149
        %p770 = pneg %p173
        %p771 = pneg %p170
        %p772 = pneg %p194
        %p773 = pneg %p191
        %p774 = pneg %p215
        %p775 = pneg %p212
        %p776 = pneg %p236
        %p777 = pneg %p233
        %p778 = pneg %p257
        %p779 = pneg %p254
        %p780 = pneg %p278
        %p781 = pneg %p275
        %p782 = pneg %p299
        %p783 = pneg %p296
        %p784 = pneg %p320
        %p785 = pneg %p317
        %p786 = pneg %p341
        %p787 = pneg %p338
        %p788 = pneg %p362
        %p789 = pneg %p359
        %p790 = pneg %p383
        %p791 = pneg %p380
        %p792 = pneg %p404
        %p793 = pneg %p401
        %p794 = pneg %p425
        %p795 = pneg %p422
        %p796 = pneg %p446
        %p797 = pneg %p443
        %p798 = pneg %p467
        %p799 = pneg %p464
        %p800 = pneg %p495
        %p801 = pneg %p492
        %s802 = sand.u32 %s482, 1
        %s803 = scalar_lea.sflag [#allocation7], %s802
        %s804 = sand.u32 %s482, 1
        %s805 = smul.addr %s804, 16
        %s806 = scalar_lea.vmem [#allocation20], %s805
        %s807 = smul.u32 2, %s47
        %s808 = smul.u32 2, %s47
        %s809 = smul.u32 2, %s47
        %v813 = vld [vmem:[%s700] sm:$0xff]
        %v814 = vld [vmem:[%s700 + $0x8] sm:$0xff]
        %v815 = vld [vmem:[%s718] sm:$0x3]
        %v816 = vld [vmem:[%s718 + $0x2] sm:$0x3]
        %vm817 = vnez %v815
        %vm818 = vnez %v816
        %p819 = scmp.eq.s32.totalorder %s47, 0
        // Predicated region
        $region133: #{tpu_custom_call.1} parent=95 // pred_check
          %p820 = pneg %p819
        $region134: #{tpu_custom_call.1} parent=95 // pred_check_branch
          %822 = sbr.rel (%p820) target = $region136
        $region135: #{tpu_custom_call.1} parent=95 // pred_region
          %v823 = vld [vmem:[%s709] sm:$0xf]
          %v824 = vld [vmem:[%s709 + $0x4] sm:$0xf]
          %v825 = vld [vmem:[#allocation13] sm:$0xf]
          %v826 = vld [vmem:[#allocation13 + $0x4] sm:$0xf]
          %v827 = vld [vmem:[#allocation13 + $0x8] sm:$0xf]
          %v828 = vld [vmem:[#allocation13 + $0xc] sm:$0xf]
          %v829 = vld [vmem:[#allocation13 + $0x10] sm:$0xf]
          %v830 = vld [vmem:[#allocation13 + $0x14] sm:$0xf]
          %v831 = vld [vmem:[#allocation13 + $0x18] sm:$0xf]
          %v832 = vld [vmem:[#allocation13 + $0x1c] sm:$0xf]
          %v833 = vld [vmem:[#allocation13 + $0x20] sm:$0xf]
          %v834 = vld [vmem:[#allocation13 + $0x24] sm:$0xf]
          %v835 = vld [vmem:[#allocation13 + $0x28] sm:$0xf]
          %v836 = vld [vmem:[#allocation13 + $0x2c] sm:$0xf]
          %v837 = vld [vmem:[#allocation13 + $0x30] sm:$0xf]
          %v838 = vld [vmem:[#allocation13 + $0x34] sm:$0xf]
          %v839 = vld [vmem:[#allocation13 + $0x38] sm:$0xf]
          %v840 = vld [vmem:[#allocation13 + $0x3c] sm:$0xf]
          %v841 = vld [vmem:[%s6] sm:$0x1]
          %v843 = vlaneseq
          %v844 = vshrl.u32 %v843, 7
          %v845 = vsub.s32 0, %v844
          %v846 = vrot.slane %v841, %v845
          %v850 = vunpack.c.l.b16 %v823
          %v851 = vunpack.c.l.b16 %v824
          %v852 = vpack.c.b16 %v851, %v850
          %v870 = vunpack.c.l.b16 %v825
          %v871 = vunpack.c.l.b16 %v826
          %v872 = vunpack.c.l.b16 %v827
          %v873 = vunpack.c.l.b16 %v828
          %v874 = vunpack.c.l.b16 %v829
          %v875 = vunpack.c.l.b16 %v830
          %v876 = vunpack.c.l.b16 %v831
          %v877 = vunpack.c.l.b16 %v832
          %v878 = vunpack.c.l.b16 %v833
          %v879 = vunpack.c.l.b16 %v834
          %v880 = vunpack.c.l.b16 %v835
          %v881 = vunpack.c.l.b16 %v836
          %v882 = vunpack.c.l.b16 %v837
          %v883 = vunpack.c.l.b16 %v838
          %v884 = vunpack.c.l.b16 %v839
          %v885 = vunpack.c.l.b16 %v840
          %v886 = vpack.c.b16 %v871, %v870
          %v887 = vpack.c.b16 %v873, %v872
          %v888 = vpack.c.b16 %v875, %v874
          %v889 = vpack.c.b16 %v877, %v876
          %v890 = vpack.c.b16 %v879, %v878
          %v891 = vpack.c.b16 %v881, %v880
          %v892 = vpack.c.b16 %v883, %v882
          %v893 = vpack.c.b16 %v885, %v884
          %902 = vmatprep.subr.bf16.mxu0 0
          %903 = vmatpush1.bf16.msra.mxu0 %v886
          %904 = vmatprep.subr.bf16.mxu0 0
          %905 = vmatpush1.bf16.msra.mxu0 %v887
          %906 = vmatprep.subr.bf16.mxu0 0
          %907 = vmatpush1.bf16.msra.mxu0 %v888
          %908 = vmatprep.subr.bf16.mxu0 0
          %909 = vmatpush1.bf16.msra.mxu0 %v889
          %910 = vmatprep.subr.bf16.mxu0 0
          %911 = vmatpush1.bf16.msra.mxu0 %v890
          %912 = vmatprep.subr.bf16.mxu0 0
          %913 = vmatpush1.bf16.msra.mxu0 %v891
          %914 = vmatprep.subr.bf16.mxu0 0
          %915 = vmatpush1.bf16.msra.mxu0 %v892
          %916 = vmatprep.subr.bf16.mxu0 0
          %917 = vmatpush1.bf16.msra.mxu0 %v893
          %918 = vmatprep.subr.bf16.mxu0 0
          %919 = vmatpush1.bf16.msra.mxu0 0
          %920 = vmatprep.subr.bf16.mxu0 0
          %921 = vmatpush1.bf16.msra.mxu0 0
          %922 = vmatprep.subr.bf16.mxu0 0
          %923 = vmatpush1.bf16.msra.mxu0 0
          %924 = vmatprep.subr.bf16.mxu0 0
          %925 = vmatpush1.bf16.msra.mxu0 0
          %926 = vmatprep.subr.bf16.mxu0 0
          %927 = vmatpush1.bf16.msra.mxu0 0
          %928 = vmatprep.subr.bf16.mxu0 0
          %929 = vmatpush1.bf16.msra.mxu0 0
          %930 = vmatprep.subr.bf16.mxu0 0
          %931 = vmatpush1.bf16.msra.mxu0 0
          %932 = vmatprep.subr.bf16.mxu0 0
          %933 = vmatpush1.bf16.msra.mxu0 0
          %934 = vmatprep.mubr.bf16.mxu0 0
          %935 = vmatmul.mubr.bf16.gmra.mrb[0].mxu0 %v852
          %v936 = vpop.f32.mrb[0].mxu0
          %v937 = vadd.f32 %v846, %v936
          %v938 = vpop.f32.mrb[0].mxu0
          %v939 = vpop.f32.mrb[0].mxu0
          %v940 = vadd.f32 %v846, %v939
          %v941 = vpop.f32.mrb[0].mxu0
          %942 = vdwg.mxu0
          %v943 = vld [vmem:[#allocation14] sm:$0xf]
          %v944 = vld [vmem:[#allocation14 + $0x4] sm:$0xf]
          %v945 = vld [vmem:[#allocation14 + $0x8] sm:$0xf]
          %v946 = vld [vmem:[#allocation14 + $0xc] sm:$0xf]
          %v947 = vld [vmem:[#allocation14 + $0x10] sm:$0xf]
          %v948 = vld [vmem:[#allocation14 + $0x14] sm:$0xf]
          %v949 = vld [vmem:[#allocation14 + $0x18] sm:$0xf]
          %v950 = vld [vmem:[#allocation14 + $0x1c] sm:$0xf]
          %v951 = vld [vmem:[#allocation14 + $0x20] sm:$0xf]
          %v952 = vld [vmem:[#allocation14 + $0x24] sm:$0xf]
          %v953 = vld [vmem:[#allocation14 + $0x28] sm:$0xf]
          %v954 = vld [vmem:[#allocation14 + $0x2c] sm:$0xf]
          %v955 = vld [vmem:[#allocation14 + $0x30] sm:$0xf]
          %v956 = vld [vmem:[#allocation14 + $0x34] sm:$0xf]
          %v957 = vld [vmem:[#allocation14 + $0x38] sm:$0xf]
          %v958 = vld [vmem:[#allocation14 + $0x3c] sm:$0xf]
          %v959 = vld [vmem:[%s8] sm:$0x1]
          %v961 = vlaneseq
          %v962 = vshrl.u32 %v961, 7
          %v963 = vsub.s32 0, %v962
          %v964 = vrot.slane %v959, %v963
          %v982 = vunpack.c.l.b16 %v943
          %v983 = vunpack.c.l.b16 %v944
          %v984 = vunpack.c.l.b16 %v945
          %v985 = vunpack.c.l.b16 %v946
          %v986 = vunpack.c.l.b16 %v947
          %v987 = vunpack.c.l.b16 %v948
          %v988 = vunpack.c.l.b16 %v949
          %v989 = vunpack.c.l.b16 %v950
          %v990 = vunpack.c.l.b16 %v951
          %v991 = vunpack.c.l.b16 %v952
          %v992 = vunpack.c.l.b16 %v953
          %v993 = vunpack.c.l.b16 %v954
          %v994 = vunpack.c.l.b16 %v955
          %v995 = vunpack.c.l.b16 %v956
          %v996 = vunpack.c.l.b16 %v957
          %v997 = vunpack.c.l.b16 %v958
          %v998 = vpack.c.b16 %v983, %v982
          %v999 = vpack.c.b16 %v985, %v984
          %v1000 = vpack.c.b16 %v987, %v986
          %v1001 = vpack.c.b16 %v989, %v988
          %v1002 = vpack.c.b16 %v991, %v990
          %v1003 = vpack.c.b16 %v993, %v992
          %v1004 = vpack.c.b16 %v995, %v994
          %v1005 = vpack.c.b16 %v997, %v996
          %1014 = vmatprep.subr.bf16.mxu0 0
          %1015 = vmatpush1.bf16.msra.mxu0 %v998
          %1016 = vmatprep.subr.bf16.mxu0 0
          %1017 = vmatpush1.bf16.msra.mxu0 %v999
          %1018 = vmatprep.subr.bf16.mxu0 0
          %1019 = vmatpush1.bf16.msra.mxu0 %v1000
          %1020 = vmatprep.subr.bf16.mxu0 0
          %1021 = vmatpush1.bf16.msra.mxu0 %v1001
          %1022 = vmatprep.subr.bf16.mxu0 0
          %1023 = vmatpush1.bf16.msra.mxu0 %v1002
          %1024 = vmatprep.subr.bf16.mxu0 0
          %1025 = vmatpush1.bf16.msra.mxu0 %v1003
          %1026 = vmatprep.subr.bf16.mxu0 0
          %1027 = vmatpush1.bf16.msra.mxu0 %v1004
          %1028 = vmatprep.subr.bf16.mxu0 0
          %1029 = vmatpush1.bf16.msra.mxu0 %v1005
          %1030 = vmatprep.subr.bf16.mxu0 0
          %1031 = vmatpush1.bf16.msra.mxu0 0
          %1032 = vmatprep.subr.bf16.mxu0 0
          %1033 = vmatpush1.bf16.msra.mxu0 0
          %1034 = vmatprep.subr.bf16.mxu0 0
          %1035 = vmatpush1.bf16.msra.mxu0 0
          %1036 = vmatprep.subr.bf16.mxu0 0
          %1037 = vmatpush1.bf16.msra.mxu0 0
          %1038 = vmatprep.subr.bf16.mxu0 0
          %1039 = vmatpush1.bf16.msra.mxu0 0
          %1040 = vmatprep.subr.bf16.mxu0 0
          %1041 = vmatpush1.bf16.msra.mxu0 0
          %1042 = vmatprep.subr.bf16.mxu0 0
          %1043 = vmatpush1.bf16.msra.mxu0 0
          %1044 = vmatprep.subr.bf16.mxu0 0
          %1045 = vmatpush1.bf16.msra.mxu0 0
          %1046 = vmatprep.mubr.bf16.mxu0 0
          %1047 = vmatmul.mubr.bf16.gmra.mrb[0].mxu0 %v852
          %v1048 = vpop.f32.mrb[0].mxu0
          %v1049 = vadd.f32 %v964, %v1048
          %v1050 = vpop.f32.mrb[0].mxu0
          %v1051 = vpop.f32.mrb[0].mxu0
          %v1052 = vadd.f32 %v964, %v1051
          %v1053 = vpop.f32.mrb[0].mxu0
          %1054 = vdwg.mxu0
          %v1055 = vpack.c.bf16 %v940, %v937
          %1056 = vst [vmem:[#allocation2] sm:$0xff] %v1055
          %v1057 = vpack.c.bf16 %v1052, %v1049
          %1058 = vst [vmem:[#allocation3] sm:$0xff] %v1057
        $region136: #{tpu_custom_call.1} parent=95 // pred_fallthru
          _
        %v1059 = vpack.c.bf16 %v814, %v813
        %v1060 = vld [vmem:[#allocation11] sm:$0xf]
        %v1061 = vld [vmem:[#allocation11 + $0x4] sm:$0xf]
        %v1062 = vld [vmem:[#allocation11 + $0x8] sm:$0xf]
        %v1063 = vld [vmem:[#allocation11 + $0xc] sm:$0xf]
        %v1064 = vld [vmem:[#allocation11 + $0x10] sm:$0xf]
        %v1065 = vld [vmem:[#allocation11 + $0x14] sm:$0xf]
        %v1066 = vld [vmem:[#allocation11 + $0x18] sm:$0xf]
        %v1067 = vld [vmem:[#allocation11 + $0x1c] sm:$0xf]
        %v1068 = vld [vmem:[#allocation11 + $0x20] sm:$0xf]
        %v1069 = vld [vmem:[#allocation11 + $0x24] sm:$0xf]
        %v1070 = vld [vmem:[#allocation11 + $0x28] sm:$0xf]
        %v1071 = vld [vmem:[#allocation11 + $0x2c] sm:$0xf]
        %v1072 = vld [vmem:[#allocation11 + $0x30] sm:$0xf]
        %v1073 = vld [vmem:[#allocation11 + $0x34] sm:$0xf]
        %v1074 = vld [vmem:[#allocation11 + $0x38] sm:$0xf]
        %v1075 = vld [vmem:[#allocation11 + $0x3c] sm:$0xf]
        %v1076 = vld [vmem:[%s4] sm:$0x1]
        %v1078 = vlaneseq
        %v1079 = vshrl.u32 %v1078, 7
        %v1080 = vsub.s32 0, %v1079
        %v1081 = vrot.slane %v1076, %v1080
        %v1099 = vunpack.c.l.b16 %v1060
        %v1100 = vunpack.c.l.b16 %v1061
        %v1101 = vunpack.c.l.b16 %v1062
        %v1102 = vunpack.c.l.b16 %v1063
        %v1103 = vunpack.c.l.b16 %v1064
        %v1104 = vunpack.c.l.b16 %v1065
        %v1105 = vunpack.c.l.b16 %v1066
        %v1106 = vunpack.c.l.b16 %v1067
        %v1107 = vunpack.c.l.b16 %v1068
        %v1108 = vunpack.c.l.b16 %v1069
        %v1109 = vunpack.c.l.b16 %v1070
        %v1110 = vunpack.c.l.b16 %v1071
        %v1111 = vunpack.c.l.b16 %v1072
        %v1112 = vunpack.c.l.b16 %v1073
        %v1113 = vunpack.c.l.b16 %v1074
        %v1114 = vunpack.c.l.b16 %v1075
        %v1115 = vpack.c.b16 %v1100, %v1099
        %v1116 = vpack.c.b16 %v1102, %v1101
        %v1117 = vpack.c.b16 %v1104, %v1103
        %v1118 = vpack.c.b16 %v1106, %v1105
        %v1119 = vpack.c.b16 %v1108, %v1107
        %v1120 = vpack.c.b16 %v1110, %v1109
        %v1121 = vpack.c.b16 %v1112, %v1111
        %v1122 = vpack.c.b16 %v1114, %v1113
        %1131 = vmatprep.subr.bf16.mxu0 0
        %1132 = vmatpush1.bf16.msra.mxu0 %v1115
        %1133 = vmatprep.subr.bf16.mxu0 0
        %1134 = vmatpush1.bf16.msra.mxu0 %v1116
        %1135 = vmatprep.subr.bf16.mxu0 0
        %1136 = vmatpush1.bf16.msra.mxu0 %v1117
        %1137 = vmatprep.subr.bf16.mxu0 0
        %1138 = vmatpush1.bf16.msra.mxu0 %v1118
        %1139 = vmatprep.subr.bf16.mxu0 0
        %1140 = vmatpush1.bf16.msra.mxu0 %v1119
        %1141 = vmatprep.subr.bf16.mxu0 0
        %1142 = vmatpush1.bf16.msra.mxu0 %v1120
        %1143 = vmatprep.subr.bf16.mxu0 0
        %1144 = vmatpush1.bf16.msra.mxu0 %v1121
        %1145 = vmatprep.subr.bf16.mxu0 0
        %1146 = vmatpush1.bf16.msra.mxu0 %v1122
        %1147 = vmatprep.subr.bf16.mxu0 0
        %1148 = vmatpush1.bf16.msra.mxu0 0
        %1149 = vmatprep.subr.bf16.mxu0 0
        %1150 = vmatpush1.bf16.msra.mxu0 0
        %1151 = vmatprep.subr.bf16.mxu0 0
        %1152 = vmatpush1.bf16.msra.mxu0 0
        %1153 = vmatprep.subr.bf16.mxu0 0
        %1154 = vmatpush1.bf16.msra.mxu0 0
        %1155 = vmatprep.subr.bf16.mxu0 0
        %1156 = vmatpush1.bf16.msra.mxu0 0
        %1157 = vmatprep.subr.bf16.mxu0 0
        %1158 = vmatpush1.bf16.msra.mxu0 0
        %1159 = vmatprep.subr.bf16.mxu0 0
        %1160 = vmatpush1.bf16.msra.mxu0 0
        %1161 = vmatprep.subr.bf16.mxu0 0
        %1162 = vmatpush1.bf16.msra.mxu0 0
        %1163 = vmatprep.mubr.bf16.mxu0 0
        %1164 = vmatmul.mubr.bf16.gmra.mrb[0].mxu0 %v1059
        %v1165 = vpop.f32.mrb[0].mxu0
        %v1166 = vadd.f32 %v1081, %v1165
        %v1167 = vpop.f32.mrb[0].mxu0
        %v1168 = vpop.f32.mrb[0].mxu0
        %v1169 = vadd.f32 %v1081, %v1168
        %v1170 = vpop.f32.mrb[0].mxu0
        %1171 = vdwg.mxu0
        %v1172 = vpack.c.bf16 %v1169, %v1166
        %1174 = vrot.lane.b32.xlu0 %v1172, 96
        %v1175 = vpop.permute.xlu0 %1174
        %1176 = vrot.lane.b32.xlu0 %v1172, 64
        %v1177 = vpop.permute.xlu0 %1176
        %1178 = vrot.lane.b32.xlu0 %v1172, 32
        %v1179 = vpop.permute.xlu0 %1178
        %v1180 = vld [vmem:[#allocation2] sm:$0xff]
        %1182 = vrot.lane.b32.xlu0 %v1180, 96
        %v1183 = vpop.permute.xlu0 %1182
        %1185 = vrot.lane.b32.xlu0 %v1180, 64
        %v1186 = vpop.permute.xlu0 %1185
        %1188 = vrot.lane.b32.xlu0 %v1180, 32
        %v1189 = vpop.permute.xlu0 %1188
        %v1191 = vld [vmem:[#allocation3] sm:$0xff]
        %1193 = vrot.lane.b32.xlu0 %v1191, 96
        %v1194 = vpop.permute.xlu0 %1193
        %1196 = vrot.lane.b32.xlu0 %v1191, 64
        %v1197 = vpop.permute.xlu0 %1196
        %1199 = vrot.lane.b32.xlu0 %v1191, 32
        %v1200 = vpop.permute.xlu0 %1199
        %1202 = vxpose.xlu0.c.b16.start [1/8] %v1180, 128
        %1203 = vxpose.xlu0.c.b16.cont [2/8] 0, 128
        %1204 = vxpose.xlu0.c.b16.cont [3/8] 0, 128
        %1205 = vxpose.xlu0.c.b16.cont [4/8] 0, 128
        %1206 = vxpose.xlu0.c.b16.cont [5/8] 0, 128
        %1207 = vxpose.xlu0.c.b16.cont [6/8] 0, 128
        %1208 = vxpose.xlu0.c.b16.cont [7/8] 0, 128
        %1209 = vxpose.xlu0.c.b16.end [8/8] 0, 128
        %v1210 = vpop.trf.xlu0
        %v1211 = vpop.trf.xlu0
        %v1212 = vpop.trf.xlu0
        %v1213 = vpop.trf.xlu0
        %v1214 = vpop.trf.xlu0
        %v1215 = vpop.trf.xlu0
        %v1216 = vpop.trf.xlu0
        %v1217 = vpop.trf.xlu0
        %1218 = vxpose.xlu0.c.b16.start [1/8] %v1183, 128
        %1219 = vxpose.xlu0.c.b16.cont [2/8] 0, 128
        %1220 = vxpose.xlu0.c.b16.cont [3/8] 0, 128
        %1221 = vxpose.xlu0.c.b16.cont [4/8] 0, 128
        %1222 = vxpose.xlu0.c.b16.cont [5/8] 0, 128
        %1223 = vxpose.xlu0.c.b16.cont [6/8] 0, 128
        %1224 = vxpose.xlu0.c.b16.cont [7/8] 0, 128
        %1225 = vxpose.xlu0.c.b16.end [8/8] 0, 128
        %v1226 = vpop.trf.xlu0
        %v1227 = vpop.trf.xlu0
        %v1228 = vpop.trf.xlu0
        %v1229 = vpop.trf.xlu0
        %v1230 = vpop.trf.xlu0
        %v1231 = vpop.trf.xlu0
        %v1232 = vpop.trf.xlu0
        %v1233 = vpop.trf.xlu0
        %1234 = vxpose.xlu0.c.b16.start [1/8] %v1186, 128
        %1235 = vxpose.xlu0.c.b16.cont [2/8] 0, 128
        %1236 = vxpose.xlu0.c.b16.cont [3/8] 0, 128
        %1237 = vxpose.xlu0.c.b16.cont [4/8] 0, 128
        %1238 = vxpose.xlu0.c.b16.cont [5/8] 0, 128
        %1239 = vxpose.xlu0.c.b16.cont [6/8] 0, 128
        %1240 = vxpose.xlu0.c.b16.cont [7/8] 0, 128
        %1241 = vxpose.xlu0.c.b16.end [8/8] 0, 128
        %v1242 = vpop.trf.xlu0
        %v1243 = vpop.trf.xlu0
        %v1244 = vpop.trf.xlu0
        %v1245 = vpop.trf.xlu0
        %v1246 = vpop.trf.xlu0
        %v1247 = vpop.trf.xlu0
        %v1248 = vpop.trf.xlu0
        %v1249 = vpop.trf.xlu0
        %1250 = vxpose.xlu0.c.b16.start [1/8] %v1189, 128
        %1251 = vxpose.xlu0.c.b16.cont [2/8] 0, 128
        %1252 = vxpose.xlu0.c.b16.cont [3/8] 0, 128
        %1253 = vxpose.xlu0.c.b16.cont [4/8] 0, 128
        %1254 = vxpose.xlu0.c.b16.cont [5/8] 0, 128
        %1255 = vxpose.xlu0.c.b16.cont [6/8] 0, 128
        %1256 = vxpose.xlu0.c.b16.cont [7/8] 0, 128
        %1257 = vxpose.xlu0.c.b16.end [8/8] 0, 128
        %v1258 = vpop.trf.xlu0
        %v1259 = vpop.trf.xlu0
        %v1260 = vpop.trf.xlu0
        %v1261 = vpop.trf.xlu0
        %v1262 = vpop.trf.xlu0
        %v1263 = vpop.trf.xlu0
        %v1264 = vpop.trf.xlu0
        %v1265 = vpop.trf.xlu0
        %vm1266 = vcmask 261120
        %v1268 = vsel %vm1266, %v1172, 0
        %1270 = vmatprep.subr.bf16.mxu0 0
        %1271 = vmatpush1.bf16.msra.mxu0 %v1210
        %1272 = vmatprep.subr.bf16.mxu0 0
        %1273 = vmatpush1.bf16.msra.mxu0 %v1211
        %1274 = vmatprep.subr.bf16.mxu0 0
        %1275 = vmatpush1.bf16.msra.mxu0 0
        %1276 = vmatprep.subr.bf16.mxu0 0
        %1277 = vmatpush1.bf16.msra.mxu0 0
        %1278 = vmatprep.subr.bf16.mxu0 0
        %1279 = vmatpush1.bf16.msra.mxu0 0
        %1280 = vmatprep.subr.bf16.mxu0 0
        %1281 = vmatpush1.bf16.msra.mxu0 0
        %1282 = vmatprep.subr.bf16.mxu0 0
        %1283 = vmatpush1.bf16.msra.mxu0 0
        %1284 = vmatprep.subr.bf16.mxu0 0
        %1285 = vmatpush1.bf16.msra.mxu0 0
        %1286 = vmatprep.subr.bf16.mxu0 0
        %1287 = vmatpush1.bf16.msra.mxu0 0
        %1288 = vmatprep.subr.bf16.mxu0 0
        %1289 = vmatpush1.bf16.msra.mxu0 0
        %1290 = vmatprep.subr.bf16.mxu0 0
        %1291 = vmatpush1.bf16.msra.mxu0 0
        %1292 = vmatprep.subr.bf16.mxu0 0
        %1293 = vmatpush1.bf16.msra.mxu0 0
        %1294 = vmatprep.subr.bf16.mxu0 0
        %1295 = vmatpush1.bf16.msra.mxu0 0
        %1296 = vmatprep.subr.bf16.mxu0 0
        %1297 = vmatpush1.bf16.msra.mxu0 0
        %1298 = vmatprep.subr.bf16.mxu0 0
        %1299 = vmatpush1.bf16.msra.mxu0 0
        %1300 = vmatprep.subr.bf16.mxu0 0
        %1301 = vmatpush1.bf16.msra.mxu0 0
        %1302 = vmatprep.mubr.bf16.mxu0 0
        %1303 = vmatmul.mubr.bf16.gmra.mrb[0].mxu0 %v1268
        %v1304 = vpop.f32.mrb[0].mxu0
        %v1305 = vadd.f32 0.0, %v1304
        %v1306 = vpop.f32.mrb[0].mxu0
        %v1307 = vpop.f32.mrb[0].mxu0
        %v1308 = vadd.f32 0.0, %v1307
        %v1309 = vpop.f32.mrb[0].mxu0
        %1310 = vdwg.mxu0
        %v1312 = vsel %vm1266, %v1175, 0
        %1314 = vmatprep.subr.bf16.mxu0 0
        %1315 = vmatpush1.bf16.msra.mxu0 %v1226
        %1316 = vmatprep.subr.bf16.mxu0 0
        %1317 = vmatpush1.bf16.msra.mxu0 %v1227
        %1318 = vmatprep.subr.bf16.mxu0 0
        %1319 = vmatpush1.bf16.msra.mxu0 0
        %1320 = vmatprep.subr.bf16.mxu0 0
        %1321 = vmatpush1.bf16.msra.mxu0 0
        %1322 = vmatprep.subr.bf16.mxu0 0
        %1323 = vmatpush1.bf16.msra.mxu0 0
        %1324 = vmatprep.subr.bf16.mxu0 0
        %1325 = vmatpush1.bf16.msra.mxu0 0
        %1326 = vmatprep.subr.bf16.mxu0 0
        %1327 = vmatpush1.bf16.msra.mxu0 0
        %1328 = vmatprep.subr.bf16.mxu0 0
        %1329 = vmatpush1.bf16.msra.mxu0 0
        %1330 = vmatprep.subr.bf16.mxu0 0
        %1331 = vmatpush1.bf16.msra.mxu0 0
        %1332 = vmatprep.subr.bf16.mxu0 0
        %1333 = vmatpush1.bf16.msra.mxu0 0
        %1334 = vmatprep.subr.bf16.mxu0 0
        %1335 = vmatpush1.bf16.msra.mxu0 0
        %1336 = vmatprep.subr.bf16.mxu0 0
        %1337 = vmatpush1.bf16.msra.mxu0 0
        %1338 = vmatprep.subr.bf16.mxu0 0
        %1339 = vmatpush1.bf16.msra.mxu0 0
        %1340 = vmatprep.subr.bf16.mxu0 0
        %1341 = vmatpush1.bf16.msra.mxu0 0
        %1342 = vmatprep.subr.bf16.mxu0 0
        %1343 = vmatpush1.bf16.msra.mxu0 0
        %1344 = vmatprep.subr.bf16.mxu0 0
        %1345 = vmatpush1.bf16.msra.mxu0 0
        %1346 = vmatprep.mubr.bf16.mxu0 0
        %1347 = vmatmul.mubr.bf16.gmra.mrb[0].mxu0 %v1312
        %v1348 = vpop.f32.mrb[0].mxu0
        %v1349 = vadd.f32 0.0, %v1348
        %v1350 = vpop.f32.mrb[0].mxu0
        %v1351 = vpop.f32.mrb[0].mxu0
        %v1352 = vadd.f32 0.0, %v1351
        %v1353 = vpop.f32.mrb[0].mxu0
        %1354 = vdwg.mxu0
        %v1356 = vsel %vm1266, %v1177, 0
        %1358 = vmatprep.subr.bf16.mxu0 0
        %1359 = vmatpush1.bf16.msra.mxu0 %v1242
        %1360 = vmatprep.subr.bf16.mxu0 0
        %1361 = vmatpush1.bf16.msra.mxu0 %v1243
        %1362 = vmatprep.subr.bf16.mxu0 0
        %1363 = vmatpush1.bf16.msra.mxu0 0
        %1364 = vmatprep.subr.bf16.mxu0 0
        %1365 = vmatpush1.bf16.msra.mxu0 0
        %1366 = vmatprep.subr.bf16.mxu0 0
        %1367 = vmatpush1.bf16.msra.mxu0 0
        %1368 = vmatprep.subr.bf16.mxu0 0
        %1369 = vmatpush1.bf16.msra.mxu0 0
        %1370 = vmatprep.subr.bf16.mxu0 0
        %1371 = vmatpush1.bf16.msra.mxu0 0
        %1372 = vmatprep.subr.bf16.mxu0 0
        %1373 = vmatpush1.bf16.msra.mxu0 0
        %1374 = vmatprep.subr.bf16.mxu0 0
        %1375 = vmatpush1.bf16.msra.mxu0 0
        %1376 = vmatprep.subr.bf16.mxu0 0
        %1377 = vmatpush1.bf16.msra.mxu0 0
        %1378 = vmatprep.subr.bf16.mxu0 0
        %1379 = vmatpush1.bf16.msra.mxu0 0
        %1380 = vmatprep.subr.bf16.mxu0 0
        %1381 = vmatpush1.bf16.msra.mxu0 0
        %1382 = vmatprep.subr.bf16.mxu0 0
        %1383 = vmatpush1.bf16.msra.mxu0 0
        %1384 = vmatprep.subr.bf16.mxu0 0
        %1385 = vmatpush1.bf16.msra.mxu0 0
        %1386 = vmatprep.subr.bf16.mxu0 0
        %1387 = vmatpush1.bf16.msra.mxu0 0
        %1388 = vmatprep.subr.bf16.mxu0 0
        %1389 = vmatpush1.bf16.msra.mxu0 0
        %1390 = vmatprep.mubr.bf16.mxu0 0
        %1391 = vmatmul.mubr.bf16.gmra.mrb[0].mxu0 %v1356
        %v1392 = vpop.f32.mrb[0].mxu0
        %v1393 = vadd.f32 0.0, %v1392
        %v1394 = vpop.f32.mrb[0].mxu0
        %v1395 = vpop.f32.mrb[0].mxu0
        %v1396 = vadd.f32 0.0, %v1395
        %v1397 = vpop.f32.mrb[0].mxu0
        %1398 = vdwg.mxu0
        %v1400 = vsel %vm1266, %v1179, 0
        %1402 = vmatprep.subr.bf16.mxu0 0
        %1403 = vmatpush1.bf16.msra.mxu0 %v1258
        %1404 = vmatprep.subr.bf16.mxu0 0
        %1405 = vmatpush1.bf16.msra.mxu0 %v1259
        %1406 = vmatprep.subr.bf16.mxu0 0
        %1407 = vmatpush1.bf16.msra.mxu0 0
        %1408 = vmatprep.subr.bf16.mxu0 0
        %1409 = vmatpush1.bf16.msra.mxu0 0
        %1410 = vmatprep.subr.bf16.mxu0 0
        %1411 = vmatpush1.bf16.msra.mxu0 0
        %1412 = vmatprep.subr.bf16.mxu0 0
        %1413 = vmatpush1.bf16.msra.mxu0 0
        %1414 = vmatprep.subr.bf16.mxu0 0
        %1415 = vmatpush1.bf16.msra.mxu0 0
        %1416 = vmatprep.subr.bf16.mxu0 0
        %1417 = vmatpush1.bf16.msra.mxu0 0
        %1418 = vmatprep.subr.bf16.mxu0 0
        %1419 = vmatpush1.bf16.msra.mxu0 0
        %1420 = vmatprep.subr.bf16.mxu0 0
        %1421 = vmatpush1.bf16.msra.mxu0 0
        %1422 = vmatprep.subr.bf16.mxu0 0
        %1423 = vmatpush1.bf16.msra.mxu0 0
        %1424 = vmatprep.subr.bf16.mxu0 0
        %1425 = vmatpush1.bf16.msra.mxu0 0
        %1426 = vmatprep.subr.bf16.mxu0 0
        %1427 = vmatpush1.bf16.msra.mxu0 0
        %1428 = vmatprep.subr.bf16.mxu0 0
        %1429 = vmatpush1.bf16.msra.mxu0 0
        %1430 = vmatprep.subr.bf16.mxu0 0
        %1431 = vmatpush1.bf16.msra.mxu0 0
        %1432 = vmatprep.subr.bf16.mxu0 0
        %1433 = vmatpush1.bf16.msra.mxu0 0
        %1434 = vmatprep.mubr.bf16.mxu0 0
        %1435 = vmatmul.mubr.bf16.gmra.mrb[0].mxu0 %v1400
        %v1436 = vpop.f32.mrb[0].mxu0
        %v1437 = vadd.f32 0.0, %v1436
        %v1438 = vpop.f32.mrb[0].mxu0
        %v1439 = vpop.f32.mrb[0].mxu0
        %v1440 = vadd.f32 0.0, %v1439
        %v1441 = vpop.f32.mrb[0].mxu0
        %1442 = vdwg.mxu0
        %v1443 = vsel %vm817, 16843009, 0
        %v1444 = vsel %vm818, 16843009, 0
        %v1445 = vunpack.c.0.s8 %v1443
        %v1446 = vunpack.c.0.s8 %v1444
        %vm1447 = vcmp.ne.s32.totalorder %v1445, 0
        %vm1448 = vcmp.ne.s32.totalorder %v1446, 0
        %v1449 = vsel %vm1447, 1, 0
        %v1450 = vsel %vm1448, 1, 0
        %vm1451 = vcmp.eq.s32.totalorder %v1449, 1
        %vm1452 = vcmp.eq.s32.totalorder %v1450, 1
        %v1453 = vsel %vm1451, %v1305, -1e+09
        %v1454 = vsel %vm1452, %v1308, -1e+09
        %v1455 = vsel %vm1451, %v1349, -1e+09
        %v1456 = vsel %vm1452, %v1352, -1e+09
        %v1457 = vsel %vm1451, %v1393, -1e+09
        %v1458 = vsel %vm1452, %v1396, -1e+09
        %v1459 = vsel %vm1451, %v1437, -1e+09
        %v1460 = vsel %vm1452, %v1440, -1e+09
        %vm1461 = vcmask 130048
        %v1462 = vsel %vm1461, %v1453, -inf
        %1463 = vmax.xlane.f32.xlu0 %v1462
        %v1464 = vpop.xlane.xlu0 %1463
        %v1465 = vsel %vm1461, %v1454, -inf
        %1466 = vmax.xlane.f32.xlu0 %v1465
        %v1467 = vpop.xlane.xlu0 %1466
        %v1468 = vsel %vm1461, %v1455, -inf
        %1469 = vmax.xlane.f32.xlu0 %v1468
        %v1470 = vpop.xlane.xlu0 %1469
        %v1471 = vsel %vm1461, %v1456, -inf
        %1472 = vmax.xlane.f32.xlu0 %v1471
        %v1473 = vpop.xlane.xlu0 %1472
        %v1474 = vsel %vm1461, %v1457, -inf
        %1475 = vmax.xlane.f32.xlu0 %v1474
        %v1476 = vpop.xlane.xlu0 %1475
        %v1477 = vsel %vm1461, %v1458, -inf
        %1478 = vmax.xlane.f32.xlu0 %v1477
        %v1479 = vpop.xlane.xlu0 %1478
        %v1480 = vsel %vm1461, %v1459, -inf
        %1481 = vmax.xlane.f32.xlu0 %v1480
        %v1482 = vpop.xlane.xlu0 %1481
        %v1483 = vsel %vm1461, %v1460, -inf
        %1484 = vmax.xlane.f32.xlu0 %v1483
        %v1485 = vpop.xlane.xlu0 %1484
        %v1486 = vsub.f32 %v1453, %v1464
        %v1487 = vsub.f32 %v1454, %v1467
        %v1488 = vsub.f32 %v1455, %v1470
        %v1489 = vsub.f32 %v1456, %v1473
        %v1490 = vsub.f32 %v1457, %v1476
        %v1491 = vsub.f32 %v1458, %v1479
        %v1492 = vsub.f32 %v1459, %v1482
        %v1493 = vsub.f32 %v1460, %v1485
        %v1494 = vmul.f32 %v1486, 1.442695
        %v1495 = vpow.pop %v1494
        %v1496 = vmul.f32 %v1487, 1.442695
        %v1497 = vpow.pop %v1496
        %v1498 = vmul.f32 %v1488, 1.442695
        %v1499 = vpow.pop %v1498
        %v1500 = vmul.f32 %v1489, 1.442695
        %v1501 = vpow.pop %v1500
        %v1502 = vmul.f32 %v1490, 1.442695
        %v1503 = vpow.pop %v1502
        %v1504 = vmul.f32 %v1491, 1.442695
        %v1505 = vpow.pop %v1504
        %v1506 = vmul.f32 %v1492, 1.442695
        %v1507 = vpow.pop %v1506
        %v1508 = vmul.f32 %v1493, 1.442695
        %v1509 = vpow.pop %v1508
        %v1510 = vsel %vm1461, %v1495, 0.0
        %1511 = vadd.xlane.f32.xlu0 %v1510
        %v1512 = vpop.xlane.xlu0 %1511
        %v1513 = vsel %vm1461, %v1497, 0.0
        %1514 = vadd.xlane.f32.xlu0 %v1513
        %v1515 = vpop.xlane.xlu0 %1514
        %v1516 = vsel %vm1461, %v1499, 0.0
        %1517 = vadd.xlane.f32.xlu0 %v1516
        %v1518 = vpop.xlane.xlu0 %1517
        %v1519 = vsel %vm1461, %v1501, 0.0
        %1520 = vadd.xlane.f32.xlu0 %v1519
        %v1521 = vpop.xlane.xlu0 %1520
        %v1522 = vsel %vm1461, %v1503, 0.0
        %1523 = vadd.xlane.f32.xlu0 %v1522
        %v1524 = vpop.xlane.xlu0 %1523
        %v1525 = vsel %vm1461, %v1505, 0.0
        %1526 = vadd.xlane.f32.xlu0 %v1525
        %v1527 = vpop.xlane.xlu0 %1526
        %v1528 = vsel %vm1461, %v1507, 0.0
        %1529 = vadd.xlane.f32.xlu0 %v1528
        %v1530 = vpop.xlane.xlu0 %1529
        %v1531 = vsel %vm1461, %v1509, 0.0
        %1532 = vadd.xlane.f32.xlu0 %v1531
        %v1533 = vpop.xlane.xlu0 %1532
        %v1534 = vrcp.pop %v1512
        %v1535 = vrcp.pop %v1515
        %v1536 = vrcp.pop %v1518
        %v1537 = vrcp.pop %v1521
        %v1538 = vrcp.pop %v1524
        %v1539 = vrcp.pop %v1527
        %v1540 = vrcp.pop %v1530
        %v1541 = vrcp.pop %v1533
        %v1542 = vmul.f32 %v1495, %v1534
        %v1543 = vmul.f32 %v1497, %v1535
        %v1544 = vmul.f32 %v1499, %v1536
        %v1545 = vmul.f32 %v1501, %v1537
        %v1546 = vmul.f32 %v1503, %v1538
        %v1547 = vmul.f32 %v1505, %v1539
        %v1548 = vmul.f32 %v1507, %v1540
        %v1549 = vmul.f32 %v1509, %v1541
        %v1550 = vpack.c.bf16 %v1543, %v1542
        %v1551 = vpack.c.bf16 %v1545, %v1544
        %v1552 = vpack.c.bf16 %v1547, %v1546
        %v1553 = vpack.c.bf16 %v1549, %v1548
        %1554 = vxpose.xlu0.c.b16.start [1/8] %v1191, 128
        %1555 = vxpose.xlu0.c.b16.cont [2/8] 0, 128
        %1556 = vxpose.xlu0.c.b16.cont [3/8] 0, 128
        %1557 = vxpose.xlu0.c.b16.cont [4/8] 0, 128
        %1558 = vxpose.xlu0.c.b16.cont [5/8] 0, 128
        %1559 = vxpose.xlu0.c.b16.cont [6/8] 0, 128
        %1560 = vxpose.xlu0.c.b16.cont [7/8] 0, 128
        %1561 = vxpose.xlu0.c.b16.end [8/8] 0, 128
        %v1562 = vpop.trf.xlu0
        %v1563 = vpop.trf.xlu0
        %v1564 = vpop.trf.xlu0
        %v1565 = vpop.trf.xlu0
        %v1566 = vpop.trf.xlu0
        %v1567 = vpop.trf.xlu0
        %v1568 = vpop.trf.xlu0
        %v1569 = vpop.trf.xlu0
        %1570 = vxpose.xlu0.c.b16.start [1/8] %v1194, 128
        %1571 = vxpose.xlu0.c.b16.cont [2/8] 0, 128
        %1572 = vxpose.xlu0.c.b16.cont [3/8] 0, 128
        %1573 = vxpose.xlu0.c.b16.cont [4/8] 0, 128
        %1574 = vxpose.xlu0.c.b16.cont [5/8] 0, 128
        %1575 = vxpose.xlu0.c.b16.cont [6/8] 0, 128
        %1576 = vxpose.xlu0.c.b16.cont [7/8] 0, 128
        %1577 = vxpose.xlu0.c.b16.end [8/8] 0, 128
        %v1578 = vpop.trf.xlu0
        %v1579 = vpop.trf.xlu0
        %v1580 = vpop.trf.xlu0
        %v1581 = vpop.trf.xlu0
        %v1582 = vpop.trf.xlu0
        %v1583 = vpop.trf.xlu0
        %v1584 = vpop.trf.xlu0
        %v1585 = vpop.trf.xlu0
        %1586 = vxpose.xlu0.c.b16.start [1/8] %v1197, 128
        %1587 = vxpose.xlu0.c.b16.cont [2/8] 0, 128
        %1588 = vxpose.xlu0.c.b16.cont [3/8] 0, 128
        %1589 = vxpose.xlu0.c.b16.cont [4/8] 0, 128
        %1590 = vxpose.xlu0.c.b16.cont [5/8] 0, 128
        %1591 = vxpose.xlu0.c.b16.cont [6/8] 0, 128
        %1592 = vxpose.xlu0.c.b16.cont [7/8] 0, 128
        %1593 = vxpose.xlu0.c.b16.end [8/8] 0, 128
        %v1594 = vpop.trf.xlu0
        %v1595 = vpop.trf.xlu0
        %v1596 = vpop.trf.xlu0
        %v1597 = vpop.trf.xlu0
        %v1598 = vpop.trf.xlu0
        %v1599 = vpop.trf.xlu0
        %v1600 = vpop.trf.xlu0
        %v1601 = vpop.trf.xlu0
        %1602 = vxpose.xlu0.c.b16.start [1/8] %v1200, 128
        %1603 = vxpose.xlu0.c.b16.cont [2/8] 0, 128
        %1604 = vxpose.xlu0.c.b16.cont [3/8] 0, 128
        %1605 = vxpose.xlu0.c.b16.cont [4/8] 0, 128
        %1606 = vxpose.xlu0.c.b16.cont [5/8] 0, 128
        %1607 = vxpose.xlu0.c.b16.cont [6/8] 0, 128
        %1608 = vxpose.xlu0.c.b16.cont [7/8] 0, 128
        %1609 = vxpose.xlu0.c.b16.end [8/8] 0, 128
        %v1610 = vpop.trf.xlu0
        %v1611 = vpop.trf.xlu0
        %v1612 = vpop.trf.xlu0
        %v1613 = vpop.trf.xlu0
        %v1614 = vpop.trf.xlu0
        %v1615 = vpop.trf.xlu0
        %v1616 = vpop.trf.xlu0
        %v1617 = vpop.trf.xlu0
        %v1619 = vsel %vm1461, %v1562, 0
        %v1622 = vsel %vm1461, %v1563, 0
        %v1625 = vsel %vm1461, %v1550, 0
        %1627 = vmatprep.subr.bf16.mxu0 0
        %1628 = vmatpush1.bf16.xpose.msra.mxu0 %v1625
        %1629 = vmatprep.subr.bf16.mxu0 0
        %1630 = vmatpush1.bf16.xpose.msra.mxu0 0
        %1631 = vmatprep.subr.bf16.mxu0 0
        %1632 = vmatpush1.bf16.xpose.msra.mxu0 0
        %1633 = vmatprep.subr.bf16.mxu0 0
        %1634 = vmatpush1.bf16.xpose.msra.mxu0 0
        %1635 = vmatprep.subr.bf16.mxu0 0
        %1636 = vmatpush1.bf16.xpose.msra.mxu0 0
        %1637 = vmatprep.subr.bf16.mxu0 0
        %1638 = vmatpush1.bf16.xpose.msra.mxu0 0
        %1639 = vmatprep.subr.bf16.mxu0 0
        %1640 = vmatpush1.bf16.xpose.msra.mxu0 0
        %1641 = vmatprep.subr.bf16.mxu0 0
        %1642 = vmatpush1.bf16.xpose.msra.mxu0 0
        %1643 = vmatprep.subr.bf16.mxu0 0
        %1644 = vmatpush1.bf16.xpose.msra.mxu0 0
        %1645 = vmatprep.subr.bf16.mxu0 0
        %1646 = vmatpush1.bf16.xpose.msra.mxu0 0
        %1647 = vmatprep.subr.bf16.mxu0 0
        %1648 = vmatpush1.bf16.xpose.msra.mxu0 0
        %1649 = vmatprep.subr.bf16.mxu0 0
        %1650 = vmatpush1.bf16.xpose.msra.mxu0 0
        %1651 = vmatprep.subr.bf16.mxu0 0
        %1652 = vmatpush1.bf16.xpose.msra.mxu0 0
        %1653 = vmatprep.subr.bf16.mxu0 0
        %1654 = vmatpush1.bf16.xpose.msra.mxu0 0
        %1655 = vmatprep.subr.bf16.mxu0 0
        %1656 = vmatpush1.bf16.xpose.msra.mxu0 0
        %1657 = vmatprep.subr.bf16.mxu0 0
        %1658 = vmatpush1.bf16.xpose.msra.mxu0 0
        %1659 = vmatprep.mubr.bf16.mxu0 0
        %1660 = vmatmul.mubr.bf16.gmra.mrb[0].mxu0 %v1619
        %v1661 = vpop.f32.mrb[0].mxu0
        %v1662 = vadd.f32 0.0, %v1661
        %v1663 = vpop.f32.mrb[0].mxu0
        %v1664 = vpop.f32.mrb[0].mxu0
        %v1665 = vadd.f32 0.0, %v1664
        %v1666 = vpop.f32.mrb[0].mxu0
        %1667 = vmatprep.mubr.bf16.mxu0 0
        %1668 = vmatmul.mubr.bf16.gmra.mrb[0].mxu0 %v1622
        %v1669 = vpop.f32.mrb[0].mxu0
        %v1670 = vadd.f32 0.0, %v1669
        %v1671 = vpop.f32.mrb[0].mxu0
        %v1672 = vpop.f32.mrb[0].mxu0
        %v1673 = vadd.f32 0.0, %v1672
        %v1674 = vpop.f32.mrb[0].mxu0
        %1675 = vdwg.mxu0
        %v1677 = vsel %vm1461, %v1578, 0
        %v1680 = vsel %vm1461, %v1579, 0
        %v1683 = vsel %vm1461, %v1551, 0
        %1685 = vmatprep.subr.bf16.mxu0 0
        %1686 = vmatpush1.bf16.xpose.msra.mxu0 %v1683
        %1687 = vmatprep.subr.bf16.mxu0 0
        %1688 = vmatpush1.bf16.xpose.msra.mxu0 0
        %1689 = vmatprep.subr.bf16.mxu0 0
        %1690 = vmatpush1.bf16.xpose.msra.mxu0 0
        %1691 = vmatprep.subr.bf16.mxu0 0
        %1692 = vmatpush1.bf16.xpose.msra.mxu0 0
        %1693 = vmatprep.subr.bf16.mxu0 0
        %1694 = vmatpush1.bf16.xpose.msra.mxu0 0
        %1695 = vmatprep.subr.bf16.mxu0 0
        %1696 = vmatpush1.bf16.xpose.msra.mxu0 0
        %1697 = vmatprep.subr.bf16.mxu0 0
        %1698 = vmatpush1.bf16.xpose.msra.mxu0 0
        %1699 = vmatprep.subr.bf16.mxu0 0
        %1700 = vmatpush1.bf16.xpose.msra.mxu0 0
        %1701 = vmatprep.subr.bf16.mxu0 0
        %1702 = vmatpush1.bf16.xpose.msra.mxu0 0
        %1703 = vmatprep.subr.bf16.mxu0 0
        %1704 = vmatpush1.bf16.xpose.msra.mxu0 0
        %1705 = vmatprep.subr.bf16.mxu0 0
        %1706 = vmatpush1.bf16.xpose.msra.mxu0 0
        %1707 = vmatprep.subr.bf16.mxu0 0
        %1708 = vmatpush1.bf16.xpose.msra.mxu0 0
        %1709 = vmatprep.subr.bf16.mxu0 0
        %1710 = vmatpush1.bf16.xpose.msra.mxu0 0
        %1711 = vmatprep.subr.bf16.mxu0 0
        %1712 = vmatpush1.bf16.xpose.msra.mxu0 0
        %1713 = vmatprep.subr.bf16.mxu0 0
        %1714 = vmatpush1.bf16.xpose.msra.mxu0 0
        %1715 = vmatprep.subr.bf16.mxu0 0
        %1716 = vmatpush1.bf16.xpose.msra.mxu0 0
        %1717 = vmatprep.mubr.bf16.mxu0 0
        %1718 = vmatmul.mubr.bf16.gmra.mrb[0].mxu0 %v1677
        %v1719 = vpop.f32.mrb[0].mxu0
        %v1720 = vadd.f32 0.0, %v1719
        %v1721 = vpop.f32.mrb[0].mxu0
        %v1722 = vpop.f32.mrb[0].mxu0
        %v1723 = vadd.f32 0.0, %v1722
        %v1724 = vpop.f32.mrb[0].mxu0
        %1725 = vmatprep.mubr.bf16.mxu0 0
        %1726 = vmatmul.mubr.bf16.gmra.mrb[0].mxu0 %v1680
        %v1727 = vpop.f32.mrb[0].mxu0
        %v1728 = vadd.f32 0.0, %v1727
        %v1729 = vpop.f32.mrb[0].mxu0
        %v1730 = vpop.f32.mrb[0].mxu0
        %v1731 = vadd.f32 0.0, %v1730
        %v1732 = vpop.f32.mrb[0].mxu0
        %1733 = vdwg.mxu0
        %v1735 = vsel %vm1461, %v1594, 0
        %v1738 = vsel %vm1461, %v1595, 0
        %v1741 = vsel %vm1461, %v1552, 0
        %1743 = vmatprep.subr.bf16.mxu0 0
        %1744 = vmatpush1.bf16.xpose.msra.mxu0 %v1741
        %1745 = vmatprep.subr.bf16.mxu0 0
        %1746 = vmatpush1.bf16.xpose.msra.mxu0 0
        %1747 = vmatprep.subr.bf16.mxu0 0
        %1748 = vmatpush1.bf16.xpose.msra.mxu0 0
        %1749 = vmatprep.subr.bf16.mxu0 0
        %1750 = vmatpush1.bf16.xpose.msra.mxu0 0
        %1751 = vmatprep.subr.bf16.mxu0 0
        %1752 = vmatpush1.bf16.xpose.msra.mxu0 0
        %1753 = vmatprep.subr.bf16.mxu0 0
        %1754 = vmatpush1.bf16.xpose.msra.mxu0 0
        %1755 = vmatprep.subr.bf16.mxu0 0
        %1756 = vmatpush1.bf16.xpose.msra.mxu0 0
        %1757 = vmatprep.subr.bf16.mxu0 0
        %1758 = vmatpush1.bf16.xpose.msra.mxu0 0
        %1759 = vmatprep.subr.bf16.mxu0 0
        %1760 = vmatpush1.bf16.xpose.msra.mxu0 0
        %1761 = vmatprep.subr.bf16.mxu0 0
        %1762 = vmatpush1.bf16.xpose.msra.mxu0 0
        %1763 = vmatprep.subr.bf16.mxu0 0
        %1764 = vmatpush1.bf16.xpose.msra.mxu0 0
        %1765 = vmatprep.subr.bf16.mxu0 0
        %1766 = vmatpush1.bf16.xpose.msra.mxu0 0
        %1767 = vmatprep.subr.bf16.mxu0 0
        %1768 = vmatpush1.bf16.xpose.msra.mxu0 0
        %1769 = vmatprep.subr.bf16.mxu0 0
        %1770 = vmatpush1.bf16.xpose.msra.mxu0 0
        %1771 = vmatprep.subr.bf16.mxu0 0
        %1772 = vmatpush1.bf16.xpose.msra.mxu0 0
        %1773 = vmatprep.subr.bf16.mxu0 0
        %1774 = vmatpush1.bf16.xpose.msra.mxu0 0
        %1775 = vmatprep.mubr.bf16.mxu0 0
        %1776 = vmatmul.mubr.bf16.gmra.mrb[0].mxu0 %v1735
        %v1777 = vpop.f32.mrb[0].mxu0
        %v1778 = vadd.f32 0.0, %v1777
        %v1779 = vpop.f32.mrb[0].mxu0
        %v1780 = vpop.f32.mrb[0].mxu0
        %v1781 = vadd.f32 0.0, %v1780
        %v1782 = vpop.f32.mrb[0].mxu0
        %1783 = vmatprep.mubr.bf16.mxu0 0
        %1784 = vmatmul.mubr.bf16.gmra.mrb[0].mxu0 %v1738
        %v1785 = vpop.f32.mrb[0].mxu0
        %v1786 = vadd.f32 0.0, %v1785
        %v1787 = vpop.f32.mrb[0].mxu0
        %v1788 = vpop.f32.mrb[0].mxu0
        %v1789 = vadd.f32 0.0, %v1788
        %v1790 = vpop.f32.mrb[0].mxu0
        %1791 = vdwg.mxu0
        %v1793 = vsel %vm1461, %v1610, 0
        %v1796 = vsel %vm1461, %v1611, 0
        %v1799 = vsel %vm1461, %v1553, 0
        %1801 = vmatprep.subr.bf16.mxu0 0
        %1802 = vmatpush1.bf16.xpose.msra.mxu0 %v1799
        %1803 = vmatprep.subr.bf16.mxu0 0
        %1804 = vmatpush1.bf16.xpose.msra.mxu0 0
        %1805 = vmatprep.subr.bf16.mxu0 0
        %1806 = vmatpush1.bf16.xpose.msra.mxu0 0
        %1807 = vmatprep.subr.bf16.mxu0 0
        %1808 = vmatpush1.bf16.xpose.msra.mxu0 0
        %1809 = vmatprep.subr.bf16.mxu0 0
        %1810 = vmatpush1.bf16.xpose.msra.mxu0 0
        %1811 = vmatprep.subr.bf16.mxu0 0
        %1812 = vmatpush1.bf16.xpose.msra.mxu0 0
        %1813 = vmatprep.subr.bf16.mxu0 0
        %1814 = vmatpush1.bf16.xpose.msra.mxu0 0
        %1815 = vmatprep.subr.bf16.mxu0 0
        %1816 = vmatpush1.bf16.xpose.msra.mxu0 0
        %1817 = vmatprep.subr.bf16.mxu0 0
        %1818 = vmatpush1.bf16.xpose.msra.mxu0 0
        %1819 = vmatprep.subr.bf16.mxu0 0
        %1820 = vmatpush1.bf16.xpose.msra.mxu0 0
        %1821 = vmatprep.subr.bf16.mxu0 0
        %1822 = vmatpush1.bf16.xpose.msra.mxu0 0
        %1823 = vmatprep.subr.bf16.mxu0 0
        %1824 = vmatpush1.bf16.xpose.msra.mxu0 0
        %1825 = vmatprep.subr.bf16.mxu0 0
        %1826 = vmatpush1.bf16.xpose.msra.mxu0 0
        %1827 = vmatprep.subr.bf16.mxu0 0
        %1828 = vmatpush1.bf16.xpose.msra.mxu0 0
        %1829 = vmatprep.subr.bf16.mxu0 0
        %1830 = vmatpush1.bf16.xpose.msra.mxu0 0
        %1831 = vmatprep.subr.bf16.mxu0 0
        %1832 = vmatpush1.bf16.xpose.msra.mxu0 0
        %1833 = vmatprep.mubr.bf16.mxu0 0
        %1834 = vmatmul.mubr.bf16.gmra.mrb[0].mxu0 %v1793
        %v1835 = vpop.f32.mrb[0].mxu0
        %v1836 = vadd.f32 0.0, %v1835
        %v1837 = vpop.f32.mrb[0].mxu0
        %v1838 = vpop.f32.mrb[0].mxu0
        %v1839 = vadd.f32 0.0, %v1838
        %v1840 = vpop.f32.mrb[0].mxu0
        %1841 = vmatprep.mubr.bf16.mxu0 0
        %1842 = vmatmul.mubr.bf16.gmra.mrb[0].mxu0 %v1796
        %v1843 = vpop.f32.mrb[0].mxu0
        %v1844 = vadd.f32 0.0, %v1843
        %v1845 = vpop.f32.mrb[0].mxu0
        %v1846 = vpop.f32.mrb[0].mxu0
        %v1847 = vadd.f32 0.0, %v1846
        %v1848 = vpop.f32.mrb[0].mxu0
        %1849 = vdwg.mxu0
        %1850 = vxpose.xlu0.b32.start [1/16] %v1662, 128
        %1851 = vxpose.xlu0.b32.cont [2/16] %v1665, 128
        %1852 = vxpose.xlu0.b32.cont [3/16] %v1670, 128
        %1853 = vxpose.xlu0.b32.cont [4/16] %v1673, 128
        %1854 = vxpose.xlu0.b32.cont [5/16] 0.0, 128
        %1855 = vxpose.xlu0.b32.cont [6/16] 0.0, 128
        %1856 = vxpose.xlu0.b32.cont [7/16] 0.0, 128
        %1857 = vxpose.xlu0.b32.cont [8/16] 0.0, 128
        %1858 = vxpose.xlu0.b32.cont [9/16] 0.0, 128
        %1859 = vxpose.xlu0.b32.cont [10/16] 0.0, 128
        %1860 = vxpose.xlu0.b32.cont [11/16] 0.0, 128
        %1861 = vxpose.xlu0.b32.cont [12/16] 0.0, 128
        %1862 = vxpose.xlu0.b32.cont [13/16] 0.0, 128
        %1863 = vxpose.xlu0.b32.cont [14/16] 0.0, 128
        %1864 = vxpose.xlu0.b32.cont [15/16] 0.0, 128
        %1865 = vxpose.xlu0.b32.end [16/16] 0.0, 128
        %v1866 = vpop.trf.xlu0
        %v1867 = vpop.trf.xlu0
        %v1868 = vpop.trf.xlu0
        %v1869 = vpop.trf.xlu0
        %v1870 = vpop.trf.xlu0
        %v1871 = vpop.trf.xlu0
        %v1872 = vpop.trf.xlu0
        %v1873 = vpop.trf.xlu0
        %v1874 = vpop.trf.xlu0
        %v1875 = vpop.trf.xlu0
        %v1876 = vpop.trf.xlu0
        %v1877 = vpop.trf.xlu0
        %v1878 = vpop.trf.xlu0
        %v1879 = vpop.trf.xlu0
        %v1880 = vpop.trf.xlu0
        %v1881 = vpop.trf.xlu0
        %1882 = vxpose.xlu0.b32.start [1/16] %v1720, 128
        %1883 = vxpose.xlu0.b32.cont [2/16] %v1723, 128
        %1884 = vxpose.xlu0.b32.cont [3/16] %v1728, 128
        %1885 = vxpose.xlu0.b32.cont [4/16] %v1731, 128
        %1886 = vxpose.xlu0.b32.cont [5/16] 0.0, 128
        %1887 = vxpose.xlu0.b32.cont [6/16] 0.0, 128
        %1888 = vxpose.xlu0.b32.cont [7/16] 0.0, 128
        %1889 = vxpose.xlu0.b32.cont [8/16] 0.0, 128
        %1890 = vxpose.xlu0.b32.cont [9/16] 0.0, 128
        %1891 = vxpose.xlu0.b32.cont [10/16] 0.0, 128
        %1892 = vxpose.xlu0.b32.cont [11/16] 0.0, 128
        %1893 = vxpose.xlu0.b32.cont [12/16] 0.0, 128
        %1894 = vxpose.xlu0.b32.cont [13/16] 0.0, 128
        %1895 = vxpose.xlu0.b32.cont [14/16] 0.0, 128
        %1896 = vxpose.xlu0.b32.cont [15/16] 0.0, 128
        %1897 = vxpose.xlu0.b32.end [16/16] 0.0, 128
        %v1898 = vpop.trf.xlu0
        %v1899 = vpop.trf.xlu0
        %v1900 = vpop.trf.xlu0
        %v1901 = vpop.trf.xlu0
        %v1902 = vpop.trf.xlu0
        %v1903 = vpop.trf.xlu0
        %v1904 = vpop.trf.xlu0
        %v1905 = vpop.trf.xlu0
        %v1906 = vpop.trf.xlu0
        %v1907 = vpop.trf.xlu0
        %v1908 = vpop.trf.xlu0
        %v1909 = vpop.trf.xlu0
        %v1910 = vpop.trf.xlu0
        %v1911 = vpop.trf.xlu0
        %v1912 = vpop.trf.xlu0
        %v1913 = vpop.trf.xlu0
        %1914 = vxpose.xlu0.b32.start [1/16] %v1778, 128
        %1915 = vxpose.xlu0.b32.cont [2/16] %v1781, 128
        %1916 = vxpose.xlu0.b32.cont [3/16] %v1786, 128
        %1917 = vxpose.xlu0.b32.cont [4/16] %v1789, 128
        %1918 = vxpose.xlu0.b32.cont [5/16] 0.0, 128
        %1919 = vxpose.xlu0.b32.cont [6/16] 0.0, 128
        %1920 = vxpose.xlu0.b32.cont [7/16] 0.0, 128
        %1921 = vxpose.xlu0.b32.cont [8/16] 0.0, 128
        %1922 = vxpose.xlu0.b32.cont [9/16] 0.0, 128
        %1923 = vxpose.xlu0.b32.cont [10/16] 0.0, 128
        %1924 = vxpose.xlu0.b32.cont [11/16] 0.0, 128
        %1925 = vxpose.xlu0.b32.cont [12/16] 0.0, 128
        %1926 = vxpose.xlu0.b32.cont [13/16] 0.0, 128
        %1927 = vxpose.xlu0.b32.cont [14/16] 0.0, 128
        %1928 = vxpose.xlu0.b32.cont [15/16] 0.0, 128
        %1929 = vxpose.xlu0.b32.end [16/16] 0.0, 128
        %v1930 = vpop.trf.xlu0
        %v1931 = vpop.trf.xlu0
        %v1932 = vpop.trf.xlu0
        %v1933 = vpop.trf.xlu0
        %v1934 = vpop.trf.xlu0
        %v1935 = vpop.trf.xlu0
        %v1936 = vpop.trf.xlu0
        %v1937 = vpop.trf.xlu0
        %v1938 = vpop.trf.xlu0
        %v1939 = vpop.trf.xlu0
        %v1940 = vpop.trf.xlu0
        %v1941 = vpop.trf.xlu0
        %v1942 = vpop.trf.xlu0
        %v1943 = vpop.trf.xlu0
        %v1944 = vpop.trf.xlu0
        %v1945 = vpop.trf.xlu0
        %1946 = vxpose.xlu0.b32.start [1/16] %v1836, 128
        %1947 = vxpose.xlu0.b32.cont [2/16] %v1839, 128
        %1948 = vxpose.xlu0.b32.cont [3/16] %v1844, 128
        %1949 = vxpose.xlu0.b32.cont [4/16] %v1847, 128
        %1950 = vxpose.xlu0.b32.cont [5/16] 0.0, 128
        %1951 = vxpose.xlu0.b32.cont [6/16] 0.0, 128
        %1952 = vxpose.xlu0.b32.cont [7/16] 0.0, 128
        %1953 = vxpose.xlu0.b32.cont [8/16] 0.0, 128
        %1954 = vxpose.xlu0.b32.cont [9/16] 0.0, 128
        %1955 = vxpose.xlu0.b32.cont [10/16] 0.0, 128
        %1956 = vxpose.xlu0.b32.cont [11/16] 0.0, 128
        %1957 = vxpose.xlu0.b32.cont [12/16] 0.0, 128
        %1958 = vxpose.xlu0.b32.cont [13/16] 0.0, 128
        %1959 = vxpose.xlu0.b32.cont [14/16] 0.0, 128
        %1960 = vxpose.xlu0.b32.cont [15/16] 0.0, 128
        %1961 = vxpose.xlu0.b32.end [16/16] 0.0, 128
        %v1962 = vpop.trf.xlu0
        %v1963 = vpop.trf.xlu0
        %v1964 = vpop.trf.xlu0
        %v1965 = vpop.trf.xlu0
        %v1966 = vpop.trf.xlu0
        %v1967 = vpop.trf.xlu0
        %v1968 = vpop.trf.xlu0
        %v1969 = vpop.trf.xlu0
        %v1970 = vpop.trf.xlu0
        %v1971 = vpop.trf.xlu0
        %v1972 = vpop.trf.xlu0
        %v1973 = vpop.trf.xlu0
        %v1974 = vpop.trf.xlu0
        %v1975 = vpop.trf.xlu0
        %v1976 = vpop.trf.xlu0
        %v1977 = vpop.trf.xlu0
        %v1978 = vcombine.low %v1866, %v1930
        %v1979 = vcombine.high %v1866, %v1930
        %v1981 = vunpack.c.l.s4 1983009808
        %v1982 = vunpack.c.0.s8 %v1981
        %v1983 = vlaneseq
        %v1984 = vshrl.u32 %v1983, 7
        %v1985 = vsub.s32 %v1982, %v1984
        %v1986 = vrot.slane %v1978, %v1985
        %v1988 = vunpack.c.l.s4 1983009808
        %v1989 = vunpack.c.0.s8 %v1988
        %v1990 = vlaneseq
        %v1991 = vshrl.u32 %v1990, 7
        %v1992 = vsub.s32 %v1989, %v1991
        %v1993 = vrot.slane %v1979, %v1992
        %v1994 = vcombine.low %v1898, %v1962
        %v1995 = vcombine.high %v1898, %v1962
        %v1997 = vunpack.c.l.s4 1983009808
        %v1998 = vunpack.c.0.s8 %v1997
        %v1999 = vlaneseq
        %v2000 = vshrl.u32 %v1999, 7
        %v2001 = vsub.s32 %v1998, %v2000
        %v2002 = vrot.slane %v1994, %v2001
        %v2004 = vunpack.c.l.s4 1983009808
        %v2005 = vunpack.c.0.s8 %v2004
        %v2006 = vlaneseq
        %v2007 = vshrl.u32 %v2006, 7
        %v2008 = vsub.s32 %v2005, %v2007
        %v2009 = vrot.slane %v1995, %v2008
        %v2010 = vcombine.low %v1986, %v2002
        %v2011 = vcombine.high %v1986, %v2002
        %v2013 = vunpack.c.l.s4 1934713408
        %v2014 = vunpack.c.0.s8 %v2013
        %v2015 = vlaneseq
        %v2016 = vshrl.u32 %v2015, 7
        %v2017 = vsub.s32 %v2014, %v2016
        %v2018 = vrot.slane %v2010, %v2017
        %v2020 = vunpack.c.l.s4 1934713408
        %v2021 = vunpack.c.0.s8 %v2020
        %v2022 = vlaneseq
        %v2023 = vshrl.u32 %v2022, 7
        %v2024 = vsub.s32 %v2021, %v2023
        %v2025 = vrot.slane %v2011, %v2024
        %v2026 = vcombine.low %v1993, %v2009
        %v2027 = vcombine.high %v1993, %v2009
        %v2029 = vunpack.c.l.s4 1934713408
        %v2030 = vunpack.c.0.s8 %v2029
        %v2031 = vlaneseq
        %v2032 = vshrl.u32 %v2031, 7
        %v2033 = vsub.s32 %v2030, %v2032
        %v2034 = vrot.slane %v2026, %v2033
        %v2036 = vunpack.c.l.s4 1934713408
        %v2037 = vunpack.c.0.s8 %v2036
        %v2038 = vlaneseq
        %v2039 = vshrl.u32 %v2038, 7
        %v2040 = vsub.s32 %v2037, %v2039
        %v2041 = vrot.slane %v2027, %v2040
        %v2042 = vcombine.high %v2018, 0.0
        %v2043 = vcombine.high %v2025, 0.0
        %v2044 = vcombine.high %v2034, 0.0
        %v2045 = vcombine.high %v2041, 0.0
        %v2046 = vcombine.low %v1867, %v1931
        %v2047 = vcombine.high %v1867, %v1931
        %v2049 = vunpack.c.l.s4 1983009808
        %v2050 = vunpack.c.0.s8 %v2049
        %v2051 = vlaneseq
        %v2052 = vshrl.u32 %v2051, 7
        %v2053 = vsub.s32 %v2050, %v2052
        %v2054 = vrot.slane %v2046, %v2053
        %v2056 = vunpack.c.l.s4 1983009808
        %v2057 = vunpack.c.0.s8 %v2056
        %v2058 = vlaneseq
        %v2059 = vshrl.u32 %v2058, 7
        %v2060 = vsub.s32 %v2057, %v2059
        %v2061 = vrot.slane %v2047, %v2060
        %v2062 = vcombine.low %v1899, %v1963
        %v2063 = vcombine.high %v1899, %v1963
        %v2065 = vunpack.c.l.s4 1983009808
        %v2066 = vunpack.c.0.s8 %v2065
        %v2067 = vlaneseq
        %v2068 = vshrl.u32 %v2067, 7
        %v2069 = vsub.s32 %v2066, %v2068
        %v2070 = vrot.slane %v2062, %v2069
        %v2072 = vunpack.c.l.s4 1983009808
        %v2073 = vunpack.c.0.s8 %v2072
        %v2074 = vlaneseq
        %v2075 = vshrl.u32 %v2074, 7
        %v2076 = vsub.s32 %v2073, %v2075
        %v2077 = vrot.slane %v2063, %v2076
        %v2078 = vcombine.low %v2054, %v2070
        %v2079 = vcombine.high %v2054, %v2070
        %v2081 = vunpack.c.l.s4 1934713408
        %v2082 = vunpack.c.0.s8 %v2081
        %v2083 = vlaneseq
        %v2084 = vshrl.u32 %v2083, 7
        %v2085 = vsub.s32 %v2082, %v2084
        %v2086 = vrot.slane %v2078, %v2085
        %v2088 = vunpack.c.l.s4 1934713408
        %v2089 = vunpack.c.0.s8 %v2088
        %v2090 = vlaneseq
        %v2091 = vshrl.u32 %v2090, 7
        %v2092 = vsub.s32 %v2089, %v2091
        %v2093 = vrot.slane %v2079, %v2092
        %v2094 = vcombine.low %v2061, %v2077
        %v2095 = vcombine.high %v2061, %v2077
        %v2097 = vunpack.c.l.s4 1934713408
        %v2098 = vunpack.c.0.s8 %v2097
        %v2099 = vlaneseq
        %v2100 = vshrl.u32 %v2099, 7
        %v2101 = vsub.s32 %v2098, %v2100
        %v2102 = vrot.slane %v2094, %v2101
        %v2104 = vunpack.c.l.s4 1934713408
        %v2105 = vunpack.c.0.s8 %v2104
        %v2106 = vlaneseq
        %v2107 = vshrl.u32 %v2106, 7
        %v2108 = vsub.s32 %v2105, %v2107
        %v2109 = vrot.slane %v2095, %v2108
        %v2110 = vcombine.high %v2086, 0.0
        %v2111 = vcombine.high %v2093, 0.0
        %v2112 = vcombine.high %v2102, 0.0
        %v2113 = vcombine.high %v2109, 0.0
        %v2114 = vpack.c.bf16 %v2018, %v2018
        %v2115 = vpack.c.bf16 %v2042, %v2042
        %v2116 = vpack.c.bf16 %v2025, %v2025
        %v2117 = vpack.c.bf16 %v2043, %v2043
        %v2118 = vpack.c.bf16 %v2034, %v2034
        %v2119 = vpack.c.bf16 %v2044, %v2044
        %v2120 = vpack.c.bf16 %v2041, %v2041
        %v2121 = vpack.c.bf16 %v2045, %v2045
        %v2122 = vpack.c.bf16 %v2086, %v2086
        %v2123 = vpack.c.bf16 %v2110, %v2110
        %v2124 = vpack.c.bf16 %v2093, %v2093
        %v2125 = vpack.c.bf16 %v2111, %v2111
        %v2126 = vpack.c.bf16 %v2102, %v2102
        %v2127 = vpack.c.bf16 %v2112, %v2112
        %v2128 = vpack.c.bf16 %v2109, %v2109
        %v2129 = vpack.c.bf16 %v2113, %v2113
        %v2130 = vcombine.low %v2114, %v2118
        %v2132 = vunpack.c.l.s4 1983009808
        %v2133 = vunpack.c.0.s8 %v2132
        %v2134 = vlaneseq
        %v2135 = vshrl.u32 %v2134, 7
        %v2136 = vsub.s32 %v2133, %v2135
        %v2137 = vrot.slane %v2130, %v2136
        %v2138 = vcombine.low %v2116, %v2120
        %v2140 = vunpack.c.l.s4 1983009808
        %v2141 = vunpack.c.0.s8 %v2140
        %v2142 = vlaneseq
        %v2143 = vshrl.u32 %v2142, 7
        %v2144 = vsub.s32 %v2141, %v2143
        %v2145 = vrot.slane %v2138, %v2144
        %v2146 = vcombine.low %v2122, %v2126
        %v2148 = vunpack.c.l.s4 1983009808
        %v2149 = vunpack.c.0.s8 %v2148
        %v2150 = vlaneseq
        %v2151 = vshrl.u32 %v2150, 7
        %v2152 = vsub.s32 %v2149, %v2151
        %v2153 = vrot.slane %v2146, %v2152
        %v2154 = vcombine.low %v2124, %v2128
        %v2156 = vunpack.c.l.s4 1983009808
        %v2157 = vunpack.c.0.s8 %v2156
        %v2158 = vlaneseq
        %v2159 = vshrl.u32 %v2158, 7
        %v2160 = vsub.s32 %v2157, %v2159
        %v2161 = vrot.slane %v2154, %v2160
        %v2162 = vcombine.low %v2137, %v2145
        %v2164 = vunpack.c.l.s4 1934713408
        %v2165 = vunpack.c.0.s8 %v2164
        %v2166 = vlaneseq
        %v2167 = vshrl.u32 %v2166, 7
        %v2168 = vsub.s32 %v2165, %v2167
        %v2169 = vrot.slane %v2162, %v2168
        %v2170 = vcombine.low %v2153, %v2161
        %v2172 = vunpack.c.l.s4 1934713408
        %v2173 = vunpack.c.0.s8 %v2172
        %v2174 = vlaneseq
        %v2175 = vshrl.u32 %v2174, 7
        %v2176 = vsub.s32 %v2173, %v2175
        %v2177 = vrot.slane %v2170, %v2176
        %v2178 = vcombine.low %v2169, %v2177
        %v2179 = vcombine.high %v2169, %v2177
        %v2180 = vcombine.low %v2115, %v2119
        %v2182 = vunpack.c.l.s4 1983009808
        %v2183 = vunpack.c.0.s8 %v2182
        %v2184 = vlaneseq
        %v2185 = vshrl.u32 %v2184, 7
        %v2186 = vsub.s32 %v2183, %v2185
        %v2187 = vrot.slane %v2180, %v2186
        %v2188 = vcombine.low %v2117, %v2121
        %v2190 = vunpack.c.l.s4 1983009808
        %v2191 = vunpack.c.0.s8 %v2190
        %v2192 = vlaneseq
        %v2193 = vshrl.u32 %v2192, 7
        %v2194 = vsub.s32 %v2191, %v2193
        %v2195 = vrot.slane %v2188, %v2194
        %v2196 = vcombine.low %v2123, %v2127
        %v2198 = vunpack.c.l.s4 1983009808
        %v2199 = vunpack.c.0.s8 %v2198
        %v2200 = vlaneseq
        %v2201 = vshrl.u32 %v2200, 7
        %v2202 = vsub.s32 %v2199, %v2201
        %v2203 = vrot.slane %v2196, %v2202
        %v2204 = vcombine.low %v2125, %v2129
        %v2206 = vunpack.c.l.s4 1983009808
        %v2207 = vunpack.c.0.s8 %v2206
        %v2208 = vlaneseq
        %v2209 = vshrl.u32 %v2208, 7
        %v2210 = vsub.s32 %v2207, %v2209
        %v2211 = vrot.slane %v2204, %v2210
        %v2212 = vcombine.low %v2187, %v2195
        %v2214 = vunpack.c.l.s4 1934713408
        %v2215 = vunpack.c.0.s8 %v2214
        %v2216 = vlaneseq
        %v2217 = vshrl.u32 %v2216, 7
        %v2218 = vsub.s32 %v2215, %v2217
        %v2219 = vrot.slane %v2212, %v2218
        %v2220 = vcombine.low %v2203, %v2211
        %v2222 = vunpack.c.l.s4 1934713408
        %v2223 = vunpack.c.0.s8 %v2222
        %v2224 = vlaneseq
        %v2225 = vshrl.u32 %v2224, 7
        %v2226 = vsub.s32 %v2223, %v2225
        %v2227 = vrot.slane %v2220, %v2226
        %v2228 = vcombine.low %v2219, %v2227
        %v2229 = vcombine.high %v2219, %v2227
        %v2232 = vpack.i.b16 %v2228, %v2178
        %v2233 = vshrl.u32 %v2178, 16
        %v2234 = vshrl.u32 %v2228, 16
        %v2235 = vpack.i.b16 %v2234, %v2233
        %v2238 = vpack.i.b16 %v2229, %v2179
        %v2239 = vshrl.u32 %v2179, 16
        %v2240 = vshrl.u32 %v2229, 16
        %v2241 = vpack.i.b16 %v2240, %v2239
        %2242 = vrot.lane.b32.xlu0 %v2235, 32
        %v2243 = vpop.permute.xlu0 %2242
        %2244 = vrot.lane.b32.xlu0 %v2238, 64
        %v2245 = vpop.permute.xlu0 %2244
        %2246 = vrot.lane.b32.xlu0 %v2241, 96
        %v2247 = vpop.permute.xlu0 %2246
        %v2250 = vsel %vm1266, %v2232, %v2243
        %vm2251 = vcmask 523264
        %v2253 = vsel %vm2251, %v2250, %v2245
        %vm2254 = vcmask 785408
        %v2256 = vsel %vm2254, %v2253, %v2247
        %v2258 = vld [vmem:[#allocation16] sm:$0xf]
        %v2259 = vld [vmem:[#allocation16 + $0x4] sm:$0xf]
        %v2260 = vld [vmem:[#allocation16 + $0x8] sm:$0xf]
        %v2261 = vld [vmem:[#allocation16 + $0xc] sm:$0xf]
        %v2262 = vld [vmem:[#allocation16 + $0x10] sm:$0xf]
        %v2263 = vld [vmem:[#allocation16 + $0x14] sm:$0xf]
        %v2264 = vld [vmem:[#allocation16 + $0x18] sm:$0xf]
        %v2265 = vld [vmem:[#allocation16 + $0x1c] sm:$0xf]
        %v2266 = vld [vmem:[#allocation16 + $0x20] sm:$0xf]
        %v2267 = vld [vmem:[#allocation16 + $0x24] sm:$0xf]
        %v2268 = vld [vmem:[#allocation16 + $0x28] sm:$0xf]
        %v2269 = vld [vmem:[#allocation16 + $0x2c] sm:$0xf]
        %v2270 = vld [vmem:[#allocation16 + $0x30] sm:$0xf]
        %v2271 = vld [vmem:[#allocation16 + $0x34] sm:$0xf]
        %v2272 = vld [vmem:[#allocation16 + $0x38] sm:$0xf]
        %v2273 = vld [vmem:[#allocation16 + $0x3c] sm:$0xf]
        %v2274 = vld [vmem:[%s10] sm:$0x1]
        %v2276 = vlaneseq
        %v2277 = vshrl.u32 %v2276, 7
        %v2278 = vsub.s32 0, %v2277
        %v2279 = vrot.slane %v2274, %v2278
        %v2297 = vunpack.c.l.b16 %v2258
        %v2298 = vunpack.c.l.b16 %v2259
        %v2299 = vunpack.c.l.b16 %v2260
        %v2300 = vunpack.c.l.b16 %v2261
        %v2301 = vunpack.c.l.b16 %v2262
        %v2302 = vunpack.c.l.b16 %v2263
        %v2303 = vunpack.c.l.b16 %v2264
        %v2304 = vunpack.c.l.b16 %v2265
        %v2305 = vunpack.c.l.b16 %v2266
        %v2306 = vunpack.c.l.b16 %v2267
        %v2307 = vunpack.c.l.b16 %v2268
        %v2308 = vunpack.c.l.b16 %v2269
        %v2309 = vunpack.c.l.b16 %v2270
        %v2310 = vunpack.c.l.b16 %v2271
        %v2311 = vunpack.c.l.b16 %v2272
        %v2312 = vunpack.c.l.b16 %v2273
        %v2313 = vpack.c.b16 %v2298, %v2297
        %v2314 = vpack.c.b16 %v2300, %v2299
        %v2315 = vpack.c.b16 %v2302, %v2301
        %v2316 = vpack.c.b16 %v2304, %v2303
        %v2317 = vpack.c.b16 %v2306, %v2305
        %v2318 = vpack.c.b16 %v2308, %v2307
        %v2319 = vpack.c.b16 %v2310, %v2309
        %v2320 = vpack.c.b16 %v2312, %v2311
        %2329 = vmatprep.subr.bf16.mxu0 0
        %2330 = vmatpush1.bf16.msra.mxu0 %v2313
        %2331 = vmatprep.subr.bf16.mxu0 0
        %2332 = vmatpush1.bf16.msra.mxu0 %v2314
        %2333 = vmatprep.subr.bf16.mxu0 0
        %2334 = vmatpush1.bf16.msra.mxu0 %v2315
        %2335 = vmatprep.subr.bf16.mxu0 0
        %2336 = vmatpush1.bf16.msra.mxu0 %v2316
        %2337 = vmatprep.subr.bf16.mxu0 0
        %2338 = vmatpush1.bf16.msra.mxu0 %v2317
        %2339 = vmatprep.subr.bf16.mxu0 0
        %2340 = vmatpush1.bf16.msra.mxu0 %v2318
        %2341 = vmatprep.subr.bf16.mxu0 0
        %2342 = vmatpush1.bf16.msra.mxu0 %v2319
        %2343 = vmatprep.subr.bf16.mxu0 0
        %2344 = vmatpush1.bf16.msra.mxu0 %v2320
        %2345 = vmatprep.subr.bf16.mxu0 0
        %2346 = vmatpush1.bf16.msra.mxu0 0
        %2347 = vmatprep.subr.bf16.mxu0 0
        %2348 = vmatpush1.bf16.msra.mxu0 0
        %2349 = vmatprep.subr.bf16.mxu0 0
        %2350 = vmatpush1.bf16.msra.mxu0 0
        %2351 = vmatprep.subr.bf16.mxu0 0
        %2352 = vmatpush1.bf16.msra.mxu0 0
        %2353 = vmatprep.subr.bf16.mxu0 0
        %2354 = vmatpush1.bf16.msra.mxu0 0
        %2355 = vmatprep.subr.bf16.mxu0 0
        %2356 = vmatpush1.bf16.msra.mxu0 0
        %2357 = vmatprep.subr.bf16.mxu0 0
        %2358 = vmatpush1.bf16.msra.mxu0 0
        %2359 = vmatprep.subr.bf16.mxu0 0
        %2360 = vmatpush1.bf16.msra.mxu0 0
        %2361 = vmatprep.mubr.bf16.mxu0 0
        %2362 = vmatmul.mubr.bf16.gmra.mrb[0].mxu0 %v2256
        %v2363 = vpop.f32.mrb[0].mxu0
        %v2364 = vadd.f32 %v2279, %v2363
        %v2365 = vpop.f32.mrb[0].mxu0
        %v2366 = vpop.f32.mrb[0].mxu0
        %v2367 = vadd.f32 %v2279, %v2366
        %v2368 = vpop.f32.mrb[0].mxu0
        %2369 = vdwg.mxu0
        %v2370 = vadd.f32 %v2364, %v813
        %v2371 = vadd.f32 %v2367, %v814
        %v2372 = vld [vmem:[%s11] sm:$0x1]
        %v2373 = vld [vmem:[%s12] sm:$0x1]
        %2374 = vadd.xlane.f32.xlu0 %v2370
        %v2375 = vpop.xlane.xlu0 %2374
        %2376 = vadd.xlane.f32.xlu0 %v2371
        %v2377 = vpop.xlane.xlu0 %2376
        %v2378 = vrcp.pop 128.0
        %v2379 = vmul.f32 %v2375, %v2378
        %v2380 = vmul.f32 %v2377, %v2378
        %v2381 = vsub.f32 %v2370, %v2379
        %v2382 = vsub.f32 %v2371, %v2380
        %v2383 = vmul.f32 %v2381, %v2381
        %v2384 = vmul.f32 %v2382, %v2382
        %2385 = vadd.xlane.f32.xlu0 %v2383
        %v2386 = vpop.xlane.xlu0 %2385
        %2387 = vadd.xlane.f32.xlu0 %v2384
        %v2388 = vpop.xlane.xlu0 %2387
        %v2389 = vmul.f32 %v2386, %v2378
        %v2390 = vmul.f32 %v2388, %v2378
        %v2391 = vadd.f32 %v2389, 1e-05
        %v2392 = vadd.f32 %v2390, 1e-05
        %v2393 = vrsqrt.pop %v2391
        %v2394 = vrsqrt.pop %v2392
        %v2395 = vmul.f32 %v2381, %v2393
        %v2396 = vmul.f32 %v2382, %v2394
        %v2398 = vlaneseq
        %v2399 = vshrl.u32 %v2398, 7
        %v2400 = vsub.s32 0, %v2399
        %v2401 = vrot.slane %v2372, %v2400
        %v2403 = vmul.f32 %v2395, %v2401
        %v2404 = vmul.f32 %v2396, %v2401
        %v2406 = vlaneseq
        %v2407 = vshrl.u32 %v2406, 7
        %v2408 = vsub.s32 0, %v2407
        %v2409 = vrot.slane %v2373, %v2408
        %v2411 = vadd.f32 %v2403, %v2409
        %v2412 = vadd.f32 %v2404, %v2409
        %v2413 = vpack.c.bf16 %v2412, %v2411
        %v2414 = vld [vmem:[#allocation17] sm:$0xff]
        %v2415 = vld [vmem:[#allocation17 + $0x8] sm:$0xff]
        %v2416 = vld [vmem:[#allocation17 + $0x10] sm:$0xff]
        %v2417 = vld [vmem:[#allocation17 + $0x18] sm:$0xff]
        %v2418 = vld [vmem:[#allocation17 + $0x20] sm:$0xff]
        %v2419 = vld [vmem:[#allocation17 + $0x28] sm:$0xff]
        %v2420 = vld [vmem:[#allocation17 + $0x30] sm:$0xff]
        %v2421 = vld [vmem:[#allocation17 + $0x38] sm:$0xff]
        %v2422 = vld [vmem:[#allocation17 + $0x40] sm:$0xff]
        %v2423 = vld [vmem:[#allocation17 + $0x48] sm:$0xff]
        %v2424 = vld [vmem:[#allocation17 + $0x50] sm:$0xff]
        %v2425 = vld [vmem:[#allocation17 + $0x58] sm:$0xff]
        %v2426 = vld [vmem:[#allocation17 + $0x60] sm:$0xff]
        %v2427 = vld [vmem:[#allocation17 + $0x68] sm:$0xff]
        %v2428 = vld [vmem:[#allocation17 + $0x70] sm:$0xff]
        %v2429 = vld [vmem:[#allocation17 + $0x78] sm:$0xff]
        %v2430 = vld [vmem:[%s14] sm:$0x3]
        %v2432 = vlaneseq
        %v2433 = vshrl.u32 %v2432, 7
        %v2434 = vsub.s32 0, %v2433
        %v2435 = vrot.slane %v2430, %v2434
        %v2436 = vlaneseq
        %v2437 = vshrl.u32 %v2436, 7
        %v2438 = vsub.s32 1, %v2437
        %v2439 = vrot.slane %v2430, %v2438
        %v2458 = vunpack.c.l.b16 %v2414
        %v2459 = vunpack.c.h.b16 %v2414
        %v2460 = vunpack.c.l.b16 %v2415
        %v2461 = vunpack.c.h.b16 %v2415
        %v2462 = vunpack.c.l.b16 %v2416
        %v2463 = vunpack.c.h.b16 %v2416
        %v2464 = vunpack.c.l.b16 %v2417
        %v2465 = vunpack.c.h.b16 %v2417
        %v2466 = vunpack.c.l.b16 %v2418
        %v2467 = vunpack.c.h.b16 %v2418
        %v2468 = vunpack.c.l.b16 %v2419
        %v2469 = vunpack.c.h.b16 %v2419
        %v2470 = vunpack.c.l.b16 %v2420
        %v2471 = vunpack.c.h.b16 %v2420
        %v2472 = vunpack.c.l.b16 %v2421
        %v2473 = vunpack.c.h.b16 %v2421
        %v2474 = vunpack.c.l.b16 %v2422
        %v2475 = vunpack.c.h.b16 %v2422
        %v2476 = vunpack.c.l.b16 %v2423
        %v2477 = vunpack.c.h.b16 %v2423
        %v2478 = vunpack.c.l.b16 %v2424
        %v2479 = vunpack.c.h.b16 %v2424
        %v2480 = vunpack.c.l.b16 %v2425
        %v2481 = vunpack.c.h.b16 %v2425
        %v2482 = vunpack.c.l.b16 %v2426
        %v2483 = vunpack.c.h.b16 %v2426
        %v2484 = vunpack.c.l.b16 %v2427
        %v2485 = vunpack.c.h.b16 %v2427
        %v2486 = vunpack.c.l.b16 %v2428
        %v2487 = vunpack.c.h.b16 %v2428
        %v2488 = vunpack.c.l.b16 %v2429
        %v2489 = vunpack.c.h.b16 %v2429
        %v2490 = vpack.c.b16 %v2460, %v2458
        %v2491 = vpack.c.b16 %v2461, %v2459
        %v2492 = vpack.c.b16 %v2464, %v2462
        %v2493 = vpack.c.b16 %v2465, %v2463
        %v2494 = vpack.c.b16 %v2468, %v2466
        %v2495 = vpack.c.b16 %v2469, %v2467
        %v2496 = vpack.c.b16 %v2472, %v2470
        %v2497 = vpack.c.b16 %v2473, %v2471
        %v2498 = vpack.c.b16 %v2476, %v2474
        %v2499 = vpack.c.b16 %v2477, %v2475
        %v2500 = vpack.c.b16 %v2480, %v2478
        %v2501 = vpack.c.b16 %v2481, %v2479
        %v2502 = vpack.c.b16 %v2484, %v2482
        %v2503 = vpack.c.b16 %v2485, %v2483
        %v2504 = vpack.c.b16 %v2488, %v2486
        %v2505 = vpack.c.b16 %v2489, %v2487
        %2522 = vmatprep.subr.bf16.mxu0 %v2491
        %2523 = vmatpush1.bf16.msra.mxu0 %v2490
        %2524 = vmatprep.subr.bf16.mxu0 %v2493
        %2525 = vmatpush1.bf16.msra.mxu0 %v2492
        %2526 = vmatprep.subr.bf16.mxu0 %v2495
        %2527 = vmatpush1.bf16.msra.mxu0 %v2494
        %2528 = vmatprep.subr.bf16.mxu0 %v2497
        %2529 = vmatpush1.bf16.msra.mxu0 %v2496
        %2530 = vmatprep.subr.bf16.mxu0 %v2499
        %2531 = vmatpush1.bf16.msra.mxu0 %v2498
        %2532 = vmatprep.subr.bf16.mxu0 %v2501
        %2533 = vmatpush1.bf16.msra.mxu0 %v2500
        %2534 = vmatprep.subr.bf16.mxu0 %v2503
        %2535 = vmatpush1.bf16.msra.mxu0 %v2502
        %2536 = vmatprep.subr.bf16.mxu0 %v2505
        %2537 = vmatpush1.bf16.msra.mxu0 %v2504
        %2538 = vmatprep.subr.bf16.mxu0 0
        %2539 = vmatpush1.bf16.msra.mxu0 0
        %2540 = vmatprep.subr.bf16.mxu0 0
        %2541 = vmatpush1.bf16.msra.mxu0 0
        %2542 = vmatprep.subr.bf16.mxu0 0
        %2543 = vmatpush1.bf16.msra.mxu0 0
        %2544 = vmatprep.subr.bf16.mxu0 0
        %2545 = vmatpush1.bf16.msra.mxu0 0
        %2546 = vmatprep.subr.bf16.mxu0 0
        %2547 = vmatpush1.bf16.msra.mxu0 0
        %2548 = vmatprep.subr.bf16.mxu0 0
        %2549 = vmatpush1.bf16.msra.mxu0 0
        %2550 = vmatprep.subr.bf16.mxu0 0
        %2551 = vmatpush1.bf16.msra.mxu0 0
        %2552 = vmatprep.subr.bf16.mxu0 0
        %2553 = vmatpush1.bf16.msra.mxu0 0
        %2554 = vmatprep.mubr.bf16.mxu0 0
        %2555 = vmatmul.mubr.bf16.gmra.mrb[0].mxu0 %v2413
        %v2556 = vpop.f32.mrb[0].mxu0
        %v2557 = vadd.f32 %v2435, %v2556
        %v2558 = vpop.f32.mrb[0].mxu0
        %v2559 = vadd.f32 %v2439, %v2558
        %v2560 = vpop.f32.mrb[0].mxu0
        %v2561 = vadd.f32 %v2435, %v2560
        %v2562 = vpop.f32.mrb[0].mxu0
        %v2563 = vadd.f32 %v2439, %v2562
        %2564 = vdwg.mxu0
        %v2565 = vmax.f32 %v2557, 0.0
        %v2566 = vmax.f32 %v2559, 0.0
        %v2567 = vmax.f32 %v2561, 0.0
        %v2568 = vmax.f32 %v2563, 0.0
        %v2569 = vpack.c.bf16 %v2567, %v2565
        %v2570 = vpack.c.bf16 %v2568, %v2566
        %v2571 = vld [vmem:[#allocation19] sm:$0xf]
        %v2572 = vld [vmem:[#allocation19 + $0x4] sm:$0xf]
        %v2573 = vld [vmem:[#allocation19 + $0x8] sm:$0xf]
        %v2574 = vld [vmem:[#allocation19 + $0xc] sm:$0xf]
        %v2575 = vld [vmem:[#allocation19 + $0x10] sm:$0xf]
        %v2576 = vld [vmem:[#allocation19 + $0x14] sm:$0xf]
        %v2577 = vld [vmem:[#allocation19 + $0x18] sm:$0xf]
        %v2578 = vld [vmem:[#allocation19 + $0x1c] sm:$0xf]
        %v2579 = vld [vmem:[#allocation19 + $0x20] sm:$0xf]
        %v2580 = vld [vmem:[#allocation19 + $0x24] sm:$0xf]
        %v2581 = vld [vmem:[#allocation19 + $0x28] sm:$0xf]
        %v2582 = vld [vmem:[#allocation19 + $0x2c] sm:$0xf]
        %v2583 = vld [vmem:[#allocation19 + $0x30] sm:$0xf]
        %v2584 = vld [vmem:[#allocation19 + $0x34] sm:$0xf]
        %v2585 = vld [vmem:[#allocation19 + $0x38] sm:$0xf]
        %v2586 = vld [vmem:[#allocation19 + $0x3c] sm:$0xf]
        %v2587 = vld [vmem:[#allocation19 + $0x40] sm:$0xf]
        %v2588 = vld [vmem:[#allocation19 + $0x44] sm:$0xf]
        %v2589 = vld [vmem:[#allocation19 + $0x48] sm:$0xf]
        %v2590 = vld [vmem:[#allocation19 + $0x4c] sm:$0xf]
        %v2591 = vld [vmem:[#allocation19 + $0x50] sm:$0xf]
        %v2592 = vld [vmem:[#allocation19 + $0x54] sm:$0xf]
        %v2593 = vld [vmem:[#allocation19 + $0x58] sm:$0xf]
        %v2594 = vld [vmem:[#allocation19 + $0x5c] sm:$0xf]
        %v2595 = vld [vmem:[#allocation19 + $0x60] sm:$0xf]
        %v2596 = vld [vmem:[#allocation19 + $0x64] sm:$0xf]
        %v2597 = vld [vmem:[#allocation19 + $0x68] sm:$0xf]
        %v2598 = vld [vmem:[#allocation19 + $0x6c] sm:$0xf]
        %v2599 = vld [vmem:[#allocation19 + $0x70] sm:$0xf]
        %v2600 = vld [vmem:[#allocation19 + $0x74] sm:$0xf]
        %v2601 = vld [vmem:[#allocation19 + $0x78] sm:$0xf]
        %v2602 = vld [vmem:[#allocation19 + $0x7c] sm:$0xf]
        %v2603 = vld [vmem:[%s16] sm:$0x1]
        %v2605 = vlaneseq
        %v2606 = vshrl.u32 %v2605, 7
        %v2607 = vsub.s32 0, %v2606
        %v2608 = vrot.slane %v2603, %v2607
        %v2642 = vunpack.c.l.b16 %v2571
        %v2643 = vunpack.c.l.b16 %v2572
        %v2644 = vunpack.c.l.b16 %v2573
        %v2645 = vunpack.c.l.b16 %v2574
        %v2646 = vunpack.c.l.b16 %v2575
        %v2647 = vunpack.c.l.b16 %v2576
        %v2648 = vunpack.c.l.b16 %v2577
        %v2649 = vunpack.c.l.b16 %v2578
        %v2650 = vunpack.c.l.b16 %v2579
        %v2651 = vunpack.c.l.b16 %v2580
        %v2652 = vunpack.c.l.b16 %v2581
        %v2653 = vunpack.c.l.b16 %v2582
        %v2654 = vunpack.c.l.b16 %v2583
        %v2655 = vunpack.c.l.b16 %v2584
        %v2656 = vunpack.c.l.b16 %v2585
        %v2657 = vunpack.c.l.b16 %v2586
        %v2658 = vunpack.c.l.b16 %v2587
        %v2659 = vunpack.c.l.b16 %v2588
        %v2660 = vunpack.c.l.b16 %v2589
        %v2661 = vunpack.c.l.b16 %v2590
        %v2662 = vunpack.c.l.b16 %v2591
        %v2663 = vunpack.c.l.b16 %v2592
        %v2664 = vunpack.c.l.b16 %v2593
        %v2665 = vunpack.c.l.b16 %v2594
        %v2666 = vunpack.c.l.b16 %v2595
        %v2667 = vunpack.c.l.b16 %v2596
        %v2668 = vunpack.c.l.b16 %v2597
        %v2669 = vunpack.c.l.b16 %v2598
        %v2670 = vunpack.c.l.b16 %v2599
        %v2671 = vunpack.c.l.b16 %v2600
        %v2672 = vunpack.c.l.b16 %v2601
        %v2673 = vunpack.c.l.b16 %v2602
        %v2674 = vpack.c.b16 %v2643, %v2642
        %v2675 = vpack.c.b16 %v2645, %v2644
        %v2676 = vpack.c.b16 %v2647, %v2646
        %v2677 = vpack.c.b16 %v2649, %v2648
        %v2678 = vpack.c.b16 %v2651, %v2650
        %v2679 = vpack.c.b16 %v2653, %v2652
        %v2680 = vpack.c.b16 %v2655, %v2654
        %v2681 = vpack.c.b16 %v2657, %v2656
        %v2682 = vpack.c.b16 %v2659, %v2658
        %v2683 = vpack.c.b16 %v2661, %v2660
        %v2684 = vpack.c.b16 %v2663, %v2662
        %v2685 = vpack.c.b16 %v2665, %v2664
        %v2686 = vpack.c.b16 %v2667, %v2666
        %v2687 = vpack.c.b16 %v2669, %v2668
        %v2688 = vpack.c.b16 %v2671, %v2670
        %v2689 = vpack.c.b16 %v2673, %v2672
        %2706 = vmatprep.subr.bf16.mxu0 0
        %2707 = vmatpush1.bf16.msra.mxu0 %v2674
        %2708 = vmatprep.subr.bf16.mxu0 0
        %2709 = vmatpush1.bf16.msra.mxu0 %v2675
        %2710 = vmatprep.subr.bf16.mxu0 0
        %2711 = vmatpush1.bf16.msra.mxu0 %v2676
        %2712 = vmatprep.subr.bf16.mxu0 0
        %2713 = vmatpush1.bf16.msra.mxu0 %v2677
        %2714 = vmatprep.subr.bf16.mxu0 0
        %2715 = vmatpush1.bf16.msra.mxu0 %v2678
        %2716 = vmatprep.subr.bf16.mxu0 0
        %2717 = vmatpush1.bf16.msra.mxu0 %v2679
        %2718 = vmatprep.subr.bf16.mxu0 0
        %2719 = vmatpush1.bf16.msra.mxu0 %v2680
        %2720 = vmatprep.subr.bf16.mxu0 0
        %2721 = vmatpush1.bf16.msra.mxu0 %v2681
        %2722 = vmatprep.subr.bf16.mxu0 0
        %2723 = vmatpush1.bf16.msra.mxu0 %v2682
        %2724 = vmatprep.subr.bf16.mxu0 0
        %2725 = vmatpush1.bf16.msra.mxu0 %v2683
        %2726 = vmatprep.subr.bf16.mxu0 0
        %2727 = vmatpush1.bf16.msra.mxu0 %v2684
        %2728 = vmatprep.subr.bf16.mxu0 0
        %2729 = vmatpush1.bf16.msra.mxu0 %v2685
        %2730 = vmatprep.subr.bf16.mxu0 0
        %2731 = vmatpush1.bf16.msra.mxu0 %v2686
        %2732 = vmatprep.subr.bf16.mxu0 0
        %2733 = vmatpush1.bf16.msra.mxu0 %v2687
        %2734 = vmatprep.subr.bf16.mxu0 0
        %2735 = vmatpush1.bf16.msra.mxu0 %v2688
        %2736 = vmatprep.subr.bf16.mxu0 0
        %2737 = vmatpush1.bf16.msra.mxu0 %v2689
        %2738 = vmatprep.mubr.bf16.mxu0 %v2570
        %2739 = vmatmul.mubr.bf16.gmra.mrb[0].mxu0 %v2569
        %v2740 = vpop.f32.mrb[0].mxu0
        %v2741 = vadd.f32 %v2608, %v2740
        %v2742 = vpop.f32.mrb[0].mxu0
        %v2743 = vpop.f32.mrb[0].mxu0
        %v2744 = vadd.f32 %v2608, %v2743
        %v2745 = vpop.f32.mrb[0].mxu0
        %2746 = vdwg.mxu0
        %v2747 = vadd.f32 %v2741, %v2411
        %v2748 = vadd.f32 %v2744, %v2412
        %v2749 = vld [vmem:[%s17] sm:$0x1]
        %v2750 = vld [vmem:[%s18] sm:$0x1]
        %2751 = vadd.xlane.f32.xlu0 %v2747
        %v2752 = vpop.xlane.xlu0 %2751
        %2753 = vadd.xlane.f32.xlu0 %v2748
        %v2754 = vpop.xlane.xlu0 %2753
        %v2755 = vmul.f32 %v2752, %v2378
        %v2756 = vmul.f32 %v2754, %v2378
        %v2757 = vsub.f32 %v2747, %v2755
        %v2758 = vsub.f32 %v2748, %v2756
        %v2759 = vmul.f32 %v2757, %v2757
        %v2760 = vmul.f32 %v2758, %v2758
        %2761 = vadd.xlane.f32.xlu0 %v2759
        %v2762 = vpop.xlane.xlu0 %2761
        %2763 = vadd.xlane.f32.xlu0 %v2760
        %v2764 = vpop.xlane.xlu0 %2763
        %v2765 = vmul.f32 %v2762, %v2378
        %v2766 = vmul.f32 %v2764, %v2378
        %v2767 = vadd.f32 %v2765, 1e-05
        %v2768 = vadd.f32 %v2766, 1e-05
        %v2769 = vrsqrt.pop %v2767
        %v2770 = vrsqrt.pop %v2768
        %v2771 = vmul.f32 %v2757, %v2769
        %v2772 = vmul.f32 %v2758, %v2770
        %v2774 = vlaneseq
        %v2775 = vshrl.u32 %v2774, 7
        %v2776 = vsub.s32 0, %v2775
        %v2777 = vrot.slane %v2749, %v2776
        %v2779 = vmul.f32 %v2771, %v2777
        %v2780 = vmul.f32 %v2772, %v2777
        %v2782 = vlaneseq
        %v2783 = vshrl.u32 %v2782, 7
        %v2784 = vsub.s32 0, %v2783
        %v2785 = vrot.slane %v2750, %v2784
        %v2787 = vadd.f32 %v2779, %v2785
        %v2788 = vadd.f32 %v2780, %v2785
        %2789 = vst [vmem:[%s806] sm:$0xff] %v2787
        %2790 = vst [vmem:[%s806 + $0x8] sm:$0xff] %v2788
        %s2791 = sand.u32 %s482, 1
        %s2792 = scalar_lea.sflag [#allocation7], %s2791
        %s2793 = sand.u32 %s482, 1
        %s2794 = smul.addr %s2793, 16
        %s2795 = scalar_lea.vmem [#allocation20], %s2794
        // Predicated region
        $region137: #{tpu_custom_call.1} parent=95 // pred_check
          %p2796 = pneg %p492
        $region138: #{tpu_custom_call.1} parent=95 // pred_check_branch
          %2798 = sbr.rel (%p2796) target = $region140
        $region139: #{tpu_custom_call.1} parent=95 // pred_region
          %s2799 = smul.u32 2, %s47
          %s2801 = ssub.s32 256, 256
          %2802 = vsyncadd %s2792, %s2801
          %s2803 = smul.addr %s46, 2
          %s2804 = sadd.s32 %s2799, %s2803
          %s2805 = smul.addr %s2804, 128
          %s2806 = scalar_lea.hbm %s19, %s2805
          %s2807 = sshll.u32 %s2795, 4
          %s2808 = int_to_ptr.vmem [resolvable:$true] %s2807
          %2813 = dma.vmem_to_hbm [thread:$0]  %s2808, 256, %s2806, %s2792, 128, 128, 8
        $region140: #{tpu_custom_call.1} parent=95 // pred_fallthru
          _
      $region96: #{tpu_custom_call.1} parent=5 // pred_fallthru
        _
      %p2814 = scmp.le.s32.totalorder 2, %s37
      // Predicated region
      $region141: #{tpu_custom_call.1} parent=5 // pred_check
        %p2815 = pneg %p2814
      $region142: #{tpu_custom_call.1} parent=5 // pred_check_branch
        %2817 = sbr.rel (%p2815) target = $region144
      $region143: #{tpu_custom_call.1} parent=5 // pred_region
        %s2818 = ssub.s32 %s37, 2
        // Predicated region
        $region145: #{tpu_custom_call.1} parent=143 // pred_check
          %p2819 = pneg %p498
        $region146: #{tpu_custom_call.1} parent=143 // pred_check_branch
          %2821 = sbr.rel (%p2819) target = $region148
        $region147: #{tpu_custom_call.1} parent=143 // pred_region
          %s2822 = sand.u32 %s483, 1
          %s2823 = scalar_lea.sflag [#allocation7], %s2822
          %s2824 = sand.u32 %s483, 1
          %s2825 = smul.addr %s2824, 16
          %s2826 = scalar_lea.vmem [#allocation20], %s2825
          %2827 = dma.done %s2823, 256
        $region148: #{tpu_custom_call.1} parent=143 // pred_fallthru
          _
      $region144: #{tpu_custom_call.1} parent=5 // pred_fallthru
        _
    $region6: #{tpu_custom_call.1} parent=1 // loop_footer
      %s41 = sadd.s32 1, %s37
    $region7: #{tpu_custom_call.1} parent=1 // loop_footer_branch
      %36 = sbr.rel target = $region3
    $region8: #{tpu_custom_call.1} parent=1 // loop_exit
      _
    %2828 = vsyncpa [#allocation6], 1
    %s2829 = scalar_lea.sflag [#allocation6], 1
    %2830 = vsyncpa %s2829, 1
    %2831 = vsyncpa [#allocation9], 1
    %s2832 = scalar_lea.sflag [#allocation9], 1
    %2833 = vsyncpa %s2832, 1
    %2834 = vsyncpa [#allocation12], 1
    %2835 = vsyncpa [#allocation15], 1
    %2836 = vsyncpa [#allocation18], 1
    %2837 = vsyncpa [#allocation7], 1
    %s2838 = scalar_lea.sflag [#allocation7], 1
    %2839 = vsyncpa %s2838, 1

// kernel: tpu_custom_call.1
$region0: #{tpu_custom_call.1}
  #allocation0 [shape = 'u32[]', space=smem, size = 0x4, offset = 0x4, fixed_abs, tag = 'smem constant byte address 0x4 - core index']
  #allocation1 [shape = 'u32[144,128]{1,0:T(1,128)}', space=vmem, size = 0x12000, scoped, tag = 'internal scratch']
  #allocation2 [shape = 'bf16[16,128]{1,0:T(16,128)(2,1)}', space=vmem, size = 0x1000, scoped, tag = 'scratch operand']
  #allocation3 [shape = 'bf16[16,128]{1,0:T(16,128)(2,1)}', space=vmem, size = 0x1000, scoped, tag = 'scratch operand']
  #allocation4 [shape = 'bf16[16,128]{1,0:T(16,128)(2,1)}', space=vmem, size = 0x1000, scoped, tag = 'scratch operand']
  %s0 = inlined_call_operand.hbm [shape: f32[2,16,128], index: 0, kind: input, shape index: {}]
  %s1 = inlined_call_operand.hbm [shape: bf16[2,16,128], index: 1, kind: input, shape index: {}]
  %s2 = inlined_call_operand.hbm [shape: s8[2,16,16], index: 2, kind: input, shape index: {}]
  %s3 = inlined_call_operand.hbm [shape: bf16[128,128], index: 3, kind: input, shape index: {}]
  %s4 = inlined_call_operand.vmem [shape: f32[1,128], index: 4, kind: input, shape index: {}]
  %s5 = inlined_call_operand.hbm [shape: bf16[128,128], index: 5, kind: input, shape index: {}]
  %s6 = inlined_call_operand.vmem [shape: f32[1,128], index: 6, kind: input, shape index: {}]
  %s7 = inlined_call_operand.hbm [shape: bf16[128,128], index: 7, kind: input, shape index: {}]
  %s8 = inlined_call_operand.vmem [shape: f32[1,128], index: 8, kind: input, shape index: {}]
  %s9 = inlined_call_operand.hbm [shape: bf16[128,128], index: 9, kind: input, shape index: {}]
  %s10 = inlined_call_operand.vmem [shape: f32[1,128], index: 10, kind: input, shape index: {}]
  %s11 = inlined_call_operand.vmem [shape: f32[1,128], index: 11, kind: input, shape index: {}]
  %s12 = inlined_call_operand.vmem [shape: f32[1,128], index: 12, kind: input, shape index: {}]
  %s13 = inlined_call_operand.hbm [shape: bf16[128,256], index: 13, kind: input, shape index: {}]
  %s14 = inlined_call_operand.vmem [shape: f32[1,256], index: 14, kind: input, shape index: {}]
  %s15 = inlined_call_operand.hbm [shape: bf16[256,128], index: 15, kind: input, shape index: {}]
  %s16 = inlined_call_operand.vmem [shape: f32[1,128], index: 16, kind: input, shape index: {}]
  %s17 = inlined_call_operand.vmem [shape: f32[1,128], index: 17, kind: input, shape index: {}]
  %s18 = inlined_call_operand.vmem [shape: f32[1,128], index: 18, kind: input, shape index: {}]
  %s19 = inlined_call_operand.hbm [shape: f32[2,16,128], index: 19, kind: output, shape index: {}]
  %s20 = sld [smem:[#allocation0]]
  $region149: #{tpu_custom_call.1} parent=0
    _
  %s22 = ssub.s32 1, %s20
  %s23 = scalar_select 0, %s22, %s20
  $region1: #{tpu_custom_call.1} parent=0
    #allocation5 [shape = 'u8[16384]{0}', space=vmem, size = 0x4000, scoped, tag = 'input window, operand 0']
    #allocation6 [shape = 's32[2]{0}', space=sflag, size = 0x8, scoped, tag = 'scoped memory for tpu_custom_call.1']
    #allocation7 [shape = 's32[2]{0}', space=sflag, size = 0x8, scoped, tag = 'scoped memory for tpu_custom_call.1']
    #allocation8 [shape = 'u8[8192]{0}', space=vmem, size = 0x2000, scoped, tag = 'input window, operand 1']
    #allocation9 [shape = 's32[2]{0}', space=sflag, size = 0x8, scoped, tag = 'scoped memory for tpu_custom_call.1']
    #allocation10 [shape = 'u8[4096]{0}', space=vmem, size = 0x1000, scoped, tag = 'input window, operand 2']
    #allocation11 [shape = 'u8[32768]{0}', space=vmem, size = 0x8000, scoped, tag = 'input window, operand 3, single buffered']
    #allocation12 [shape = 's32[1]{0}', space=sflag, size = 0x4, scoped, tag = 'scoped memory for tpu_custom_call.1']
    #allocation13 [shape = 'u8[32768]{0}', space=vmem, size = 0x8000, scoped, tag = 'input window, operand 5, single buffered']
    #allocation14 [shape = 'u8[32768]{0}', space=vmem, size = 0x8000, scoped, tag = 'input window, operand 7, single buffered']
    #allocation15 [shape = 's32[1]{0}', space=sflag, size = 0x4, scoped, tag = 'scoped memory for tpu_custom_call.1']
    #allocation16 [shape = 'u8[32768]{0}', space=vmem, size = 0x8000, scoped, tag = 'input window, operand 9, single buffered']
    #allocation17 [shape = 'u8[65536]{0}', space=vmem, size = 0x10000, scoped, tag = 'input window, operand 13, single buffered']
    #allocation18 [shape = 's32[1]{0}', space=sflag, size = 0x4, scoped, tag = 'scoped memory for tpu_custom_call.1']
    #allocation19 [shape = 'u8[65536]{0}', space=vmem, size = 0x10000, scoped, tag = 'input window, operand 15, single buffered']
    #allocation20 [shape = 'u8[16384]{0}', space=vmem, size = 0x4000, scoped, tag = 'output window, operand 0']
    %24 = vsyncpa [#allocation6], 0
    %s25 = scalar_lea.sflag [#allocation6], 1
    %26 = vsyncpa %s25, 0
    %27 = vsyncpa [#allocation9], 0
    %s28 = scalar_lea.sflag [#allocation9], 1
    %29 = vsyncpa %s28, 0
    %30 = vsyncpa [#allocation12], 0
    %31 = vsyncpa [#allocation15], 0
    %32 = vsyncpa [#allocation18], 0
    %33 = vsyncpa [#allocation7], 0
    %s34 = scalar_lea.sflag [#allocation7], 1
    %35 = vsyncpa %s34, 0
    loop: start=0, step=1, limit=4
    $region2: #{tpu_custom_call.1} parent=1 // loop_pre_header
      _
    $region3: #{tpu_custom_call.1} parent=1 // loop_header
      %s37 = sphi 0, %s41
      %p38 = scmp.ge.s32.totalorder %s37, 4
      %s44 = sphi 0, %s56
      %s45 = sphi 0, %s52
      %s46 = sphi 0, %s44
      %s47 = sphi 0, %s45
      %s48 = sphi 0, %s46
      %s49 = sphi 0, %s47
      %s61 = sphi 0, %s63
      %s64 = sphi 0, %s61
      %s65 = sphi 0, %s64
      %s81 = sphi 0, %s65
      %s87 = sphi 0, %s89
      %s90 = sphi 0, %s87
      %s91 = sphi 0, %s90
      %s107 = sphi 0, %s91
      %s115 = sphi 0, %s117
      %s118 = sphi 0, %s115
      %s119 = sphi 0, %s118
      %s135 = sphi 0, %s119
      %s139 = sphi 0, %s139
      %s141 = sphi 0, %s139
      %s142 = sphi 0, %s141
      %s156 = sphi 0, %s142
      %s160 = sphi 0, %s160
      %s162 = sphi 0, %s160
      %s163 = sphi 0, %s162
      %s177 = sphi 0, %s163
      %s181 = sphi 0, %s181
      %s183 = sphi 0, %s181
      %s184 = sphi 0, %s183
      %s198 = sphi 0, %s184
      %s202 = sphi 0, %s202
      %s204 = sphi 0, %s202
      %s205 = sphi 0, %s204
      %s219 = sphi 0, %s205
      %s223 = sphi 0, %s223
      %s225 = sphi 0, %s223
      %s226 = sphi 0, %s225
      %s240 = sphi 0, %s226
      %s244 = sphi 0, %s244
      %s246 = sphi 0, %s244
      %s247 = sphi 0, %s246
      %s261 = sphi 0, %s247
      %s265 = sphi 0, %s265
      %s267 = sphi 0, %s265
      %s268 = sphi 0, %s267
      %s282 = sphi 0, %s268
      %s286 = sphi 0, %s286
      %s288 = sphi 0, %s286
      %s289 = sphi 0, %s288
      %s303 = sphi 0, %s289
      %s307 = sphi 0, %s307
      %s309 = sphi 0, %s307
      %s310 = sphi 0, %s309
      %s324 = sphi 0, %s310
      %s328 = sphi 0, %s328
      %s330 = sphi 0, %s328
      %s331 = sphi 0, %s330
      %s345 = sphi 0, %s331
      %s349 = sphi 0, %s349
      %s351 = sphi 0, %s349
      %s352 = sphi 0, %s351
      %s366 = sphi 0, %s352
      %s370 = sphi 0, %s370
      %s372 = sphi 0, %s370
      %s373 = sphi 0, %s372
      %s387 = sphi 0, %s373
      %s391 = sphi 0, %s391
      %s393 = sphi 0, %s391
      %s394 = sphi 0, %s393
      %s408 = sphi 0, %s394
      %s412 = sphi 0, %s412
      %s414 = sphi 0, %s412
      %s415 = sphi 0, %s414
      %s429 = sphi 0, %s415
      %s433 = sphi 0, %s433
      %s435 = sphi 0, %s433
      %s436 = sphi 0, %s435
      %s450 = sphi 0, %s436
      %s454 = sphi 0, %s454
      %s456 = sphi 0, %s454
      %s457 = sphi 0, %s456
      %s471 = sphi 0, %s457
      %s479 = sphi 0, %s481
      %s482 = sphi 0, %s479
      %s483 = sphi 0, %s482
      %s499 = sphi 0, %s483
    $region4: #{tpu_custom_call.1} parent=1 // loop_header_branch
      %40 = sbr.rel (%p38) target = $region8
    $region5: #{tpu_custom_call.1} parent=1 // loop_body
      %s42 = ssub.s32 %s37, 1
      %s43 = ssub.s32 %s37, 2
      %s50 = sadd.s32 1, %s45
      %p51 = scmp.ge.s32.totalorder %s50, 1
      %s52 = scalar_select %p51, 0, %s50
      %s53 = sadd.s32 1, %s44
      %s54 = scalar_select %p51, %s53, %s44
      %p55 = scmp.ge.s32.totalorder %s54, 2
      %s56 = scalar_select %p55, 0, %s54
      %s57 = ssub.s32 %s44, %s56
      %s58 = ssub.s32 %s45, %s52
      %s59 = sor.u32 %s57, %s58
      %p60 = scmp.eq.s32.totalorder %s59, 0
      %s62 = sadd.s32 %s61, 1
      %s63 = scalar_select %p60, %s61, %s62
      %p66 = pneg %p60
      %p67 = scmp.eq.s32.totalorder %s37, 1
      %p68 = por %p66, %p67
      %p69 = scmp.ne.s32.totalorder %s61, %s64
      %p70 = scmp.eq.s32.totalorder %s37, 0
      %p71 = por %p69, %p70
      %p72 = scmp.ne.s32.totalorder %s61, %s64
      %p73 = scmp.eq.s32.totalorder %s42, 1
      %p74 = por %p72, %p73
      %p75 = scmp.ne.s32.totalorder %s64, %s65
      %p76 = scmp.eq.s32.totalorder %s42, 0
      %p77 = por %p75, %p76
      %p78 = scmp.ne.s32.totalorder %s64, %s65
      %p79 = scmp.eq.s32.totalorder %s43, 1
      %p80 = por %p78, %p79
      %p82 = scmp.ne.s32.totalorder %s65, %s81
      %p83 = scmp.eq.s32.totalorder %s43, 0
      %p84 = por %p82, %p83
      %s85 = ssub.s32 %s44, %s56
      %p86 = scmp.eq.s32.totalorder %s85, 0
      %s88 = sadd.s32 %s87, 1
      %s89 = scalar_select %p86, %s87, %s88
      %p92 = pneg %p86
      %p93 = scmp.eq.s32.totalorder %s37, 1
      %p94 = por %p92, %p93
      %p95 = scmp.ne.s32.totalorder %s87, %s90
      %p96 = scmp.eq.s32.totalorder %s37, 0
      %p97 = por %p95, %p96
      %p98 = scmp.ne.s32.totalorder %s87, %s90
      %p99 = scmp.eq.s32.totalorder %s42, 1
      %p100 = por %p98, %p99
      %p101 = scmp.ne.s32.totalorder %s90, %s91
      %p102 = scmp.eq.s32.totalorder %s42, 0
      %p103 = por %p101, %p102
      %p104 = scmp.ne.s32.totalorder %s90, %s91
      %p105 = scmp.eq.s32.totalorder %s43, 1
      %p106 = por %p104, %p105
      %p108 = scmp.ne.s32.totalorder %s91, %s107
      %p109 = scmp.eq.s32.totalorder %s43, 0
      %p110 = por %p108, %p109
      %s111 = ssub.s32 %s44, %s56
      %s112 = ssub.s32 %s45, %s52
      %s113 = sor.u32 %s111, %s112
      %p114 = scmp.eq.s32.totalorder %s113, 0
      %s116 = sadd.s32 %s115, 1
      %s117 = scalar_select %p114, %s115, %s116
      %p120 = pneg %p114
      %p121 = scmp.eq.s32.totalorder %s37, 1
      %p122 = por %p120, %p121
      %p123 = scmp.ne.s32.totalorder %s115, %s118
      %p124 = scmp.eq.s32.totalorder %s37, 0
      %p125 = por %p123, %p124
      %p126 = scmp.ne.s32.totalorder %s115, %s118
      %p127 = scmp.eq.s32.totalorder %s42, 1
      %p128 = por %p126, %p127
      %p129 = scmp.ne.s32.totalorder %s118, %s119
      %p130 = scmp.eq.s32.totalorder %s42, 0
      %p131 = por %p129, %p130
      %p132 = scmp.ne.s32.totalorder %s118, %s119
      %p133 = scmp.eq.s32.totalorder %s43, 1
      %p134 = por %p132, %p133
      %p136 = scmp.ne.s32.totalorder %s119, %s135
      %p137 = scmp.eq.s32.totalorder %s43, 0
      %p138 = por %p136, %p137
      %s140 = sadd.s32 %s139, 1
      %p143 = scmp.eq.s32.totalorder %s37, 1
      %p144 = scmp.ne.s32.totalorder %s139, %s141
      %p145 = scmp.eq.s32.totalorder %s37, 0
      %p146 = por %p144, %p145
      %p147 = scmp.ne.s32.totalorder %s139, %s141
      %p148 = scmp.eq.s32.totalorder %s42, 1
      %p149 = por %p147, %p148
      %p150 = scmp.ne.s32.totalorder %s141, %s142
      %p151 = scmp.eq.s32.totalorder %s42, 0
      %p152 = por %p150, %p151
      %p153 = scmp.ne.s32.totalorder %s141, %s142
      %p154 = scmp.eq.s32.totalorder %s43, 1
      %p155 = por %p153, %p154
      %p157 = scmp.ne.s32.totalorder %s142, %s156
      %p158 = scmp.eq.s32.totalorder %s43, 0
      %p159 = por %p157, %p158
      %s161 = sadd.s32 %s160, 1
      %p164 = scmp.eq.s32.totalorder %s37, 1
      %p165 = scmp.ne.s32.totalorder %s160, %s162
      %p166 = scmp.eq.s32.totalorder %s37, 0
      %p167 = por %p165, %p166
      %p168 = scmp.ne.s32.totalorder %s160, %s162
      %p169 = scmp.eq.s32.totalorder %s42, 1
      %p170 = por %p168, %p169
      %p171 = scmp.ne.s32.totalorder %s162, %s163
      %p172 = scmp.eq.s32.totalorder %s42, 0
      %p173 = por %p171, %p172
      %p174 = scmp.ne.s32.totalorder %s162, %s163
      %p175 = scmp.eq.s32.totalorder %s43, 1
      %p176 = por %p174, %p175
      %p178 = scmp.ne.s32.totalorder %s163, %s177
      %p179 = scmp.eq.s32.totalorder %s43, 0
      %p180 = por %p178, %p179
      %s182 = sadd.s32 %s181, 1
      %p185 = scmp.eq.s32.totalorder %s37, 1
      %p186 = scmp.ne.s32.totalorder %s181, %s183
      %p187 = scmp.eq.s32.totalorder %s37, 0
      %p188 = por %p186, %p187
      %p189 = scmp.ne.s32.totalorder %s181, %s183
      %p190 = scmp.eq.s32.totalorder %s42, 1
      %p191 = por %p189, %p190
      %p192 = scmp.ne.s32.totalorder %s183, %s184
      %p193 = scmp.eq.s32.totalorder %s42, 0
      %p194 = por %p192, %p193
      %p195 = scmp.ne.s32.totalorder %s183, %s184
      %p196 = scmp.eq.s32.totalorder %s43, 1
      %p197 = por %p195, %p196
      %p199 = scmp.ne.s32.totalorder %s184, %s198
      %p200 = scmp.eq.s32.totalorder %s43, 0
      %p201 = por %p199, %p200
      %s203 = sadd.s32 %s202, 1
      %p206 = scmp.eq.s32.totalorder %s37, 1
      %p207 = scmp.ne.s32.totalorder %s202, %s204
      %p208 = scmp.eq.s32.totalorder %s37, 0
      %p209 = por %p207, %p208
      %p210 = scmp.ne.s32.totalorder %s202, %s204
      %p211 = scmp.eq.s32.totalorder %s42, 1
      %p212 = por %p210, %p211
      %p213 = scmp.ne.s32.totalorder %s204, %s205
      %p214 = scmp.eq.s32.totalorder %s42, 0
      %p215 = por %p213, %p214
      %p216 = scmp.ne.s32.totalorder %s204, %s205
      %p217 = scmp.eq.s32.totalorder %s43, 1
      %p218 = por %p216, %p217
      %p220 = scmp.ne.s32.totalorder %s205, %s219
      %p221 = scmp.eq.s32.totalorder %s43, 0
      %p222 = por %p220, %p221
      %s224 = sadd.s32 %s223, 1
      %p227 = scmp.eq.s32.totalorder %s37, 1
      %p228 = scmp.ne.s32.totalorder %s223, %s225
      %p229 = scmp.eq.s32.totalorder %s37, 0
      %p230 = por %p228, %p229
      %p231 = scmp.ne.s32.totalorder %s223, %s225
      %p232 = scmp.eq.s32.totalorder %s42, 1
      %p233 = por %p231, %p232
      %p234 = scmp.ne.s32.totalorder %s225, %s226
      %p235 = scmp.eq.s32.totalorder %s42, 0
      %p236 = por %p234, %p235
      %p237 = scmp.ne.s32.totalorder %s225, %s226
      %p238 = scmp.eq.s32.totalorder %s43, 1
      %p239 = por %p237, %p238
      %p241 = scmp.ne.s32.totalorder %s226, %s240
      %p242 = scmp.eq.s32.totalorder %s43, 0
      %p243 = por %p241, %p242
      %s245 = sadd.s32 %s244, 1
      %p248 = scmp.eq.s32.totalorder %s37, 1
      %p249 = scmp.ne.s32.totalorder %s244, %s246
      %p250 = scmp.eq.s32.totalorder %s37, 0
      %p251 = por %p249, %p250
      %p252 = scmp.ne.s32.totalorder %s244, %s246
      %p253 = scmp.eq.s32.totalorder %s42, 1
      %p254 = por %p252, %p253
      %p255 = scmp.ne.s32.totalorder %s246, %s247
      %p256 = scmp.eq.s32.totalorder %s42, 0
      %p257 = por %p255, %p256
      %p258 = scmp.ne.s32.totalorder %s246, %s247
      %p259 = scmp.eq.s32.totalorder %s43, 1
      %p260 = por %p258, %p259
      %p262 = scmp.ne.s32.totalorder %s247, %s261
      %p263 = scmp.eq.s32.totalorder %s43, 0
      %p264 = por %p262, %p263
      %s266 = sadd.s32 %s265, 1
      %p269 = scmp.eq.s32.totalorder %s37, 1
      %p270 = scmp.ne.s32.totalorder %s265, %s267
      %p271 = scmp.eq.s32.totalorder %s37, 0
      %p272 = por %p270, %p271
      %p273 = scmp.ne.s32.totalorder %s265, %s267
      %p274 = scmp.eq.s32.totalorder %s42, 1
      %p275 = por %p273, %p274
      %p276 = scmp.ne.s32.totalorder %s267, %s268
      %p277 = scmp.eq.s32.totalorder %s42, 0
      %p278 = por %p276, %p277
      %p279 = scmp.ne.s32.totalorder %s267, %s268
      %p280 = scmp.eq.s32.totalorder %s43, 1
      %p281 = por %p279, %p280
      %p283 = scmp.ne.s32.totalorder %s268, %s282
      %p284 = scmp.eq.s32.totalorder %s43, 0
      %p285 = por %p283, %p284
      %s287 = sadd.s32 %s286, 1
      %p290 = scmp.eq.s32.totalorder %s37, 1
      %p291 = scmp.ne.s32.totalorder %s286, %s288
      %p292 = scmp.eq.s32.totalorder %s37, 0
      %p293 = por %p291, %p292
      %p294 = scmp.ne.s32.totalorder %s286, %s288
      %p295 = scmp.eq.s32.totalorder %s42, 1
      %p296 = por %p294, %p295
      %p297 = scmp.ne.s32.totalorder %s288, %s289
      %p298 = scmp.eq.s32.totalorder %s42, 0
      %p299 = por %p297, %p298
      %p300 = scmp.ne.s32.totalorder %s288, %s289
      %p301 = scmp.eq.s32.totalorder %s43, 1
      %p302 = por %p300, %p301
      %p304 = scmp.ne.s32.totalorder %s289, %s303
      %p305 = scmp.eq.s32.totalorder %s43, 0
      %p306 = por %p304, %p305
      %s308 = sadd.s32 %s307, 1
      %p311 = scmp.eq.s32.totalorder %s37, 1
      %p312 = scmp.ne.s32.totalorder %s307, %s309
      %p313 = scmp.eq.s32.totalorder %s37, 0
      %p314 = por %p312, %p313
      %p315 = scmp.ne.s32.totalorder %s307, %s309
      %p316 = scmp.eq.s32.totalorder %s42, 1
      %p317 = por %p315, %p316
      %p318 = scmp.ne.s32.totalorder %s309, %s310
      %p319 = scmp.eq.s32.totalorder %s42, 0
      %p320 = por %p318, %p319
      %p321 = scmp.ne.s32.totalorder %s309, %s310
      %p322 = scmp.eq.s32.totalorder %s43, 1
      %p323 = por %p321, %p322
      %p325 = scmp.ne.s32.totalorder %s310, %s324
      %p326 = scmp.eq.s32.totalorder %s43, 0
      %p327 = por %p325, %p326
      %s329 = sadd.s32 %s328, 1
      %p332 = scmp.eq.s32.totalorder %s37, 1
      %p333 = scmp.ne.s32.totalorder %s328, %s330
      %p334 = scmp.eq.s32.totalorder %s37, 0
      %p335 = por %p333, %p334
      %p336 = scmp.ne.s32.totalorder %s328, %s330
      %p337 = scmp.eq.s32.totalorder %s42, 1
      %p338 = por %p336, %p337
      %p339 = scmp.ne.s32.totalorder %s330, %s331
      %p340 = scmp.eq.s32.totalorder %s42, 0
      %p341 = por %p339, %p340
      %p342 = scmp.ne.s32.totalorder %s330, %s331
      %p343 = scmp.eq.s32.totalorder %s43, 1
      %p344 = por %p342, %p343
      %p346 = scmp.ne.s32.totalorder %s331, %s345
      %p347 = scmp.eq.s32.totalorder %s43, 0
      %p348 = por %p346, %p347
      %s350 = sadd.s32 %s349, 1
      %p353 = scmp.eq.s32.totalorder %s37, 1
      %p354 = scmp.ne.s32.totalorder %s349, %s351
      %p355 = scmp.eq.s32.totalorder %s37, 0
      %p356 = por %p354, %p355
      %p357 = scmp.ne.s32.totalorder %s349, %s351
      %p358 = scmp.eq.s32.totalorder %s42, 1
      %p359 = por %p357, %p358
      %p360 = scmp.ne.s32.totalorder %s351, %s352
      %p361 = scmp.eq.s32.totalorder %s42, 0
      %p362 = por %p360, %p361
      %p363 = scmp.ne.s32.totalorder %s351, %s352
      %p364 = scmp.eq.s32.totalorder %s43, 1
      %p365 = por %p363, %p364
      %p367 = scmp.ne.s32.totalorder %s352, %s366
      %p368 = scmp.eq.s32.totalorder %s43, 0
      %p369 = por %p367, %p368
      %s371 = sadd.s32 %s370, 1
      %p374 = scmp.eq.s32.totalorder %s37, 1
      %p375 = scmp.ne.s32.totalorder %s370, %s372
      %p376 = scmp.eq.s32.totalorder %s37, 0
      %p377 = por %p375, %p376
      %p378 = scmp.ne.s32.totalorder %s370, %s372
      %p379 = scmp.eq.s32.totalorder %s42, 1
      %p380 = por %p378, %p379
      %p381 = scmp.ne.s32.totalorder %s372, %s373
      %p382 = scmp.eq.s32.totalorder %s42, 0
      %p383 = por %p381, %p382
      %p384 = scmp.ne.s32.totalorder %s372, %s373
      %p385 = scmp.eq.s32.totalorder %s43, 1
      %p386 = por %p384, %p385
      %p388 = scmp.ne.s32.totalorder %s373, %s387
      %p389 = scmp.eq.s32.totalorder %s43, 0
      %p390 = por %p388, %p389
      %s392 = sadd.s32 %s391, 1
      %p395 = scmp.eq.s32.totalorder %s37, 1
      %p396 = scmp.ne.s32.totalorder %s391, %s393
      %p397 = scmp.eq.s32.totalorder %s37, 0
      %p398 = por %p396, %p397
      %p399 = scmp.ne.s32.totalorder %s391, %s393
      %p400 = scmp.eq.s32.totalorder %s42, 1
      %p401 = por %p399, %p400
      %p402 = scmp.ne.s32.totalorder %s393, %s394
      %p403 = scmp.eq.s32.totalorder %s42, 0
      %p404 = por %p402, %p403
      %p405 = scmp.ne.s32.totalorder %s393, %s394
      %p406 = scmp.eq.s32.totalorder %s43, 1
      %p407 = por %p405, %p406
      %p409 = scmp.ne.s32.totalorder %s394, %s408
      %p410 = scmp.eq.s32.totalorder %s43, 0
      %p411 = por %p409, %p410
      %s413 = sadd.s32 %s412, 1
      %p416 = scmp.eq.s32.totalorder %s37, 1
      %p417 = scmp.ne.s32.totalorder %s412, %s414
      %p418 = scmp.eq.s32.totalorder %s37, 0
      %p419 = por %p417, %p418
      %p420 = scmp.ne.s32.totalorder %s412, %s414
      %p421 = scmp.eq.s32.totalorder %s42, 1
      %p422 = por %p420, %p421
      %p423 = scmp.ne.s32.totalorder %s414, %s415
      %p424 = scmp.eq.s32.totalorder %s42, 0
      %p425 = por %p423, %p424
      %p426 = scmp.ne.s32.totalorder %s414, %s415
      %p427 = scmp.eq.s32.totalorder %s43, 1
      %p428 = por %p426, %p427
      %p430 = scmp.ne.s32.totalorder %s415, %s429
      %p431 = scmp.eq.s32.totalorder %s43, 0
      %p432 = por %p430, %p431
      %s434 = sadd.s32 %s433, 1
      %p437 = scmp.eq.s32.totalorder %s37, 1
      %p438 = scmp.ne.s32.totalorder %s433, %s435
      %p439 = scmp.eq.s32.totalorder %s37, 0
      %p440 = por %p438, %p439
      %p441 = scmp.ne.s32.totalorder %s433, %s435
      %p442 = scmp.eq.s32.totalorder %s42, 1
      %p443 = por %p441, %p442
      %p444 = scmp.ne.s32.totalorder %s435, %s436
      %p445 = scmp.eq.s32.totalorder %s42, 0
      %p446 = por %p444, %p445
      %p447 = scmp.ne.s32.totalorder %s435, %s436
      %p448 = scmp.eq.s32.totalorder %s43, 1
      %p449 = por %p447, %p448
      %p451 = scmp.ne.s32.totalorder %s436, %s450
      %p452 = scmp.eq.s32.totalorder %s43, 0
      %p453 = por %p451, %p452
      %s455 = sadd.s32 %s454, 1
      %p458 = scmp.eq.s32.totalorder %s37, 1
      %p459 = scmp.ne.s32.totalorder %s454, %s456
      %p460 = scmp.eq.s32.totalorder %s37, 0
      %p461 = por %p459, %p460
      %p462 = scmp.ne.s32.totalorder %s454, %s456
      %p463 = scmp.eq.s32.totalorder %s42, 1
      %p464 = por %p462, %p463
      %p465 = scmp.ne.s32.totalorder %s456, %s457
      %p466 = scmp.eq.s32.totalorder %s42, 0
      %p467 = por %p465, %p466
      %p468 = scmp.ne.s32.totalorder %s456, %s457
      %p469 = scmp.eq.s32.totalorder %s43, 1
      %p470 = por %p468, %p469
      %p472 = scmp.ne.s32.totalorder %s457, %s471
      %p473 = scmp.eq.s32.totalorder %s43, 0
      %p474 = por %p472, %p473
      %s475 = ssub.s32 %s44, %s56
      %s476 = ssub.s32 %s45, %s52
      %s477 = sor.u32 %s475, %s476
      %p478 = scmp.eq.s32.totalorder %s477, 0
      %s480 = sadd.s32 %s479, 1
      %s481 = scalar_select %p478, %s479, %s480
      %p484 = pneg %p478
      %p485 = scmp.eq.s32.totalorder %s37, 1
      %p486 = por %p484, %p485
      %p487 = scmp.ne.s32.totalorder %s479, %s482
      %p488 = scmp.eq.s32.totalorder %s37, 0
      %p489 = por %p487, %p488
      %p490 = scmp.ne.s32.totalorder %s479, %s482
      %p491 = scmp.eq.s32.totalorder %s42, 1
      %p492 = por %p490, %p491
      %p493 = scmp.ne.s32.totalorder %s482, %s483
      %p494 = scmp.eq.s32.totalorder %s42, 0
      %p495 = por %p493, %p494
      %p496 = scmp.ne.s32.totalorder %s482, %s483
      %p497 = scmp.eq.s32.totalorder %s43, 1
      %p498 = por %p496, %p497
      %p500 = scmp.ne.s32.totalorder %s483, %s499
      %p501 = scmp.eq.s32.totalorder %s43, 0
      %p502 = por %p500, %p501
      %p503 = scmp.le.s32.totalorder 1, %s37
      %p504 = scmp.lt.s32.totalorder %s37, 3
      %p505 = pnand %p503, %p504
      %p506 = pneg %p505
      // Predicated region
      $region9: #{tpu_custom_call.1} parent=5 // pred_check
        _
      $region10: #{tpu_custom_call.1} parent=5 // pred_check_branch
        %508 = sbr.rel (%p505) target = $region12
      $region11: #{tpu_custom_call.1} parent=5 // pred_region
        %s509 = ssub.s32 %s37, 1
        // Predicated region
        $region13: #{tpu_custom_call.1} parent=11 // pred_check
          %p510 = pneg %p152
        $region14: #{tpu_custom_call.1} parent=11 // pred_check_branch
          %512 = sbr.rel (%p510) target = $region16
        $region15: #{tpu_custom_call.1} parent=11 // pred_region
          %s514 = ssub.s32 1024, 1024
          %515 = vsyncadd [#allocation12], %s514
          %s516 = sshll.u32 [#allocation11], 4
          %s517 = int_to_ptr.vmem [resolvable:$true] %s516
          %522 = dma.hbm_to_vmem [thread:$0]  %s3, 1024, %s517, [#allocation12], 64, 64, 4
        $region16: #{tpu_custom_call.1} parent=11 // pred_fallthru
          _
        // Predicated region
        $region17: #{tpu_custom_call.1} parent=11 // pred_check
          %p523 = pneg %p173
        $region18: #{tpu_custom_call.1} parent=11 // pred_check_branch
          %525 = sbr.rel (%p523) target = $region20
        $region19: #{tpu_custom_call.1} parent=11 // pred_region
          _
        $region20: #{tpu_custom_call.1} parent=11 // pred_fallthru
          _
        // Predicated region
        $region21: #{tpu_custom_call.1} parent=11 // pred_check
          %p526 = pneg %p194
        $region22: #{tpu_custom_call.1} parent=11 // pred_check_branch
          %528 = sbr.rel (%p526) target = $region24
        $region23: #{tpu_custom_call.1} parent=11 // pred_region
          %s530 = ssub.s32 1024, 1024
          %531 = vsyncadd [#allocation12], %s530
          %s532 = sshll.u32 [#allocation13], 4
          %s533 = int_to_ptr.vmem [resolvable:$true] %s532
          %538 = dma.hbm_to_vmem [thread:$0]  %s5, 1024, %s533, [#allocation12], 64, 64, 4
        $region24: #{tpu_custom_call.1} parent=11 // pred_fallthru
          _
        // Predicated region
        $region25: #{tpu_custom_call.1} parent=11 // pred_check
          %p539 = pneg %p215
        $region26: #{tpu_custom_call.1} parent=11 // pred_check_branch
          %541 = sbr.rel (%p539) target = $region28
        $region27: #{tpu_custom_call.1} parent=11 // pred_region
          _
        $region28: #{tpu_custom_call.1} parent=11 // pred_fallthru
          _
        // Predicated region
        $region29: #{tpu_custom_call.1} parent=11 // pred_check
          %p542 = pneg %p236
        $region30: #{tpu_custom_call.1} parent=11 // pred_check_branch
          %544 = sbr.rel (%p542) target = $region32
        $region31: #{tpu_custom_call.1} parent=11 // pred_region
          %s546 = ssub.s32 1024, 1024
          %547 = vsyncadd [#allocation15], %s546
          %s548 = sshll.u32 [#allocation14], 4
          %s549 = int_to_ptr.vmem [resolvable:$true] %s548
          %554 = dma.hbm_to_vmem [thread:$0]  %s7, 1024, %s549, [#allocation15], 64, 64, 4
        $region32: #{tpu_custom_call.1} parent=11 // pred_fallthru
          _
        // Predicated region
        $region33: #{tpu_custom_call.1} parent=11 // pred_check
          %p555 = pneg %p257
        $region34: #{tpu_custom_call.1} parent=11 // pred_check_branch
          %557 = sbr.rel (%p555) target = $region36
        $region35: #{tpu_custom_call.1} parent=11 // pred_region
          _
        $region36: #{tpu_custom_call.1} parent=11 // pred_fallthru
          _
        // Predicated region
        $region37: #{tpu_custom_call.1} parent=11 // pred_check
          %p558 = pneg %p278
        $region38: #{tpu_custom_call.1} parent=11 // pred_check_branch
          %560 = sbr.rel (%p558) target = $region40
        $region39: #{tpu_custom_call.1} parent=11 // pred_region
          %s562 = ssub.s32 1024, 1024
          %563 = vsyncadd [#allocation15], %s562
          %s564 = sshll.u32 [#allocation16], 4
          %s565 = int_to_ptr.vmem [resolvable:$true] %s564
          %570 = dma.hbm_to_vmem [thread:$0]  %s9, 1024, %s565, [#allocation15], 64, 64, 4
        $region40: #{tpu_custom_call.1} parent=11 // pred_fallthru
          _
        // Predicated region
        $region41: #{tpu_custom_call.1} parent=11 // pred_check
          %p571 = pneg %p299
        $region42: #{tpu_custom_call.1} parent=11 // pred_check_branch
          %573 = sbr.rel (%p571) target = $region44
        $region43: #{tpu_custom_call.1} parent=11 // pred_region
          _
        $region44: #{tpu_custom_call.1} parent=11 // pred_fallthru
          _
        // Predicated region
        $region45: #{tpu_custom_call.1} parent=11 // pred_check
          %p574 = pneg %p320
        $region46: #{tpu_custom_call.1} parent=11 // pred_check_branch
          %576 = sbr.rel (%p574) target = $region48
        $region47: #{tpu_custom_call.1} parent=11 // pred_region
          _
        $region48: #{tpu_custom_call.1} parent=11 // pred_fallthru
          _
        // Predicated region
        $region49: #{tpu_custom_call.1} parent=11 // pred_check
          %p577 = pneg %p341
        $region50: #{tpu_custom_call.1} parent=11 // pred_check_branch
          %579 = sbr.rel (%p577) target = $region52
        $region51: #{tpu_custom_call.1} parent=11 // pred_region
          _
        $region52: #{tpu_custom_call.1} parent=11 // pred_fallthru
          _
        // Predicated region
        $region53: #{tpu_custom_call.1} parent=11 // pred_check
          %p580 = pneg %p362
        $region54: #{tpu_custom_call.1} parent=11 // pred_check_branch
          %582 = sbr.rel (%p580) target = $region56
        $region55: #{tpu_custom_call.1} parent=11 // pred_region
          %s584 = ssub.s32 2048, 2048
          %585 = vsyncadd [#allocation18], %s584
          %s586 = sshll.u32 [#allocation17], 4
          %s587 = int_to_ptr.vmem [resolvable:$true] %s586
          %592 = dma.hbm_to_vmem [thread:$0]  %s13, 2048, %s587, [#allocation18], 128, 128, 8
        $region56: #{tpu_custom_call.1} parent=11 // pred_fallthru
          _
        // Predicated region
        $region57: #{tpu_custom_call.1} parent=11 // pred_check
          %p593 = pneg %p383
        $region58: #{tpu_custom_call.1} parent=11 // pred_check_branch
          %595 = sbr.rel (%p593) target = $region60
        $region59: #{tpu_custom_call.1} parent=11 // pred_region
          _
        $region60: #{tpu_custom_call.1} parent=11 // pred_fallthru
          _
        // Predicated region
        $region61: #{tpu_custom_call.1} parent=11 // pred_check
          %p596 = pneg %p404
        $region62: #{tpu_custom_call.1} parent=11 // pred_check_branch
          %598 = sbr.rel (%p596) target = $region64
        $region63: #{tpu_custom_call.1} parent=11 // pred_region
          %s600 = ssub.s32 2048, 2048
          %601 = vsyncadd [#allocation18], %s600
          %s602 = sshll.u32 [#allocation19], 4
          %s603 = int_to_ptr.vmem [resolvable:$true] %s602
          %608 = dma.hbm_to_vmem [thread:$0]  %s15, 2048, %s603, [#allocation18], 64, 64, 4
        $region64: #{tpu_custom_call.1} parent=11 // pred_fallthru
          _
        // Predicated region
        $region65: #{tpu_custom_call.1} parent=11 // pred_check
          %p609 = pneg %p425
        $region66: #{tpu_custom_call.1} parent=11 // pred_check_branch
          %611 = sbr.rel (%p609) target = $region68
        $region67: #{tpu_custom_call.1} parent=11 // pred_region
          _
        $region68: #{tpu_custom_call.1} parent=11 // pred_fallthru
          _
        // Predicated region
        $region69: #{tpu_custom_call.1} parent=11 // pred_check
          %p612 = pneg %p446
        $region70: #{tpu_custom_call.1} parent=11 // pred_check_branch
          %614 = sbr.rel (%p612) target = $region72
        $region71: #{tpu_custom_call.1} parent=11 // pred_region
          _
        $region72: #{tpu_custom_call.1} parent=11 // pred_fallthru
          _
        // Predicated region
        $region73: #{tpu_custom_call.1} parent=11 // pred_check
          %p615 = pneg %p467
        $region74: #{tpu_custom_call.1} parent=11 // pred_check_branch
          %617 = sbr.rel (%p615) target = $region76
        $region75: #{tpu_custom_call.1} parent=11 // pred_region
          _
        $region76: #{tpu_custom_call.1} parent=11 // pred_fallthru
          _
      $region12: #{tpu_custom_call.1} parent=5 // pred_fallthru
        _
      %p618 = scmp.lt.s32.totalorder %s37, 2
      // Predicated region
      $region77: #{tpu_custom_call.1} parent=5 // pred_check
        %p619 = pneg %p618
      $region78: #{tpu_custom_call.1} parent=5 // pred_check_branch
        %621 = sbr.rel (%p619) target = $region80
      $region79: #{tpu_custom_call.1} parent=5 // pred_region
        // Predicated region
        $region81: #{tpu_custom_call.1} parent=79 // pred_check
          %p622 = pneg %p71
        $region82: #{tpu_custom_call.1} parent=79 // pred_check_branch
          %624 = sbr.rel (%p622) target = $region84
        $region83: #{tpu_custom_call.1} parent=79 // pred_region
          %s625 = sand.u32 %s61, 1
          %s626 = scalar_lea.sflag [#allocation6], %s625
          %s627 = sand.u32 %s61, 1
          %s628 = smul.addr %s627, 16
          %s629 = scalar_lea.vmem [#allocation5], %s628
          %s630 = smul.u32 2, %s45
          %s632 = ssub.s32 256, 256
          %633 = vsyncadd %s626, %s632
          %s634 = smul.addr %s44, 2
          %s635 = sadd.s32 %s630, %s634
          %s636 = smul.addr %s635, 128
          %s637 = scalar_lea.hbm %s0, %s636
          %s638 = sshll.u32 %s629, 4
          %s639 = int_to_ptr.vmem [resolvable:$true] %s638
          %644 = dma.hbm_to_vmem [thread:$0]  %s637, 256, %s639, %s626, 128, 128, 8
        $region84: #{tpu_custom_call.1} parent=79 // pred_fallthru
          _
        // Predicated region
        $region85: #{tpu_custom_call.1} parent=79 // pred_check
          %p645 = pneg %p97
        $region86: #{tpu_custom_call.1} parent=79 // pred_check_branch
          %647 = sbr.rel (%p645) target = $region88
        $region87: #{tpu_custom_call.1} parent=79 // pred_region
          %s648 = sand.u32 %s37, 1
          %s649 = scalar_lea.sflag [#allocation9], %s648
          %s650 = sand.u32 %s87, 1
          %s651 = smul.addr %s650, 8
          %s652 = scalar_lea.vmem [#allocation8], %s651
          %s654 = ssub.s32 128, 128
          %655 = vsyncadd %s649, %s654
          %s656 = smul.addr %s44, 2
          %s657 = smul.addr %s656, 64
          %s658 = scalar_lea.hbm %s1, %s657
          %s659 = sshll.u32 %s652, 4
          %s660 = int_to_ptr.vmem [resolvable:$true] %s659
          %665 = dma.hbm_to_vmem [thread:$0]  %s658, 128, %s660, %s649, 64, 64, 4
        $region88: #{tpu_custom_call.1} parent=79 // pred_fallthru
          _
        // Predicated region
        $region89: #{tpu_custom_call.1} parent=79 // pred_check
          %p666 = pneg %p125
        $region90: #{tpu_custom_call.1} parent=79 // pred_check_branch
          %668 = sbr.rel (%p666) target = $region92
        $region91: #{tpu_custom_call.1} parent=79 // pred_region
          %s669 = sand.u32 %s37, 1
          %s670 = scalar_lea.sflag [#allocation9], %s669
          %s671 = sand.u32 %s115, 1
          %s672 = smul.addr %s671, 4
          %s673 = scalar_lea.vmem [#allocation10], %s672
          %s674 = smul.u32 2, %s45
          %s676 = ssub.s32 64, 64
          %677 = vsyncadd %s670, %s676
          %s678 = smul.addr %s44, 2
          %s679 = sadd.s32 %s674, %s678
          %s680 = smul.addr %s679, 32
          %s681 = scalar_lea.hbm %s2, %s680
          %s682 = sshll.u32 %s673, 4
          %s683 = int_to_ptr.vmem [resolvable:$true] %s682
          %688 = dma.hbm_to_vmem [thread:$0]  %s681, 64, %s683, %s670, 32, 32, 2
        $region92: #{tpu_custom_call.1} parent=79 // pred_fallthru
          _
      $region80: #{tpu_custom_call.1} parent=5 // pred_fallthru
        _
      %p689 = scmp.le.s32.totalorder 1, %s37
      %p690 = scmp.lt.s32.totalorder %s37, 3
      %p691 = pnand %p689, %p690
      %p692 = pneg %p691
      // Predicated region
      $region93: #{tpu_custom_call.1} parent=5 // pred_check
        _
      $region94: #{tpu_custom_call.1} parent=5 // pred_check_branch
        %694 = sbr.rel (%p691) target = $region96
      $region95: #{tpu_custom_call.1} parent=5 // pred_region
        %s695 = ssub.s32 %s37, 1
        %s696 = sand.u32 %s64, 1
        %s697 = scalar_lea.sflag [#allocation6], %s696
        %s698 = sand.u32 %s64, 1
        %s699 = smul.addr %s698, 16
        %s700 = scalar_lea.vmem [#allocation5], %s699
        // Predicated region
        $region97: #{tpu_custom_call.1} parent=95 // pred_check
          %p701 = pneg %p77
        $region98: #{tpu_custom_call.1} parent=95 // pred_check_branch
          %703 = sbr.rel (%p701) target = $region100
        $region99: #{tpu_custom_call.1} parent=95 // pred_region
          %704 = dma.done %s697, 256
        $region100: #{tpu_custom_call.1} parent=95 // pred_fallthru
          _
        %s705 = sand.u32 %s42, 1
        %s706 = scalar_lea.sflag [#allocation9], %s705
        %s707 = sand.u32 %s90, 1
        %s708 = smul.addr %s707, 8
        %s709 = scalar_lea.vmem [#allocation8], %s708
        // Predicated region
        $region101: #{tpu_custom_call.1} parent=95 // pred_check
          %p710 = pneg %p103
        $region102: #{tpu_custom_call.1} parent=95 // pred_check_branch
          %712 = sbr.rel (%p710) target = $region104
        $region103: #{tpu_custom_call.1} parent=95 // pred_region
          %713 = dma.done %s706, 128
        $region104: #{tpu_custom_call.1} parent=95 // pred_fallthru
          _
        %s714 = sand.u32 %s42, 1
        %s715 = scalar_lea.sflag [#allocation9], %s714
        %s716 = sand.u32 %s118, 1
        %s717 = smul.addr %s716, 4
        %s718 = scalar_lea.vmem [#allocation10], %s717
        // Predicated region
        $region105: #{tpu_custom_call.1} parent=95 // pred_check
          %p719 = pneg %p131
        $region106: #{tpu_custom_call.1} parent=95 // pred_check_branch
          %721 = sbr.rel (%p719) target = $region108
        $region107: #{tpu_custom_call.1} parent=95 // pred_region
          %722 = dma.done %s715, 64
        $region108: #{tpu_custom_call.1} parent=95 // pred_fallthru
          _
        // Predicated region
        $region109: #{tpu_custom_call.1} parent=95 // pred_check
          %p723 = pneg %p152
        $region110: #{tpu_custom_call.1} parent=95 // pred_check_branch
          %725 = sbr.rel (%p723) target = $region112
        $region111: #{tpu_custom_call.1} parent=95 // pred_region
          %726 = dma.done [#allocation12], 1024
        $region112: #{tpu_custom_call.1} parent=95 // pred_fallthru
          _
        // Predicated region
        $region113: #{tpu_custom_call.1} parent=95 // pred_check
          %p727 = pneg %p194
        $region114: #{tpu_custom_call.1} parent=95 // pred_check_branch
          %729 = sbr.rel (%p727) target = $region116
        $region115: #{tpu_custom_call.1} parent=95 // pred_region
          %730 = dma.done [#allocation12], 1024
        $region116: #{tpu_custom_call.1} parent=95 // pred_fallthru
          _
        // Predicated region
        $region117: #{tpu_custom_call.1} parent=95 // pred_check
          %p731 = pneg %p236
        $region118: #{tpu_custom_call.1} parent=95 // pred_check_branch
          %733 = sbr.rel (%p731) target = $region120
        $region119: #{tpu_custom_call.1} parent=95 // pred_region
          %734 = dma.done [#allocation15], 1024
        $region120: #{tpu_custom_call.1} parent=95 // pred_fallthru
          _
        // Predicated region
        $region121: #{tpu_custom_call.1} parent=95 // pred_check
          %p735 = pneg %p278
        $region122: #{tpu_custom_call.1} parent=95 // pred_check_branch
          %737 = sbr.rel (%p735) target = $region124
        $region123: #{tpu_custom_call.1} parent=95 // pred_region
          %738 = dma.done [#allocation15], 1024
        $region124: #{tpu_custom_call.1} parent=95 // pred_fallthru
          _
        // Predicated region
        $region125: #{tpu_custom_call.1} parent=95 // pred_check
          %p739 = pneg %p362
        $region126: #{tpu_custom_call.1} parent=95 // pred_check_branch
          %741 = sbr.rel (%p739) target = $region128
        $region127: #{tpu_custom_call.1} parent=95 // pred_region
          %742 = dma.done [#allocation18], 2048
        $region128: #{tpu_custom_call.1} parent=95 // pred_fallthru
          _
        // Predicated region
        $region129: #{tpu_custom_call.1} parent=95 // pred_check
          %p743 = pneg %p404
        $region130: #{tpu_custom_call.1} parent=95 // pred_check_branch
          %745 = sbr.rel (%p743) target = $region132
        $region131: #{tpu_custom_call.1} parent=95 // pred_region
          %746 = dma.done [#allocation18], 2048
        $region132: #{tpu_custom_call.1} parent=95 // pred_fallthru
          _
        %s747 = sand.u32 %s64, 1
        %s748 = scalar_lea.sflag [#allocation6], %s747
        %s749 = sand.u32 %s64, 1
        %s750 = smul.addr %s749, 16
        %s751 = scalar_lea.vmem [#allocation5], %s750
        %p752 = pneg %p77
        %p753 = pneg %p74
        %s754 = sand.u32 %s42, 1
        %s755 = scalar_lea.sflag [#allocation9], %s754
        %s756 = sand.u32 %s90, 1
        %s757 = smul.addr %s756, 8
        %s758 = scalar_lea.vmem [#allocation8], %s757
        %p759 = pneg %p103
        %p760 = pneg %p100
        %s761 = sand.u32 %s42, 1
        %s762 = scalar_lea.sflag [#allocation9], %s761
        %s763 = sand.u32 %s118, 1
        %s764 = smul.addr %s763, 4
        %s765 = scalar_lea.vmem [#allocation10], %s764
        %p766 = pneg %p131
        %p767 = pneg %p128
        %p768 = pneg %p152
        %p769 = pneg %p149
        %p770 = pneg %p173
        %p771 = pneg %p170
        %p772 = pneg %p194
        %p773 = pneg %p191
        %p774 = pneg %p215
        %p775 = pneg %p212
        %p776 = pneg %p236
        %p777 = pneg %p233
        %p778 = pneg %p257
        %p779 = pneg %p254
        %p780 = pneg %p278
        %p781 = pneg %p275
        %p782 = pneg %p299
        %p783 = pneg %p296
        %p784 = pneg %p320
        %p785 = pneg %p317
        %p786 = pneg %p341
        %p787 = pneg %p338
        %p788 = pneg %p362
        %p789 = pneg %p359
        %p790 = pneg %p383
        %p791 = pneg %p380
        %p792 = pneg %p404
        %p793 = pneg %p401
        %p794 = pneg %p425
        %p795 = pneg %p422
        %p796 = pneg %p446
        %p797 = pneg %p443
        %p798 = pneg %p467
        %p799 = pneg %p464
        %p800 = pneg %p495
        %p801 = pneg %p492
        %s802 = sand.u32 %s482, 1
        %s803 = scalar_lea.sflag [#allocation7], %s802
        %s804 = sand.u32 %s482, 1
        %s805 = smul.addr %s804, 16
        %s806 = scalar_lea.vmem [#allocation20], %s805
        %s807 = smul.u32 2, %s47
        %s808 = smul.u32 2, %s47
        %s809 = smul.u32 2, %s47
        %v813 = vld [vmem:[%s700] sm:$0xff]
        %v814 = vld [vmem:[%s700 + $0x8] sm:$0xff]
        %v815 = vld [vmem:[%s718] sm:$0x3]
        %v816 = vld [vmem:[%s718 + $0x2] sm:$0x3]
        %vm817 = vnez %v815
        %vm818 = vnez %v816
        %p819 = scmp.eq.s32.totalorder %s47, 0
        // Predicated region
        $region133: #{tpu_custom_call.1} parent=95 // pred_check
          %p820 = pneg %p819
        $region134: #{tpu_custom_call.1} parent=95 // pred_check_branch
          %822 = sbr.rel (%p820) target = $region136
        $region135: #{tpu_custom_call.1} parent=95 // pred_region
          %v823 = vld [vmem:[%s709] sm:$0xf]
          %v824 = vld [vmem:[%s709 + $0x4] sm:$0xf]
          %v825 = vld [vmem:[#allocation13] sm:$0xf]
          %v826 = vld [vmem:[#allocation13 + $0x4] sm:$0xf]
          %v827 = vld [vmem:[#allocation13 + $0x8] sm:$0xf]
          %v828 = vld [vmem:[#allocation13 + $0xc] sm:$0xf]
          %v829 = vld [vmem:[#allocation13 + $0x10] sm:$0xf]
          %v830 = vld [vmem:[#allocation13 + $0x14] sm:$0xf]
          %v831 = vld [vmem:[#allocation13 + $0x18] sm:$0xf]
          %v832 = vld [vmem:[#allocation13 + $0x1c] sm:$0xf]
          %v833 = vld [vmem:[#allocation13 + $0x20] sm:$0xf]
          %v834 = vld [vmem:[#allocation13 + $0x24] sm:$0xf]
          %v835 = vld [vmem:[#allocation13 + $0x28] sm:$0xf]
          %v836 = vld [vmem:[#allocation13 + $0x2c] sm:$0xf]
          %v837 = vld [vmem:[#allocation13 + $0x30] sm:$0xf]
          %v838 = vld [vmem:[#allocation13 + $0x34] sm:$0xf]
          %v839 = vld [vmem:[#allocation13 + $0x38] sm:$0xf]
          %v840 = vld [vmem:[#allocation13 + $0x3c] sm:$0xf]
          %v841 = vld [vmem:[%s6] sm:$0x1]
          %v843 = vlaneseq
          %v844 = vshrl.u32 %v843, 7
          %v845 = vsub.s32 0, %v844
          %v846 = vrot.slane %v841, %v845
          %v850 = vunpack.c.l.b16 %v823
          %v851 = vunpack.c.l.b16 %v824
          %v852 = vpack.c.b16 %v851, %v850
          %v870 = vunpack.c.l.b16 %v825
          %v871 = vunpack.c.l.b16 %v826
          %v872 = vunpack.c.l.b16 %v827
          %v873 = vunpack.c.l.b16 %v828
          %v874 = vunpack.c.l.b16 %v829
          %v875 = vunpack.c.l.b16 %v830
          %v876 = vunpack.c.l.b16 %v831
          %v877 = vunpack.c.l.b16 %v832
          %v878 = vunpack.c.l.b16 %v833
          %v879 = vunpack.c.l.b16 %v834
          %v880 = vunpack.c.l.b16 %v835
          %v881 = vunpack.c.l.b16 %v836
          %v882 = vunpack.c.l.b16 %v837
          %v883 = vunpack.c.l.b16 %v838
          %v884 = vunpack.c.l.b16 %v839
          %v885 = vunpack.c.l.b16 %v840
          %v886 = vpack.c.b16 %v871, %v870
          %v887 = vpack.c.b16 %v873, %v872
          %v888 = vpack.c.b16 %v875, %v874
          %v889 = vpack.c.b16 %v877, %v876
          %v890 = vpack.c.b16 %v879, %v878
          %v891 = vpack.c.b16 %v881, %v880
          %v892 = vpack.c.b16 %v883, %v882
          %v893 = vpack.c.b16 %v885, %v884
          %902 = vmatprep.subr.bf16.mxu0 0
          %903 = vmatpush1.bf16.msra.mxu0 %v886
          %904 = vmatprep.subr.bf16.mxu0 0
          %905 = vmatpush1.bf16.msra.mxu0 %v887
          %906 = vmatprep.subr.bf16.mxu0 0
          %907 = vmatpush1.bf16.msra.mxu0 %v888
          %908 = vmatprep.subr.bf16.mxu0 0
          %909 = vmatpush1.bf16.msra.mxu0 %v889
          %910 = vmatprep.subr.bf16.mxu0 0
          %911 = vmatpush1.bf16.msra.mxu0 %v890
          %912 = vmatprep.subr.bf16.mxu0 0
          %913 = vmatpush1.bf16.msra.mxu0 %v891
          %914 = vmatprep.subr.bf16.mxu0 0
          %915 = vmatpush1.bf16.msra.mxu0 %v892
          %916 = vmatprep.subr.bf16.mxu0 0
          %917 = vmatpush1.bf16.msra.mxu0 %v893
          %918 = vmatprep.subr.bf16.mxu0 0
          %919 = vmatpush1.bf16.msra.mxu0 0
          %920 = vmatprep.subr.bf16.mxu0 0
          %921 = vmatpush1.bf16.msra.mxu0 0
          %922 = vmatprep.subr.bf16.mxu0 0
          %923 = vmatpush1.bf16.msra.mxu0 0
          %924 = vmatprep.subr.bf16.mxu0 0
          %925 = vmatpush1.bf16.msra.mxu0 0
          %926 = vmatprep.subr.bf16.mxu0 0
          %927 = vmatpush1.bf16.msra.mxu0 0
          %928 = vmatprep.subr.bf16.mxu0 0
          %929 = vmatpush1.bf16.msra.mxu0 0
          %930 = vmatprep.subr.bf16.mxu0 0
          %931 = vmatpush1.bf16.msra.mxu0 0
          %932 = vmatprep.subr.bf16.mxu0 0
          %933 = vmatpush1.bf16.msra.mxu0 0
          %934 = vmatprep.mubr.bf16.mxu0 0
          %935 = vmatmul.mubr.bf16.gmra.mrb[0].mxu0 %v852
          %v936 = vpop.f32.mrb[0].mxu0
          %v937 = vadd.f32 %v846, %v936
          %v938 = vpop.f32.mrb[0].mxu0
          %v939 = vpop.f32.mrb[0].mxu0
          %v940 = vadd.f32 %v846, %v939
          %v941 = vpop.f32.mrb[0].mxu0
          %942 = vdwg.mxu0
          %v943 = vld [vmem:[#allocation14] sm:$0xf]
          %v944 = vld [vmem:[#allocation14 + $0x4] sm:$0xf]
          %v945 = vld [vmem:[#allocation14 + $0x8] sm:$0xf]
          %v946 = vld [vmem:[#allocation14 + $0xc] sm:$0xf]
          %v947 = vld [vmem:[#allocation14 + $0x10] sm:$0xf]
          %v948 = vld [vmem:[#allocation14 + $0x14] sm:$0xf]
          %v949 = vld [vmem:[#allocation14 + $0x18] sm:$0xf]
          %v950 = vld [vmem:[#allocation14 + $0x1c] sm:$0xf]
          %v951 = vld [vmem:[#allocation14 + $0x20] sm:$0xf]
          %v952 = vld [vmem:[#allocation14 + $0x24] sm:$0xf]
          %v953 = vld [vmem:[#allocation14 + $0x28] sm:$0xf]
          %v954 = vld [vmem:[#allocation14 + $0x2c] sm:$0xf]
          %v955 = vld [vmem:[#allocation14 + $0x30] sm:$0xf]
          %v956 = vld [vmem:[#allocation14 + $0x34] sm:$0xf]
          %v957 = vld [vmem:[#allocation14 + $0x38] sm:$0xf]
          %v958 = vld [vmem:[#allocation14 + $0x3c] sm:$0xf]
          %v959 = vld [vmem:[%s8] sm:$0x1]
          %v961 = vlaneseq
          %v962 = vshrl.u32 %v961, 7
          %v963 = vsub.s32 0, %v962
          %v964 = vrot.slane %v959, %v963
          %v982 = vunpack.c.l.b16 %v943
          %v983 = vunpack.c.l.b16 %v944
          %v984 = vunpack.c.l.b16 %v945
          %v985 = vunpack.c.l.b16 %v946
          %v986 = vunpack.c.l.b16 %v947
          %v987 = vunpack.c.l.b16 %v948
          %v988 = vunpack.c.l.b16 %v949
          %v989 = vunpack.c.l.b16 %v950
          %v990 = vunpack.c.l.b16 %v951
          %v991 = vunpack.c.l.b16 %v952
          %v992 = vunpack.c.l.b16 %v953
          %v993 = vunpack.c.l.b16 %v954
          %v994 = vunpack.c.l.b16 %v955
          %v995 = vunpack.c.l.b16 %v956
          %v996 = vunpack.c.l.b16 %v957
          %v997 = vunpack.c.l.b16 %v958
          %v998 = vpack.c.b16 %v983, %v982
          %v999 = vpack.c.b16 %v985, %v984
          %v1000 = vpack.c.b16 %v987, %v986
          %v1001 = vpack.c.b16 %v989, %v988
          %v1002 = vpack.c.b16 %v991, %v990
          %v1003 = vpack.c.b16 %v993, %v992
          %v1004 = vpack.c.b16 %v995, %v994
          %v1005 = vpack.c.b16 %v997, %v996
          %1014 = vmatprep.subr.bf16.mxu0 0
          %1015 = vmatpush1.bf16.msra.mxu0 %v998
          %1016 = vmatprep.subr.bf16.mxu0 0
          %1017 = vmatpush1.bf16.msra.mxu0 %v999
          %1018 = vmatprep.subr.bf16.mxu0 0
          %1019 = vmatpush1.bf16.msra.mxu0 %v1000
          %1020 = vmatprep.subr.bf16.mxu0 0
          %1021 = vmatpush1.bf16.msra.mxu0 %v1001
          %1022 = vmatprep.subr.bf16.mxu0 0
          %1023 = vmatpush1.bf16.msra.mxu0 %v1002
          %1024 = vmatprep.subr.bf16.mxu0 0
          %1025 = vmatpush1.bf16.msra.mxu0 %v1003
          %1026 = vmatprep.subr.bf16.mxu0 0
          %1027 = vmatpush1.bf16.msra.mxu0 %v1004
          %1028 = vmatprep.subr.bf16.mxu0 0
          %1029 = vmatpush1.bf16.msra.mxu0 %v1005
          %1030 = vmatprep.subr.bf16.mxu0 0
          %1031 = vmatpush1.bf16.msra.mxu0 0
          %1032 = vmatprep.subr.bf16.mxu0 0
          %1033 = vmatpush1.bf16.msra.mxu0 0
          %1034 = vmatprep.subr.bf16.mxu0 0
          %1035 = vmatpush1.bf16.msra.mxu0 0
          %1036 = vmatprep.subr.bf16.mxu0 0
          %1037 = vmatpush1.bf16.msra.mxu0 0
          %1038 = vmatprep.subr.bf16.mxu0 0
          %1039 = vmatpush1.bf16.msra.mxu0 0
          %1040 = vmatprep.subr.bf16.mxu0 0
          %1041 = vmatpush1.bf16.msra.mxu0 0
          %1042 = vmatprep.subr.bf16.mxu0 0
          %1043 = vmatpush1.bf16.msra.mxu0 0
          %1044 = vmatprep.subr.bf16.mxu0 0
          %1045 = vmatpush1.bf16.msra.mxu0 0
          %1046 = vmatprep.mubr.bf16.mxu0 0
          %1047 = vmatmul.mubr.bf16.gmra.mrb[0].mxu0 %v852
          %v1048 = vpop.f32.mrb[0].mxu0
          %v1049 = vadd.f32 %v964, %v1048
          %v1050 = vpop.f32.mrb[0].mxu0
          %v1051 = vpop.f32.mrb[0].mxu0
          %v1052 = vadd.f32 %v964, %v1051
          %v1053 = vpop.f32.mrb[0].mxu0
          %1054 = vdwg.mxu0
          %v1055 = vpack.c.bf16 %v940, %v937
          %1056 = vst [vmem:[#allocation2] sm:$0xff] %v1055
          %v1057 = vpack.c.bf16 %v1052, %v1049
          %1058 = vst [vmem:[#allocation3] sm:$0xff] %v1057
        $region136: #{tpu_custom_call.1} parent=95 // pred_fallthru
          _
        %v1059 = vpack.c.bf16 %v814, %v813
        %v1060 = vld [vmem:[#allocation11] sm:$0xf]
        %v1061 = vld [vmem:[#allocation11 + $0x4] sm:$0xf]
        %v1062 = vld [vmem:[#allocation11 + $0x8] sm:$0xf]
        %v1063 = vld [vmem:[#allocation11 + $0xc] sm:$0xf]
        %v1064 = vld [vmem:[#allocation11 + $0x10] sm:$0xf]
        %v1065 = vld [vmem:[#allocation11 + $0x14] sm:$0xf]
        %v1066 = vld [vmem:[#allocation11 + $0x18] sm:$0xf]
        %v1067 = vld [vmem:[#allocation11 + $0x1c] sm:$0xf]
        %v1068 = vld [vmem:[#allocation11 + $0x20] sm:$0xf]
        %v1069 = vld [vmem:[#allocation11 + $0x24] sm:$0xf]
        %v1070 = vld [vmem:[#allocation11 + $0x28] sm:$0xf]
        %v1071 = vld [vmem:[#allocation11 + $0x2c] sm:$0xf]
        %v1072 = vld [vmem:[#allocation11 + $0x30] sm:$0xf]
        %v1073 = vld [vmem:[#allocation11 + $0x34] sm:$0xf]
        %v1074 = vld [vmem:[#allocation11 + $0x38] sm:$0xf]
        %v1075 = vld [vmem:[#allocation11 + $0x3c] sm:$0xf]
        %v1076 = vld [vmem:[%s4] sm:$0x1]
        %v1078 = vlaneseq
        %v1079 = vshrl.u32 %v1078, 7
        %v1080 = vsub.s32 0, %v1079
        %v1081 = vrot.slane %v1076, %v1080
        %v1099 = vunpack.c.l.b16 %v1060
        %v1100 = vunpack.c.l.b16 %v1061
        %v1101 = vunpack.c.l.b16 %v1062
        %v1102 = vunpack.c.l.b16 %v1063
        %v1103 = vunpack.c.l.b16 %v1064
        %v1104 = vunpack.c.l.b16 %v1065
        %v1105 = vunpack.c.l.b16 %v1066
        %v1106 = vunpack.c.l.b16 %v1067
        %v1107 = vunpack.c.l.b16 %v1068
        %v1108 = vunpack.c.l.b16 %v1069
        %v1109 = vunpack.c.l.b16 %v1070
        %v1110 = vunpack.c.l.b16 %v1071
        %v1111 = vunpack.c.l.b16 %v1072
        %v1112 = vunpack.c.l.b16 %v1073
        %v1113 = vunpack.c.l.b16 %v1074
        %v1114 = vunpack.c.l.b16 %v1075
        %v1115 = vpack.c.b16 %v1100, %v1099
        %v1116 = vpack.c.b16 %v1102, %v1101
        %v1117 = vpack.c.b16 %v1104, %v1103
        %v1118 = vpack.c.b16 %v1106, %v1105
        %v1119 = vpack.c.b16 %v1108, %v1107
        %v1120 = vpack.c.b16 %v1110, %v1109
        %v1121 = vpack.c.b16 %v1112, %v1111
        %v1122 = vpack.c.b16 %v1114, %v1113
        %1131 = vmatprep.subr.bf16.mxu0 0
        %1132 = vmatpush1.bf16.msra.mxu0 %v1115
        %1133 = vmatprep.subr.bf16.mxu0 0
        %1134 = vmatpush1.bf16.msra.mxu0 %v1116
        %1135 = vmatprep.subr.bf16.mxu0 0
        %1136 = vmatpush1.bf16.msra.mxu0 %v1117
        %1137 = vmatprep.subr.bf16.mxu0 0
        %1138 = vmatpush1.bf16.msra.mxu0 %v1118
        %1139 = vmatprep.subr.bf16.mxu0 0
        %1140 = vmatpush1.bf16.msra.mxu0 %v1119
        %1141 = vmatprep.subr.bf16.mxu0 0
        %1142 = vmatpush1.bf16.msra.mxu0 %v1120
        %1143 = vmatprep.subr.bf16.mxu0 0
        %1144 = vmatpush1.bf16.msra.mxu0 %v1121
        %1145 = vmatprep.subr.bf16.mxu0 0
        %1146 = vmatpush1.bf16.msra.mxu0 %v1122
        %1147 = vmatprep.subr.bf16.mxu0 0
        %1148 = vmatpush1.bf16.msra.mxu0 0
        %1149 = vmatprep.subr.bf16.mxu0 0
        %1150 = vmatpush1.bf16.msra.mxu0 0
        %1151 = vmatprep.subr.bf16.mxu0 0
        %1152 = vmatpush1.bf16.msra.mxu0 0
        %1153 = vmatprep.subr.bf16.mxu0 0
        %1154 = vmatpush1.bf16.msra.mxu0 0
        %1155 = vmatprep.subr.bf16.mxu0 0
        %1156 = vmatpush1.bf16.msra.mxu0 0
        %1157 = vmatprep.subr.bf16.mxu0 0
        %1158 = vmatpush1.bf16.msra.mxu0 0
        %1159 = vmatprep.subr.bf16.mxu0 0
        %1160 = vmatpush1.bf16.msra.mxu0 0
        %1161 = vmatprep.subr.bf16.mxu0 0
        %1162 = vmatpush1.bf16.msra.mxu0 0
        %1163 = vmatprep.mubr.bf16.mxu0 0
        %1164 = vmatmul.mubr.bf16.gmra.mrb[0].mxu0 %v1059
        %v1165 = vpop.f32.mrb[0].mxu0
        %v1166 = vadd.f32 %v1081, %v1165
        %v1167 = vpop.f32.mrb[0].mxu0
        %v1168 = vpop.f32.mrb[0].mxu0
        %v1169 = vadd.f32 %v1081, %v1168
        %v1170 = vpop.f32.mrb[0].mxu0
        %1171 = vdwg.mxu0
        %v1172 = vld [vmem:[#allocation2] sm:$0xff]
        %v1173 = vld [vmem:[#allocation3] sm:$0xff]
        %v1174 = vpack.c.bf16 %v1169, %v1166
        %vm1175 = vcmask 261120
        %v1177 = vsel %vm1175, %v1174, 0
        %v1180 = vsel %vm1175, %v1172, 0
        %1182 = vmatprep.subr.bf16.mxu0 0
        %1183 = vmatpush1.bf16.xpose.msra.mxu0 %v1180
        %1184 = vmatprep.subr.bf16.mxu0 0
        %1185 = vmatpush1.bf16.xpose.msra.mxu0 0
        %1186 = vmatprep.subr.bf16.mxu0 0
        %1187 = vmatpush1.bf16.xpose.msra.mxu0 0
        %1188 = vmatprep.subr.bf16.mxu0 0
        %1189 = vmatpush1.bf16.xpose.msra.mxu0 0
        %1190 = vmatprep.subr.bf16.mxu0 0
        %1191 = vmatpush1.bf16.xpose.msra.mxu0 0
        %1192 = vmatprep.subr.bf16.mxu0 0
        %1193 = vmatpush1.bf16.xpose.msra.mxu0 0
        %1194 = vmatprep.subr.bf16.mxu0 0
        %1195 = vmatpush1.bf16.xpose.msra.mxu0 0
        %1196 = vmatprep.subr.bf16.mxu0 0
        %1197 = vmatpush1.bf16.xpose.msra.mxu0 0
        %1198 = vmatprep.subr.bf16.mxu0 0
        %1199 = vmatpush1.bf16.xpose.msra.mxu0 0
        %1200 = vmatprep.subr.bf16.mxu0 0
        %1201 = vmatpush1.bf16.xpose.msra.mxu0 0
        %1202 = vmatprep.subr.bf16.mxu0 0
        %1203 = vmatpush1.bf16.xpose.msra.mxu0 0
        %1204 = vmatprep.subr.bf16.mxu0 0
        %1205 = vmatpush1.bf16.xpose.msra.mxu0 0
        %1206 = vmatprep.subr.bf16.mxu0 0
        %1207 = vmatpush1.bf16.xpose.msra.mxu0 0
        %1208 = vmatprep.subr.bf16.mxu0 0
        %1209 = vmatpush1.bf16.xpose.msra.mxu0 0
        %1210 = vmatprep.subr.bf16.mxu0 0
        %1211 = vmatpush1.bf16.xpose.msra.mxu0 0
        %1212 = vmatprep.subr.bf16.mxu0 0
        %1213 = vmatpush1.bf16.xpose.msra.mxu0 0
        %1214 = vmatprep.mubr.bf16.mxu0 0
        %1215 = vmatmul.mubr.bf16.gmra.mrb[0].mxu0 %v1177
        %v1216 = vpop.f32.mrb[0].mxu0
        %v1217 = vadd.f32 0.0, %v1216
        %v1218 = vpop.f32.mrb[0].mxu0
        %v1219 = vpop.f32.mrb[0].mxu0
        %v1220 = vadd.f32 0.0, %v1219
        %v1221 = vpop.f32.mrb[0].mxu0
        %1222 = vdwg.mxu0
        %v1223 = vsel %vm817, 16843009, 0
        %v1224 = vsel %vm818, 16843009, 0
        %v1225 = vunpack.c.0.s8 %v1223
        %v1226 = vunpack.c.0.s8 %v1224
        %vm1227 = vcmp.ne.s32.totalorder %v1225, 0
        %vm1228 = vcmp.ne.s32.totalorder %v1226, 0
        %v1229 = vsel %vm1227, %v1217, -1e+09
        %v1230 = vsel %vm1228, %v1220, -1e+09
        %vm1231 = vcmask 130048
        %v1232 = vsel %vm1231, %v1229, -inf
        %1233 = vmax.xlane.f32.xlu0 %v1232
        %v1234 = vpop.xlane.xlu0 %1233
        %v1235 = vsel %vm1231, %v1230, -inf
        %1236 = vmax.xlane.f32.xlu0 %v1235
        %v1237 = vpop.xlane.xlu0 %1236
        %v1238 = vsub.f32 %v1229, %v1234
        %v1239 = vsub.f32 %v1230, %v1237
        %v1240 = vmul.f32 %v1238, 1.442695
        %v1241 = vpow.pop %v1240
        %v1242 = vmul.f32 %v1239, 1.442695
        %v1243 = vpow.pop %v1242
        %v1244 = vsel %vm1231, %v1241, 0.0
        %1245 = vadd.xlane.f32.xlu0 %v1244
        %v1246 = vpop.xlane.xlu0 %1245
        %v1247 = vsel %vm1231, %v1243, 0.0
        %1248 = vadd.xlane.f32.xlu0 %v1247
        %v1249 = vpop.xlane.xlu0 %1248
        %v1250 = vrcp.pop %v1246
        %v1251 = vrcp.pop %v1249
        %v1252 = vmul.f32 %v1241, %v1250
        %v1253 = vmul.f32 %v1243, %v1251
        %v1254 = vpack.c.bf16 %v1253, %v1252
        %v1256 = vsel %vm1231, %v1254, 0
        %1258 = vmatprep.subr.bf16.mxu0 0
        %1259 = vmatpush1.bf16.msra.mxu0 %v1173
        %1260 = vmatprep.subr.bf16.mxu0 0
        %1261 = vmatpush1.bf16.msra.mxu0 0
        %1262 = vmatprep.subr.bf16.mxu0 0
        %1263 = vmatpush1.bf16.msra.mxu0 0
        %1264 = vmatprep.subr.bf16.mxu0 0
        %1265 = vmatpush1.bf16.msra.mxu0 0
        %1266 = vmatprep.subr.bf16.mxu0 0
        %1267 = vmatpush1.bf16.msra.mxu0 0
        %1268 = vmatprep.subr.bf16.mxu0 0
        %1269 = vmatpush1.bf16.msra.mxu0 0
        %1270 = vmatprep.subr.bf16.mxu0 0
        %1271 = vmatpush1.bf16.msra.mxu0 0
        %1272 = vmatprep.subr.bf16.mxu0 0
        %1273 = vmatpush1.bf16.msra.mxu0 0
        %1274 = vmatprep.subr.bf16.mxu0 0
        %1275 = vmatpush1.bf16.msra.mxu0 0
        %1276 = vmatprep.subr.bf16.mxu0 0
        %1277 = vmatpush1.bf16.msra.mxu0 0
        %1278 = vmatprep.subr.bf16.mxu0 0
        %1279 = vmatpush1.bf16.msra.mxu0 0
        %1280 = vmatprep.subr.bf16.mxu0 0
        %1281 = vmatpush1.bf16.msra.mxu0 0
        %1282 = vmatprep.subr.bf16.mxu0 0
        %1283 = vmatpush1.bf16.msra.mxu0 0
        %1284 = vmatprep.subr.bf16.mxu0 0
        %1285 = vmatpush1.bf16.msra.mxu0 0
        %1286 = vmatprep.subr.bf16.mxu0 0
        %1287 = vmatpush1.bf16.msra.mxu0 0
        %1288 = vmatprep.subr.bf16.mxu0 0
        %1289 = vmatpush1.bf16.msra.mxu0 0
        %1290 = vmatprep.mubr.bf16.mxu0 0
        %1291 = vmatmul.mubr.bf16.gmra.mrb[0].mxu0 %v1256
        %v1292 = vpop.f32.mrb[0].mxu0
        %v1293 = vadd.f32 0.0, %v1292
        %v1294 = vpop.f32.mrb[0].mxu0
        %v1295 = vpop.f32.mrb[0].mxu0
        %v1296 = vadd.f32 0.0, %v1295
        %v1297 = vpop.f32.mrb[0].mxu0
        %1298 = vdwg.mxu0
        %v1299 = vpack.c.bf16 %v1296, %v1293
        %1300 = vst.msk [vmem:[#allocation4] sm:$0xff] %vm1175, %v1299
        %1302 = vrot.lane.b32.xlu0 %v1174, 96
        %v1303 = vpop.permute.xlu0 %1302
        %1305 = vrot.lane.b32.xlu0 %v1172, 96
        %v1306 = vpop.permute.xlu0 %1305
        %v1308 = vsel %vm1175, %v1303, 0
        %v1311 = vsel %vm1175, %v1306, 0
        %1313 = vmatprep.subr.bf16.mxu0 0
        %1314 = vmatpush1.bf16.xpose.msra.mxu0 %v1311
        %1315 = vmatprep.subr.bf16.mxu0 0
        %1316 = vmatpush1.bf16.xpose.msra.mxu0 0
        %1317 = vmatprep.subr.bf16.mxu0 0
        %1318 = vmatpush1.bf16.xpose.msra.mxu0 0
        %1319 = vmatprep.subr.bf16.mxu0 0
        %1320 = vmatpush1.bf16.xpose.msra.mxu0 0
        %1321 = vmatprep.subr.bf16.mxu0 0
        %1322 = vmatpush1.bf16.xpose.msra.mxu0 0
        %1323 = vmatprep.subr.bf16.mxu0 0
        %1324 = vmatpush1.bf16.xpose.msra.mxu0 0
        %1325 = vmatprep.subr.bf16.mxu0 0
        %1326 = vmatpush1.bf16.xpose.msra.mxu0 0
        %1327 = vmatprep.subr.bf16.mxu0 0
        %1328 = vmatpush1.bf16.xpose.msra.mxu0 0
        %1329 = vmatprep.subr.bf16.mxu0 0
        %1330 = vmatpush1.bf16.xpose.msra.mxu0 0
        %1331 = vmatprep.subr.bf16.mxu0 0
        %1332 = vmatpush1.bf16.xpose.msra.mxu0 0
        %1333 = vmatprep.subr.bf16.mxu0 0
        %1334 = vmatpush1.bf16.xpose.msra.mxu0 0
        %1335 = vmatprep.subr.bf16.mxu0 0
        %1336 = vmatpush1.bf16.xpose.msra.mxu0 0
        %1337 = vmatprep.subr.bf16.mxu0 0
        %1338 = vmatpush1.bf16.xpose.msra.mxu0 0
        %1339 = vmatprep.subr.bf16.mxu0 0
        %1340 = vmatpush1.bf16.xpose.msra.mxu0 0
        %1341 = vmatprep.subr.bf16.mxu0 0
        %1342 = vmatpush1.bf16.xpose.msra.mxu0 0
        %1343 = vmatprep.subr.bf16.mxu0 0
        %1344 = vmatpush1.bf16.xpose.msra.mxu0 0
        %1345 = vmatprep.mubr.bf16.mxu0 0
        %1346 = vmatmul.mubr.bf16.gmra.mrb[0].mxu0 %v1308
        %v1347 = vpop.f32.mrb[0].mxu0
        %v1348 = vadd.f32 0.0, %v1347
        %v1349 = vpop.f32.mrb[0].mxu0
        %v1350 = vpop.f32.mrb[0].mxu0
        %v1351 = vadd.f32 0.0, %v1350
        %v1352 = vpop.f32.mrb[0].mxu0
        %1353 = vdwg.mxu0
        %v1354 = vsel %vm1227, %v1348, -1e+09
        %v1355 = vsel %vm1228, %v1351, -1e+09
        %v1356 = vsel %vm1231, %v1354, -inf
        %1357 = vmax.xlane.f32.xlu0 %v1356
        %v1358 = vpop.xlane.xlu0 %1357
        %v1359 = vsel %vm1231, %v1355, -inf
        %1360 = vmax.xlane.f32.xlu0 %v1359
        %v1361 = vpop.xlane.xlu0 %1360
        %v1362 = vsub.f32 %v1354, %v1358
        %v1363 = vsub.f32 %v1355, %v1361
        %v1364 = vmul.f32 %v1362, 1.442695
        %v1365 = vpow.pop %v1364
        %v1366 = vmul.f32 %v1363, 1.442695
        %v1367 = vpow.pop %v1366
        %v1368 = vsel %vm1231, %v1365, 0.0
        %1369 = vadd.xlane.f32.xlu0 %v1368
        %v1370 = vpop.xlane.xlu0 %1369
        %v1371 = vsel %vm1231, %v1367, 0.0
        %1372 = vadd.xlane.f32.xlu0 %v1371
        %v1373 = vpop.xlane.xlu0 %1372
        %v1374 = vrcp.pop %v1370
        %v1375 = vrcp.pop %v1373
        %v1376 = vmul.f32 %v1365, %v1374
        %v1377 = vmul.f32 %v1367, %v1375
        %v1378 = vpack.c.bf16 %v1377, %v1376
        %1380 = vrot.lane.b32.xlu0 %v1173, 96
        %v1381 = vpop.permute.xlu0 %1380
        %v1384 = vsel %vm1231, %v1378, 0
        %1386 = vmatprep.subr.bf16.mxu0 0
        %1387 = vmatpush1.bf16.msra.mxu0 %v1381
        %1388 = vmatprep.subr.bf16.mxu0 0
        %1389 = vmatpush1.bf16.msra.mxu0 0
        %1390 = vmatprep.subr.bf16.mxu0 0
        %1391 = vmatpush1.bf16.msra.mxu0 0
        %1392 = vmatprep.subr.bf16.mxu0 0
        %1393 = vmatpush1.bf16.msra.mxu0 0
        %1394 = vmatprep.subr.bf16.mxu0 0
        %1395 = vmatpush1.bf16.msra.mxu0 0
        %1396 = vmatprep.subr.bf16.mxu0 0
        %1397 = vmatpush1.bf16.msra.mxu0 0
        %1398 = vmatprep.subr.bf16.mxu0 0
        %1399 = vmatpush1.bf16.msra.mxu0 0
        %1400 = vmatprep.subr.bf16.mxu0 0
        %1401 = vmatpush1.bf16.msra.mxu0 0
        %1402 = vmatprep.subr.bf16.mxu0 0
        %1403 = vmatpush1.bf16.msra.mxu0 0
        %1404 = vmatprep.subr.bf16.mxu0 0
        %1405 = vmatpush1.bf16.msra.mxu0 0
        %1406 = vmatprep.subr.bf16.mxu0 0
        %1407 = vmatpush1.bf16.msra.mxu0 0
        %1408 = vmatprep.subr.bf16.mxu0 0
        %1409 = vmatpush1.bf16.msra.mxu0 0
        %1410 = vmatprep.subr.bf16.mxu0 0
        %1411 = vmatpush1.bf16.msra.mxu0 0
        %1412 = vmatprep.subr.bf16.mxu0 0
        %1413 = vmatpush1.bf16.msra.mxu0 0
        %1414 = vmatprep.subr.bf16.mxu0 0
        %1415 = vmatpush1.bf16.msra.mxu0 0
        %1416 = vmatprep.subr.bf16.mxu0 0
        %1417 = vmatpush1.bf16.msra.mxu0 0
        %1418 = vmatprep.mubr.bf16.mxu0 0
        %1419 = vmatmul.mubr.bf16.gmra.mrb[0].mxu0 %v1384
        %v1420 = vpop.f32.mrb[0].mxu0
        %v1421 = vadd.f32 0.0, %v1420
        %v1422 = vpop.f32.mrb[0].mxu0
        %v1423 = vpop.f32.mrb[0].mxu0
        %v1424 = vadd.f32 0.0, %v1423
        %v1425 = vpop.f32.mrb[0].mxu0
        %1426 = vdwg.mxu0
        %v1427 = vpack.c.bf16 %v1424, %v1421
        %1429 = vrot.lane.b32.xlu0 %v1427, 32
        %v1430 = vpop.permute.xlu0 %1429
        %vm1432 = vcmask 523520
        %1433 = vst.msk [vmem:[#allocation4] sm:$0xff] %vm1432, %v1430
        %1434 = vrot.lane.b32.xlu0 %v1174, 64
        %v1435 = vpop.permute.xlu0 %1434
        %1436 = vrot.lane.b32.xlu0 %v1172, 64
        %v1437 = vpop.permute.xlu0 %1436
        %v1439 = vsel %vm1175, %v1435, 0
        %v1442 = vsel %vm1175, %v1437, 0
        %1444 = vmatprep.subr.bf16.mxu0 0
        %1445 = vmatpush1.bf16.xpose.msra.mxu0 %v1442
        %1446 = vmatprep.subr.bf16.mxu0 0
        %1447 = vmatpush1.bf16.xpose.msra.mxu0 0
        %1448 = vmatprep.subr.bf16.mxu0 0
        %1449 = vmatpush1.bf16.xpose.msra.mxu0 0
        %1450 = vmatprep.subr.bf16.mxu0 0
        %1451 = vmatpush1.bf16.xpose.msra.mxu0 0
        %1452 = vmatprep.subr.bf16.mxu0 0
        %1453 = vmatpush1.bf16.xpose.msra.mxu0 0
        %1454 = vmatprep.subr.bf16.mxu0 0
        %1455 = vmatpush1.bf16.xpose.msra.mxu0 0
        %1456 = vmatprep.subr.bf16.mxu0 0
        %1457 = vmatpush1.bf16.xpose.msra.mxu0 0
        %1458 = vmatprep.subr.bf16.mxu0 0
        %1459 = vmatpush1.bf16.xpose.msra.mxu0 0
        %1460 = vmatprep.subr.bf16.mxu0 0
        %1461 = vmatpush1.bf16.xpose.msra.mxu0 0
        %1462 = vmatprep.subr.bf16.mxu0 0
        %1463 = vmatpush1.bf16.xpose.msra.mxu0 0
        %1464 = vmatprep.subr.bf16.mxu0 0
        %1465 = vmatpush1.bf16.xpose.msra.mxu0 0
        %1466 = vmatprep.subr.bf16.mxu0 0
        %1467 = vmatpush1.bf16.xpose.msra.mxu0 0
        %1468 = vmatprep.subr.bf16.mxu0 0
        %1469 = vmatpush1.bf16.xpose.msra.mxu0 0
        %1470 = vmatprep.subr.bf16.mxu0 0
        %1471 = vmatpush1.bf16.xpose.msra.mxu0 0
        %1472 = vmatprep.subr.bf16.mxu0 0
        %1473 = vmatpush1.bf16.xpose.msra.mxu0 0
        %1474 = vmatprep.subr.bf16.mxu0 0
        %1475 = vmatpush1.bf16.xpose.msra.mxu0 0
        %1476 = vmatprep.mubr.bf16.mxu0 0
        %1477 = vmatmul.mubr.bf16.gmra.mrb[0].mxu0 %v1439
        %v1478 = vpop.f32.mrb[0].mxu0
        %v1479 = vadd.f32 0.0, %v1478
        %v1480 = vpop.f32.mrb[0].mxu0
        %v1481 = vpop.f32.mrb[0].mxu0
        %v1482 = vadd.f32 0.0, %v1481
        %v1483 = vpop.f32.mrb[0].mxu0
        %1484 = vdwg.mxu0
        %v1485 = vsel %vm1227, %v1479, -1e+09
        %v1486 = vsel %vm1228, %v1482, -1e+09
        %v1487 = vsel %vm1231, %v1485, -inf
        %1488 = vmax.xlane.f32.xlu0 %v1487
        %v1489 = vpop.xlane.xlu0 %1488
        %v1490 = vsel %vm1231, %v1486, -inf
        %1491 = vmax.xlane.f32.xlu0 %v1490
        %v1492 = vpop.xlane.xlu0 %1491
        %v1493 = vsub.f32 %v1485, %v1489
        %v1494 = vsub.f32 %v1486, %v1492
        %v1495 = vmul.f32 %v1493, 1.442695
        %v1496 = vpow.pop %v1495
        %v1497 = vmul.f32 %v1494, 1.442695
        %v1498 = vpow.pop %v1497
        %v1499 = vsel %vm1231, %v1496, 0.0
        %1500 = vadd.xlane.f32.xlu0 %v1499
        %v1501 = vpop.xlane.xlu0 %1500
        %v1502 = vsel %vm1231, %v1498, 0.0
        %1503 = vadd.xlane.f32.xlu0 %v1502
        %v1504 = vpop.xlane.xlu0 %1503
        %v1505 = vrcp.pop %v1501
        %v1506 = vrcp.pop %v1504
        %v1507 = vmul.f32 %v1496, %v1505
        %v1508 = vmul.f32 %v1498, %v1506
        %v1509 = vpack.c.bf16 %v1508, %v1507
        %1510 = vrot.lane.b32.xlu0 %v1173, 64
        %v1511 = vpop.permute.xlu0 %1510
        %v1514 = vsel %vm1231, %v1509, 0
        %1516 = vmatprep.subr.bf16.mxu0 0
        %1517 = vmatpush1.bf16.msra.mxu0 %v1511
        %1518 = vmatprep.subr.bf16.mxu0 0
        %1519 = vmatpush1.bf16.msra.mxu0 0
        %1520 = vmatprep.subr.bf16.mxu0 0
        %1521 = vmatpush1.bf16.msra.mxu0 0
        %1522 = vmatprep.subr.bf16.mxu0 0
        %1523 = vmatpush1.bf16.msra.mxu0 0
        %1524 = vmatprep.subr.bf16.mxu0 0
        %1525 = vmatpush1.bf16.msra.mxu0 0
        %1526 = vmatprep.subr.bf16.mxu0 0
        %1527 = vmatpush1.bf16.msra.mxu0 0
        %1528 = vmatprep.subr.bf16.mxu0 0
        %1529 = vmatpush1.bf16.msra.mxu0 0
        %1530 = vmatprep.subr.bf16.mxu0 0
        %1531 = vmatpush1.bf16.msra.mxu0 0
        %1532 = vmatprep.subr.bf16.mxu0 0
        %1533 = vmatpush1.bf16.msra.mxu0 0
        %1534 = vmatprep.subr.bf16.mxu0 0
        %1535 = vmatpush1.bf16.msra.mxu0 0
        %1536 = vmatprep.subr.bf16.mxu0 0
        %1537 = vmatpush1.bf16.msra.mxu0 0
        %1538 = vmatprep.subr.bf16.mxu0 0
        %1539 = vmatpush1.bf16.msra.mxu0 0
        %1540 = vmatprep.subr.bf16.mxu0 0
        %1541 = vmatpush1.bf16.msra.mxu0 0
        %1542 = vmatprep.subr.bf16.mxu0 0
        %1543 = vmatpush1.bf16.msra.mxu0 0
        %1544 = vmatprep.subr.bf16.mxu0 0
        %1545 = vmatpush1.bf16.msra.mxu0 0
        %1546 = vmatprep.subr.bf16.mxu0 0
        %1547 = vmatpush1.bf16.msra.mxu0 0
        %1548 = vmatprep.mubr.bf16.mxu0 0
        %1549 = vmatmul.mubr.bf16.gmra.mrb[0].mxu0 %v1514
        %v1550 = vpop.f32.mrb[0].mxu0
        %v1551 = vadd.f32 0.0, %v1550
        %v1552 = vpop.f32.mrb[0].mxu0
        %v1553 = vpop.f32.mrb[0].mxu0
        %v1554 = vadd.f32 0.0, %v1553
        %v1555 = vpop.f32.mrb[0].mxu0
        %1556 = vdwg.mxu0
        %v1557 = vpack.c.bf16 %v1554, %v1551
        %1559 = vrot.lane.b32.xlu0 %v1557, 64
        %v1560 = vpop.permute.xlu0 %1559
        %vm1562 = vcmask 785920
        %1563 = vst.msk [vmem:[#allocation4] sm:$0xff] %vm1562, %v1560
        %1564 = vrot.lane.b32.xlu0 %v1174, 32
        %v1565 = vpop.permute.xlu0 %1564
        %1566 = vrot.lane.b32.xlu0 %v1172, 32
        %v1567 = vpop.permute.xlu0 %1566
        %v1569 = vsel %vm1175, %v1565, 0
        %v1572 = vsel %vm1175, %v1567, 0
        %1574 = vmatprep.subr.bf16.mxu0 0
        %1575 = vmatpush1.bf16.xpose.msra.mxu0 %v1572
        %1576 = vmatprep.subr.bf16.mxu0 0
        %1577 = vmatpush1.bf16.xpose.msra.mxu0 0
        %1578 = vmatprep.subr.bf16.mxu0 0
        %1579 = vmatpush1.bf16.xpose.msra.mxu0 0
        %1580 = vmatprep.subr.bf16.mxu0 0
        %1581 = vmatpush1.bf16.xpose.msra.mxu0 0
        %1582 = vmatprep.subr.bf16.mxu0 0
        %1583 = vmatpush1.bf16.xpose.msra.mxu0 0
        %1584 = vmatprep.subr.bf16.mxu0 0
        %1585 = vmatpush1.bf16.xpose.msra.mxu0 0
        %1586 = vmatprep.subr.bf16.mxu0 0
        %1587 = vmatpush1.bf16.xpose.msra.mxu0 0
        %1588 = vmatprep.subr.bf16.mxu0 0
        %1589 = vmatpush1.bf16.xpose.msra.mxu0 0
        %1590 = vmatprep.subr.bf16.mxu0 0
        %1591 = vmatpush1.bf16.xpose.msra.mxu0 0
        %1592 = vmatprep.subr.bf16.mxu0 0
        %1593 = vmatpush1.bf16.xpose.msra.mxu0 0
        %1594 = vmatprep.subr.bf16.mxu0 0
        %1595 = vmatpush1.bf16.xpose.msra.mxu0 0
        %1596 = vmatprep.subr.bf16.mxu0 0
        %1597 = vmatpush1.bf16.xpose.msra.mxu0 0
        %1598 = vmatprep.subr.bf16.mxu0 0
        %1599 = vmatpush1.bf16.xpose.msra.mxu0 0
        %1600 = vmatprep.subr.bf16.mxu0 0
        %1601 = vmatpush1.bf16.xpose.msra.mxu0 0
        %1602 = vmatprep.subr.bf16.mxu0 0
        %1603 = vmatpush1.bf16.xpose.msra.mxu0 0
        %1604 = vmatprep.subr.bf16.mxu0 0
        %1605 = vmatpush1.bf16.xpose.msra.mxu0 0
        %1606 = vmatprep.mubr.bf16.mxu0 0
        %1607 = vmatmul.mubr.bf16.gmra.mrb[0].mxu0 %v1569
        %v1608 = vpop.f32.mrb[0].mxu0
        %v1609 = vadd.f32 0.0, %v1608
        %v1610 = vpop.f32.mrb[0].mxu0
        %v1611 = vpop.f32.mrb[0].mxu0
        %v1612 = vadd.f32 0.0, %v1611
        %v1613 = vpop.f32.mrb[0].mxu0
        %1614 = vdwg.mxu0
        %v1615 = vsel %vm1227, %v1609, -1e+09
        %v1616 = vsel %vm1228, %v1612, -1e+09
        %v1617 = vsel %vm1231, %v1615, -inf
        %1618 = vmax.xlane.f32.xlu0 %v1617
        %v1619 = vpop.xlane.xlu0 %1618
        %v1620 = vsel %vm1231, %v1616, -inf
        %1621 = vmax.xlane.f32.xlu0 %v1620
        %v1622 = vpop.xlane.xlu0 %1621
        %v1623 = vsub.f32 %v1615, %v1619
        %v1624 = vsub.f32 %v1616, %v1622
        %v1625 = vmul.f32 %v1623, 1.442695
        %v1626 = vpow.pop %v1625
        %v1627 = vmul.f32 %v1624, 1.442695
        %v1628 = vpow.pop %v1627
        %v1629 = vsel %vm1231, %v1626, 0.0
        %1630 = vadd.xlane.f32.xlu0 %v1629
        %v1631 = vpop.xlane.xlu0 %1630
        %v1632 = vsel %vm1231, %v1628, 0.0
        %1633 = vadd.xlane.f32.xlu0 %v1632
        %v1634 = vpop.xlane.xlu0 %1633
        %v1635 = vrcp.pop %v1631
        %v1636 = vrcp.pop %v1634
        %v1637 = vmul.f32 %v1626, %v1635
        %v1638 = vmul.f32 %v1628, %v1636
        %v1639 = vpack.c.bf16 %v1638, %v1637
        %1640 = vrot.lane.b32.xlu0 %v1173, 32
        %v1641 = vpop.permute.xlu0 %1640
        %v1644 = vsel %vm1231, %v1639, 0
        %1646 = vmatprep.subr.bf16.mxu0 0
        %1647 = vmatpush1.bf16.msra.mxu0 %v1641
        %1648 = vmatprep.subr.bf16.mxu0 0
        %1649 = vmatpush1.bf16.msra.mxu0 0
        %1650 = vmatprep.subr.bf16.mxu0 0
        %1651 = vmatpush1.bf16.msra.mxu0 0
        %1652 = vmatprep.subr.bf16.mxu0 0
        %1653 = vmatpush1.bf16.msra.mxu0 0
        %1654 = vmatprep.subr.bf16.mxu0 0
        %1655 = vmatpush1.bf16.msra.mxu0 0
        %1656 = vmatprep.subr.bf16.mxu0 0
        %1657 = vmatpush1.bf16.msra.mxu0 0
        %1658 = vmatprep.subr.bf16.mxu0 0
        %1659 = vmatpush1.bf16.msra.mxu0 0
        %1660 = vmatprep.subr.bf16.mxu0 0
        %1661 = vmatpush1.bf16.msra.mxu0 0
        %1662 = vmatprep.subr.bf16.mxu0 0
        %1663 = vmatpush1.bf16.msra.mxu0 0
        %1664 = vmatprep.subr.bf16.mxu0 0
        %1665 = vmatpush1.bf16.msra.mxu0 0
        %1666 = vmatprep.subr.bf16.mxu0 0
        %1667 = vmatpush1.bf16.msra.mxu0 0
        %1668 = vmatprep.subr.bf16.mxu0 0
        %1669 = vmatpush1.bf16.msra.mxu0 0
        %1670 = vmatprep.subr.bf16.mxu0 0
        %1671 = vmatpush1.bf16.msra.mxu0 0
        %1672 = vmatprep.subr.bf16.mxu0 0
        %1673 = vmatpush1.bf16.msra.mxu0 0
        %1674 = vmatprep.subr.bf16.mxu0 0
        %1675 = vmatpush1.bf16.msra.mxu0 0
        %1676 = vmatprep.subr.bf16.mxu0 0
        %1677 = vmatpush1.bf16.msra.mxu0 0
        %1678 = vmatprep.mubr.bf16.mxu0 0
        %1679 = vmatmul.mubr.bf16.gmra.mrb[0].mxu0 %v1644
        %v1680 = vpop.f32.mrb[0].mxu0
        %v1681 = vadd.f32 0.0, %v1680
        %v1682 = vpop.f32.mrb[0].mxu0
        %v1683 = vpop.f32.mrb[0].mxu0
        %v1684 = vadd.f32 0.0, %v1683
        %v1685 = vpop.f32.mrb[0].mxu0
        %1686 = vdwg.mxu0
        %v1687 = vpack.c.bf16 %v1684, %v1681
        %1689 = vrot.lane.b32.xlu0 %v1687, 96
        %v1690 = vpop.permute.xlu0 %1689
        %vm1692 = vcmask 1048320
        %1693 = vst.msk [vmem:[#allocation4] sm:$0xff] %vm1692, %v1690
        %v1694 = vld [vmem:[#allocation4] sm:$0xff]
        %v1695 = vld [vmem:[#allocation16] sm:$0xf]
        %v1696 = vld [vmem:[#allocation16 + $0x4] sm:$0xf]
        %v1697 = vld [vmem:[#allocation16 + $0x8] sm:$0xf]
        %v1698 = vld [vmem:[#allocation16 + $0xc] sm:$0xf]
        %v1699 = vld [vmem:[#allocation16 + $0x10] sm:$0xf]
        %v1700 = vld [vmem:[#allocation16 + $0x14] sm:$0xf]
        %v1701 = vld [vmem:[#allocation16 + $0x18] sm:$0xf]
        %v1702 = vld [vmem:[#allocation16 + $0x1c] sm:$0xf]
        %v1703 = vld [vmem:[#allocation16 + $0x20] sm:$0xf]
        %v1704 = vld [vmem:[#allocation16 + $0x24] sm:$0xf]
        %v1705 = vld [vmem:[#allocation16 + $0x28] sm:$0xf]
        %v1706 = vld [vmem:[#allocation16 + $0x2c] sm:$0xf]
        %v1707 = vld [vmem:[#allocation16 + $0x30] sm:$0xf]
        %v1708 = vld [vmem:[#allocation16 + $0x34] sm:$0xf]
        %v1709 = vld [vmem:[#allocation16 + $0x38] sm:$0xf]
        %v1710 = vld [vmem:[#allocation16 + $0x3c] sm:$0xf]
        %v1711 = vld [vmem:[%s10] sm:$0x1]
        %v1713 = vlaneseq
        %v1714 = vshrl.u32 %v1713, 7
        %v1715 = vsub.s32 0, %v1714
        %v1716 = vrot.slane %v1711, %v1715
        %v1734 = vunpack.c.l.b16 %v1695
        %v1735 = vunpack.c.l.b16 %v1696
        %v1736 = vunpack.c.l.b16 %v1697
        %v1737 = vunpack.c.l.b16 %v1698
        %v1738 = vunpack.c.l.b16 %v1699
        %v1739 = vunpack.c.l.b16 %v1700
        %v1740 = vunpack.c.l.b16 %v1701
        %v1741 = vunpack.c.l.b16 %v1702
        %v1742 = vunpack.c.l.b16 %v1703
        %v1743 = vunpack.c.l.b16 %v1704
        %v1744 = vunpack.c.l.b16 %v1705
        %v1745 = vunpack.c.l.b16 %v1706
        %v1746 = vunpack.c.l.b16 %v1707
        %v1747 = vunpack.c.l.b16 %v1708
        %v1748 = vunpack.c.l.b16 %v1709
        %v1749 = vunpack.c.l.b16 %v1710
        %v1750 = vpack.c.b16 %v1735, %v1734
        %v1751 = vpack.c.b16 %v1737, %v1736
        %v1752 = vpack.c.b16 %v1739, %v1738
        %v1753 = vpack.c.b16 %v1741, %v1740
        %v1754 = vpack.c.b16 %v1743, %v1742
        %v1755 = vpack.c.b16 %v1745, %v1744
        %v1756 = vpack.c.b16 %v1747, %v1746
        %v1757 = vpack.c.b16 %v1749, %v1748
        %1766 = vmatprep.subr.bf16.mxu0 0
        %1767 = vmatpush1.bf16.msra.mxu0 %v1750
        %1768 = vmatprep.subr.bf16.mxu0 0
        %1769 = vmatpush1.bf16.msra.mxu0 %v1751
        %1770 = vmatprep.subr.bf16.mxu0 0
        %1771 = vmatpush1.bf16.msra.mxu0 %v1752
        %1772 = vmatprep.subr.bf16.mxu0 0
        %1773 = vmatpush1.bf16.msra.mxu0 %v1753
        %1774 = vmatprep.subr.bf16.mxu0 0
        %1775 = vmatpush1.bf16.msra.mxu0 %v1754
        %1776 = vmatprep.subr.bf16.mxu0 0
        %1777 = vmatpush1.bf16.msra.mxu0 %v1755
        %1778 = vmatprep.subr.bf16.mxu0 0
        %1779 = vmatpush1.bf16.msra.mxu0 %v1756
        %1780 = vmatprep.subr.bf16.mxu0 0
        %1781 = vmatpush1.bf16.msra.mxu0 %v1757
        %1782 = vmatprep.subr.bf16.mxu0 0
        %1783 = vmatpush1.bf16.msra.mxu0 0
        %1784 = vmatprep.subr.bf16.mxu0 0
        %1785 = vmatpush1.bf16.msra.mxu0 0
        %1786 = vmatprep.subr.bf16.mxu0 0
        %1787 = vmatpush1.bf16.msra.mxu0 0
        %1788 = vmatprep.subr.bf16.mxu0 0
        %1789 = vmatpush1.bf16.msra.mxu0 0
        %1790 = vmatprep.subr.bf16.mxu0 0
        %1791 = vmatpush1.bf16.msra.mxu0 0
        %1792 = vmatprep.subr.bf16.mxu0 0
        %1793 = vmatpush1.bf16.msra.mxu0 0
        %1794 = vmatprep.subr.bf16.mxu0 0
        %1795 = vmatpush1.bf16.msra.mxu0 0
        %1796 = vmatprep.subr.bf16.mxu0 0
        %1797 = vmatpush1.bf16.msra.mxu0 0
        %1798 = vmatprep.mubr.bf16.mxu0 0
        %1799 = vmatmul.mubr.bf16.gmra.mrb[0].mxu0 %v1694
        %v1800 = vpop.f32.mrb[0].mxu0
        %v1801 = vadd.f32 %v1716, %v1800
        %v1802 = vpop.f32.mrb[0].mxu0
        %v1803 = vpop.f32.mrb[0].mxu0
        %v1804 = vadd.f32 %v1716, %v1803
        %v1805 = vpop.f32.mrb[0].mxu0
        %1806 = vdwg.mxu0
        %v1807 = vadd.f32 %v1801, %v813
        %v1808 = vadd.f32 %v1804, %v814
        %v1809 = vld [vmem:[%s11] sm:$0x1]
        %v1810 = vld [vmem:[%s12] sm:$0x1]
        %1811 = vadd.xlane.f32.xlu0 %v1807
        %v1812 = vpop.xlane.xlu0 %1811
        %1813 = vadd.xlane.f32.xlu0 %v1808
        %v1814 = vpop.xlane.xlu0 %1813
        %v1815 = vrcp.pop 128.0
        %v1816 = vmul.f32 %v1812, %v1815
        %v1817 = vmul.f32 %v1814, %v1815
        %v1818 = vsub.f32 %v1807, %v1816
        %v1819 = vsub.f32 %v1808, %v1817
        %v1820 = vmul.f32 %v1818, %v1818
        %v1821 = vmul.f32 %v1819, %v1819
        %1822 = vadd.xlane.f32.xlu0 %v1820
        %v1823 = vpop.xlane.xlu0 %1822
        %1824 = vadd.xlane.f32.xlu0 %v1821
        %v1825 = vpop.xlane.xlu0 %1824
        %v1826 = vmul.f32 %v1823, %v1815
        %v1827 = vmul.f32 %v1825, %v1815
        %v1828 = vadd.f32 %v1826, 1e-05
        %v1829 = vadd.f32 %v1827, 1e-05
        %v1830 = vrsqrt.pop %v1828
        %v1831 = vrsqrt.pop %v1829
        %v1832 = vmul.f32 %v1818, %v1830
        %v1833 = vmul.f32 %v1819, %v1831
        %v1835 = vlaneseq
        %v1836 = vshrl.u32 %v1835, 7
        %v1837 = vsub.s32 0, %v1836
        %v1838 = vrot.slane %v1809, %v1837
        %v1840 = vmul.f32 %v1832, %v1838
        %v1841 = vmul.f32 %v1833, %v1838
        %v1843 = vlaneseq
        %v1844 = vshrl.u32 %v1843, 7
        %v1845 = vsub.s32 0, %v1844
        %v1846 = vrot.slane %v1810, %v1845
        %v1848 = vadd.f32 %v1840, %v1846
        %v1849 = vadd.f32 %v1841, %v1846
        %v1850 = vpack.c.bf16 %v1849, %v1848
        %v1851 = vld [vmem:[#allocation17] sm:$0xff]
        %v1852 = vld [vmem:[#allocation17 + $0x8] sm:$0xff]
        %v1853 = vld [vmem:[#allocation17 + $0x10] sm:$0xff]
        %v1854 = vld [vmem:[#allocation17 + $0x18] sm:$0xff]
        %v1855 = vld [vmem:[#allocation17 + $0x20] sm:$0xff]
        %v1856 = vld [vmem:[#allocation17 + $0x28] sm:$0xff]
        %v1857 = vld [vmem:[#allocation17 + $0x30] sm:$0xff]
        %v1858 = vld [vmem:[#allocation17 + $0x38] sm:$0xff]
        %v1859 = vld [vmem:[#allocation17 + $0x40] sm:$0xff]
        %v1860 = vld [vmem:[#allocation17 + $0x48] sm:$0xff]
        %v1861 = vld [vmem:[#allocation17 + $0x50] sm:$0xff]
        %v1862 = vld [vmem:[#allocation17 + $0x58] sm:$0xff]
        %v1863 = vld [vmem:[#allocation17 + $0x60] sm:$0xff]
        %v1864 = vld [vmem:[#allocation17 + $0x68] sm:$0xff]
        %v1865 = vld [vmem:[#allocation17 + $0x70] sm:$0xff]
        %v1866 = vld [vmem:[#allocation17 + $0x78] sm:$0xff]
        %v1867 = vld [vmem:[%s14] sm:$0x3]
        %v1869 = vlaneseq
        %v1870 = vshrl.u32 %v1869, 7
        %v1871 = vsub.s32 0, %v1870
        %v1872 = vrot.slane %v1867, %v1871
        %v1873 = vlaneseq
        %v1874 = vshrl.u32 %v1873, 7
        %v1875 = vsub.s32 1, %v1874
        %v1876 = vrot.slane %v1867, %v1875
        %v1895 = vunpack.c.l.b16 %v1851
        %v1896 = vunpack.c.h.b16 %v1851
        %v1897 = vunpack.c.l.b16 %v1852
        %v1898 = vunpack.c.h.b16 %v1852
        %v1899 = vunpack.c.l.b16 %v1853
        %v1900 = vunpack.c.h.b16 %v1853
        %v1901 = vunpack.c.l.b16 %v1854
        %v1902 = vunpack.c.h.b16 %v1854
        %v1903 = vunpack.c.l.b16 %v1855
        %v1904 = vunpack.c.h.b16 %v1855
        %v1905 = vunpack.c.l.b16 %v1856
        %v1906 = vunpack.c.h.b16 %v1856
        %v1907 = vunpack.c.l.b16 %v1857
        %v1908 = vunpack.c.h.b16 %v1857
        %v1909 = vunpack.c.l.b16 %v1858
        %v1910 = vunpack.c.h.b16 %v1858
        %v1911 = vunpack.c.l.b16 %v1859
        %v1912 = vunpack.c.h.b16 %v1859
        %v1913 = vunpack.c.l.b16 %v1860
        %v1914 = vunpack.c.h.b16 %v1860
        %v1915 = vunpack.c.l.b16 %v1861
        %v1916 = vunpack.c.h.b16 %v1861
        %v1917 = vunpack.c.l.b16 %v1862
        %v1918 = vunpack.c.h.b16 %v1862
        %v1919 = vunpack.c.l.b16 %v1863
        %v1920 = vunpack.c.h.b16 %v1863
        %v1921 = vunpack.c.l.b16 %v1864
        %v1922 = vunpack.c.h.b16 %v1864
        %v1923 = vunpack.c.l.b16 %v1865
        %v1924 = vunpack.c.h.b16 %v1865
        %v1925 = vunpack.c.l.b16 %v1866
        %v1926 = vunpack.c.h.b16 %v1866
        %v1927 = vpack.c.b16 %v1897, %v1895
        %v1928 = vpack.c.b16 %v1898, %v1896
        %v1929 = vpack.c.b16 %v1901, %v1899
        %v1930 = vpack.c.b16 %v1902, %v1900
        %v1931 = vpack.c.b16 %v1905, %v1903
        %v1932 = vpack.c.b16 %v1906, %v1904
        %v1933 = vpack.c.b16 %v1909, %v1907
        %v1934 = vpack.c.b16 %v1910, %v1908
        %v1935 = vpack.c.b16 %v1913, %v1911
        %v1936 = vpack.c.b16 %v1914, %v1912
        %v1937 = vpack.c.b16 %v1917, %v1915
        %v1938 = vpack.c.b16 %v1918, %v1916
        %v1939 = vpack.c.b16 %v1921, %v1919
        %v1940 = vpack.c.b16 %v1922, %v1920
        %v1941 = vpack.c.b16 %v1925, %v1923
        %v1942 = vpack.c.b16 %v1926, %v1924
        %1959 = vmatprep.subr.bf16.mxu0 %v1928
        %1960 = vmatpush1.bf16.msra.mxu0 %v1927
        %1961 = vmatprep.subr.bf16.mxu0 %v1930
        %1962 = vmatpush1.bf16.msra.mxu0 %v1929
        %1963 = vmatprep.subr.bf16.mxu0 %v1932
        %1964 = vmatpush1.bf16.msra.mxu0 %v1931
        %1965 = vmatprep.subr.bf16.mxu0 %v1934
        %1966 = vmatpush1.bf16.msra.mxu0 %v1933
        %1967 = vmatprep.subr.bf16.mxu0 %v1936
        %1968 = vmatpush1.bf16.msra.mxu0 %v1935
        %1969 = vmatprep.subr.bf16.mxu0 %v1938
        %1970 = vmatpush1.bf16.msra.mxu0 %v1937
        %1971 = vmatprep.subr.bf16.mxu0 %v1940
        %1972 = vmatpush1.bf16.msra.mxu0 %v1939
        %1973 = vmatprep.subr.bf16.mxu0 %v1942
        %1974 = vmatpush1.bf16.msra.mxu0 %v1941
        %1975 = vmatprep.subr.bf16.mxu0 0
        %1976 = vmatpush1.bf16.msra.mxu0 0
        %1977 = vmatprep.subr.bf16.mxu0 0
        %1978 = vmatpush1.bf16.msra.mxu0 0
        %1979 = vmatprep.subr.bf16.mxu0 0
        %1980 = vmatpush1.bf16.msra.mxu0 0
        %1981 = vmatprep.subr.bf16.mxu0 0
        %1982 = vmatpush1.bf16.msra.mxu0 0
        %1983 = vmatprep.subr.bf16.mxu0 0
        %1984 = vmatpush1.bf16.msra.mxu0 0
        %1985 = vmatprep.subr.bf16.mxu0 0
        %1986 = vmatpush1.bf16.msra.mxu0 0
        %1987 = vmatprep.subr.bf16.mxu0 0
        %1988 = vmatpush1.bf16.msra.mxu0 0
        %1989 = vmatprep.subr.bf16.mxu0 0
        %1990 = vmatpush1.bf16.msra.mxu0 0
        %1991 = vmatprep.mubr.bf16.mxu0 0
        %1992 = vmatmul.mubr.bf16.gmra.mrb[0].mxu0 %v1850
        %v1993 = vpop.f32.mrb[0].mxu0
        %v1994 = vadd.f32 %v1872, %v1993
        %v1995 = vpop.f32.mrb[0].mxu0
        %v1996 = vadd.f32 %v1876, %v1995
        %v1997 = vpop.f32.mrb[0].mxu0
        %v1998 = vadd.f32 %v1872, %v1997
        %v1999 = vpop.f32.mrb[0].mxu0
        %v2000 = vadd.f32 %v1876, %v1999
        %2001 = vdwg.mxu0
        %v2002 = vmax.f32 %v1994, 0.0
        %v2003 = vmax.f32 %v1996, 0.0
        %v2004 = vmax.f32 %v1998, 0.0
        %v2005 = vmax.f32 %v2000, 0.0
        %v2006 = vpack.c.bf16 %v2004, %v2002
        %v2007 = vpack.c.bf16 %v2005, %v2003
        %v2008 = vld [vmem:[#allocation19] sm:$0xf]
        %v2009 = vld [vmem:[#allocation19 + $0x4] sm:$0xf]
        %v2010 = vld [vmem:[#allocation19 + $0x8] sm:$0xf]
        %v2011 = vld [vmem:[#allocation19 + $0xc] sm:$0xf]
        %v2012 = vld [vmem:[#allocation19 + $0x10] sm:$0xf]
        %v2013 = vld [vmem:[#allocation19 + $0x14] sm:$0xf]
        %v2014 = vld [vmem:[#allocation19 + $0x18] sm:$0xf]
        %v2015 = vld [vmem:[#allocation19 + $0x1c] sm:$0xf]
        %v2016 = vld [vmem:[#allocation19 + $0x20] sm:$0xf]
        %v2017 = vld [vmem:[#allocation19 + $0x24] sm:$0xf]
        %v2018 = vld [vmem:[#allocation19 + $0x28] sm:$0xf]
        %v2019 = vld [vmem:[#allocation19 + $0x2c] sm:$0xf]
        %v2020 = vld [vmem:[#allocation19 + $0x30] sm:$0xf]
        %v2021 = vld [vmem:[#allocation19 + $0x34] sm:$0xf]
        %v2022 = vld [vmem:[#allocation19 + $0x38] sm:$0xf]
        %v2023 = vld [vmem:[#allocation19 + $0x3c] sm:$0xf]
        %v2024 = vld [vmem:[#allocation19 + $0x40] sm:$0xf]
        %v2025 = vld [vmem:[#allocation19 + $0x44] sm:$0xf]
        %v2026 = vld [vmem:[#allocation19 + $0x48] sm:$0xf]
        %v2027 = vld [vmem:[#allocation19 + $0x4c] sm:$0xf]
        %v2028 = vld [vmem:[#allocation19 + $0x50] sm:$0xf]
        %v2029 = vld [vmem:[#allocation19 + $0x54] sm:$0xf]
        %v2030 = vld [vmem:[#allocation19 + $0x58] sm:$0xf]
        %v2031 = vld [vmem:[#allocation19 + $0x5c] sm:$0xf]
        %v2032 = vld [vmem:[#allocation19 + $0x60] sm:$0xf]
        %v2033 = vld [vmem:[#allocation19 + $0x64] sm:$0xf]
        %v2034 = vld [vmem:[#allocation19 + $0x68] sm:$0xf]
        %v2035 = vld [vmem:[#allocation19 + $0x6c] sm:$0xf]
        %v2036 = vld [vmem:[#allocation19 + $0x70] sm:$0xf]
        %v2037 = vld [vmem:[#allocation19 + $0x74] sm:$0xf]
        %v2038 = vld [vmem:[#allocation19 + $0x78] sm:$0xf]
        %v2039 = vld [vmem:[#allocation19 + $0x7c] sm:$0xf]
        %v2040 = vld [vmem:[%s16] sm:$0x1]
        %v2042 = vlaneseq
        %v2043 = vshrl.u32 %v2042, 7
        %v2044 = vsub.s32 0, %v2043
        %v2045 = vrot.slane %v2040, %v2044
        %v2079 = vunpack.c.l.b16 %v2008
        %v2080 = vunpack.c.l.b16 %v2009
        %v2081 = vunpack.c.l.b16 %v2010
        %v2082 = vunpack.c.l.b16 %v2011
        %v2083 = vunpack.c.l.b16 %v2012
        %v2084 = vunpack.c.l.b16 %v2013
        %v2085 = vunpack.c.l.b16 %v2014
        %v2086 = vunpack.c.l.b16 %v2015
        %v2087 = vunpack.c.l.b16 %v2016
        %v2088 = vunpack.c.l.b16 %v2017
        %v2089 = vunpack.c.l.b16 %v2018
        %v2090 = vunpack.c.l.b16 %v2019
        %v2091 = vunpack.c.l.b16 %v2020
        %v2092 = vunpack.c.l.b16 %v2021
        %v2093 = vunpack.c.l.b16 %v2022
        %v2094 = vunpack.c.l.b16 %v2023
        %v2095 = vunpack.c.l.b16 %v2024
        %v2096 = vunpack.c.l.b16 %v2025
        %v2097 = vunpack.c.l.b16 %v2026
        %v2098 = vunpack.c.l.b16 %v2027
        %v2099 = vunpack.c.l.b16 %v2028
        %v2100 = vunpack.c.l.b16 %v2029
        %v2101 = vunpack.c.l.b16 %v2030
        %v2102 = vunpack.c.l.b16 %v2031
        %v2103 = vunpack.c.l.b16 %v2032
        %v2104 = vunpack.c.l.b16 %v2033
        %v2105 = vunpack.c.l.b16 %v2034
        %v2106 = vunpack.c.l.b16 %v2035
        %v2107 = vunpack.c.l.b16 %v2036
        %v2108 = vunpack.c.l.b16 %v2037
        %v2109 = vunpack.c.l.b16 %v2038
        %v2110 = vunpack.c.l.b16 %v2039
        %v2111 = vpack.c.b16 %v2080, %v2079
        %v2112 = vpack.c.b16 %v2082, %v2081
        %v2113 = vpack.c.b16 %v2084, %v2083
        %v2114 = vpack.c.b16 %v2086, %v2085
        %v2115 = vpack.c.b16 %v2088, %v2087
        %v2116 = vpack.c.b16 %v2090, %v2089
        %v2117 = vpack.c.b16 %v2092, %v2091
        %v2118 = vpack.c.b16 %v2094, %v2093
        %v2119 = vpack.c.b16 %v2096, %v2095
        %v2120 = vpack.c.b16 %v2098, %v2097
        %v2121 = vpack.c.b16 %v2100, %v2099
        %v2122 = vpack.c.b16 %v2102, %v2101
        %v2123 = vpack.c.b16 %v2104, %v2103
        %v2124 = vpack.c.b16 %v2106, %v2105
        %v2125 = vpack.c.b16 %v2108, %v2107
        %v2126 = vpack.c.b16 %v2110, %v2109
        %2143 = vmatprep.subr.bf16.mxu0 0
        %2144 = vmatpush1.bf16.msra.mxu0 %v2111
        %2145 = vmatprep.subr.bf16.mxu0 0
        %2146 = vmatpush1.bf16.msra.mxu0 %v2112
        %2147 = vmatprep.subr.bf16.mxu0 0
        %2148 = vmatpush1.bf16.msra.mxu0 %v2113
        %2149 = vmatprep.subr.bf16.mxu0 0
        %2150 = vmatpush1.bf16.msra.mxu0 %v2114
        %2151 = vmatprep.subr.bf16.mxu0 0
        %2152 = vmatpush1.bf16.msra.mxu0 %v2115
        %2153 = vmatprep.subr.bf16.mxu0 0
        %2154 = vmatpush1.bf16.msra.mxu0 %v2116
        %2155 = vmatprep.subr.bf16.mxu0 0
        %2156 = vmatpush1.bf16.msra.mxu0 %v2117
        %2157 = vmatprep.subr.bf16.mxu0 0
        %2158 = vmatpush1.bf16.msra.mxu0 %v2118
        %2159 = vmatprep.subr.bf16.mxu0 0
        %2160 = vmatpush1.bf16.msra.mxu0 %v2119
        %2161 = vmatprep.subr.bf16.mxu0 0
        %2162 = vmatpush1.bf16.msra.mxu0 %v2120
        %2163 = vmatprep.subr.bf16.mxu0 0
        %2164 = vmatpush1.bf16.msra.mxu0 %v2121
        %2165 = vmatprep.subr.bf16.mxu0 0
        %2166 = vmatpush1.bf16.msra.mxu0 %v2122
        %2167 = vmatprep.subr.bf16.mxu0 0
        %2168 = vmatpush1.bf16.msra.mxu0 %v2123
        %2169 = vmatprep.subr.bf16.mxu0 0
        %2170 = vmatpush1.bf16.msra.mxu0 %v2124
        %2171 = vmatprep.subr.bf16.mxu0 0
        %2172 = vmatpush1.bf16.msra.mxu0 %v2125
        %2173 = vmatprep.subr.bf16.mxu0 0
        %2174 = vmatpush1.bf16.msra.mxu0 %v2126
        %2175 = vmatprep.mubr.bf16.mxu0 %v2007
        %2176 = vmatmul.mubr.bf16.gmra.mrb[0].mxu0 %v2006
        %v2177 = vpop.f32.mrb[0].mxu0
        %v2178 = vadd.f32 %v2045, %v2177
        %v2179 = vpop.f32.mrb[0].mxu0
        %v2180 = vpop.f32.mrb[0].mxu0
        %v2181 = vadd.f32 %v2045, %v2180
        %v2182 = vpop.f32.mrb[0].mxu0
        %2183 = vdwg.mxu0
        %v2184 = vadd.f32 %v2178, %v1848
        %v2185 = vadd.f32 %v2181, %v1849
        %v2186 = vld [vmem:[%s17] sm:$0x1]
        %v2187 = vld [vmem:[%s18] sm:$0x1]
        %2188 = vadd.xlane.f32.xlu0 %v2184
        %v2189 = vpop.xlane.xlu0 %2188
        %2190 = vadd.xlane.f32.xlu0 %v2185
        %v2191 = vpop.xlane.xlu0 %2190
        %v2192 = vmul.f32 %v2189, %v1815
        %v2193 = vmul.f32 %v2191, %v1815
        %v2194 = vsub.f32 %v2184, %v2192
        %v2195 = vsub.f32 %v2185, %v2193
        %v2196 = vmul.f32 %v2194, %v2194
        %v2197 = vmul.f32 %v2195, %v2195
        %2198 = vadd.xlane.f32.xlu0 %v2196
        %v2199 = vpop.xlane.xlu0 %2198
        %2200 = vadd.xlane.f32.xlu0 %v2197
        %v2201 = vpop.xlane.xlu0 %2200
        %v2202 = vmul.f32 %v2199, %v1815
        %v2203 = vmul.f32 %v2201, %v1815
        %v2204 = vadd.f32 %v2202, 1e-05
        %v2205 = vadd.f32 %v2203, 1e-05
        %v2206 = vrsqrt.pop %v2204
        %v2207 = vrsqrt.pop %v2205
        %v2208 = vmul.f32 %v2194, %v2206
        %v2209 = vmul.f32 %v2195, %v2207
        %v2211 = vlaneseq
        %v2212 = vshrl.u32 %v2211, 7
        %v2213 = vsub.s32 0, %v2212
        %v2214 = vrot.slane %v2186, %v2213
        %v2216 = vmul.f32 %v2208, %v2214
        %v2217 = vmul.f32 %v2209, %v2214
        %v2219 = vlaneseq
        %v2220 = vshrl.u32 %v2219, 7
        %v2221 = vsub.s32 0, %v2220
        %v2222 = vrot.slane %v2187, %v2221
        %v2224 = vadd.f32 %v2216, %v2222
        %v2225 = vadd.f32 %v2217, %v2222
        %2226 = vst [vmem:[%s806] sm:$0xff] %v2224
        %2227 = vst [vmem:[%s806 + $0x8] sm:$0xff] %v2225
        %s2228 = sand.u32 %s482, 1
        %s2229 = scalar_lea.sflag [#allocation7], %s2228
        %s2230 = sand.u32 %s482, 1
        %s2231 = smul.addr %s2230, 16
        %s2232 = scalar_lea.vmem [#allocation20], %s2231
        // Predicated region
        $region137: #{tpu_custom_call.1} parent=95 // pred_check
          %p2233 = pneg %p492
        $region138: #{tpu_custom_call.1} parent=95 // pred_check_branch
          %2235 = sbr.rel (%p2233) target = $region140
        $region139: #{tpu_custom_call.1} parent=95 // pred_region
          %s2236 = smul.u32 2, %s47
          %s2238 = ssub.s32 256, 256
          %2239 = vsyncadd %s2229, %s2238
          %s2240 = smul.addr %s46, 2
          %s2241 = sadd.s32 %s2236, %s2240
          %s2242 = smul.addr %s2241, 128
          %s2243 = scalar_lea.hbm %s19, %s2242
          %s2244 = sshll.u32 %s2232, 4
          %s2245 = int_to_ptr.vmem [resolvable:$true] %s2244
          %2250 = dma.vmem_to_hbm [thread:$0]  %s2245, 256, %s2243, %s2229, 128, 128, 8
        $region140: #{tpu_custom_call.1} parent=95 // pred_fallthru
          _
      $region96: #{tpu_custom_call.1} parent=5 // pred_fallthru
        _
      %p2251 = scmp.le.s32.totalorder 2, %s37
      // Predicated region
      $region141: #{tpu_custom_call.1} parent=5 // pred_check
        %p2252 = pneg %p2251
      $region142: #{tpu_custom_call.1} parent=5 // pred_check_branch
        %2254 = sbr.rel (%p2252) target = $region144
      $region143: #{tpu_custom_call.1} parent=5 // pred_region
        %s2255 = ssub.s32 %s37, 2
        // Predicated region
        $region145: #{tpu_custom_call.1} parent=143 // pred_check
          %p2256 = pneg %p498
        $region146: #{tpu_custom_call.1} parent=143 // pred_check_branch
          %2258 = sbr.rel (%p2256) target = $region148
        $region147: #{tpu_custom_call.1} parent=143 // pred_region
          %s2259 = sand.u32 %s483, 1
          %s2260 = scalar_lea.sflag [#allocation7], %s2259
          %s2261 = sand.u32 %s483, 1
          %s2262 = smul.addr %s2261, 16
          %s2263 = scalar_lea.vmem [#allocation20], %s2262
          %2264 = dma.done %s2260, 256
        $region148: #{tpu_custom_call.1} parent=143 // pred_fallthru
          _
      $region144: #{tpu_custom_call.1} parent=5 // pred_fallthru
        _
    $region6: #{tpu_custom_call.1} parent=1 // loop_footer
      %s41 = sadd.s32 1, %s37
    $region7: #{tpu_custom_call.1} parent=1 // loop_footer_branch
      %36 = sbr.rel target = $region3
    $region8: #{tpu_custom_call.1} parent=1 // loop_exit
      _
    %2265 = vsyncpa [#allocation6], 1
    %s2266 = scalar_lea.sflag [#allocation6], 1
    %2267 = vsyncpa %s2266, 1
    %2268 = vsyncpa [#allocation9], 1
    %s2269 = scalar_lea.sflag [#allocation9], 1
    %2270 = vsyncpa %s2269, 1
    %2271 = vsyncpa [#allocation12], 1
    %2272 = vsyncpa [#allocation15], 1
    %2273 = vsyncpa [#allocation18], 1
    %2274 = vsyncpa [#allocation7], 1
    %s2275 = scalar_lea.sflag [#allocation7], 1
    %2276 = vsyncpa %s2275, 1

</llo_original>
